<compile_context>
chip_gen: v6e
topology: v6e:2x2x1
jax: 0.10.0
libtpu: 0.0.40
codegen_flags: <defaults>
</compile_context>

<pallas_src>
import jax
import jax.numpy as jnp
from jax.experimental import pallas as pl
from jax.experimental.pallas import tpu as pltpu

IMG_SIZE = 16
PATCH_SIZE = 8
IN_CHANS = 3
EMBED_DIM = 32
DEPTH = 2
NUM_HEADS = 4
MLP_RATIO = 4.0
LN_EPS = 1e-6

HEAD_DIM = EMBED_DIM // NUM_HEADS
SCALE = HEAD_DIM ** -0.5          # qk_scale=None -> head_dim ** -0.5
MLP_HIDDEN = int(EMBED_DIM * MLP_RATIO)
NUM_PATCHES = (IMG_SIZE // PATCH_SIZE) ** 2
SEQ_LEN = NUM_PATCHES + 1
NEG_INF = -1e30

_VMEM = pl.BlockSpec(memory_space=pltpu.MemorySpace.VMEM)


# ----------------------------------------------------------------------------
# Fused Pallas kernel: patch-embed + all blocks + final LayerNorm
# ----------------------------------------------------------------------------
def _vit_fused_kernel(
    patches_ref, patch_w_ref, patch_b_ref,
    clspos_ref, scatter_ref, attn_bias_ref,
    ln1_w_ref, ln1_b_ref,
    wq_ref, wk_ref, wv_ref, bq_ref, bk_ref, bv_ref,
    proj_w_ref, proj_b_ref,
    ln2_w_ref, ln2_b_ref,
    fc1_w_ref, fc1_b_ref, fc2_w_ref, fc2_b_ref,
    norm_w_ref, norm_b_ref,
    o_ref,
):
    f32 = jnp.float32

    def layernorm(v, w, b):
        mu = jnp.mean(v, axis=-1, keepdims=True)
        xc = v - mu                                  # reuse (x - mu) for the variance
        var = jnp.mean(xc * xc, axis=-1, keepdims=True)
        return xc * jax.lax.rsqrt(var + LN_EPS) * w + b

    # ---- Patch embedding: strided conv as a single matmul over all batch patches ----
    emb = (
        jnp.dot(patches_ref[...], patch_w_ref[...], preferred_element_type=f32)
        + patch_b_ref[...]
    )  # (B*Np, C)

    # ---- Token assembly: cls+pos rows are precomputed; scatter patch embeddings ----
    # into their batch-folded token rows with one 0/1 matmul (no small strided stores).
    x = clspos_ref[...] + jnp.dot(scatter_ref[...], emb, preferred_element_type=f32)  # (B*N, C)

    attn_bias = attn_bias_ref[...]                   # (B*N, B*N) block-diagonal bias

    for d in range(DEPTH):
        # ---- Multi-head self-attention (batch folded, heads via pre-split weights) ----
        h1 = layernorm(x, ln1_w_ref[d], ln1_b_ref[d])
        proj_acc = proj_b_ref[d]                     # (1, C) broadcast accumulator
        for hh in range(NUM_HEADS):
            q = jnp.dot(h1, wq_ref[d, hh], preferred_element_type=f32) + bq_ref[d, hh]
            k = jnp.dot(h1, wk_ref[d, hh], preferred_element_type=f32) + bk_ref[d, hh]
            v = jnp.dot(h1, wv_ref[d, hh], preferred_element_type=f32) + bv_ref[d, hh]
            s = jnp.dot(q, k.T, preferred_element_type=f32) * SCALE + attn_bias
            s = s - jnp.max(s, axis=-1, keepdims=True)
            p = jnp.exp(s)
            p = p * pl.reciprocal(jnp.sum(p, axis=-1, keepdims=True), approx=True)
            o_h = jnp.dot(p, v, preferred_element_type=f32)             # (B*N, hd)
            proj_acc = proj_acc + jnp.dot(o_h, proj_w_ref[d, hh],
                                          preferred_element_type=f32)   # (B*N, C)
        x = x + proj_acc

        # ---- MLP ----
        h2 = layernorm(x, ln2_w_ref[d], ln2_b_ref[d])
        h2 = jnp.dot(h2, fc1_w_ref[d], preferred_element_type=f32) + fc1_b_ref[d]
        # TODO(synk): PyTorch nn.GELU() is the exact erf-based GELU; tanh approximation
        # used since lax.erf is not guaranteed to lower in Mosaic (small numeric drift).
        h2 = jax.nn.gelu(h2, approximate=True)
        h2 = jnp.dot(h2, fc2_w_ref[d], preferred_element_type=f32) + fc2_b_ref[d]
        x = x + h2

    # ---- Final LayerNorm, single store of all tokens ----
    o_ref[...] = layernorm(x, norm_w_ref[...], norm_b_ref[...])


# ----------------------------------------------------------------------------
# Parameter init (deterministic, synthetic: trunc-normal(std=0.02) like VISSL)
# ----------------------------------------------------------------------------
def _trunc_normal(key, shape, std=0.02):
    return std * jax.random.truncated_normal(key, -2.0, 2.0, shape, jnp.float32)


def init_params(key):
    keys = jax.random.split(key, 4 + 4 * DEPTH)
    k_iter = iter(keys)

    patch_k = IN_CHANS * PATCH_SIZE * PATCH_SIZE
    # Conv2d weight (D, Cin, P, P) flattened to (Cin*P*P, D) so that patches @ w == conv.
    conv_w = _trunc_normal(next(k_iter), (EMBED_DIM, IN_CHANS, PATCH_SIZE, PATCH_SIZE))
    params = {
        "patch_w": conv_w.reshape(EMBED_DIM, patch_k).T,
        "patch_b": jnp.zeros((1, EMBED_DIM), jnp.float32),
        "cls_token": _trunc_normal(next(k_iter), (1, 1, EMBED_DIM)),
        "pos_embed": _trunc_normal(next(k_iter), (1, SEQ_LEN, EMBED_DIM)),
        "norm_w": jnp.ones((1, EMBED_DIM), jnp.float32),
        "norm_b": jnp.zeros((1, EMBED_DIM), jnp.float32),
        "blocks": [],
    }
    for _ in range(DEPTH):
        blk = {
            "ln1_w": jnp.ones((1, EMBED_DIM), jnp.float32),
            "ln1_b": jnp.zeros((1, EMBED_DIM), jnp.float32),
            "qkv_w": _trunc_normal(next(k_iter), (EMBED_DIM, 3 * EMBED_DIM)),
            "qkv_b": jnp.zeros((1, 3 * EMBED_DIM), jnp.float32),
            "proj_w": _trunc_normal(next(k_iter), (EMBED_DIM, EMBED_DIM)),
            "proj_b": jnp.zeros((1, EMBED_DIM), jnp.float32),
            "ln2_w": jnp.ones((1, EMBED_DIM), jnp.float32),
            "ln2_b": jnp.zeros((1, EMBED_DIM), jnp.float32),
            "fc1_w": _trunc_normal(next(k_iter), (EMBED_DIM, MLP_HIDDEN)),
            "fc1_b": jnp.zeros((1, MLP_HIDDEN), jnp.float32),
            "fc2_w": _trunc_normal(next(k_iter), (MLP_HIDDEN, EMBED_DIM)),
            "fc2_b": jnp.zeros((1, EMBED_DIM), jnp.float32),
        }
        params["blocks"].append(blk)
    return params


# ----------------------------------------------------------------------------
# Wrapper: plain-JAX layout prep (free, outside the kernel) + one pallas_call
# ----------------------------------------------------------------------------
def _prepare_kernel_params(params, batch):
    C, H, hd = EMBED_DIM, NUM_HEADS, HEAD_DIM
    blocks = params["blocks"]

    def stack(fn):
        return jnp.stack([fn(b) for b in blocks], axis=0)

    kp = {
        # Per-head-split qkv / proj weights so the kernel never lane-slices activations.
        # torch qkv column order is [q | k | v], each head-major: flat = s*C + h*hd + d.
        "wq": stack(lambda b: b["qkv_w"][:, 0 * C:1 * C].reshape(C, H, hd).transpose(1, 0, 2)),
        "wk": stack(lambda b: b["qkv_w"][:, 1 * C:2 * C].reshape(C, H, hd).transpose(1, 0, 2)),
        "wv": stack(lambda b: b["qkv_w"][:, 2 * C:3 * C].reshape(C, H, hd).transpose(1, 0, 2)),
        "bq": stack(lambda b: b["qkv_b"][0, 0 * C:1 * C].reshape(H, 1, hd)),
        "bk": stack(lambda b: b["qkv_b"][0, 1 * C:2 * C].reshape(H, 1, hd)),
        "bv": stack(lambda b: b["qkv_b"][0, 2 * C:3 * C].reshape(H, 1, hd)),
        "proj_w": stack(lambda b: b["proj_w"].reshape(H, hd, C)),
        "proj_b": stack(lambda b: b["proj_b"]),
        "ln1_w": stack(lambda b: b["ln1_w"]),
        "ln1_b": stack(lambda b: b["ln1_b"]),
        "ln2_w": stack(lambda b: b["ln2_w"]),
        "ln2_b": stack(lambda b: b["ln2_b"]),
        "fc1_w": stack(lambda b: b["fc1_w"]),
        "fc1_b": stack(lambda b: b["fc1_b"]),
        "fc2_w": stack(lambda b: b["fc2_w"]),
        "fc2_b": stack(lambda b: b["fc2_b"]),
    }

    # cls-token + positional embedding rows, replicated per batch element (B*N, C).
    clspos_block = jnp.concatenate(
        [params["cls_token"][0] + params["pos_embed"][0, :1],
         params["pos_embed"][0, 1:]], axis=0)                       # (N, C)
    kp["clspos"] = jnp.tile(clspos_block, (batch, 1))               # (B*N, C)

    # 0/1 scatter matrix placing patch-embedding rows into their token rows.
    bn = batch * SEQ_LEN
    tok_b = jnp.arange(bn) // SEQ_LEN
    tok_n = jnp.arange(bn) % SEQ_LEN
    pat_b = jnp.arange(batch * NUM_PATCHES) // NUM_PATCHES
    pat_i = jnp.arange(batch * NUM_PATCHES) % NUM_PATCHES
    kp["scatter"] = ((tok_b[:, None] == pat_b[None, :]) &
                     (tok_n[:, None] == pat_i[None, :] + 1)).astype(jnp.float32)

    # Block-diagonal additive attention bias: 0 within a sample, -1e30 across samples.
    kp["attn_bias"] = jnp.where(tok_b[:, None] == tok_b[None, :],
                                0.0, NEG_INF).astype(jnp.float32)
    return kp


def vit_forward(x, params):
    b, c_in, h, w = x.shape
    hp, wp = h // PATCH_SIZE, w // PATCH_SIZE

    # PatchEmbed glue: strided conv == matmul over flattened (Cin, P, P) patches.
    patches = x.reshape(b, c_in, hp, PATCH_SIZE, wp, PATCH_SIZE)
    patches = patches.transpose(0, 2, 4, 1, 3, 5)                   # (B, Hp, Wp, Cin, P, P)
    patches = patches.reshape(b * hp * wp, c_in * PATCH_SIZE * PATCH_SIZE)

    kp = _prepare_kernel_params(params, b)
    bn = b * SEQ_LEN

    kernel_inputs = [
        patches, params["patch_w"], params["patch_b"],
        kp["clspos"], kp["scatter"], kp["attn_bias"],
        kp["ln1_w"], kp["ln1_b"],
        kp["wq"], kp["wk"], kp["wv"], kp["bq"], kp["bk"], kp["bv"],
        kp["proj_w"], kp["proj_b"],
        kp["ln2_w"], kp["ln2_b"],
        kp["fc1_w"], kp["fc1_b"], kp["fc2_w"], kp["fc2_b"],
        params["norm_w"], params["norm_b"],
    ]

    out2d = pl.pallas_call(
        _vit_fused_kernel,
        out_shape=jax.ShapeDtypeStruct((bn, EMBED_DIM), jnp.float32),
        in_specs=[_VMEM] * len(kernel_inputs),
        out_specs=_VMEM,
    )(*kernel_inputs)

    # Final class-token extraction (matches forward_features(only_class_token=True)).
    cls_out = out2d.reshape(b, SEQ_LEN, EMBED_DIM)[:, 0]            # (B, D)
    return cls_out[None]                                            # unsqueeze(0) -> (1, B, D)


if __name__ == "__main__":
    key = jax.random.PRNGKey(0)
    k_x, k_p = jax.random.split(key)
    x = jax.random.normal(k_x, (2, IN_CHANS, IMG_SIZE, IMG_SIZE), dtype=jnp.float32)
    params = init_params(k_p)

    out = vit_forward(x, params)
    out = jax.block_until_ready(out)

    assert out.shape == (1, 2, EMBED_DIM), out.shape
    assert bool(jnp.all(jnp.isfinite(out)))
    print("KERNEL_OK")
</pallas_src>

<mosaic_0001>
module attributes {stable_mosaic.version = 11 : i64} {
  func.func @_vit_fused_kernel(%arg0: memref<8x192xf32, #tpu.memory_space<vmem>>, %arg1: memref<192x32xf32, #tpu.memory_space<vmem>>, %arg2: memref<1x32xf32, #tpu.memory_space<vmem>>, %arg3: memref<10x32xf32, #tpu.memory_space<vmem>>, %arg4: memref<10x8xf32, #tpu.memory_space<vmem>>, %arg5: memref<10x10xf32, #tpu.memory_space<vmem>>, %arg6: memref<2x1x32xf32, #tpu.memory_space<vmem>>, %arg7: memref<2x1x32xf32, #tpu.memory_space<vmem>>, %arg8: memref<2x4x32x8xf32, #tpu.memory_space<vmem>>, %arg9: memref<2x4x32x8xf32, #tpu.memory_space<vmem>>, %arg10: memref<2x4x32x8xf32, #tpu.memory_space<vmem>>, %arg11: memref<2x4x1x8xf32, #tpu.memory_space<vmem>>, %arg12: memref<2x4x1x8xf32, #tpu.memory_space<vmem>>, %arg13: memref<2x4x1x8xf32, #tpu.memory_space<vmem>>, %arg14: memref<2x4x8x32xf32, #tpu.memory_space<vmem>>, %arg15: memref<2x1x32xf32, #tpu.memory_space<vmem>>, %arg16: memref<2x1x32xf32, #tpu.memory_space<vmem>>, %arg17: memref<2x1x32xf32, #tpu.memory_space<vmem>>, %arg18: memref<2x32x128xf32, #tpu.memory_space<vmem>>, %arg19: memref<2x1x128xf32, #tpu.memory_space<vmem>>, %arg20: memref<2x128x32xf32, #tpu.memory_space<vmem>>, %arg21: memref<2x1x32xf32, #tpu.memory_space<vmem>>, %arg22: memref<1x32xf32, #tpu.memory_space<vmem>>, %arg23: memref<1x32xf32, #tpu.memory_space<vmem>>, %arg24: memref<10x32xf32, #tpu.memory_space<vmem>>) attributes {dimension_semantics = [], scalar_prefetch = 0 : i64, scratch_operands = 0 : i64, tpu.core_type = #tpu.core_type<tc>} {
    %c0 = arith.constant 0 : index
    %c0_0 = arith.constant 0 : index
    %0 = vector.load %arg0[%c0, %c0_0] : memref<8x192xf32, #tpu.memory_space<vmem>>, vector<8x192xf32>
    %c0_1 = arith.constant 0 : index
    %c0_2 = arith.constant 0 : index
    %1 = vector.load %arg1[%c0_1, %c0_2] : memref<192x32xf32, #tpu.memory_space<vmem>>, vector<192x32xf32>
    %cst = arith.constant dense<0.000000e+00> : vector<8x32xf32>
    %2 = tpu.matmul %0, %1, %cst {dimension_numbers = #tpu.dot_dimension_numbers<[1], [0], [0], [1], [0, 0, 1, 1], [], []>} : vector<8x192xf32>, vector<192x32xf32>, vector<8x32xf32> -> vector<8x32xf32>
    %c0_3 = arith.constant 0 : index
    %c0_4 = arith.constant 0 : index
    %3 = vector.load %arg2[%c0_3, %c0_4] : memref<1x32xf32, #tpu.memory_space<vmem>>, vector<1x32xf32>
    %4 = vector.broadcast %3 : vector<1x32xf32> to vector<8x32xf32>
    %5 = arith.addf %2, %4 : vector<8x32xf32>
    %c0_5 = arith.constant 0 : index
    %c0_6 = arith.constant 0 : index
    %6 = vector.load %arg3[%c0_5, %c0_6] : memref<10x32xf32, #tpu.memory_space<vmem>>, vector<10x32xf32>
    %c0_7 = arith.constant 0 : index
    %c0_8 = arith.constant 0 : index
    %7 = vector.load %arg4[%c0_7, %c0_8] : memref<10x8xf32, #tpu.memory_space<vmem>>, vector<10x8xf32>
    %cst_9 = arith.constant dense<0.000000e+00> : vector<10x32xf32>
    %8 = tpu.matmul %7, %5, %cst_9 {dimension_numbers = #tpu.dot_dimension_numbers<[1], [0], [0], [1], [0, 0, 1, 1], [], []>} : vector<10x8xf32>, vector<8x32xf32>, vector<10x32xf32> -> vector<10x32xf32>
    %9 = arith.addf %6, %8 : vector<10x32xf32>
    %c0_10 = arith.constant 0 : index
    %c0_11 = arith.constant 0 : index
    %10 = vector.load %arg5[%c0_10, %c0_11] : memref<10x10xf32, #tpu.memory_space<vmem>>, vector<10x10xf32>
    %c0_12 = arith.constant 0 : index
    %c0_13 = arith.constant 0 : index
    %c0_14 = arith.constant 0 : index
    %11 = vector.load %arg6[%c0_12, %c0_13, %c0_14] : memref<2x1x32xf32, #tpu.memory_space<vmem>>, vector<1x1x32xf32>
    %12 = vector.shape_cast %11 : vector<1x1x32xf32> to vector<1x32xf32>
    %c0_15 = arith.constant 0 : index
    %c0_16 = arith.constant 0 : index
    %c0_17 = arith.constant 0 : index
    %13 = vector.load %arg7[%c0_15, %c0_16, %c0_17] : memref<2x1x32xf32, #tpu.memory_space<vmem>>, vector<1x1x32xf32>
    %14 = vector.shape_cast %13 : vector<1x1x32xf32> to vector<1x32xf32>
    %cst_18 = arith.constant dense<0.000000e+00> : vector<10xf32>
    %15 = vector.multi_reduction <add>, %9, %cst_18 [1] : vector<10x32xf32> to vector<10xf32>
    %16 = vector.shape_cast %15 : vector<10xf32> to vector<10x1xf32>
    %cst_19 = arith.constant 3.200000e+01 : f32
    %17 = vector.broadcast %cst_19 : f32 to vector<10x1xf32>
    %18 = arith.divf %16, %17 : vector<10x1xf32>
    %19 = vector.broadcast %18 : vector<10x1xf32> to vector<10x32xf32>
    %20 = arith.subf %9, %19 : vector<10x32xf32>
    %21 = arith.mulf %20, %20 : vector<10x32xf32>
    %cst_20 = arith.constant dense<0.000000e+00> : vector<10xf32>
    %22 = vector.multi_reduction <add>, %21, %cst_20 [1] : vector<10x32xf32> to vector<10xf32>
    %23 = vector.shape_cast %22 : vector<10xf32> to vector<10x1xf32>
    %cst_21 = arith.constant 3.200000e+01 : f32
    %24 = vector.broadcast %cst_21 : f32 to vector<10x1xf32>
    %25 = arith.divf %23, %24 : vector<10x1xf32>
    %cst_22 = arith.constant 9.99999997E-7 : f32
    %26 = vector.broadcast %cst_22 : f32 to vector<10x1xf32>
    %27 = arith.addf %25, %26 : vector<10x1xf32>
    %28 = math.rsqrt %27 : vector<10x1xf32>
    %29 = vector.broadcast %28 : vector<10x1xf32> to vector<10x32xf32>
    %30 = arith.mulf %20, %29 : vector<10x32xf32>
    %31 = vector.broadcast %12 : vector<1x32xf32> to vector<10x32xf32>
    %32 = arith.mulf %30, %31 : vector<10x32xf32>
    %33 = vector.broadcast %14 : vector<1x32xf32> to vector<10x32xf32>
    %34 = arith.addf %32, %33 : vector<10x32xf32>
    %c0_23 = arith.constant 0 : index
    %c0_24 = arith.constant 0 : index
    %c0_25 = arith.constant 0 : index
    %35 = vector.load %arg15[%c0_23, %c0_24, %c0_25] : memref<2x1x32xf32, #tpu.memory_space<vmem>>, vector<1x1x32xf32>
    %36 = vector.shape_cast %35 : vector<1x1x32xf32> to vector<1x32xf32>
    %c0_26 = arith.constant 0 : index
    %c0_27 = arith.constant 0 : index
    %c0_28 = arith.constant 0 : index
    %c0_29 = arith.constant 0 : index
    %37 = vector.load %arg8[%c0_26, %c0_27, %c0_28, %c0_29] : memref<2x4x32x8xf32, #tpu.memory_space<vmem>>, vector<1x1x32x8xf32>
    %38 = vector.shape_cast %37 : vector<1x1x32x8xf32> to vector<32x8xf32>
    %cst_30 = arith.constant dense<0.000000e+00> : vector<10x8xf32>
    %39 = tpu.matmul %34, %38, %cst_30 {dimension_numbers = #tpu.dot_dimension_numbers<[1], [0], [0], [1], [0, 0, 1, 1], [], []>} : vector<10x32xf32>, vector<32x8xf32>, vector<10x8xf32> -> vector<10x8xf32>
    %c0_31 = arith.constant 0 : index
    %c0_32 = arith.constant 0 : index
    %c0_33 = arith.constant 0 : index
    %c0_34 = arith.constant 0 : index
    %40 = vector.load %arg11[%c0_31, %c0_32, %c0_33, %c0_34] : memref<2x4x1x8xf32, #tpu.memory_space<vmem>>, vector<1x1x1x8xf32>
    %41 = vector.shape_cast %40 : vector<1x1x1x8xf32> to vector<1x8xf32>
    %42 = vector.broadcast %41 : vector<1x8xf32> to vector<10x8xf32>
    %43 = arith.addf %39, %42 : vector<10x8xf32>
    %c0_35 = arith.constant 0 : index
    %c0_36 = arith.constant 0 : index
    %c0_37 = arith.constant 0 : index
    %c0_38 = arith.constant 0 : index
    %44 = vector.load %arg9[%c0_35, %c0_36, %c0_37, %c0_38] : memref<2x4x32x8xf32, #tpu.memory_space<vmem>>, vector<1x1x32x8xf32>
    %45 = vector.shape_cast %44 : vector<1x1x32x8xf32> to vector<32x8xf32>
    %cst_39 = arith.constant dense<0.000000e+00> : vector<10x8xf32>
    %46 = tpu.matmul %34, %45, %cst_39 {dimension_numbers = #tpu.dot_dimension_numbers<[1], [0], [0], [1], [0, 0, 1, 1], [], []>} : vector<10x32xf32>, vector<32x8xf32>, vector<10x8xf32> -> vector<10x8xf32>
    %c0_40 = arith.constant 0 : index
    %c0_41 = arith.constant 0 : index
    %c0_42 = arith.constant 0 : index
    %c0_43 = arith.constant 0 : index
    %47 = vector.load %arg12[%c0_40, %c0_41, %c0_42, %c0_43] : memref<2x4x1x8xf32, #tpu.memory_space<vmem>>, vector<1x1x1x8xf32>
    %48 = vector.shape_cast %47 : vector<1x1x1x8xf32> to vector<1x8xf32>
    %49 = vector.broadcast %48 : vector<1x8xf32> to vector<10x8xf32>
    %50 = arith.addf %46, %49 : vector<10x8xf32>
    %c0_44 = arith.constant 0 : index
    %c0_45 = arith.constant 0 : index
    %c0_46 = arith.constant 0 : index
    %c0_47 = arith.constant 0 : index
    %51 = vector.load %arg10[%c0_44, %c0_45, %c0_46, %c0_47] : memref<2x4x32x8xf32, #tpu.memory_space<vmem>>, vector<1x1x32x8xf32>
    %52 = vector.shape_cast %51 : vector<1x1x32x8xf32> to vector<32x8xf32>
    %cst_48 = arith.constant dense<0.000000e+00> : vector<10x8xf32>
    %53 = tpu.matmul %34, %52, %cst_48 {dimension_numbers = #tpu.dot_dimension_numbers<[1], [0], [0], [1], [0, 0, 1, 1], [], []>} : vector<10x32xf32>, vector<32x8xf32>, vector<10x8xf32> -> vector<10x8xf32>
    %c0_49 = arith.constant 0 : index
    %c0_50 = arith.constant 0 : index
    %c0_51 = arith.constant 0 : index
    %c0_52 = arith.constant 0 : index
    %54 = vector.load %arg13[%c0_49, %c0_50, %c0_51, %c0_52] : memref<2x4x1x8xf32, #tpu.memory_space<vmem>>, vector<1x1x1x8xf32>
    %55 = vector.shape_cast %54 : vector<1x1x1x8xf32> to vector<1x8xf32>
    %56 = vector.broadcast %55 : vector<1x8xf32> to vector<10x8xf32>
    %57 = arith.addf %53, %56 : vector<10x8xf32>
    %58 = tpu.transpose %50, [1, 0] : vector<10x8xf32> -> vector<8x10xf32>
    %cst_53 = arith.constant dense<0.000000e+00> : vector<10x10xf32>
    %59 = tpu.matmul %43, %58, %cst_53 {dimension_numbers = #tpu.dot_dimension_numbers<[1], [0], [0], [1], [0, 0, 1, 1], [], []>} : vector<10x8xf32>, vector<8x10xf32>, vector<10x10xf32> -> vector<10x10xf32>
    %cst_54 = arith.constant 0.353553385 : f32
    %60 = vector.broadcast %cst_54 : f32 to vector<10x10xf32>
    %61 = arith.mulf %59, %60 : vector<10x10xf32>
    %62 = arith.addf %61, %10 : vector<10x10xf32>
    %cst_55 = arith.constant dense<0xFF800000> : vector<10xf32>
    %63 = vector.multi_reduction <maximumf>, %62, %cst_55 [1] : vector<10x10xf32> to vector<10xf32>
    %64 = vector.shape_cast %63 : vector<10xf32> to vector<10x1xf32>
    %65 = vector.broadcast %64 : vector<10x1xf32> to vector<10x10xf32>
    %66 = arith.subf %62, %65 : vector<10x10xf32>
    %67 = math.exp %66 : vector<10x10xf32>
    %cst_56 = arith.constant dense<0.000000e+00> : vector<10xf32>
    %68 = vector.multi_reduction <add>, %67, %cst_56 [1] : vector<10x10xf32> to vector<10xf32>
    %69 = vector.shape_cast %68 : vector<10xf32> to vector<10x1xf32>
    %70 = tpu.reciprocal %69 {approx = true} : vector<10x1xf32> -> vector<10x1xf32>
    %71 = vector.broadcast %70 : vector<10x1xf32> to vector<10x10xf32>
    %72 = arith.mulf %67, %71 : vector<10x10xf32>
    %cst_57 = arith.constant dense<0.000000e+00> : vector<10x8xf32>
    %73 = tpu.matmul %72, %57, %cst_57 {dimension_numbers = #tpu.dot_dimension_numbers<[1], [0], [0], [1], [0, 0, 1, 1], [], []>} : vector<10x10xf32>, vector<10x8xf32>, vector<10x8xf32> -> vector<10x8xf32>
    %c0_58 = arith.constant 0 : index
    %c0_59 = arith.constant 0 : index
    %c0_60 = arith.constant 0 : index
    %c0_61 = arith.constant 0 : index
    %74 = vector.load %arg14[%c0_58, %c0_59, %c0_60, %c0_61] : memref<2x4x8x32xf32, #tpu.memory_space<vmem>>, vector<1x1x8x32xf32>
    %75 = vector.shape_cast %74 : vector<1x1x8x32xf32> to vector<8x32xf32>
    %cst_62 = arith.constant dense<0.000000e+00> : vector<10x32xf32>
    %76 = tpu.matmul %73, %75, %cst_62 {dimension_numbers = #tpu.dot_dimension_numbers<[1], [0], [0], [1], [0, 0, 1, 1], [], []>} : vector<10x8xf32>, vector<8x32xf32>, vector<10x32xf32> -> vector<10x32xf32>
    %77 = vector.broadcast %36 : vector<1x32xf32> to vector<10x32xf32>
    %78 = arith.addf %77, %76 : vector<10x32xf32>
    %c0_63 = arith.constant 0 : index
    %c1 = arith.constant 1 : index
    %c0_64 = arith.constant 0 : index
    %c0_65 = arith.constant 0 : index
    %79 = vector.load %arg8[%c0_63, %c1, %c0_64, %c0_65] : memref<2x4x32x8xf32, #tpu.memory_space<vmem>>, vector<1x1x32x8xf32>
    %80 = vector.shape_cast %79 : vector<1x1x32x8xf32> to vector<32x8xf32>
    %cst_66 = arith.constant dense<0.000000e+00> : vector<10x8xf32>
    %81 = tpu.matmul %34, %80, %cst_66 {dimension_numbers = #tpu.dot_dimension_numbers<[1], [0], [0], [1], [0, 0, 1, 1], [], []>} : vector<10x32xf32>, vector<32x8xf32>, vector<10x8xf32> -> vector<10x8xf32>
    %c0_67 = arith.constant 0 : index
    %c1_68 = arith.constant 1 : index
    %c0_69 = arith.constant 0 : index
    %c0_70 = arith.constant 0 : index
    %82 = vector.load %arg11[%c0_67, %c1_68, %c0_69, %c0_70] : memref<2x4x1x8xf32, #tpu.memory_space<vmem>>, vector<1x1x1x8xf32>
    %83 = vector.shape_cast %82 : vector<1x1x1x8xf32> to vector<1x8xf32>
    %84 = vector.broadcast %83 : vector<1x8xf32> to vector<10x8xf32>
    %85 = arith.addf %81, %84 : vector<10x8xf32>
    %c0_71 = arith.constant 0 : index
    %c1_72 = arith.constant 1 : index
    %c0_73 = arith.constant 0 : index
    %c0_74 = arith.constant 0 : index
    %86 = vector.load %arg9[%c0_71, %c1_72, %c0_73, %c0_74] : memref<2x4x32x8xf32, #tpu.memory_space<vmem>>, vector<1x1x32x8xf32>
    %87 = vector.shape_cast %86 : vector<1x1x32x8xf32> to vector<32x8xf32>
    %cst_75 = arith.constant dense<0.000000e+00> : vector<10x8xf32>
    %88 = tpu.matmul %34, %87, %cst_75 {dimension_numbers = #tpu.dot_dimension_numbers<[1], [0], [0], [1], [0, 0, 1, 1], [], []>} : vector<10x32xf32>, vector<32x8xf32>, vector<10x8xf32> -> vector<10x8xf32>
    %c0_76 = arith.constant 0 : index
    %c1_77 = arith.constant 1 : index
    %c0_78 = arith.constant 0 : index
    %c0_79 = arith.constant 0 : index
    %89 = vector.load %arg12[%c0_76, %c1_77, %c0_78, %c0_79] : memref<2x4x1x8xf32, #tpu.memory_space<vmem>>, vector<1x1x1x8xf32>
    %90 = vector.shape_cast %89 : vector<1x1x1x8xf32> to vector<1x8xf32>
    %91 = vector.broadcast %90 : vector<1x8xf32> to vector<10x8xf32>
    %92 = arith.addf %88, %91 : vector<10x8xf32>
    %c0_80 = arith.constant 0 : index
    %c1_81 = arith.constant 1 : index
    %c0_82 = arith.constant 0 : index
    %c0_83 = arith.constant 0 : index
    %93 = vector.load %arg10[%c0_80, %c1_81, %c0_82, %c0_83] : memref<2x4x32x8xf32, #tpu.memory_space<vmem>>, vector<1x1x32x8xf32>
    %94 = vector.shape_cast %93 : vector<1x1x32x8xf32> to vector<32x8xf32>
    %cst_84 = arith.constant dense<0.000000e+00> : vector<10x8xf32>
    %95 = tpu.matmul %34, %94, %cst_84 {dimension_numbers = #tpu.dot_dimension_numbers<[1], [0], [0], [1], [0, 0, 1, 1], [], []>} : vector<10x32xf32>, vector<32x8xf32>, vector<10x8xf32> -> vector<10x8xf32>
    %c0_85 = arith.constant 0 : index
    %c1_86 = arith.constant 1 : index
    %c0_87 = arith.constant 0 : index
    %c0_88 = arith.constant 0 : index
    %96 = vector.load %arg13[%c0_85, %c1_86, %c0_87, %c0_88] : memref<2x4x1x8xf32, #tpu.memory_space<vmem>>, vector<1x1x1x8xf32>
    %97 = vector.shape_cast %96 : vector<1x1x1x8xf32> to vector<1x8xf32>
    %98 = vector.broadcast %97 : vector<1x8xf32> to vector<10x8xf32>
    %99 = arith.addf %95, %98 : vector<10x8xf32>
    %100 = tpu.transpose %92, [1, 0] : vector<10x8xf32> -> vector<8x10xf32>
    %cst_89 = arith.constant dense<0.000000e+00> : vector<10x10xf32>
    %101 = tpu.matmul %85, %100, %cst_89 {dimension_numbers = #tpu.dot_dimension_numbers<[1], [0], [0], [1], [0, 0, 1, 1], [], []>} : vector<10x8xf32>, vector<8x10xf32>, vector<10x10xf32> -> vector<10x10xf32>
    %cst_90 = arith.constant 0.353553385 : f32
    %102 = vector.broadcast %cst_90 : f32 to vector<10x10xf32>
    %103 = arith.mulf %101, %102 : vector<10x10xf32>
    %104 = arith.addf %103, %10 : vector<10x10xf32>
    %cst_91 = arith.constant dense<0xFF800000> : vector<10xf32>
    %105 = vector.multi_reduction <maximumf>, %104, %cst_91 [1] : vector<10x10xf32> to vector<10xf32>
    %106 = vector.shape_cast %105 : vector<10xf32> to vector<10x1xf32>
    %107 = vector.broadcast %106 : vector<10x1xf32> to vector<10x10xf32>
    %108 = arith.subf %104, %107 : vector<10x10xf32>
    %109 = math.exp %108 : vector<10x10xf32>
    %cst_92 = arith.constant dense<0.000000e+00> : vector<10xf32>
    %110 = vector.multi_reduction <add>, %109, %cst_92 [1] : vector<10x10xf32> to vector<10xf32>
    %111 = vector.shape_cast %110 : vector<10xf32> to vector<10x1xf32>
    %112 = tpu.reciprocal %111 {approx = true} : vector<10x1xf32> -> vector<10x1xf32>
    %113 = vector.broadcast %112 : vector<10x1xf32> to vector<10x10xf32>
    %114 = arith.mulf %109, %113 : vector<10x10xf32>
    %cst_93 = arith.constant dense<0.000000e+00> : vector<10x8xf32>
    %115 = tpu.matmul %114, %99, %cst_93 {dimension_numbers = #tpu.dot_dimension_numbers<[1], [0], [0], [1], [0, 0, 1, 1], [], []>} : vector<10x10xf32>, vector<10x8xf32>, vector<10x8xf32> -> vector<10x8xf32>
    %c0_94 = arith.constant 0 : index
    %c1_95 = arith.constant 1 : index
    %c0_96 = arith.constant 0 : index
    %c0_97 = arith.constant 0 : index
    %116 = vector.load %arg14[%c0_94, %c1_95, %c0_96, %c0_97] : memref<2x4x8x32xf32, #tpu.memory_space<vmem>>, vector<1x1x8x32xf32>
    %117 = vector.shape_cast %116 : vector<1x1x8x32xf32> to vector<8x32xf32>
    %cst_98 = arith.constant dense<0.000000e+00> : vector<10x32xf32>
    %118 = tpu.matmul %115, %117, %cst_98 {dimension_numbers = #tpu.dot_dimension_numbers<[1], [0], [0], [1], [0, 0, 1, 1], [], []>} : vector<10x8xf32>, vector<8x32xf32>, vector<10x32xf32> -> vector<10x32xf32>
    %119 = arith.addf %78, %118 : vector<10x32xf32>
    %c0_99 = arith.constant 0 : index
    %c2 = arith.constant 2 : index
    %c0_100 = arith.constant 0 : index
    %c0_101 = arith.constant 0 : index
    %120 = vector.load %arg8[%c0_99, %c2, %c0_100, %c0_101] : memref<2x4x32x8xf32, #tpu.memory_space<vmem>>, vector<1x1x32x8xf32>
    %121 = vector.shape_cast %120 : vector<1x1x32x8xf32> to vector<32x8xf32>
    %cst_102 = arith.constant dense<0.000000e+00> : vector<10x8xf32>
    %122 = tpu.matmul %34, %121, %cst_102 {dimension_numbers = #tpu.dot_dimension_numbers<[1], [0], [0], [1], [0, 0, 1, 1], [], []>} : vector<10x32xf32>, vector<32x8xf32>, vector<10x8xf32> -> vector<10x8xf32>
    %c0_103 = arith.constant 0 : index
    %c2_104 = arith.constant 2 : index
    %c0_105 = arith.constant 0 : index
    %c0_106 = arith.constant 0 : index
    %123 = vector.load %arg11[%c0_103, %c2_104, %c0_105, %c0_106] : memref<2x4x1x8xf32, #tpu.memory_space<vmem>>, vector<1x1x1x8xf32>
    %124 = vector.shape_cast %123 : vector<1x1x1x8xf32> to vector<1x8xf32>
    %125 = vector.broadcast %124 : vector<1x8xf32> to vector<10x8xf32>
    %126 = arith.addf %122, %125 : vector<10x8xf32>
    %c0_107 = arith.constant 0 : index
    %c2_108 = arith.constant 2 : index
    %c0_109 = arith.constant 0 : index
    %c0_110 = arith.constant 0 : index
    %127 = vector.load %arg9[%c0_107, %c2_108, %c0_109, %c0_110] : memref<2x4x32x8xf32, #tpu.memory_space<vmem>>, vector<1x1x32x8xf32>
    %128 = vector.shape_cast %127 : vector<1x1x32x8xf32> to vector<32x8xf32>
    %cst_111 = arith.constant dense<0.000000e+00> : vector<10x8xf32>
    %129 = tpu.matmul %34, %128, %cst_111 {dimension_numbers = #tpu.dot_dimension_numbers<[1], [0], [0], [1], [0, 0, 1, 1], [], []>} : vector<10x32xf32>, vector<32x8xf32>, vector<10x8xf32> -> vector<10x8xf32>
    %c0_112 = arith.constant 0 : index
    %c2_113 = arith.constant 2 : index
    %c0_114 = arith.constant 0 : index
    %c0_115 = arith.constant 0 : index
    %130 = vector.load %arg12[%c0_112, %c2_113, %c0_114, %c0_115] : memref<2x4x1x8xf32, #tpu.memory_space<vmem>>, vector<1x1x1x8xf32>
    %131 = vector.shape_cast %130 : vector<1x1x1x8xf32> to vector<1x8xf32>
    %132 = vector.broadcast %131 : vector<1x8xf32> to vector<10x8xf32>
    %133 = arith.addf %129, %132 : vector<10x8xf32>
    %c0_116 = arith.constant 0 : index
    %c2_117 = arith.constant 2 : index
    %c0_118 = arith.constant 0 : index
    %c0_119 = arith.constant 0 : index
    %134 = vector.load %arg10[%c0_116, %c2_117, %c0_118, %c0_119] : memref<2x4x32x8xf32, #tpu.memory_space<vmem>>, vector<1x1x32x8xf32>
    %135 = vector.shape_cast %134 : vector<1x1x32x8xf32> to vector<32x8xf32>
    %cst_120 = arith.constant dense<0.000000e+00> : vector<10x8xf32>
    %136 = tpu.matmul %34, %135, %cst_120 {dimension_numbers = #tpu.dot_dimension_numbers<[1], [0], [0], [1], [0, 0, 1, 1], [], []>} : vector<10x32xf32>, vector<32x8xf32>, vector<10x8xf32> -> vector<10x8xf32>
    %c0_121 = arith.constant 0 : index
    %c2_122 = arith.constant 2 : index
    %c0_123 = arith.constant 0 : index
    %c0_124 = arith.constant 0 : index
    %137 = vector.load %arg13[%c0_121, %c2_122, %c0_123, %c0_124] : memref<2x4x1x8xf32, #tpu.memory_space<vmem>>, vector<1x1x1x8xf32>
    %138 = vector.shape_cast %137 : vector<1x1x1x8xf32> to vector<1x8xf32>
    %139 = vector.broadcast %138 : vector<1x8xf32> to vector<10x8xf32>
    %140 = arith.addf %136, %139 : vector<10x8xf32>
    %141 = tpu.transpose %133, [1, 0] : vector<10x8xf32> -> vector<8x10xf32>
    %cst_125 = arith.constant dense<0.000000e+00> : vector<10x10xf32>
    %142 = tpu.matmul %126, %141, %cst_125 {dimension_numbers = #tpu.dot_dimension_numbers<[1], [0], [0], [1], [0, 0, 1, 1], [], []>} : vector<10x8xf32>, vector<8x10xf32>, vector<10x10xf32> -> vector<10x10xf32>
    %cst_126 = arith.constant 0.353553385 : f32
    %143 = vector.broadcast %cst_126 : f32 to vector<10x10xf32>
    %144 = arith.mulf %142, %143 : vector<10x10xf32>
    %145 = arith.addf %144, %10 : vector<10x10xf32>
    %cst_127 = arith.constant dense<0xFF800000> : vector<10xf32>
    %146 = vector.multi_reduction <maximumf>, %145, %cst_127 [1] : vector<10x10xf32> to vector<10xf32>
    %147 = vector.shape_cast %146 : vector<10xf32> to vector<10x1xf32>
    %148 = vector.broadcast %147 : vector<10x1xf32> to vector<10x10xf32>
    %149 = arith.subf %145, %148 : vector<10x10xf32>
    %150 = math.exp %149 : vector<10x10xf32>
    %cst_128 = arith.constant dense<0.000000e+00> : vector<10xf32>
    %151 = vector.multi_reduction <add>, %150, %cst_128 [1] : vector<10x10xf32> to vector<10xf32>
    %152 = vector.shape_cast %151 : vector<10xf32> to vector<10x1xf32>
    %153 = tpu.reciprocal %152 {approx = true} : vector<10x1xf32> -> vector<10x1xf32>
    %154 = vector.broadcast %153 : vector<10x1xf32> to vector<10x10xf32>
    %155 = arith.mulf %150, %154 : vector<10x10xf32>
    %cst_129 = arith.constant dense<0.000000e+00> : vector<10x8xf32>
    %156 = tpu.matmul %155, %140, %cst_129 {dimension_numbers = #tpu.dot_dimension_numbers<[1], [0], [0], [1], [0, 0, 1, 1], [], []>} : vector<10x10xf32>, vector<10x8xf32>, vector<10x8xf32> -> vector<10x8xf32>
    %c0_130 = arith.constant 0 : index
    %c2_131 = arith.constant 2 : index
    %c0_132 = arith.constant 0 : index
    %c0_133 = arith.constant 0 : index
    %157 = vector.load %arg14[%c0_130, %c2_131, %c0_132, %c0_133] : memref<2x4x8x32xf32, #tpu.memory_space<vmem>>, vector<1x1x8x32xf32>
    %158 = vector.shape_cast %157 : vector<1x1x8x32xf32> to vector<8x32xf32>
    %cst_134 = arith.constant dense<0.000000e+00> : vector<10x32xf32>
    %159 = tpu.matmul %156, %158, %cst_134 {dimension_numbers = #tpu.dot_dimension_numbers<[1], [0], [0], [1], [0, 0, 1, 1], [], []>} : vector<10x8xf32>, vector<8x32xf32>, vector<10x32xf32> -> vector<10x32xf32>
    %160 = arith.addf %119, %159 : vector<10x32xf32>
    %c0_135 = arith.constant 0 : index
    %c3 = arith.constant 3 : index
    %c0_136 = arith.constant 0 : index
    %c0_137 = arith.constant 0 : index
    %161 = vector.load %arg8[%c0_135, %c3, %c0_136, %c0_137] : memref<2x4x32x8xf32, #tpu.memory_space<vmem>>, vector<1x1x32x8xf32>
    %162 = vector.shape_cast %161 : vector<1x1x32x8xf32> to vector<32x8xf32>
    %cst_138 = arith.constant dense<0.000000e+00> : vector<10x8xf32>
    %163 = tpu.matmul %34, %162, %cst_138 {dimension_numbers = #tpu.dot_dimension_numbers<[1], [0], [0], [1], [0, 0, 1, 1], [], []>} : vector<10x32xf32>, vector<32x8xf32>, vector<10x8xf32> -> vector<10x8xf32>
    %c0_139 = arith.constant 0 : index
    %c3_140 = arith.constant 3 : index
    %c0_141 = arith.constant 0 : index
    %c0_142 = arith.constant 0 : index
    %164 = vector.load %arg11[%c0_139, %c3_140, %c0_141, %c0_142] : memref<2x4x1x8xf32, #tpu.memory_space<vmem>>, vector<1x1x1x8xf32>
    %165 = vector.shape_cast %164 : vector<1x1x1x8xf32> to vector<1x8xf32>
    %166 = vector.broadcast %165 : vector<1x8xf32> to vector<10x8xf32>
    %167 = arith.addf %163, %166 : vector<10x8xf32>
    %c0_143 = arith.constant 0 : index
    %c3_144 = arith.constant 3 : index
    %c0_145 = arith.constant 0 : index
    %c0_146 = arith.constant 0 : index
    %168 = vector.load %arg9[%c0_143, %c3_144, %c0_145, %c0_146] : memref<2x4x32x8xf32, #tpu.memory_space<vmem>>, vector<1x1x32x8xf32>
    %169 = vector.shape_cast %168 : vector<1x1x32x8xf32> to vector<32x8xf32>
    %cst_147 = arith.constant dense<0.000000e+00> : vector<10x8xf32>
    %170 = tpu.matmul %34, %169, %cst_147 {dimension_numbers = #tpu.dot_dimension_numbers<[1], [0], [0], [1], [0, 0, 1, 1], [], []>} : vector<10x32xf32>, vector<32x8xf32>, vector<10x8xf32> -> vector<10x8xf32>
    %c0_148 = arith.constant 0 : index
    %c3_149 = arith.constant 3 : index
    %c0_150 = arith.constant 0 : index
    %c0_151 = arith.constant 0 : index
    %171 = vector.load %arg12[%c0_148, %c3_149, %c0_150, %c0_151] : memref<2x4x1x8xf32, #tpu.memory_space<vmem>>, vector<1x1x1x8xf32>
    %172 = vector.shape_cast %171 : vector<1x1x1x8xf32> to vector<1x8xf32>
    %173 = vector.broadcast %172 : vector<1x8xf32> to vector<10x8xf32>
    %174 = arith.addf %170, %173 : vector<10x8xf32>
    %c0_152 = arith.constant 0 : index
    %c3_153 = arith.constant 3 : index
    %c0_154 = arith.constant 0 : index
    %c0_155 = arith.constant 0 : index
    %175 = vector.load %arg10[%c0_152, %c3_153, %c0_154, %c0_155] : memref<2x4x32x8xf32, #tpu.memory_space<vmem>>, vector<1x1x32x8xf32>
    %176 = vector.shape_cast %175 : vector<1x1x32x8xf32> to vector<32x8xf32>
    %cst_156 = arith.constant dense<0.000000e+00> : vector<10x8xf32>
    %177 = tpu.matmul %34, %176, %cst_156 {dimension_numbers = #tpu.dot_dimension_numbers<[1], [0], [0], [1], [0, 0, 1, 1], [], []>} : vector<10x32xf32>, vector<32x8xf32>, vector<10x8xf32> -> vector<10x8xf32>
    %c0_157 = arith.constant 0 : index
    %c3_158 = arith.constant 3 : index
    %c0_159 = arith.constant 0 : index
    %c0_160 = arith.constant 0 : index
    %178 = vector.load %arg13[%c0_157, %c3_158, %c0_159, %c0_160] : memref<2x4x1x8xf32, #tpu.memory_space<vmem>>, vector<1x1x1x8xf32>
    %179 = vector.shape_cast %178 : vector<1x1x1x8xf32> to vector<1x8xf32>
    %180 = vector.broadcast %179 : vector<1x8xf32> to vector<10x8xf32>
    %181 = arith.addf %177, %180 : vector<10x8xf32>
    %182 = tpu.transpose %174, [1, 0] : vector<10x8xf32> -> vector<8x10xf32>
    %cst_161 = arith.constant dense<0.000000e+00> : vector<10x10xf32>
    %183 = tpu.matmul %167, %182, %cst_161 {dimension_numbers = #tpu.dot_dimension_numbers<[1], [0], [0], [1], [0, 0, 1, 1], [], []>} : vector<10x8xf32>, vector<8x10xf32>, vector<10x10xf32> -> vector<10x10xf32>
    %cst_162 = arith.constant 0.353553385 : f32
    %184 = vector.broadcast %cst_162 : f32 to vector<10x10xf32>
    %185 = arith.mulf %183, %184 : vector<10x10xf32>
    %186 = arith.addf %185, %10 : vector<10x10xf32>
    %cst_163 = arith.constant dense<0xFF800000> : vector<10xf32>
    %187 = vector.multi_reduction <maximumf>, %186, %cst_163 [1] : vector<10x10xf32> to vector<10xf32>
    %188 = vector.shape_cast %187 : vector<10xf32> to vector<10x1xf32>
    %189 = vector.broadcast %188 : vector<10x1xf32> to vector<10x10xf32>
    %190 = arith.subf %186, %189 : vector<10x10xf32>
    %191 = math.exp %190 : vector<10x10xf32>
    %cst_164 = arith.constant dense<0.000000e+00> : vector<10xf32>
    %192 = vector.multi_reduction <add>, %191, %cst_164 [1] : vector<10x10xf32> to vector<10xf32>
    %193 = vector.shape_cast %192 : vector<10xf32> to vector<10x1xf32>
    %194 = tpu.reciprocal %193 {approx = true} : vector<10x1xf32> -> vector<10x1xf32>
    %195 = vector.broadcast %194 : vector<10x1xf32> to vector<10x10xf32>
    %196 = arith.mulf %191, %195 : vector<10x10xf32>
    %cst_165 = arith.constant dense<0.000000e+00> : vector<10x8xf32>
    %197 = tpu.matmul %196, %181, %cst_165 {dimension_numbers = #tpu.dot_dimension_numbers<[1], [0], [0], [1], [0, 0, 1, 1], [], []>} : vector<10x10xf32>, vector<10x8xf32>, vector<10x8xf32> -> vector<10x8xf32>
    %c0_166 = arith.constant 0 : index
    %c3_167 = arith.constant 3 : index
    %c0_168 = arith.constant 0 : index
    %c0_169 = arith.constant 0 : index
    %198 = vector.load %arg14[%c0_166, %c3_167, %c0_168, %c0_169] : memref<2x4x8x32xf32, #tpu.memory_space<vmem>>, vector<1x1x8x32xf32>
    %199 = vector.shape_cast %198 : vector<1x1x8x32xf32> to vector<8x32xf32>
    %cst_170 = arith.constant dense<0.000000e+00> : vector<10x32xf32>
    %200 = tpu.matmul %197, %199, %cst_170 {dimension_numbers = #tpu.dot_dimension_numbers<[1], [0], [0], [1], [0, 0, 1, 1], [], []>} : vector<10x8xf32>, vector<8x32xf32>, vector<10x32xf32> -> vector<10x32xf32>
    %201 = arith.addf %160, %200 : vector<10x32xf32>
    %202 = arith.addf %9, %201 : vector<10x32xf32>
    %c0_171 = arith.constant 0 : index
    %c0_172 = arith.constant 0 : index
    %c0_173 = arith.constant 0 : index
    %203 = vector.load %arg16[%c0_171, %c0_172, %c0_173] : memref<2x1x32xf32, #tpu.memory_space<vmem>>, vector<1x1x32xf32>
    %204 = vector.shape_cast %203 : vector<1x1x32xf32> to vector<1x32xf32>
    %c0_174 = arith.constant 0 : index
    %c0_175 = arith.constant 0 : index
    %c0_176 = arith.constant 0 : index
    %205 = vector.load %arg17[%c0_174, %c0_175, %c0_176] : memref<2x1x32xf32, #tpu.memory_space<vmem>>, vector<1x1x32xf32>
    %206 = vector.shape_cast %205 : vector<1x1x32xf32> to vector<1x32xf32>
    %cst_177 = arith.constant dense<0.000000e+00> : vector<10xf32>
    %207 = vector.multi_reduction <add>, %202, %cst_177 [1] : vector<10x32xf32> to vector<10xf32>
    %208 = vector.shape_cast %207 : vector<10xf32> to vector<10x1xf32>
    %cst_178 = arith.constant 3.200000e+01 : f32
    %209 = vector.broadcast %cst_178 : f32 to vector<10x1xf32>
    %210 = arith.divf %208, %209 : vector<10x1xf32>
    %211 = vector.broadcast %210 : vector<10x1xf32> to vector<10x32xf32>
    %212 = arith.subf %202, %211 : vector<10x32xf32>
    %213 = arith.mulf %212, %212 : vector<10x32xf32>
    %cst_179 = arith.constant dense<0.000000e+00> : vector<10xf32>
    %214 = vector.multi_reduction <add>, %213, %cst_179 [1] : vector<10x32xf32> to vector<10xf32>
    %215 = vector.shape_cast %214 : vector<10xf32> to vector<10x1xf32>
    %cst_180 = arith.constant 3.200000e+01 : f32
    %216 = vector.broadcast %cst_180 : f32 to vector<10x1xf32>
    %217 = arith.divf %215, %216 : vector<10x1xf32>
    %cst_181 = arith.constant 9.99999997E-7 : f32
    %218 = vector.broadcast %cst_181 : f32 to vector<10x1xf32>
    %219 = arith.addf %217, %218 : vector<10x1xf32>
    %220 = math.rsqrt %219 : vector<10x1xf32>
    %221 = vector.broadcast %220 : vector<10x1xf32> to vector<10x32xf32>
    %222 = arith.mulf %212, %221 : vector<10x32xf32>
    %223 = vector.broadcast %204 : vector<1x32xf32> to vector<10x32xf32>
    %224 = arith.mulf %222, %223 : vector<10x32xf32>
    %225 = vector.broadcast %206 : vector<1x32xf32> to vector<10x32xf32>
    %226 = arith.addf %224, %225 : vector<10x32xf32>
    %c0_182 = arith.constant 0 : index
    %c0_183 = arith.constant 0 : index
    %c0_184 = arith.constant 0 : index
    %227 = vector.load %arg18[%c0_182, %c0_183, %c0_184] : memref<2x32x128xf32, #tpu.memory_space<vmem>>, vector<1x32x128xf32>
    %228 = vector.shape_cast %227 : vector<1x32x128xf32> to vector<32x128xf32>
    %cst_185 = arith.constant dense<0.000000e+00> : vector<10x128xf32>
    %229 = tpu.matmul %226, %228, %cst_185 {dimension_numbers = #tpu.dot_dimension_numbers<[1], [0], [0], [1], [0, 0, 1, 1], [], []>} : vector<10x32xf32>, vector<32x128xf32>, vector<10x128xf32> -> vector<10x128xf32>
    %c0_186 = arith.constant 0 : index
    %c0_187 = arith.constant 0 : index
    %c0_188 = arith.constant 0 : index
    %230 = vector.load %arg19[%c0_186, %c0_187, %c0_188] : memref<2x1x128xf32, #tpu.memory_space<vmem>>, vector<1x1x128xf32>
    %231 = vector.shape_cast %230 : vector<1x1x128xf32> to vector<1x128xf32>
    %232 = vector.broadcast %231 : vector<1x128xf32> to vector<10x128xf32>
    %233 = arith.addf %229, %232 : vector<10x128xf32>
    %234 = arith.mulf %233, %233 : vector<10x128xf32>
    %235 = arith.mulf %233, %234 : vector<10x128xf32>
    %cst_189 = arith.constant 4.471500e-02 : f32
    %236 = vector.broadcast %cst_189 : f32 to vector<10x128xf32>
    %237 = arith.mulf %236, %235 : vector<10x128xf32>
    %238 = arith.addf %233, %237 : vector<10x128xf32>
    %cst_190 = arith.constant 0.797884583 : f32
    %239 = vector.broadcast %cst_190 : f32 to vector<10x128xf32>
    %240 = arith.mulf %239, %238 : vector<10x128xf32>
    %241 = math.tanh %240 : vector<10x128xf32>
    %cst_191 = arith.constant 1.000000e+00 : f32
    %242 = vector.broadcast %cst_191 : f32 to vector<10x128xf32>
    %243 = arith.addf %242, %241 : vector<10x128xf32>
    %cst_192 = arith.constant 5.000000e-01 : f32
    %244 = vector.broadcast %cst_192 : f32 to vector<10x128xf32>
    %245 = arith.mulf %244, %243 : vector<10x128xf32>
    %246 = arith.mulf %233, %245 : vector<10x128xf32>
    %c0_193 = arith.constant 0 : index
    %c0_194 = arith.constant 0 : index
    %c0_195 = arith.constant 0 : index
    %247 = vector.load %arg20[%c0_193, %c0_194, %c0_195] : memref<2x128x32xf32, #tpu.memory_space<vmem>>, vector<1x128x32xf32>
    %248 = vector.shape_cast %247 : vector<1x128x32xf32> to vector<128x32xf32>
    %cst_196 = arith.constant dense<0.000000e+00> : vector<10x32xf32>
    %249 = tpu.matmul %246, %248, %cst_196 {dimension_numbers = #tpu.dot_dimension_numbers<[1], [0], [0], [1], [0, 0, 1, 1], [], []>} : vector<10x128xf32>, vector<128x32xf32>, vector<10x32xf32> -> vector<10x32xf32>
    %c0_197 = arith.constant 0 : index
    %c0_198 = arith.constant 0 : index
    %c0_199 = arith.constant 0 : index
    %250 = vector.load %arg21[%c0_197, %c0_198, %c0_199] : memref<2x1x32xf32, #tpu.memory_space<vmem>>, vector<1x1x32xf32>
    %251 = vector.shape_cast %250 : vector<1x1x32xf32> to vector<1x32xf32>
    %252 = vector.broadcast %251 : vector<1x32xf32> to vector<10x32xf32>
    %253 = arith.addf %249, %252 : vector<10x32xf32>
    %254 = arith.addf %202, %253 : vector<10x32xf32>
    %c1_200 = arith.constant 1 : index
    %c0_201 = arith.constant 0 : index
    %c0_202 = arith.constant 0 : index
    %255 = vector.load %arg6[%c1_200, %c0_201, %c0_202] : memref<2x1x32xf32, #tpu.memory_space<vmem>>, vector<1x1x32xf32>
    %256 = vector.shape_cast %255 : vector<1x1x32xf32> to vector<1x32xf32>
    %c1_203 = arith.constant 1 : index
    %c0_204 = arith.constant 0 : index
    %c0_205 = arith.constant 0 : index
    %257 = vector.load %arg7[%c1_203, %c0_204, %c0_205] : memref<2x1x32xf32, #tpu.memory_space<vmem>>, vector<1x1x32xf32>
    %258 = vector.shape_cast %257 : vector<1x1x32xf32> to vector<1x32xf32>
    %cst_206 = arith.constant dense<0.000000e+00> : vector<10xf32>
    %259 = vector.multi_reduction <add>, %254, %cst_206 [1] : vector<10x32xf32> to vector<10xf32>
    %260 = vector.shape_cast %259 : vector<10xf32> to vector<10x1xf32>
    %cst_207 = arith.constant 3.200000e+01 : f32
    %261 = vector.broadcast %cst_207 : f32 to vector<10x1xf32>
    %262 = arith.divf %260, %261 : vector<10x1xf32>
    %263 = vector.broadcast %262 : vector<10x1xf32> to vector<10x32xf32>
    %264 = arith.subf %254, %263 : vector<10x32xf32>
    %265 = arith.mulf %264, %264 : vector<10x32xf32>
    %cst_208 = arith.constant dense<0.000000e+00> : vector<10xf32>
    %266 = vector.multi_reduction <add>, %265, %cst_208 [1] : vector<10x32xf32> to vector<10xf32>
    %267 = vector.shape_cast %266 : vector<10xf32> to vector<10x1xf32>
    %cst_209 = arith.constant 3.200000e+01 : f32
    %268 = vector.broadcast %cst_209 : f32 to vector<10x1xf32>
    %269 = arith.divf %267, %268 : vector<10x1xf32>
    %cst_210 = arith.constant 9.99999997E-7 : f32
    %270 = vector.broadcast %cst_210 : f32 to vector<10x1xf32>
    %271 = arith.addf %269, %270 : vector<10x1xf32>
    %272 = math.rsqrt %271 : vector<10x1xf32>
    %273 = vector.broadcast %272 : vector<10x1xf32> to vector<10x32xf32>
    %274 = arith.mulf %264, %273 : vector<10x32xf32>
    %275 = vector.broadcast %256 : vector<1x32xf32> to vector<10x32xf32>
    %276 = arith.mulf %274, %275 : vector<10x32xf32>
    %277 = vector.broadcast %258 : vector<1x32xf32> to vector<10x32xf32>
    %278 = arith.addf %276, %277 : vector<10x32xf32>
    %c1_211 = arith.constant 1 : index
    %c0_212 = arith.constant 0 : index
    %c0_213 = arith.constant 0 : index
    %279 = vector.load %arg15[%c1_211, %c0_212, %c0_213] : memref<2x1x32xf32, #tpu.memory_space<vmem>>, vector<1x1x32xf32>
    %280 = vector.shape_cast %279 : vector<1x1x32xf32> to vector<1x32xf32>
    %c1_214 = arith.constant 1 : index
    %c0_215 = arith.constant 0 : index
    %c0_216 = arith.constant 0 : index
    %c0_217 = arith.constant 0 : index
    %281 = vector.load %arg8[%c1_214, %c0_215, %c0_216, %c0_217] : memref<2x4x32x8xf32, #tpu.memory_space<vmem>>, vector<1x1x32x8xf32>
    %282 = vector.shape_cast %281 : vector<1x1x32x8xf32> to vector<32x8xf32>
    %cst_218 = arith.constant dense<0.000000e+00> : vector<10x8xf32>
    %283 = tpu.matmul %278, %282, %cst_218 {dimension_numbers = #tpu.dot_dimension_numbers<[1], [0], [0], [1], [0, 0, 1, 1], [], []>} : vector<10x32xf32>, vector<32x8xf32>, vector<10x8xf32> -> vector<10x8xf32>
    %c1_219 = arith.constant 1 : index
    %c0_220 = arith.constant 0 : index
    %c0_221 = arith.constant 0 : index
    %c0_222 = arith.constant 0 : index
    %284 = vector.load %arg11[%c1_219, %c0_220, %c0_221, %c0_222] : memref<2x4x1x8xf32, #tpu.memory_space<vmem>>, vector<1x1x1x8xf32>
    %285 = vector.shape_cast %284 : vector<1x1x1x8xf32> to vector<1x8xf32>
    %286 = vector.broadcast %285 : vector<1x8xf32> to vector<10x8xf32>
    %287 = arith.addf %283, %286 : vector<10x8xf32>
    %c1_223 = arith.constant 1 : index
    %c0_224 = arith.constant 0 : index
    %c0_225 = arith.constant 0 : index
    %c0_226 = arith.constant 0 : index
    %288 = vector.load %arg9[%c1_223, %c0_224, %c0_225, %c0_226] : memref<2x4x32x8xf32, #tpu.memory_space<vmem>>, vector<1x1x32x8xf32>
    %289 = vector.shape_cast %288 : vector<1x1x32x8xf32> to vector<32x8xf32>
    %cst_227 = arith.constant dense<0.000000e+00> : vector<10x8xf32>
    %290 = tpu.matmul %278, %289, %cst_227 {dimension_numbers = #tpu.dot_dimension_numbers<[1], [0], [0], [1], [0, 0, 1, 1], [], []>} : vector<10x32xf32>, vector<32x8xf32>, vector<10x8xf32> -> vector<10x8xf32>
    %c1_228 = arith.constant 1 : index
    %c0_229 = arith.constant 0 : index
    %c0_230 = arith.constant 0 : index
    %c0_231 = arith.constant 0 : index
    %291 = vector.load %arg12[%c1_228, %c0_229, %c0_230, %c0_231] : memref<2x4x1x8xf32, #tpu.memory_space<vmem>>, vector<1x1x1x8xf32>
    %292 = vector.shape_cast %291 : vector<1x1x1x8xf32> to vector<1x8xf32>
    %293 = vector.broadcast %292 : vector<1x8xf32> to vector<10x8xf32>
    %294 = arith.addf %290, %293 : vector<10x8xf32>
    %c1_232 = arith.constant 1 : index
    %c0_233 = arith.constant 0 : index
    %c0_234 = arith.constant 0 : index
    %c0_235 = arith.constant 0 : index
    %295 = vector.load %arg10[%c1_232, %c0_233, %c0_234, %c0_235] : memref<2x4x32x8xf32, #tpu.memory_space<vmem>>, vector<1x1x32x8xf32>
    %296 = vector.shape_cast %295 : vector<1x1x32x8xf32> to vector<32x8xf32>
    %cst_236 = arith.constant dense<0.000000e+00> : vector<10x8xf32>
    %297 = tpu.matmul %278, %296, %cst_236 {dimension_numbers = #tpu.dot_dimension_numbers<[1], [0], [0], [1], [0, 0, 1, 1], [], []>} : vector<10x32xf32>, vector<32x8xf32>, vector<10x8xf32> -> vector<10x8xf32>
    %c1_237 = arith.constant 1 : index
    %c0_238 = arith.constant 0 : index
    %c0_239 = arith.constant 0 : index
    %c0_240 = arith.constant 0 : index
    %298 = vector.load %arg13[%c1_237, %c0_238, %c0_239, %c0_240] : memref<2x4x1x8xf32, #tpu.memory_space<vmem>>, vector<1x1x1x8xf32>
    %299 = vector.shape_cast %298 : vector<1x1x1x8xf32> to vector<1x8xf32>
    %300 = vector.broadcast %299 : vector<1x8xf32> to vector<10x8xf32>
    %301 = arith.addf %297, %300 : vector<10x8xf32>
    %302 = tpu.transpose %294, [1, 0] : vector<10x8xf32> -> vector<8x10xf32>
    %cst_241 = arith.constant dense<0.000000e+00> : vector<10x10xf32>
    %303 = tpu.matmul %287, %302, %cst_241 {dimension_numbers = #tpu.dot_dimension_numbers<[1], [0], [0], [1], [0, 0, 1, 1], [], []>} : vector<10x8xf32>, vector<8x10xf32>, vector<10x10xf32> -> vector<10x10xf32>
    %cst_242 = arith.constant 0.353553385 : f32
    %304 = vector.broadcast %cst_242 : f32 to vector<10x10xf32>
    %305 = arith.mulf %303, %304 : vector<10x10xf32>
    %306 = arith.addf %305, %10 : vector<10x10xf32>
    %cst_243 = arith.constant dense<0xFF800000> : vector<10xf32>
    %307 = vector.multi_reduction <maximumf>, %306, %cst_243 [1] : vector<10x10xf32> to vector<10xf32>
    %308 = vector.shape_cast %307 : vector<10xf32> to vector<10x1xf32>
    %309 = vector.broadcast %308 : vector<10x1xf32> to vector<10x10xf32>
    %310 = arith.subf %306, %309 : vector<10x10xf32>
    %311 = math.exp %310 : vector<10x10xf32>
    %cst_244 = arith.constant dense<0.000000e+00> : vector<10xf32>
    %312 = vector.multi_reduction <add>, %311, %cst_244 [1] : vector<10x10xf32> to vector<10xf32>
    %313 = vector.shape_cast %312 : vector<10xf32> to vector<10x1xf32>
    %314 = tpu.reciprocal %313 {approx = true} : vector<10x1xf32> -> vector<10x1xf32>
    %315 = vector.broadcast %314 : vector<10x1xf32> to vector<10x10xf32>
    %316 = arith.mulf %311, %315 : vector<10x10xf32>
    %cst_245 = arith.constant dense<0.000000e+00> : vector<10x8xf32>
    %317 = tpu.matmul %316, %301, %cst_245 {dimension_numbers = #tpu.dot_dimension_numbers<[1], [0], [0], [1], [0, 0, 1, 1], [], []>} : vector<10x10xf32>, vector<10x8xf32>, vector<10x8xf32> -> vector<10x8xf32>
    %c1_246 = arith.constant 1 : index
    %c0_247 = arith.constant 0 : index
    %c0_248 = arith.constant 0 : index
    %c0_249 = arith.constant 0 : index
    %318 = vector.load %arg14[%c1_246, %c0_247, %c0_248, %c0_249] : memref<2x4x8x32xf32, #tpu.memory_space<vmem>>, vector<1x1x8x32xf32>
    %319 = vector.shape_cast %318 : vector<1x1x8x32xf32> to vector<8x32xf32>
    %cst_250 = arith.constant dense<0.000000e+00> : vector<10x32xf32>
    %320 = tpu.matmul %317, %319, %cst_250 {dimension_numbers = #tpu.dot_dimension_numbers<[1], [0], [0], [1], [0, 0, 1, 1], [], []>} : vector<10x8xf32>, vector<8x32xf32>, vector<10x32xf32> -> vector<10x32xf32>
    %321 = vector.broadcast %280 : vector<1x32xf32> to vector<10x32xf32>
    %322 = arith.addf %321, %320 : vector<10x32xf32>
    %c1_251 = arith.constant 1 : index
    %c1_252 = arith.constant 1 : index
    %c0_253 = arith.constant 0 : index
    %c0_254 = arith.constant 0 : index
    %323 = vector.load %arg8[%c1_251, %c1_252, %c0_253, %c0_254] : memref<2x4x32x8xf32, #tpu.memory_space<vmem>>, vector<1x1x32x8xf32>
    %324 = vector.shape_cast %323 : vector<1x1x32x8xf32> to vector<32x8xf32>
    %cst_255 = arith.constant dense<0.000000e+00> : vector<10x8xf32>
    %325 = tpu.matmul %278, %324, %cst_255 {dimension_numbers = #tpu.dot_dimension_numbers<[1], [0], [0], [1], [0, 0, 1, 1], [], []>} : vector<10x32xf32>, vector<32x8xf32>, vector<10x8xf32> -> vector<10x8xf32>
    %c1_256 = arith.constant 1 : index
    %c1_257 = arith.constant 1 : index
    %c0_258 = arith.constant 0 : index
    %c0_259 = arith.constant 0 : index
    %326 = vector.load %arg11[%c1_256, %c1_257, %c0_258, %c0_259] : memref<2x4x1x8xf32, #tpu.memory_space<vmem>>, vector<1x1x1x8xf32>
    %327 = vector.shape_cast %326 : vector<1x1x1x8xf32> to vector<1x8xf32>
    %328 = vector.broadcast %327 : vector<1x8xf32> to vector<10x8xf32>
    %329 = arith.addf %325, %328 : vector<10x8xf32>
    %c1_260 = arith.constant 1 : index
    %c1_261 = arith.constant 1 : index
    %c0_262 = arith.constant 0 : index
    %c0_263 = arith.constant 0 : index
    %330 = vector.load %arg9[%c1_260, %c1_261, %c0_262, %c0_263] : memref<2x4x32x8xf32, #tpu.memory_space<vmem>>, vector<1x1x32x8xf32>
    %331 = vector.shape_cast %330 : vector<1x1x32x8xf32> to vector<32x8xf32>
    %cst_264 = arith.constant dense<0.000000e+00> : vector<10x8xf32>
    %332 = tpu.matmul %278, %331, %cst_264 {dimension_numbers = #tpu.dot_dimension_numbers<[1], [0], [0], [1], [0, 0, 1, 1], [], []>} : vector<10x32xf32>, vector<32x8xf32>, vector<10x8xf32> -> vector<10x8xf32>
    %c1_265 = arith.constant 1 : index
    %c1_266 = arith.constant 1 : index
    %c0_267 = arith.constant 0 : index
    %c0_268 = arith.constant 0 : index
    %333 = vector.load %arg12[%c1_265, %c1_266, %c0_267, %c0_268] : memref<2x4x1x8xf32, #tpu.memory_space<vmem>>, vector<1x1x1x8xf32>
    %334 = vector.shape_cast %333 : vector<1x1x1x8xf32> to vector<1x8xf32>
    %335 = vector.broadcast %334 : vector<1x8xf32> to vector<10x8xf32>
    %336 = arith.addf %332, %335 : vector<10x8xf32>
    %c1_269 = arith.constant 1 : index
    %c1_270 = arith.constant 1 : index
    %c0_271 = arith.constant 0 : index
    %c0_272 = arith.constant 0 : index
    %337 = vector.load %arg10[%c1_269, %c1_270, %c0_271, %c0_272] : memref<2x4x32x8xf32, #tpu.memory_space<vmem>>, vector<1x1x32x8xf32>
    %338 = vector.shape_cast %337 : vector<1x1x32x8xf32> to vector<32x8xf32>
    %cst_273 = arith.constant dense<0.000000e+00> : vector<10x8xf32>
    %339 = tpu.matmul %278, %338, %cst_273 {dimension_numbers = #tpu.dot_dimension_numbers<[1], [0], [0], [1], [0, 0, 1, 1], [], []>} : vector<10x32xf32>, vector<32x8xf32>, vector<10x8xf32> -> vector<10x8xf32>
    %c1_274 = arith.constant 1 : index
    %c1_275 = arith.constant 1 : index
    %c0_276 = arith.constant 0 : index
    %c0_277 = arith.constant 0 : index
    %340 = vector.load %arg13[%c1_274, %c1_275, %c0_276, %c0_277] : memref<2x4x1x8xf32, #tpu.memory_space<vmem>>, vector<1x1x1x8xf32>
    %341 = vector.shape_cast %340 : vector<1x1x1x8xf32> to vector<1x8xf32>
    %342 = vector.broadcast %341 : vector<1x8xf32> to vector<10x8xf32>
    %343 = arith.addf %339, %342 : vector<10x8xf32>
    %344 = tpu.transpose %336, [1, 0] : vector<10x8xf32> -> vector<8x10xf32>
    %cst_278 = arith.constant dense<0.000000e+00> : vector<10x10xf32>
    %345 = tpu.matmul %329, %344, %cst_278 {dimension_numbers = #tpu.dot_dimension_numbers<[1], [0], [0], [1], [0, 0, 1, 1], [], []>} : vector<10x8xf32>, vector<8x10xf32>, vector<10x10xf32> -> vector<10x10xf32>
    %cst_279 = arith.constant 0.353553385 : f32
    %346 = vector.broadcast %cst_279 : f32 to vector<10x10xf32>
    %347 = arith.mulf %345, %346 : vector<10x10xf32>
    %348 = arith.addf %347, %10 : vector<10x10xf32>
    %cst_280 = arith.constant dense<0xFF800000> : vector<10xf32>
    %349 = vector.multi_reduction <maximumf>, %348, %cst_280 [1] : vector<10x10xf32> to vector<10xf32>
    %350 = vector.shape_cast %349 : vector<10xf32> to vector<10x1xf32>
    %351 = vector.broadcast %350 : vector<10x1xf32> to vector<10x10xf32>
    %352 = arith.subf %348, %351 : vector<10x10xf32>
    %353 = math.exp %352 : vector<10x10xf32>
    %cst_281 = arith.constant dense<0.000000e+00> : vector<10xf32>
    %354 = vector.multi_reduction <add>, %353, %cst_281 [1] : vector<10x10xf32> to vector<10xf32>
    %355 = vector.shape_cast %354 : vector<10xf32> to vector<10x1xf32>
    %356 = tpu.reciprocal %355 {approx = true} : vector<10x1xf32> -> vector<10x1xf32>
    %357 = vector.broadcast %356 : vector<10x1xf32> to vector<10x10xf32>
    %358 = arith.mulf %353, %357 : vector<10x10xf32>
    %cst_282 = arith.constant dense<0.000000e+00> : vector<10x8xf32>
    %359 = tpu.matmul %358, %343, %cst_282 {dimension_numbers = #tpu.dot_dimension_numbers<[1], [0], [0], [1], [0, 0, 1, 1], [], []>} : vector<10x10xf32>, vector<10x8xf32>, vector<10x8xf32> -> vector<10x8xf32>
    %c1_283 = arith.constant 1 : index
    %c1_284 = arith.constant 1 : index
    %c0_285 = arith.constant 0 : index
    %c0_286 = arith.constant 0 : index
    %360 = vector.load %arg14[%c1_283, %c1_284, %c0_285, %c0_286] : memref<2x4x8x32xf32, #tpu.memory_space<vmem>>, vector<1x1x8x32xf32>
    %361 = vector.shape_cast %360 : vector<1x1x8x32xf32> to vector<8x32xf32>
    %cst_287 = arith.constant dense<0.000000e+00> : vector<10x32xf32>
    %362 = tpu.matmul %359, %361, %cst_287 {dimension_numbers = #tpu.dot_dimension_numbers<[1], [0], [0], [1], [0, 0, 1, 1], [], []>} : vector<10x8xf32>, vector<8x32xf32>, vector<10x32xf32> -> vector<10x32xf32>
    %363 = arith.addf %322, %362 : vector<10x32xf32>
    %c1_288 = arith.constant 1 : index
    %c2_289 = arith.constant 2 : index
    %c0_290 = arith.constant 0 : index
    %c0_291 = arith.constant 0 : index
    %364 = vector.load %arg8[%c1_288, %c2_289, %c0_290, %c0_291] : memref<2x4x32x8xf32, #tpu.memory_space<vmem>>, vector<1x1x32x8xf32>
    %365 = vector.shape_cast %364 : vector<1x1x32x8xf32> to vector<32x8xf32>
    %cst_292 = arith.constant dense<0.000000e+00> : vector<10x8xf32>
    %366 = tpu.matmul %278, %365, %cst_292 {dimension_numbers = #tpu.dot_dimension_numbers<[1], [0], [0], [1], [0, 0, 1, 1], [], []>} : vector<10x32xf32>, vector<32x8xf32>, vector<10x8xf32> -> vector<10x8xf32>
    %c1_293 = arith.constant 1 : index
    %c2_294 = arith.constant 2 : index
    %c0_295 = arith.constant 0 : index
    %c0_296 = arith.constant 0 : index
    %367 = vector.load %arg11[%c1_293, %c2_294, %c0_295, %c0_296] : memref<2x4x1x8xf32, #tpu.memory_space<vmem>>, vector<1x1x1x8xf32>
    %368 = vector.shape_cast %367 : vector<1x1x1x8xf32> to vector<1x8xf32>
    %369 = vector.broadcast %368 : vector<1x8xf32> to vector<10x8xf32>
    %370 = arith.addf %366, %369 : vector<10x8xf32>
    %c1_297 = arith.constant 1 : index
    %c2_298 = arith.constant 2 : index
    %c0_299 = arith.constant 0 : index
    %c0_300 = arith.constant 0 : index
    %371 = vector.load %arg9[%c1_297, %c2_298, %c0_299, %c0_300] : memref<2x4x32x8xf32, #tpu.memory_space<vmem>>, vector<1x1x32x8xf32>
    %372 = vector.shape_cast %371 : vector<1x1x32x8xf32> to vector<32x8xf32>
    %cst_301 = arith.constant dense<0.000000e+00> : vector<10x8xf32>
    %373 = tpu.matmul %278, %372, %cst_301 {dimension_numbers = #tpu.dot_dimension_numbers<[1], [0], [0], [1], [0, 0, 1, 1], [], []>} : vector<10x32xf32>, vector<32x8xf32>, vector<10x8xf32> -> vector<10x8xf32>
    %c1_302 = arith.constant 1 : index
    %c2_303 = arith.constant 2 : index
    %c0_304 = arith.constant 0 : index
    %c0_305 = arith.constant 0 : index
    %374 = vector.load %arg12[%c1_302, %c2_303, %c0_304, %c0_305] : memref<2x4x1x8xf32, #tpu.memory_space<vmem>>, vector<1x1x1x8xf32>
    %375 = vector.shape_cast %374 : vector<1x1x1x8xf32> to vector<1x8xf32>
    %376 = vector.broadcast %375 : vector<1x8xf32> to vector<10x8xf32>
    %377 = arith.addf %373, %376 : vector<10x8xf32>
    %c1_306 = arith.constant 1 : index
    %c2_307 = arith.constant 2 : index
    %c0_308 = arith.constant 0 : index
    %c0_309 = arith.constant 0 : index
    %378 = vector.load %arg10[%c1_306, %c2_307, %c0_308, %c0_309] : memref<2x4x32x8xf32, #tpu.memory_space<vmem>>, vector<1x1x32x8xf32>
    %379 = vector.shape_cast %378 : vector<1x1x32x8xf32> to vector<32x8xf32>
    %cst_310 = arith.constant dense<0.000000e+00> : vector<10x8xf32>
    %380 = tpu.matmul %278, %379, %cst_310 {dimension_numbers = #tpu.dot_dimension_numbers<[1], [0], [0], [1], [0, 0, 1, 1], [], []>} : vector<10x32xf32>, vector<32x8xf32>, vector<10x8xf32> -> vector<10x8xf32>
    %c1_311 = arith.constant 1 : index
    %c2_312 = arith.constant 2 : index
    %c0_313 = arith.constant 0 : index
    %c0_314 = arith.constant 0 : index
    %381 = vector.load %arg13[%c1_311, %c2_312, %c0_313, %c0_314] : memref<2x4x1x8xf32, #tpu.memory_space<vmem>>, vector<1x1x1x8xf32>
    %382 = vector.shape_cast %381 : vector<1x1x1x8xf32> to vector<1x8xf32>
    %383 = vector.broadcast %382 : vector<1x8xf32> to vector<10x8xf32>
    %384 = arith.addf %380, %383 : vector<10x8xf32>
    %385 = tpu.transpose %377, [1, 0] : vector<10x8xf32> -> vector<8x10xf32>
    %cst_315 = arith.constant dense<0.000000e+00> : vector<10x10xf32>
    %386 = tpu.matmul %370, %385, %cst_315 {dimension_numbers = #tpu.dot_dimension_numbers<[1], [0], [0], [1], [0, 0, 1, 1], [], []>} : vector<10x8xf32>, vector<8x10xf32>, vector<10x10xf32> -> vector<10x10xf32>
    %cst_316 = arith.constant 0.353553385 : f32
    %387 = vector.broadcast %cst_316 : f32 to vector<10x10xf32>
    %388 = arith.mulf %386, %387 : vector<10x10xf32>
    %389 = arith.addf %388, %10 : vector<10x10xf32>
    %cst_317 = arith.constant dense<0xFF800000> : vector<10xf32>
    %390 = vector.multi_reduction <maximumf>, %389, %cst_317 [1] : vector<10x10xf32> to vector<10xf32>
    %391 = vector.shape_cast %390 : vector<10xf32> to vector<10x1xf32>
    %392 = vector.broadcast %391 : vector<10x1xf32> to vector<10x10xf32>
    %393 = arith.subf %389, %392 : vector<10x10xf32>
    %394 = math.exp %393 : vector<10x10xf32>
    %cst_318 = arith.constant dense<0.000000e+00> : vector<10xf32>
    %395 = vector.multi_reduction <add>, %394, %cst_318 [1] : vector<10x10xf32> to vector<10xf32>
    %396 = vector.shape_cast %395 : vector<10xf32> to vector<10x1xf32>
    %397 = tpu.reciprocal %396 {approx = true} : vector<10x1xf32> -> vector<10x1xf32>
    %398 = vector.broadcast %397 : vector<10x1xf32> to vector<10x10xf32>
    %399 = arith.mulf %394, %398 : vector<10x10xf32>
    %cst_319 = arith.constant dense<0.000000e+00> : vector<10x8xf32>
    %400 = tpu.matmul %399, %384, %cst_319 {dimension_numbers = #tpu.dot_dimension_numbers<[1], [0], [0], [1], [0, 0, 1, 1], [], []>} : vector<10x10xf32>, vector<10x8xf32>, vector<10x8xf32> -> vector<10x8xf32>
    %c1_320 = arith.constant 1 : index
    %c2_321 = arith.constant 2 : index
    %c0_322 = arith.constant 0 : index
    %c0_323 = arith.constant 0 : index
    %401 = vector.load %arg14[%c1_320, %c2_321, %c0_322, %c0_323] : memref<2x4x8x32xf32, #tpu.memory_space<vmem>>, vector<1x1x8x32xf32>
    %402 = vector.shape_cast %401 : vector<1x1x8x32xf32> to vector<8x32xf32>
    %cst_324 = arith.constant dense<0.000000e+00> : vector<10x32xf32>
    %403 = tpu.matmul %400, %402, %cst_324 {dimension_numbers = #tpu.dot_dimension_numbers<[1], [0], [0], [1], [0, 0, 1, 1], [], []>} : vector<10x8xf32>, vector<8x32xf32>, vector<10x32xf32> -> vector<10x32xf32>
    %404 = arith.addf %363, %403 : vector<10x32xf32>
    %c1_325 = arith.constant 1 : index
    %c3_326 = arith.constant 3 : index
    %c0_327 = arith.constant 0 : index
    %c0_328 = arith.constant 0 : index
    %405 = vector.load %arg8[%c1_325, %c3_326, %c0_327, %c0_328] : memref<2x4x32x8xf32, #tpu.memory_space<vmem>>, vector<1x1x32x8xf32>
    %406 = vector.shape_cast %405 : vector<1x1x32x8xf32> to vector<32x8xf32>
    %cst_329 = arith.constant dense<0.000000e+00> : vector<10x8xf32>
    %407 = tpu.matmul %278, %406, %cst_329 {dimension_numbers = #tpu.dot_dimension_numbers<[1], [0], [0], [1], [0, 0, 1, 1], [], []>} : vector<10x32xf32>, vector<32x8xf32>, vector<10x8xf32> -> vector<10x8xf32>
    %c1_330 = arith.constant 1 : index
    %c3_331 = arith.constant 3 : index
    %c0_332 = arith.constant 0 : index
    %c0_333 = arith.constant 0 : index
    %408 = vector.load %arg11[%c1_330, %c3_331, %c0_332, %c0_333] : memref<2x4x1x8xf32, #tpu.memory_space<vmem>>, vector<1x1x1x8xf32>
    %409 = vector.shape_cast %408 : vector<1x1x1x8xf32> to vector<1x8xf32>
    %410 = vector.broadcast %409 : vector<1x8xf32> to vector<10x8xf32>
    %411 = arith.addf %407, %410 : vector<10x8xf32>
    %c1_334 = arith.constant 1 : index
    %c3_335 = arith.constant 3 : index
    %c0_336 = arith.constant 0 : index
    %c0_337 = arith.constant 0 : index
    %412 = vector.load %arg9[%c1_334, %c3_335, %c0_336, %c0_337] : memref<2x4x32x8xf32, #tpu.memory_space<vmem>>, vector<1x1x32x8xf32>
    %413 = vector.shape_cast %412 : vector<1x1x32x8xf32> to vector<32x8xf32>
    %cst_338 = arith.constant dense<0.000000e+00> : vector<10x8xf32>
    %414 = tpu.matmul %278, %413, %cst_338 {dimension_numbers = #tpu.dot_dimension_numbers<[1], [0], [0], [1], [0, 0, 1, 1], [], []>} : vector<10x32xf32>, vector<32x8xf32>, vector<10x8xf32> -> vector<10x8xf32>
    %c1_339 = arith.constant 1 : index
    %c3_340 = arith.constant 3 : index
    %c0_341 = arith.constant 0 : index
    %c0_342 = arith.constant 0 : index
    %415 = vector.load %arg12[%c1_339, %c3_340, %c0_341, %c0_342] : memref<2x4x1x8xf32, #tpu.memory_space<vmem>>, vector<1x1x1x8xf32>
    %416 = vector.shape_cast %415 : vector<1x1x1x8xf32> to vector<1x8xf32>
    %417 = vector.broadcast %416 : vector<1x8xf32> to vector<10x8xf32>
    %418 = arith.addf %414, %417 : vector<10x8xf32>
    %c1_343 = arith.constant 1 : index
    %c3_344 = arith.constant 3 : index
    %c0_345 = arith.constant 0 : index
    %c0_346 = arith.constant 0 : index
    %419 = vector.load %arg10[%c1_343, %c3_344, %c0_345, %c0_346] : memref<2x4x32x8xf32, #tpu.memory_space<vmem>>, vector<1x1x32x8xf32>
    %420 = vector.shape_cast %419 : vector<1x1x32x8xf32> to vector<32x8xf32>
    %cst_347 = arith.constant dense<0.000000e+00> : vector<10x8xf32>
    %421 = tpu.matmul %278, %420, %cst_347 {dimension_numbers = #tpu.dot_dimension_numbers<[1], [0], [0], [1], [0, 0, 1, 1], [], []>} : vector<10x32xf32>, vector<32x8xf32>, vector<10x8xf32> -> vector<10x8xf32>
    %c1_348 = arith.constant 1 : index
    %c3_349 = arith.constant 3 : index
    %c0_350 = arith.constant 0 : index
    %c0_351 = arith.constant 0 : index
    %422 = vector.load %arg13[%c1_348, %c3_349, %c0_350, %c0_351] : memref<2x4x1x8xf32, #tpu.memory_space<vmem>>, vector<1x1x1x8xf32>
    %423 = vector.shape_cast %422 : vector<1x1x1x8xf32> to vector<1x8xf32>
    %424 = vector.broadcast %423 : vector<1x8xf32> to vector<10x8xf32>
    %425 = arith.addf %421, %424 : vector<10x8xf32>
    %426 = tpu.transpose %418, [1, 0] : vector<10x8xf32> -> vector<8x10xf32>
    %cst_352 = arith.constant dense<0.000000e+00> : vector<10x10xf32>
    %427 = tpu.matmul %411, %426, %cst_352 {dimension_numbers = #tpu.dot_dimension_numbers<[1], [0], [0], [1], [0, 0, 1, 1], [], []>} : vector<10x8xf32>, vector<8x10xf32>, vector<10x10xf32> -> vector<10x10xf32>
    %cst_353 = arith.constant 0.353553385 : f32
    %428 = vector.broadcast %cst_353 : f32 to vector<10x10xf32>
    %429 = arith.mulf %427, %428 : vector<10x10xf32>
    %430 = arith.addf %429, %10 : vector<10x10xf32>
    %cst_354 = arith.constant dense<0xFF800000> : vector<10xf32>
    %431 = vector.multi_reduction <maximumf>, %430, %cst_354 [1] : vector<10x10xf32> to vector<10xf32>
    %432 = vector.shape_cast %431 : vector<10xf32> to vector<10x1xf32>
    %433 = vector.broadcast %432 : vector<10x1xf32> to vector<10x10xf32>
    %434 = arith.subf %430, %433 : vector<10x10xf32>
    %435 = math.exp %434 : vector<10x10xf32>
    %cst_355 = arith.constant dense<0.000000e+00> : vector<10xf32>
    %436 = vector.multi_reduction <add>, %435, %cst_355 [1] : vector<10x10xf32> to vector<10xf32>
    %437 = vector.shape_cast %436 : vector<10xf32> to vector<10x1xf32>
    %438 = tpu.reciprocal %437 {approx = true} : vector<10x1xf32> -> vector<10x1xf32>
    %439 = vector.broadcast %438 : vector<10x1xf32> to vector<10x10xf32>
    %440 = arith.mulf %435, %439 : vector<10x10xf32>
    %cst_356 = arith.constant dense<0.000000e+00> : vector<10x8xf32>
    %441 = tpu.matmul %440, %425, %cst_356 {dimension_numbers = #tpu.dot_dimension_numbers<[1], [0], [0], [1], [0, 0, 1, 1], [], []>} : vector<10x10xf32>, vector<10x8xf32>, vector<10x8xf32> -> vector<10x8xf32>
    %c1_357 = arith.constant 1 : index
    %c3_358 = arith.constant 3 : index
    %c0_359 = arith.constant 0 : index
    %c0_360 = arith.constant 0 : index
    %442 = vector.load %arg14[%c1_357, %c3_358, %c0_359, %c0_360] : memref<2x4x8x32xf32, #tpu.memory_space<vmem>>, vector<1x1x8x32xf32>
    %443 = vector.shape_cast %442 : vector<1x1x8x32xf32> to vector<8x32xf32>
    %cst_361 = arith.constant dense<0.000000e+00> : vector<10x32xf32>
    %444 = tpu.matmul %441, %443, %cst_361 {dimension_numbers = #tpu.dot_dimension_numbers<[1], [0], [0], [1], [0, 0, 1, 1], [], []>} : vector<10x8xf32>, vector<8x32xf32>, vector<10x32xf32> -> vector<10x32xf32>
    %445 = arith.addf %404, %444 : vector<10x32xf32>
    %446 = arith.addf %254, %445 : vector<10x32xf32>
    %c1_362 = arith.constant 1 : index
    %c0_363 = arith.constant 0 : index
    %c0_364 = arith.constant 0 : index
    %447 = vector.load %arg16[%c1_362, %c0_363, %c0_364] : memref<2x1x32xf32, #tpu.memory_space<vmem>>, vector<1x1x32xf32>
    %448 = vector.shape_cast %447 : vector<1x1x32xf32> to vector<1x32xf32>
    %c1_365 = arith.constant 1 : index
    %c0_366 = arith.constant 0 : index
    %c0_367 = arith.constant 0 : index
    %449 = vector.load %arg17[%c1_365, %c0_366, %c0_367] : memref<2x1x32xf32, #tpu.memory_space<vmem>>, vector<1x1x32xf32>
    %450 = vector.shape_cast %449 : vector<1x1x32xf32> to vector<1x32xf32>
    %cst_368 = arith.constant dense<0.000000e+00> : vector<10xf32>
    %451 = vector.multi_reduction <add>, %446, %cst_368 [1] : vector<10x32xf32> to vector<10xf32>
    %452 = vector.shape_cast %451 : vector<10xf32> to vector<10x1xf32>
    %cst_369 = arith.constant 3.200000e+01 : f32
    %453 = vector.broadcast %cst_369 : f32 to vector<10x1xf32>
    %454 = arith.divf %452, %453 : vector<10x1xf32>
    %455 = vector.broadcast %454 : vector<10x1xf32> to vector<10x32xf32>
    %456 = arith.subf %446, %455 : vector<10x32xf32>
    %457 = arith.mulf %456, %456 : vector<10x32xf32>
    %cst_370 = arith.constant dense<0.000000e+00> : vector<10xf32>
    %458 = vector.multi_reduction <add>, %457, %cst_370 [1] : vector<10x32xf32> to vector<10xf32>
    %459 = vector.shape_cast %458 : vector<10xf32> to vector<10x1xf32>
    %cst_371 = arith.constant 3.200000e+01 : f32
    %460 = vector.broadcast %cst_371 : f32 to vector<10x1xf32>
    %461 = arith.divf %459, %460 : vector<10x1xf32>
    %cst_372 = arith.constant 9.99999997E-7 : f32
    %462 = vector.broadcast %cst_372 : f32 to vector<10x1xf32>
    %463 = arith.addf %461, %462 : vector<10x1xf32>
    %464 = math.rsqrt %463 : vector<10x1xf32>
    %465 = vector.broadcast %464 : vector<10x1xf32> to vector<10x32xf32>
    %466 = arith.mulf %456, %465 : vector<10x32xf32>
    %467 = vector.broadcast %448 : vector<1x32xf32> to vector<10x32xf32>
    %468 = arith.mulf %466, %467 : vector<10x32xf32>
    %469 = vector.broadcast %450 : vector<1x32xf32> to vector<10x32xf32>
    %470 = arith.addf %468, %469 : vector<10x32xf32>
    %c1_373 = arith.constant 1 : index
    %c0_374 = arith.constant 0 : index
    %c0_375 = arith.constant 0 : index
    %471 = vector.load %arg18[%c1_373, %c0_374, %c0_375] : memref<2x32x128xf32, #tpu.memory_space<vmem>>, vector<1x32x128xf32>
    %472 = vector.shape_cast %471 : vector<1x32x128xf32> to vector<32x128xf32>
    %cst_376 = arith.constant dense<0.000000e+00> : vector<10x128xf32>
    %473 = tpu.matmul %470, %472, %cst_376 {dimension_numbers = #tpu.dot_dimension_numbers<[1], [0], [0], [1], [0, 0, 1, 1], [], []>} : vector<10x32xf32>, vector<32x128xf32>, vector<10x128xf32> -> vector<10x128xf32>
    %c1_377 = arith.constant 1 : index
    %c0_378 = arith.constant 0 : index
    %c0_379 = arith.constant 0 : index
    %474 = vector.load %arg19[%c1_377, %c0_378, %c0_379] : memref<2x1x128xf32, #tpu.memory_space<vmem>>, vector<1x1x128xf32>
    %475 = vector.shape_cast %474 : vector<1x1x128xf32> to vector<1x128xf32>
    %476 = vector.broadcast %475 : vector<1x128xf32> to vector<10x128xf32>
    %477 = arith.addf %473, %476 : vector<10x128xf32>
    %478 = arith.mulf %477, %477 : vector<10x128xf32>
    %479 = arith.mulf %477, %478 : vector<10x128xf32>
    %cst_380 = arith.constant 4.471500e-02 : f32
    %480 = vector.broadcast %cst_380 : f32 to vector<10x128xf32>
    %481 = arith.mulf %480, %479 : vector<10x128xf32>
    %482 = arith.addf %477, %481 : vector<10x128xf32>
    %cst_381 = arith.constant 0.797884583 : f32
    %483 = vector.broadcast %cst_381 : f32 to vector<10x128xf32>
    %484 = arith.mulf %483, %482 : vector<10x128xf32>
    %485 = math.tanh %484 : vector<10x128xf32>
    %cst_382 = arith.constant 1.000000e+00 : f32
    %486 = vector.broadcast %cst_382 : f32 to vector<10x128xf32>
    %487 = arith.addf %486, %485 : vector<10x128xf32>
    %cst_383 = arith.constant 5.000000e-01 : f32
    %488 = vector.broadcast %cst_383 : f32 to vector<10x128xf32>
    %489 = arith.mulf %488, %487 : vector<10x128xf32>
    %490 = arith.mulf %477, %489 : vector<10x128xf32>
    %c1_384 = arith.constant 1 : index
    %c0_385 = arith.constant 0 : index
    %c0_386 = arith.constant 0 : index
    %491 = vector.load %arg20[%c1_384, %c0_385, %c0_386] : memref<2x128x32xf32, #tpu.memory_space<vmem>>, vector<1x128x32xf32>
    %492 = vector.shape_cast %491 : vector<1x128x32xf32> to vector<128x32xf32>
    %cst_387 = arith.constant dense<0.000000e+00> : vector<10x32xf32>
    %493 = tpu.matmul %490, %492, %cst_387 {dimension_numbers = #tpu.dot_dimension_numbers<[1], [0], [0], [1], [0, 0, 1, 1], [], []>} : vector<10x128xf32>, vector<128x32xf32>, vector<10x32xf32> -> vector<10x32xf32>
    %c1_388 = arith.constant 1 : index
    %c0_389 = arith.constant 0 : index
    %c0_390 = arith.constant 0 : index
    %494 = vector.load %arg21[%c1_388, %c0_389, %c0_390] : memref<2x1x32xf32, #tpu.memory_space<vmem>>, vector<1x1x32xf32>
    %495 = vector.shape_cast %494 : vector<1x1x32xf32> to vector<1x32xf32>
    %496 = vector.broadcast %495 : vector<1x32xf32> to vector<10x32xf32>
    %497 = arith.addf %493, %496 : vector<10x32xf32>
    %498 = arith.addf %446, %497 : vector<10x32xf32>
    %c0_391 = arith.constant 0 : index
    %c0_392 = arith.constant 0 : index
    %499 = vector.load %arg22[%c0_391, %c0_392] : memref<1x32xf32, #tpu.memory_space<vmem>>, vector<1x32xf32>
    %c0_393 = arith.constant 0 : index
    %c0_394 = arith.constant 0 : index
    %500 = vector.load %arg23[%c0_393, %c0_394] : memref<1x32xf32, #tpu.memory_space<vmem>>, vector<1x32xf32>
    %cst_395 = arith.constant dense<0.000000e+00> : vector<10xf32>
    %501 = vector.multi_reduction <add>, %498, %cst_395 [1] : vector<10x32xf32> to vector<10xf32>
    %502 = vector.shape_cast %501 : vector<10xf32> to vector<10x1xf32>
    %cst_396 = arith.constant 3.200000e+01 : f32
    %503 = vector.broadcast %cst_396 : f32 to vector<10x1xf32>
    %504 = arith.divf %502, %503 : vector<10x1xf32>
    %505 = vector.broadcast %504 : vector<10x1xf32> to vector<10x32xf32>
    %506 = arith.subf %498, %505 : vector<10x32xf32>
    %507 = arith.mulf %506, %506 : vector<10x32xf32>
    %cst_397 = arith.constant dense<0.000000e+00> : vector<10xf32>
    %508 = vector.multi_reduction <add>, %507, %cst_397 [1] : vector<10x32xf32> to vector<10xf32>
    %509 = vector.shape_cast %508 : vector<10xf32> to vector<10x1xf32>
    %cst_398 = arith.constant 3.200000e+01 : f32
    %510 = vector.broadcast %cst_398 : f32 to vector<10x1xf32>
    %511 = arith.divf %509, %510 : vector<10x1xf32>
    %cst_399 = arith.constant 9.99999997E-7 : f32
    %512 = vector.broadcast %cst_399 : f32 to vector<10x1xf32>
    %513 = arith.addf %511, %512 : vector<10x1xf32>
    %514 = math.rsqrt %513 : vector<10x1xf32>
    %515 = vector.broadcast %514 : vector<10x1xf32> to vector<10x32xf32>
    %516 = arith.mulf %506, %515 : vector<10x32xf32>
    %517 = vector.broadcast %499 : vector<1x32xf32> to vector<10x32xf32>
    %518 = arith.mulf %516, %517 : vector<10x32xf32>
    %519 = vector.broadcast %500 : vector<1x32xf32> to vector<10x32xf32>
    %520 = arith.addf %518, %519 : vector<10x32xf32>
    %c0_400 = arith.constant 0 : index
    %c0_401 = arith.constant 0 : index
    %521 = vector.load %arg24[%c0_400, %c0_401] : memref<10x32xf32, #tpu.memory_space<vmem>>, vector<10x32xf32>
    tpu.vector_store %arg24[%c0_400, %c0_401], %520 {strides = array<i32>} : memref<10x32xf32, #tpu.memory_space<vmem>>, vector<10x32xf32>,
    return
  }
}

</mosaic_0001>

<llo_original>
// kernel: tpu_custom_call.1
$region0: #{tpu_custom_call.1}
  #allocation0 [shape = 'u32[]', space=smem, size = 0x4, offset = 0x4, fixed_abs, tag = 'smem constant byte address 0x4 - core index']
  #allocation1 [shape = 'u32[144,128]{1,0:T(1,128)}', space=vmem, size = 0x12000, scoped, tag = 'internal scratch']
  %s0 = inlined_call_operand.vmem [shape: f32[8,192], index: 0, kind: input, shape index: {}]
  %s1 = inlined_call_operand.vmem [shape: f32[192,32], index: 1, kind: input, shape index: {}]
  %s2 = inlined_call_operand.vmem [shape: f32[1,32], index: 2, kind: input, shape index: {}]
  %s3 = inlined_call_operand.vmem [shape: f32[10,32], index: 3, kind: input, shape index: {}]
  %s4 = inlined_call_operand.vmem [shape: f32[10,8], index: 4, kind: input, shape index: {}]
  %s5 = inlined_call_operand.vmem [shape: f32[10,10], index: 5, kind: input, shape index: {}]
  %s6 = inlined_call_operand.vmem [shape: f32[2,1,32], index: 6, kind: input, shape index: {}]
  %s7 = inlined_call_operand.vmem [shape: f32[2,1,32], index: 7, kind: input, shape index: {}]
  %s8 = inlined_call_operand.vmem [shape: f32[2,4,32,8], index: 8, kind: input, shape index: {}]
  %s9 = inlined_call_operand.vmem [shape: f32[2,4,32,8], index: 9, kind: input, shape index: {}]
  %s10 = inlined_call_operand.vmem [shape: f32[2,4,32,8], index: 10, kind: input, shape index: {}]
  %s11 = inlined_call_operand.vmem [shape: f32[2,4,1,8], index: 11, kind: input, shape index: {}]
  %s12 = inlined_call_operand.vmem [shape: f32[2,4,1,8], index: 12, kind: input, shape index: {}]
  %s13 = inlined_call_operand.vmem [shape: f32[2,4,1,8], index: 13, kind: input, shape index: {}]
  %s14 = inlined_call_operand.vmem [shape: f32[2,4,8,32], index: 14, kind: input, shape index: {}]
  %s15 = inlined_call_operand.vmem [shape: f32[2,1,32], index: 15, kind: input, shape index: {}]
  %s16 = inlined_call_operand.vmem [shape: f32[2,1,32], index: 16, kind: input, shape index: {}]
  %s17 = inlined_call_operand.vmem [shape: f32[2,1,32], index: 17, kind: input, shape index: {}]
  %s18 = inlined_call_operand.vmem [shape: f32[2,32,128], index: 18, kind: input, shape index: {}]
  %s19 = inlined_call_operand.vmem [shape: f32[2,1,128], index: 19, kind: input, shape index: {}]
  %s20 = inlined_call_operand.vmem [shape: f32[2,128,32], index: 20, kind: input, shape index: {}]
  %s21 = inlined_call_operand.vmem [shape: f32[2,1,32], index: 21, kind: input, shape index: {}]
  %s22 = inlined_call_operand.vmem [shape: f32[1,32], index: 22, kind: input, shape index: {}]
  %s23 = inlined_call_operand.vmem [shape: f32[1,32], index: 23, kind: input, shape index: {}]
  %s24 = inlined_call_operand.hbm [shape: f32[10,32], index: 24, kind: output, shape index: {}]
  %s25 = sld [smem:[#allocation0]]
  $region106: #{tpu_custom_call.1} parent=0
    _
  %s27 = ssub.s32 1, %s25
  %s28 = scalar_select 0, %s27, %s25
  $region1: #{tpu_custom_call.1} parent=0
    #allocation2 [shape = 'u8[8192]{0}', space=vmem, size = 0x2000, scoped, tag = 'output window, operand 0, single buffered']
    #allocation3 [shape = 's32[1]{0}', space=sflag, size = 0x4, scoped, tag = 'scoped memory for tpu_custom_call.1']
    %29 = vsyncpa [#allocation3], 0
    // Predicated region
    $region2: #{tpu_custom_call.1} parent=1 // pred_check
      _
    $region3: #{tpu_custom_call.1} parent=1 // pred_check_branch
      %31 = sbr.rel (0) target = $region5
    $region4: #{tpu_custom_call.1} parent=1 // pred_region
      _
    $region5: #{tpu_custom_call.1} parent=1 // pred_fallthru
      _
    // Predicated region
    $region6: #{tpu_custom_call.1} parent=1 // pred_check
      _
    $region7: #{tpu_custom_call.1} parent=1 // pred_check_branch
      %33 = sbr.rel (0) target = $region9
    $region8: #{tpu_custom_call.1} parent=1 // pred_region
      _
    $region9: #{tpu_custom_call.1} parent=1 // pred_fallthru
      _
    // Predicated region
    $region10: #{tpu_custom_call.1} parent=1 // pred_check
      _
    $region11: #{tpu_custom_call.1} parent=1 // pred_check_branch
      %35 = sbr.rel (0) target = $region13
    $region12: #{tpu_custom_call.1} parent=1 // pred_region
      _
    $region13: #{tpu_custom_call.1} parent=1 // pred_fallthru
      _
    // Predicated region
    $region14: #{tpu_custom_call.1} parent=1 // pred_check
      _
    $region15: #{tpu_custom_call.1} parent=1 // pred_check_branch
      %37 = sbr.rel (0) target = $region17
    $region16: #{tpu_custom_call.1} parent=1 // pred_region
      _
    $region17: #{tpu_custom_call.1} parent=1 // pred_fallthru
      _
    // Predicated region
    $region18: #{tpu_custom_call.1} parent=1 // pred_check
      _
    $region19: #{tpu_custom_call.1} parent=1 // pred_check_branch
      %39 = sbr.rel (0) target = $region21
    $region20: #{tpu_custom_call.1} parent=1 // pred_region
      _
    $region21: #{tpu_custom_call.1} parent=1 // pred_fallthru
      _
    // Predicated region
    $region22: #{tpu_custom_call.1} parent=1 // pred_check
      _
    $region23: #{tpu_custom_call.1} parent=1 // pred_check_branch
      %41 = sbr.rel (0) target = $region25
    $region24: #{tpu_custom_call.1} parent=1 // pred_region
      _
    $region25: #{tpu_custom_call.1} parent=1 // pred_fallthru
      _
    // Predicated region
    $region26: #{tpu_custom_call.1} parent=1 // pred_check
      _
    $region27: #{tpu_custom_call.1} parent=1 // pred_check_branch
      %43 = sbr.rel (0) target = $region29
    $region28: #{tpu_custom_call.1} parent=1 // pred_region
      _
    $region29: #{tpu_custom_call.1} parent=1 // pred_fallthru
      _
    // Predicated region
    $region30: #{tpu_custom_call.1} parent=1 // pred_check
      _
    $region31: #{tpu_custom_call.1} parent=1 // pred_check_branch
      %45 = sbr.rel (0) target = $region33
    $region32: #{tpu_custom_call.1} parent=1 // pred_region
      _
    $region33: #{tpu_custom_call.1} parent=1 // pred_fallthru
      _
    // Predicated region
    $region34: #{tpu_custom_call.1} parent=1 // pred_check
      _
    $region35: #{tpu_custom_call.1} parent=1 // pred_check_branch
      %47 = sbr.rel (0) target = $region37
    $region36: #{tpu_custom_call.1} parent=1 // pred_region
      _
    $region37: #{tpu_custom_call.1} parent=1 // pred_fallthru
      _
    // Predicated region
    $region38: #{tpu_custom_call.1} parent=1 // pred_check
      _
    $region39: #{tpu_custom_call.1} parent=1 // pred_check_branch
      %49 = sbr.rel (0) target = $region41
    $region40: #{tpu_custom_call.1} parent=1 // pred_region
      _
    $region41: #{tpu_custom_call.1} parent=1 // pred_fallthru
      _
    // Predicated region
    $region42: #{tpu_custom_call.1} parent=1 // pred_check
      _
    $region43: #{tpu_custom_call.1} parent=1 // pred_check_branch
      %51 = sbr.rel (0) target = $region45
    $region44: #{tpu_custom_call.1} parent=1 // pred_region
      _
    $region45: #{tpu_custom_call.1} parent=1 // pred_fallthru
      _
    // Predicated region
    $region46: #{tpu_custom_call.1} parent=1 // pred_check
      _
    $region47: #{tpu_custom_call.1} parent=1 // pred_check_branch
      %53 = sbr.rel (0) target = $region49
    $region48: #{tpu_custom_call.1} parent=1 // pred_region
      _
    $region49: #{tpu_custom_call.1} parent=1 // pred_fallthru
      _
    // Predicated region
    $region50: #{tpu_custom_call.1} parent=1 // pred_check
      _
    $region51: #{tpu_custom_call.1} parent=1 // pred_check_branch
      %55 = sbr.rel (0) target = $region53
    $region52: #{tpu_custom_call.1} parent=1 // pred_region
      _
    $region53: #{tpu_custom_call.1} parent=1 // pred_fallthru
      _
    // Predicated region
    $region54: #{tpu_custom_call.1} parent=1 // pred_check
      _
    $region55: #{tpu_custom_call.1} parent=1 // pred_check_branch
      %57 = sbr.rel (0) target = $region57
    $region56: #{tpu_custom_call.1} parent=1 // pred_region
      _
    $region57: #{tpu_custom_call.1} parent=1 // pred_fallthru
      _
    // Predicated region
    $region58: #{tpu_custom_call.1} parent=1 // pred_check
      _
    $region59: #{tpu_custom_call.1} parent=1 // pred_check_branch
      %59 = sbr.rel (0) target = $region61
    $region60: #{tpu_custom_call.1} parent=1 // pred_region
      _
    $region61: #{tpu_custom_call.1} parent=1 // pred_fallthru
      _
    // Predicated region
    $region62: #{tpu_custom_call.1} parent=1 // pred_check
      _
    $region63: #{tpu_custom_call.1} parent=1 // pred_check_branch
      %61 = sbr.rel (0) target = $region65
    $region64: #{tpu_custom_call.1} parent=1 // pred_region
      _
    $region65: #{tpu_custom_call.1} parent=1 // pred_fallthru
      _
    // Predicated region
    $region66: #{tpu_custom_call.1} parent=1 // pred_check
      _
    $region67: #{tpu_custom_call.1} parent=1 // pred_check_branch
      %63 = sbr.rel (0) target = $region69
    $region68: #{tpu_custom_call.1} parent=1 // pred_region
      _
    $region69: #{tpu_custom_call.1} parent=1 // pred_fallthru
      _
    // Predicated region
    $region70: #{tpu_custom_call.1} parent=1 // pred_check
      _
    $region71: #{tpu_custom_call.1} parent=1 // pred_check_branch
      %65 = sbr.rel (0) target = $region73
    $region72: #{tpu_custom_call.1} parent=1 // pred_region
      _
    $region73: #{tpu_custom_call.1} parent=1 // pred_fallthru
      _
    // Predicated region
    $region74: #{tpu_custom_call.1} parent=1 // pred_check
      _
    $region75: #{tpu_custom_call.1} parent=1 // pred_check_branch
      %67 = sbr.rel (0) target = $region77
    $region76: #{tpu_custom_call.1} parent=1 // pred_region
      _
    $region77: #{tpu_custom_call.1} parent=1 // pred_fallthru
      _
    // Predicated region
    $region78: #{tpu_custom_call.1} parent=1 // pred_check
      _
    $region79: #{tpu_custom_call.1} parent=1 // pred_check_branch
      %69 = sbr.rel (0) target = $region81
    $region80: #{tpu_custom_call.1} parent=1 // pred_region
      _
    $region81: #{tpu_custom_call.1} parent=1 // pred_fallthru
      _
    // Predicated region
    $region82: #{tpu_custom_call.1} parent=1 // pred_check
      _
    $region83: #{tpu_custom_call.1} parent=1 // pred_check_branch
      %71 = sbr.rel (0) target = $region85
    $region84: #{tpu_custom_call.1} parent=1 // pred_region
      _
    $region85: #{tpu_custom_call.1} parent=1 // pred_fallthru
      _
    // Predicated region
    $region86: #{tpu_custom_call.1} parent=1 // pred_check
      _
    $region87: #{tpu_custom_call.1} parent=1 // pred_check_branch
      %73 = sbr.rel (0) target = $region89
    $region88: #{tpu_custom_call.1} parent=1 // pred_region
      _
    $region89: #{tpu_custom_call.1} parent=1 // pred_fallthru
      _
    // Predicated region
    $region90: #{tpu_custom_call.1} parent=1 // pred_check
      _
    $region91: #{tpu_custom_call.1} parent=1 // pred_check_branch
      %75 = sbr.rel (0) target = $region93
    $region92: #{tpu_custom_call.1} parent=1 // pred_region
      _
    $region93: #{tpu_custom_call.1} parent=1 // pred_fallthru
      _
    // Predicated region
    $region94: #{tpu_custom_call.1} parent=1 // pred_check
      _
    $region95: #{tpu_custom_call.1} parent=1 // pred_check_branch
      %77 = sbr.rel (0) target = $region97
    $region96: #{tpu_custom_call.1} parent=1 // pred_region
      _
    $region97: #{tpu_custom_call.1} parent=1 // pred_fallthru
      _
    %v78 = vld [vmem:[%s0] sm:$0xff]
    %v79 = vld [vmem:[%s0 + $0x8] sm:$0xff]
    %v80 = vld [vmem:[%s1] sm:$0xff]
    %v81 = vld [vmem:[%s1 + $0x8] sm:$0xff]
    %v82 = vld [vmem:[%s1 + $0x10] sm:$0xff]
    %v83 = vld [vmem:[%s1 + $0x18] sm:$0xff]
    %v84 = vld [vmem:[%s1 + $0x20] sm:$0xff]
    %v85 = vld [vmem:[%s1 + $0x28] sm:$0xff]
    %v86 = vld [vmem:[%s1 + $0x30] sm:$0xff]
    %v87 = vld [vmem:[%s1 + $0x38] sm:$0xff]
    %v88 = vld [vmem:[%s1 + $0x40] sm:$0xff]
    %v89 = vld [vmem:[%s1 + $0x48] sm:$0xff]
    %v90 = vld [vmem:[%s1 + $0x50] sm:$0xff]
    %v91 = vld [vmem:[%s1 + $0x58] sm:$0xff]
    %v92 = vld [vmem:[%s1 + $0x60] sm:$0xff]
    %v93 = vld [vmem:[%s1 + $0x68] sm:$0xff]
    %v94 = vld [vmem:[%s1 + $0x70] sm:$0xff]
    %v95 = vld [vmem:[%s1 + $0x78] sm:$0xff]
    %v96 = vld [vmem:[%s1 + $0x80] sm:$0xff]
    %v97 = vld [vmem:[%s1 + $0x88] sm:$0xff]
    %v98 = vld [vmem:[%s1 + $0x90] sm:$0xff]
    %v99 = vld [vmem:[%s1 + $0x98] sm:$0xff]
    %v100 = vld [vmem:[%s1 + $0xa0] sm:$0xff]
    %v101 = vld [vmem:[%s1 + $0xa8] sm:$0xff]
    %v102 = vld [vmem:[%s1 + $0xb0] sm:$0xff]
    %v103 = vld [vmem:[%s1 + $0xb8] sm:$0xff]
    %v104 = vld [vmem:[%s2] sm:$0x1]
    %v106 = vlaneseq
    %v107 = vshrl.u32 %v106, 7
    %v108 = vsub.s32 0, %v107
    %v109 = vrot.slane %v104, %v108
    %vm111 = vcmask 523264
    %v113 = vsel %vm111, %v79, 0
    %115 = vmatprep.subr.mxu0 0.0
    %116 = vmatpush1.msra.mxu0 %v95
    %117 = vmatprep.subr.mxu0 0.0
    %118 = vmatpush1.msra.mxu0 %v94
    %119 = vmatprep.subr.mxu0 0.0
    %120 = vmatpush1.msra.mxu0 %v93
    %121 = vmatprep.subr.mxu0 0.0
    %122 = vmatpush1.msra.mxu0 %v92
    %123 = vmatprep.subr.mxu0 0.0
    %124 = vmatpush1.msra.mxu0 %v91
    %125 = vmatprep.subr.mxu0 0.0
    %126 = vmatpush1.msra.mxu0 %v90
    %127 = vmatprep.subr.mxu0 0.0
    %128 = vmatpush1.msra.mxu0 %v89
    %129 = vmatprep.subr.mxu0 0.0
    %130 = vmatpush1.msra.mxu0 %v88
    %131 = vmatprep.subr.mxu0 0.0
    %132 = vmatpush1.msra.mxu0 %v87
    %133 = vmatprep.subr.mxu0 0.0
    %134 = vmatpush1.msra.mxu0 %v86
    %135 = vmatprep.subr.mxu0 0.0
    %136 = vmatpush1.msra.mxu0 %v85
    %137 = vmatprep.subr.mxu0 0.0
    %138 = vmatpush1.msra.mxu0 %v84
    %139 = vmatprep.subr.mxu0 0.0
    %140 = vmatpush1.msra.mxu0 %v83
    %141 = vmatprep.subr.mxu0 0.0
    %142 = vmatpush1.msra.mxu0 %v82
    %143 = vmatprep.subr.mxu0 0.0
    %144 = vmatpush1.msra.mxu0 %v81
    %145 = vmatprep.subr.mxu0 0.0
    %146 = vmatpush1.msra.mxu0 %v80
    %147 = vmatprep.subr.mxu0 0.0
    %148 = vmatpush2.msra.mxu0 0.0
    %149 = vmatprep.subr.mxu0 0.0
    %150 = vmatpush2.msra.mxu0 0.0
    %151 = vmatprep.subr.mxu0 0.0
    %152 = vmatpush2.msra.mxu0 0.0
    %153 = vmatprep.subr.mxu0 0.0
    %154 = vmatpush2.msra.mxu0 0.0
    %155 = vmatprep.subr.mxu0 0.0
    %156 = vmatpush2.msra.mxu0 0.0
    %157 = vmatprep.subr.mxu0 0.0
    %158 = vmatpush2.msra.mxu0 0.0
    %159 = vmatprep.subr.mxu0 0.0
    %160 = vmatpush2.msra.mxu0 0.0
    %161 = vmatprep.subr.mxu0 0.0
    %162 = vmatpush2.msra.mxu0 0.0
    %163 = vmatprep.subr.mxu0 0.0
    %164 = vmatpush2.msra.mxu0 %v103
    %165 = vmatprep.subr.mxu0 0.0
    %166 = vmatpush2.msra.mxu0 %v102
    %167 = vmatprep.subr.mxu0 0.0
    %168 = vmatpush2.msra.mxu0 %v101
    %169 = vmatprep.subr.mxu0 0.0
    %170 = vmatpush2.msra.mxu0 %v100
    %171 = vmatprep.subr.mxu0 0.0
    %172 = vmatpush2.msra.mxu0 %v99
    %173 = vmatprep.subr.mxu0 0.0
    %174 = vmatpush2.msra.mxu0 %v98
    %175 = vmatprep.subr.mxu0 0.0
    %176 = vmatpush2.msra.mxu0 %v97
    %177 = vmatprep.subr.mxu0 0.0
    %178 = vmatpush2.msra.mxu0 %v96
    %179 = vmatprep.mubr.f32.mxu0 %v113
    %180 = vmatmul.mubr.f32.gmra.mxu0 %v78
    %v181 = vpop.f32.mrf.mxu0
    %v182 = vadd.f32 %v109, %v181
    %v183 = vpop.f32.mrf.mxu0
    %184 = vdwg.mxu0
    %v185 = vld [vmem:[%s3] sm:$0xff]
    %v186 = vld [vmem:[%s3 + $0x8] sm:$0x3]
    %v187 = vld [vmem:[%s4] sm:$0xff]
    %v188 = vld [vmem:[%s4 + $0x8] sm:$0x3]
    %vm189 = vcmask 64512
    %v191 = vsel %vm189, %v187, 0
    %v194 = vsel %vm189, %v188, 0
    %196 = vmatprep.subr.mxu0 0.0
    %197 = vmatpush1.msra.mxu0 0.0
    %198 = vmatprep.subr.mxu0 0.0
    %199 = vmatpush1.msra.mxu0 0.0
    %200 = vmatprep.subr.mxu0 0.0
    %201 = vmatpush1.msra.mxu0 0.0
    %202 = vmatprep.subr.mxu0 0.0
    %203 = vmatpush1.msra.mxu0 0.0
    %204 = vmatprep.subr.mxu0 0.0
    %205 = vmatpush1.msra.mxu0 0.0
    %206 = vmatprep.subr.mxu0 0.0
    %207 = vmatpush1.msra.mxu0 0.0
    %208 = vmatprep.subr.mxu0 0.0
    %209 = vmatpush1.msra.mxu0 0.0
    %210 = vmatprep.subr.mxu0 0.0
    %211 = vmatpush1.msra.mxu0 0.0
    %212 = vmatprep.subr.mxu0 0.0
    %213 = vmatpush1.msra.mxu0 0.0
    %214 = vmatprep.subr.mxu0 0.0
    %215 = vmatpush1.msra.mxu0 0.0
    %216 = vmatprep.subr.mxu0 0.0
    %217 = vmatpush1.msra.mxu0 0.0
    %218 = vmatprep.subr.mxu0 0.0
    %219 = vmatpush1.msra.mxu0 0.0
    %220 = vmatprep.subr.mxu0 0.0
    %221 = vmatpush1.msra.mxu0 0.0
    %222 = vmatprep.subr.mxu0 0.0
    %223 = vmatpush1.msra.mxu0 0.0
    %224 = vmatprep.subr.mxu0 0.0
    %225 = vmatpush1.msra.mxu0 0.0
    %226 = vmatprep.subr.mxu0 0.0
    %227 = vmatpush1.msra.mxu0 %v182
    %228 = vmatprep.subr.mxu0 0.0
    %229 = vmatpush2.msra.mxu0 0.0
    %230 = vmatprep.subr.mxu0 0.0
    %231 = vmatpush2.msra.mxu0 0.0
    %232 = vmatprep.subr.mxu0 0.0
    %233 = vmatpush2.msra.mxu0 0.0
    %234 = vmatprep.subr.mxu0 0.0
    %235 = vmatpush2.msra.mxu0 0.0
    %236 = vmatprep.subr.mxu0 0.0
    %237 = vmatpush2.msra.mxu0 0.0
    %238 = vmatprep.subr.mxu0 0.0
    %239 = vmatpush2.msra.mxu0 0.0
    %240 = vmatprep.subr.mxu0 0.0
    %241 = vmatpush2.msra.mxu0 0.0
    %242 = vmatprep.subr.mxu0 0.0
    %243 = vmatpush2.msra.mxu0 0.0
    %244 = vmatprep.subr.mxu0 0.0
    %245 = vmatpush2.msra.mxu0 0.0
    %246 = vmatprep.subr.mxu0 0.0
    %247 = vmatpush2.msra.mxu0 0.0
    %248 = vmatprep.subr.mxu0 0.0
    %249 = vmatpush2.msra.mxu0 0.0
    %250 = vmatprep.subr.mxu0 0.0
    %251 = vmatpush2.msra.mxu0 0.0
    %252 = vmatprep.subr.mxu0 0.0
    %253 = vmatpush2.msra.mxu0 0.0
    %254 = vmatprep.subr.mxu0 0.0
    %255 = vmatpush2.msra.mxu0 0.0
    %256 = vmatprep.subr.mxu0 0.0
    %257 = vmatpush2.msra.mxu0 0.0
    %258 = vmatprep.subr.mxu0 0.0
    %259 = vmatpush2.msra.mxu0 0.0
    %260 = vmatprep.mubr.f32.mxu0 0.0
    %261 = vmatmul.mubr.f32.gmra.mxu0 %v191
    %v262 = vpop.f32.mrf.mxu0
    %v263 = vadd.f32 0.0, %v262
    %v264 = vpop.f32.mrf.mxu0
    %265 = vmatprep.mubr.f32.mxu0 0.0
    %266 = vmatmul.mubr.f32.gmra.mxu0 %v194
    %v267 = vpop.f32.mrf.mxu0
    %v268 = vadd.f32 0.0, %v267
    %v269 = vpop.f32.mrf.mxu0
    %270 = vdwg.mxu0
    %v271 = vadd.f32 %v185, %v263
    %v272 = vadd.f32 %v186, %v268
    %v273 = vld [vmem:[%s5] sm:$0xff]
    %v274 = vld [vmem:[%s5 + $0x8] sm:$0x3]
    %v275 = vld [vmem:[%s6] sm:$0x1]
    %v276 = vld [vmem:[%s7] sm:$0x1]
    %vm277 = vcmask 261120
    %v278 = vsel %vm277, %v271, 0.0
    %279 = vadd.xlane.f32.xlu0 %v278
    %v280 = vpop.xlane.xlu0 %279
    %vm281 = vcmask 254976
    %v282 = vsel %vm281, %v272, 0.0
    %283 = vadd.xlane.f32.xlu0 %v282
    %v284 = vpop.xlane.xlu0 %283
    %v285 = vrcp.pop 32.0
    %v286 = vmul.f32 %v280, %v285
    %v287 = vmul.f32 %v284, %v285
    %v288 = vsub.f32 %v271, %v286
    %v289 = vsub.f32 %v272, %v287
    %v290 = vmul.f32 %v288, %v288
    %v291 = vmul.f32 %v289, %v289
    %v292 = vsel %vm277, %v290, 0.0
    %293 = vadd.xlane.f32.xlu0 %v292
    %v294 = vpop.xlane.xlu0 %293
    %v295 = vsel %vm281, %v291, 0.0
    %296 = vadd.xlane.f32.xlu0 %v295
    %v297 = vpop.xlane.xlu0 %296
    %v298 = vmul.f32 %v294, %v285
    %v299 = vmul.f32 %v297, %v285
    %v300 = vadd.f32 %v298, 1e-06
    %v301 = vadd.f32 %v299, 1e-06
    %v302 = vrsqrt.pop %v300
    %v303 = vrsqrt.pop %v301
    %v304 = vmul.f32 %v288, %v302
    %v305 = vmul.f32 %v289, %v303
    %v307 = vlaneseq
    %v308 = vshrl.u32 %v307, 7
    %v309 = vsub.s32 0, %v308
    %v310 = vrot.slane %v275, %v309
    %v312 = vmul.f32 %v304, %v310
    %v313 = vmul.f32 %v305, %v310
    %v315 = vlaneseq
    %v316 = vshrl.u32 %v315, 7
    %v317 = vsub.s32 0, %v316
    %v318 = vrot.slane %v276, %v317
    %v320 = vadd.f32 %v312, %v318
    %v321 = vadd.f32 %v313, %v318
    %v322 = vld [vmem:[%s15] sm:$0x1]
    %v323 = vld [vmem:[%s8] sm:$0xff]
    %v324 = vld [vmem:[%s8 + $0x8] sm:$0xff]
    %v325 = vld [vmem:[%s8 + $0x10] sm:$0xff]
    %v326 = vld [vmem:[%s8 + $0x18] sm:$0xff]
    %v327 = vld [vmem:[%s11] sm:$0x1]
    %v329 = vlaneseq
    %v330 = vshrl.u32 %v329, 7
    %v331 = vsub.s32 0, %v330
    %v332 = vrot.slane %v327, %v331
    %v335 = vsel %vm277, %v320, 0
    %v338 = vsel %vm277, %v321, 0
    %340 = vmatprep.subr.mxu0 0.0
    %341 = vmatpush1.msra.mxu0 0.0
    %342 = vmatprep.subr.mxu0 0.0
    %343 = vmatpush1.msra.mxu0 0.0
    %344 = vmatprep.subr.mxu0 0.0
    %345 = vmatpush1.msra.mxu0 0.0
    %346 = vmatprep.subr.mxu0 0.0
    %347 = vmatpush1.msra.mxu0 0.0
    %348 = vmatprep.subr.mxu0 0.0
    %349 = vmatpush1.msra.mxu0 0.0
    %350 = vmatprep.subr.mxu0 0.0
    %351 = vmatpush1.msra.mxu0 0.0
    %352 = vmatprep.subr.mxu0 0.0
    %353 = vmatpush1.msra.mxu0 0.0
    %354 = vmatprep.subr.mxu0 0.0
    %355 = vmatpush1.msra.mxu0 0.0
    %356 = vmatprep.subr.mxu0 0.0
    %357 = vmatpush1.msra.mxu0 0.0
    %358 = vmatprep.subr.mxu0 0.0
    %359 = vmatpush1.msra.mxu0 0.0
    %360 = vmatprep.subr.mxu0 0.0
    %361 = vmatpush1.msra.mxu0 0.0
    %362 = vmatprep.subr.mxu0 0.0
    %363 = vmatpush1.msra.mxu0 0.0
    %364 = vmatprep.subr.mxu0 0.0
    %365 = vmatpush1.msra.mxu0 %v326
    %366 = vmatprep.subr.mxu0 0.0
    %367 = vmatpush1.msra.mxu0 %v325
    %368 = vmatprep.subr.mxu0 0.0
    %369 = vmatpush1.msra.mxu0 %v324
    %370 = vmatprep.subr.mxu0 0.0
    %371 = vmatpush1.msra.mxu0 %v323
    %372 = vmatprep.subr.mxu0 0.0
    %373 = vmatpush2.msra.mxu0 0.0
    %374 = vmatprep.subr.mxu0 0.0
    %375 = vmatpush2.msra.mxu0 0.0
    %376 = vmatprep.subr.mxu0 0.0
    %377 = vmatpush2.msra.mxu0 0.0
    %378 = vmatprep.subr.mxu0 0.0
    %379 = vmatpush2.msra.mxu0 0.0
    %380 = vmatprep.subr.mxu0 0.0
    %381 = vmatpush2.msra.mxu0 0.0
    %382 = vmatprep.subr.mxu0 0.0
    %383 = vmatpush2.msra.mxu0 0.0
    %384 = vmatprep.subr.mxu0 0.0
    %385 = vmatpush2.msra.mxu0 0.0
    %386 = vmatprep.subr.mxu0 0.0
    %387 = vmatpush2.msra.mxu0 0.0
    %388 = vmatprep.subr.mxu0 0.0
    %389 = vmatpush2.msra.mxu0 0.0
    %390 = vmatprep.subr.mxu0 0.0
    %391 = vmatpush2.msra.mxu0 0.0
    %392 = vmatprep.subr.mxu0 0.0
    %393 = vmatpush2.msra.mxu0 0.0
    %394 = vmatprep.subr.mxu0 0.0
    %395 = vmatpush2.msra.mxu0 0.0
    %396 = vmatprep.subr.mxu0 0.0
    %397 = vmatpush2.msra.mxu0 0.0
    %398 = vmatprep.subr.mxu0 0.0
    %399 = vmatpush2.msra.mxu0 0.0
    %400 = vmatprep.subr.mxu0 0.0
    %401 = vmatpush2.msra.mxu0 0.0
    %402 = vmatprep.subr.mxu0 0.0
    %403 = vmatpush2.msra.mxu0 0.0
    %404 = vmatprep.mubr.f32.mxu0 0.0
    %405 = vmatmul.mubr.f32.gmra.mxu0 %v335
    %v406 = vpop.f32.mrf.mxu0
    %v407 = vadd.f32 %v332, %v406
    %v408 = vpop.f32.mrf.mxu0
    %409 = vmatprep.mubr.f32.mxu0 0.0
    %410 = vmatmul.mubr.f32.gmra.mxu0 %v338
    %v411 = vpop.f32.mrf.mxu0
    %v412 = vadd.f32 %v332, %v411
    %v413 = vpop.f32.mrf.mxu0
    %414 = vdwg.mxu0
    %v415 = vld [vmem:[%s9] sm:$0xff]
    %v416 = vld [vmem:[%s9 + $0x8] sm:$0xff]
    %v417 = vld [vmem:[%s9 + $0x10] sm:$0xff]
    %v418 = vld [vmem:[%s9 + $0x18] sm:$0xff]
    %v419 = vld [vmem:[%s12] sm:$0x1]
    %v421 = vlaneseq
    %v422 = vshrl.u32 %v421, 7
    %v423 = vsub.s32 0, %v422
    %v424 = vrot.slane %v419, %v423
    %426 = vmatprep.subr.mxu0 0.0
    %427 = vmatpush1.msra.mxu0 0.0
    %428 = vmatprep.subr.mxu0 0.0
    %429 = vmatpush1.msra.mxu0 0.0
    %430 = vmatprep.subr.mxu0 0.0
    %431 = vmatpush1.msra.mxu0 0.0
    %432 = vmatprep.subr.mxu0 0.0
    %433 = vmatpush1.msra.mxu0 0.0
    %434 = vmatprep.subr.mxu0 0.0
    %435 = vmatpush1.msra.mxu0 0.0
    %436 = vmatprep.subr.mxu0 0.0
    %437 = vmatpush1.msra.mxu0 0.0
    %438 = vmatprep.subr.mxu0 0.0
    %439 = vmatpush1.msra.mxu0 0.0
    %440 = vmatprep.subr.mxu0 0.0
    %441 = vmatpush1.msra.mxu0 0.0
    %442 = vmatprep.subr.mxu0 0.0
    %443 = vmatpush1.msra.mxu0 0.0
    %444 = vmatprep.subr.mxu0 0.0
    %445 = vmatpush1.msra.mxu0 0.0
    %446 = vmatprep.subr.mxu0 0.0
    %447 = vmatpush1.msra.mxu0 0.0
    %448 = vmatprep.subr.mxu0 0.0
    %449 = vmatpush1.msra.mxu0 0.0
    %450 = vmatprep.subr.mxu0 0.0
    %451 = vmatpush1.msra.mxu0 %v418
    %452 = vmatprep.subr.mxu0 0.0
    %453 = vmatpush1.msra.mxu0 %v417
    %454 = vmatprep.subr.mxu0 0.0
    %455 = vmatpush1.msra.mxu0 %v416
    %456 = vmatprep.subr.mxu0 0.0
    %457 = vmatpush1.msra.mxu0 %v415
    %458 = vmatprep.subr.mxu0 0.0
    %459 = vmatpush2.msra.mxu0 0.0
    %460 = vmatprep.subr.mxu0 0.0
    %461 = vmatpush2.msra.mxu0 0.0
    %462 = vmatprep.subr.mxu0 0.0
    %463 = vmatpush2.msra.mxu0 0.0
    %464 = vmatprep.subr.mxu0 0.0
    %465 = vmatpush2.msra.mxu0 0.0
    %466 = vmatprep.subr.mxu0 0.0
    %467 = vmatpush2.msra.mxu0 0.0
    %468 = vmatprep.subr.mxu0 0.0
    %469 = vmatpush2.msra.mxu0 0.0
    %470 = vmatprep.subr.mxu0 0.0
    %471 = vmatpush2.msra.mxu0 0.0
    %472 = vmatprep.subr.mxu0 0.0
    %473 = vmatpush2.msra.mxu0 0.0
    %474 = vmatprep.subr.mxu0 0.0
    %475 = vmatpush2.msra.mxu0 0.0
    %476 = vmatprep.subr.mxu0 0.0
    %477 = vmatpush2.msra.mxu0 0.0
    %478 = vmatprep.subr.mxu0 0.0
    %479 = vmatpush2.msra.mxu0 0.0
    %480 = vmatprep.subr.mxu0 0.0
    %481 = vmatpush2.msra.mxu0 0.0
    %482 = vmatprep.subr.mxu0 0.0
    %483 = vmatpush2.msra.mxu0 0.0
    %484 = vmatprep.subr.mxu0 0.0
    %485 = vmatpush2.msra.mxu0 0.0
    %486 = vmatprep.subr.mxu0 0.0
    %487 = vmatpush2.msra.mxu0 0.0
    %488 = vmatprep.subr.mxu0 0.0
    %489 = vmatpush2.msra.mxu0 0.0
    %490 = vmatprep.mubr.f32.mxu0 0.0
    %491 = vmatmul.mubr.f32.gmra.mxu0 %v335
    %v492 = vpop.f32.mrf.mxu0
    %v493 = vadd.f32 %v424, %v492
    %v494 = vpop.f32.mrf.mxu0
    %495 = vmatprep.mubr.f32.mxu0 0.0
    %496 = vmatmul.mubr.f32.gmra.mxu0 %v338
    %v497 = vpop.f32.mrf.mxu0
    %v498 = vadd.f32 %v424, %v497
    %v499 = vpop.f32.mrf.mxu0
    %500 = vdwg.mxu0
    %v501 = vld [vmem:[%s10] sm:$0xff]
    %v502 = vld [vmem:[%s10 + $0x8] sm:$0xff]
    %v503 = vld [vmem:[%s10 + $0x10] sm:$0xff]
    %v504 = vld [vmem:[%s10 + $0x18] sm:$0xff]
    %v505 = vld [vmem:[%s13] sm:$0x1]
    %v507 = vlaneseq
    %v508 = vshrl.u32 %v507, 7
    %v509 = vsub.s32 0, %v508
    %v510 = vrot.slane %v505, %v509
    %512 = vmatprep.subr.mxu0 0.0
    %513 = vmatpush1.msra.mxu0 0.0
    %514 = vmatprep.subr.mxu0 0.0
    %515 = vmatpush1.msra.mxu0 0.0
    %516 = vmatprep.subr.mxu0 0.0
    %517 = vmatpush1.msra.mxu0 0.0
    %518 = vmatprep.subr.mxu0 0.0
    %519 = vmatpush1.msra.mxu0 0.0
    %520 = vmatprep.subr.mxu0 0.0
    %521 = vmatpush1.msra.mxu0 0.0
    %522 = vmatprep.subr.mxu0 0.0
    %523 = vmatpush1.msra.mxu0 0.0
    %524 = vmatprep.subr.mxu0 0.0
    %525 = vmatpush1.msra.mxu0 0.0
    %526 = vmatprep.subr.mxu0 0.0
    %527 = vmatpush1.msra.mxu0 0.0
    %528 = vmatprep.subr.mxu0 0.0
    %529 = vmatpush1.msra.mxu0 0.0
    %530 = vmatprep.subr.mxu0 0.0
    %531 = vmatpush1.msra.mxu0 0.0
    %532 = vmatprep.subr.mxu0 0.0
    %533 = vmatpush1.msra.mxu0 0.0
    %534 = vmatprep.subr.mxu0 0.0
    %535 = vmatpush1.msra.mxu0 0.0
    %536 = vmatprep.subr.mxu0 0.0
    %537 = vmatpush1.msra.mxu0 %v504
    %538 = vmatprep.subr.mxu0 0.0
    %539 = vmatpush1.msra.mxu0 %v503
    %540 = vmatprep.subr.mxu0 0.0
    %541 = vmatpush1.msra.mxu0 %v502
    %542 = vmatprep.subr.mxu0 0.0
    %543 = vmatpush1.msra.mxu0 %v501
    %544 = vmatprep.subr.mxu0 0.0
    %545 = vmatpush2.msra.mxu0 0.0
    %546 = vmatprep.subr.mxu0 0.0
    %547 = vmatpush2.msra.mxu0 0.0
    %548 = vmatprep.subr.mxu0 0.0
    %549 = vmatpush2.msra.mxu0 0.0
    %550 = vmatprep.subr.mxu0 0.0
    %551 = vmatpush2.msra.mxu0 0.0
    %552 = vmatprep.subr.mxu0 0.0
    %553 = vmatpush2.msra.mxu0 0.0
    %554 = vmatprep.subr.mxu0 0.0
    %555 = vmatpush2.msra.mxu0 0.0
    %556 = vmatprep.subr.mxu0 0.0
    %557 = vmatpush2.msra.mxu0 0.0
    %558 = vmatprep.subr.mxu0 0.0
    %559 = vmatpush2.msra.mxu0 0.0
    %560 = vmatprep.subr.mxu0 0.0
    %561 = vmatpush2.msra.mxu0 0.0
    %562 = vmatprep.subr.mxu0 0.0
    %563 = vmatpush2.msra.mxu0 0.0
    %564 = vmatprep.subr.mxu0 0.0
    %565 = vmatpush2.msra.mxu0 0.0
    %566 = vmatprep.subr.mxu0 0.0
    %567 = vmatpush2.msra.mxu0 0.0
    %568 = vmatprep.subr.mxu0 0.0
    %569 = vmatpush2.msra.mxu0 0.0
    %570 = vmatprep.subr.mxu0 0.0
    %571 = vmatpush2.msra.mxu0 0.0
    %572 = vmatprep.subr.mxu0 0.0
    %573 = vmatpush2.msra.mxu0 0.0
    %574 = vmatprep.subr.mxu0 0.0
    %575 = vmatpush2.msra.mxu0 0.0
    %576 = vmatprep.mubr.f32.mxu0 0.0
    %577 = vmatmul.mubr.f32.gmra.mxu0 %v335
    %v578 = vpop.f32.mrf.mxu0
    %v579 = vadd.f32 %v510, %v578
    %v580 = vpop.f32.mrf.mxu0
    %581 = vmatprep.mubr.f32.mxu0 0.0
    %582 = vmatmul.mubr.f32.gmra.mxu0 %v338
    %v583 = vpop.f32.mrf.mxu0
    %v584 = vadd.f32 %v510, %v583
    %v585 = vpop.f32.mrf.mxu0
    %586 = vdwg.mxu0
    %v588 = vsel %vm189, %v407, 0
    %v591 = vsel %vm189, %v412, 0
    %v594 = vsel %vm189, %v493, 0
    %v597 = vsel %vm189, %v498, 0
    %599 = vmatprep.subr.mxu0 0.0
    %600 = vmatpush1.xpose.msra.mxu0 0.0
    %601 = vmatprep.subr.mxu0 0.0
    %602 = vmatpush1.xpose.msra.mxu0 0.0
    %603 = vmatprep.subr.mxu0 0.0
    %604 = vmatpush1.xpose.msra.mxu0 0.0
    %605 = vmatprep.subr.mxu0 0.0
    %606 = vmatpush1.xpose.msra.mxu0 0.0
    %607 = vmatprep.subr.mxu0 0.0
    %608 = vmatpush1.xpose.msra.mxu0 0.0
    %609 = vmatprep.subr.mxu0 0.0
    %610 = vmatpush1.xpose.msra.mxu0 0.0
    %611 = vmatprep.subr.mxu0 0.0
    %612 = vmatpush1.xpose.msra.mxu0 0.0
    %613 = vmatprep.subr.mxu0 0.0
    %614 = vmatpush1.xpose.msra.mxu0 0.0
    %615 = vmatprep.subr.mxu0 0.0
    %616 = vmatpush1.xpose.msra.mxu0 0.0
    %617 = vmatprep.subr.mxu0 0.0
    %618 = vmatpush1.xpose.msra.mxu0 0.0
    %619 = vmatprep.subr.mxu0 0.0
    %620 = vmatpush1.xpose.msra.mxu0 0.0
    %621 = vmatprep.subr.mxu0 0.0
    %622 = vmatpush1.xpose.msra.mxu0 0.0
    %623 = vmatprep.subr.mxu0 0.0
    %624 = vmatpush1.xpose.msra.mxu0 0.0
    %625 = vmatprep.subr.mxu0 0.0
    %626 = vmatpush1.xpose.msra.mxu0 0.0
    %627 = vmatprep.subr.mxu0 0.0
    %628 = vmatpush1.xpose.msra.mxu0 %v597
    %629 = vmatprep.subr.mxu0 0.0
    %630 = vmatpush1.xpose.msra.mxu0 %v594
    %631 = vmatprep.subr.mxu0 0.0
    %632 = vmatpush2.xpose.msra.mxu0 0.0
    %633 = vmatprep.subr.mxu0 0.0
    %634 = vmatpush2.xpose.msra.mxu0 0.0
    %635 = vmatprep.subr.mxu0 0.0
    %636 = vmatpush2.xpose.msra.mxu0 0.0
    %637 = vmatprep.subr.mxu0 0.0
    %638 = vmatpush2.xpose.msra.mxu0 0.0
    %639 = vmatprep.subr.mxu0 0.0
    %640 = vmatpush2.xpose.msra.mxu0 0.0
    %641 = vmatprep.subr.mxu0 0.0
    %642 = vmatpush2.xpose.msra.mxu0 0.0
    %643 = vmatprep.subr.mxu0 0.0
    %644 = vmatpush2.xpose.msra.mxu0 0.0
    %645 = vmatprep.subr.mxu0 0.0
    %646 = vmatpush2.xpose.msra.mxu0 0.0
    %647 = vmatprep.subr.mxu0 0.0
    %648 = vmatpush2.xpose.msra.mxu0 0.0
    %649 = vmatprep.subr.mxu0 0.0
    %650 = vmatpush2.xpose.msra.mxu0 0.0
    %651 = vmatprep.subr.mxu0 0.0
    %652 = vmatpush2.xpose.msra.mxu0 0.0
    %653 = vmatprep.subr.mxu0 0.0
    %654 = vmatpush2.xpose.msra.mxu0 0.0
    %655 = vmatprep.subr.mxu0 0.0
    %656 = vmatpush2.xpose.msra.mxu0 0.0
    %657 = vmatprep.subr.mxu0 0.0
    %658 = vmatpush2.xpose.msra.mxu0 0.0
    %659 = vmatprep.subr.mxu0 0.0
    %660 = vmatpush2.xpose.msra.mxu0 0.0
    %661 = vmatprep.subr.mxu0 0.0
    %662 = vmatpush2.xpose.msra.mxu0 0.0
    %663 = vmatprep.mubr.f32.mxu0 0.0
    %664 = vmatmul.mubr.f32.gmra.mxu0 %v588
    %v665 = vpop.f32.mrf.mxu0
    %v666 = vadd.f32 0.0, %v665
    %v667 = vpop.f32.mrf.mxu0
    %668 = vmatprep.mubr.f32.mxu0 0.0
    %669 = vmatmul.mubr.f32.gmra.mxu0 %v591
    %v670 = vpop.f32.mrf.mxu0
    %v671 = vadd.f32 0.0, %v670
    %v672 = vpop.f32.mrf.mxu0
    %673 = vdwg.mxu0
    %v674 = vmul.f32 %v666, 0.35355338
    %v675 = vmul.f32 %v671, 0.35355338
    %v676 = vadd.f32 %v674, %v273
    %v677 = vadd.f32 %v675, %v274
    %vm678 = vcmask 80896
    %v679 = vsel %vm678, %v676, -inf
    %680 = vmax.xlane.f32.xlu0 %v679
    %v681 = vpop.xlane.xlu0 %680
    %vm682 = vcmask 74752
    %v683 = vsel %vm682, %v677, -inf
    %684 = vmax.xlane.f32.xlu0 %v683
    %v685 = vpop.xlane.xlu0 %684
    %v686 = vsub.f32 %v676, %v681
    %v687 = vsub.f32 %v677, %v685
    %v688 = vmul.f32 %v686, 1.442695
    %v689 = vpow.pop %v688
    %v690 = vmul.f32 %v687, 1.442695
    %v691 = vpow.pop %v690
    %v692 = vsel %vm678, %v689, 0.0
    %693 = vadd.xlane.f32.xlu0 %v692
    %v694 = vpop.xlane.xlu0 %693
    %v695 = vsel %vm682, %v691, 0.0
    %696 = vadd.xlane.f32.xlu0 %v695
    %v697 = vpop.xlane.xlu0 %696
    %v698 = vrcp.pop %v694
    %v699 = vrcp.pop %v697
    %v700 = vmul.f32 %v689, %v698
    %v701 = vmul.f32 %v691, %v699
    %v703 = vsel %vm678, %v700, 0
    %v706 = vsel %vm678, %v701, 0
    %vm708 = vcmask 1041408
    %v710 = vsel %vm708, %v584, 0
    %712 = vmatprep.subr.mxu0 0.0
    %713 = vmatpush1.msra.mxu0 0.0
    %714 = vmatprep.subr.mxu0 0.0
    %715 = vmatpush1.msra.mxu0 0.0
    %716 = vmatprep.subr.mxu0 0.0
    %717 = vmatpush1.msra.mxu0 0.0
    %718 = vmatprep.subr.mxu0 0.0
    %719 = vmatpush1.msra.mxu0 0.0
    %720 = vmatprep.subr.mxu0 0.0
    %721 = vmatpush1.msra.mxu0 0.0
    %722 = vmatprep.subr.mxu0 0.0
    %723 = vmatpush1.msra.mxu0 0.0
    %724 = vmatprep.subr.mxu0 0.0
    %725 = vmatpush1.msra.mxu0 0.0
    %726 = vmatprep.subr.mxu0 0.0
    %727 = vmatpush1.msra.mxu0 0.0
    %728 = vmatprep.subr.mxu0 0.0
    %729 = vmatpush1.msra.mxu0 0.0
    %730 = vmatprep.subr.mxu0 0.0
    %731 = vmatpush1.msra.mxu0 0.0
    %732 = vmatprep.subr.mxu0 0.0
    %733 = vmatpush1.msra.mxu0 0.0
    %734 = vmatprep.subr.mxu0 0.0
    %735 = vmatpush1.msra.mxu0 0.0
    %736 = vmatprep.subr.mxu0 0.0
    %737 = vmatpush1.msra.mxu0 0.0
    %738 = vmatprep.subr.mxu0 0.0
    %739 = vmatpush1.msra.mxu0 0.0
    %740 = vmatprep.subr.mxu0 0.0
    %741 = vmatpush1.msra.mxu0 %v710
    %742 = vmatprep.subr.mxu0 0.0
    %743 = vmatpush1.msra.mxu0 %v579
    %744 = vmatprep.subr.mxu0 0.0
    %745 = vmatpush2.msra.mxu0 0.0
    %746 = vmatprep.subr.mxu0 0.0
    %747 = vmatpush2.msra.mxu0 0.0
    %748 = vmatprep.subr.mxu0 0.0
    %749 = vmatpush2.msra.mxu0 0.0
    %750 = vmatprep.subr.mxu0 0.0
    %751 = vmatpush2.msra.mxu0 0.0
    %752 = vmatprep.subr.mxu0 0.0
    %753 = vmatpush2.msra.mxu0 0.0
    %754 = vmatprep.subr.mxu0 0.0
    %755 = vmatpush2.msra.mxu0 0.0
    %756 = vmatprep.subr.mxu0 0.0
    %757 = vmatpush2.msra.mxu0 0.0
    %758 = vmatprep.subr.mxu0 0.0
    %759 = vmatpush2.msra.mxu0 0.0
    %760 = vmatprep.subr.mxu0 0.0
    %761 = vmatpush2.msra.mxu0 0.0
    %762 = vmatprep.subr.mxu0 0.0
    %763 = vmatpush2.msra.mxu0 0.0
    %764 = vmatprep.subr.mxu0 0.0
    %765 = vmatpush2.msra.mxu0 0.0
    %766 = vmatprep.subr.mxu0 0.0
    %767 = vmatpush2.msra.mxu0 0.0
    %768 = vmatprep.subr.mxu0 0.0
    %769 = vmatpush2.msra.mxu0 0.0
    %770 = vmatprep.subr.mxu0 0.0
    %771 = vmatpush2.msra.mxu0 0.0
    %772 = vmatprep.subr.mxu0 0.0
    %773 = vmatpush2.msra.mxu0 0.0
    %774 = vmatprep.subr.mxu0 0.0
    %775 = vmatpush2.msra.mxu0 0.0
    %776 = vmatprep.mubr.f32.mxu0 0.0
    %777 = vmatmul.mubr.f32.gmra.mxu0 %v703
    %v778 = vpop.f32.mrf.mxu0
    %v779 = vadd.f32 0.0, %v778
    %v780 = vpop.f32.mrf.mxu0
    %781 = vmatprep.mubr.f32.mxu0 0.0
    %782 = vmatmul.mubr.f32.gmra.mxu0 %v706
    %v783 = vpop.f32.mrf.mxu0
    %v784 = vadd.f32 0.0, %v783
    %v785 = vpop.f32.mrf.mxu0
    %786 = vdwg.mxu0
    %v787 = vld [vmem:[%s14] sm:$0xff]
    %v789 = vsel %vm189, %v779, 0
    %v792 = vsel %vm189, %v784, 0
    %794 = vmatprep.subr.mxu0 0.0
    %795 = vmatpush1.msra.mxu0 0.0
    %796 = vmatprep.subr.mxu0 0.0
    %797 = vmatpush1.msra.mxu0 0.0
    %798 = vmatprep.subr.mxu0 0.0
    %799 = vmatpush1.msra.mxu0 0.0
    %800 = vmatprep.subr.mxu0 0.0
    %801 = vmatpush1.msra.mxu0 0.0
    %802 = vmatprep.subr.mxu0 0.0
    %803 = vmatpush1.msra.mxu0 0.0
    %804 = vmatprep.subr.mxu0 0.0
    %805 = vmatpush1.msra.mxu0 0.0
    %806 = vmatprep.subr.mxu0 0.0
    %807 = vmatpush1.msra.mxu0 0.0
    %808 = vmatprep.subr.mxu0 0.0
    %809 = vmatpush1.msra.mxu0 0.0
    %810 = vmatprep.subr.mxu0 0.0
    %811 = vmatpush1.msra.mxu0 0.0
    %812 = vmatprep.subr.mxu0 0.0
    %813 = vmatpush1.msra.mxu0 0.0
    %814 = vmatprep.subr.mxu0 0.0
    %815 = vmatpush1.msra.mxu0 0.0
    %816 = vmatprep.subr.mxu0 0.0
    %817 = vmatpush1.msra.mxu0 0.0
    %818 = vmatprep.subr.mxu0 0.0
    %819 = vmatpush1.msra.mxu0 0.0
    %820 = vmatprep.subr.mxu0 0.0
    %821 = vmatpush1.msra.mxu0 0.0
    %822 = vmatprep.subr.mxu0 0.0
    %823 = vmatpush1.msra.mxu0 0.0
    %824 = vmatprep.subr.mxu0 0.0
    %825 = vmatpush1.msra.mxu0 %v787
    %826 = vmatprep.subr.mxu0 0.0
    %827 = vmatpush2.msra.mxu0 0.0
    %828 = vmatprep.subr.mxu0 0.0
    %829 = vmatpush2.msra.mxu0 0.0
    %830 = vmatprep.subr.mxu0 0.0
    %831 = vmatpush2.msra.mxu0 0.0
    %832 = vmatprep.subr.mxu0 0.0
    %833 = vmatpush2.msra.mxu0 0.0
    %834 = vmatprep.subr.mxu0 0.0
    %835 = vmatpush2.msra.mxu0 0.0
    %836 = vmatprep.subr.mxu0 0.0
    %837 = vmatpush2.msra.mxu0 0.0
    %838 = vmatprep.subr.mxu0 0.0
    %839 = vmatpush2.msra.mxu0 0.0
    %840 = vmatprep.subr.mxu0 0.0
    %841 = vmatpush2.msra.mxu0 0.0
    %842 = vmatprep.subr.mxu0 0.0
    %843 = vmatpush2.msra.mxu0 0.0
    %844 = vmatprep.subr.mxu0 0.0
    %845 = vmatpush2.msra.mxu0 0.0
    %846 = vmatprep.subr.mxu0 0.0
    %847 = vmatpush2.msra.mxu0 0.0
    %848 = vmatprep.subr.mxu0 0.0
    %849 = vmatpush2.msra.mxu0 0.0
    %850 = vmatprep.subr.mxu0 0.0
    %851 = vmatpush2.msra.mxu0 0.0
    %852 = vmatprep.subr.mxu0 0.0
    %853 = vmatpush2.msra.mxu0 0.0
    %854 = vmatprep.subr.mxu0 0.0
    %855 = vmatpush2.msra.mxu0 0.0
    %856 = vmatprep.subr.mxu0 0.0
    %857 = vmatpush2.msra.mxu0 0.0
    %858 = vmatprep.mubr.f32.mxu0 0.0
    %859 = vmatmul.mubr.f32.gmra.mxu0 %v789
    %v860 = vpop.f32.mrf.mxu0
    %v861 = vadd.f32 0.0, %v860
    %v862 = vpop.f32.mrf.mxu0
    %863 = vmatprep.mubr.f32.mxu0 0.0
    %864 = vmatmul.mubr.f32.gmra.mxu0 %v792
    %v865 = vpop.f32.mrf.mxu0
    %v866 = vadd.f32 0.0, %v865
    %v867 = vpop.f32.mrf.mxu0
    %868 = vdwg.mxu0
    %v870 = vlaneseq
    %v871 = vshrl.u32 %v870, 7
    %v872 = vsub.s32 0, %v871
    %v873 = vrot.slane %v322, %v872
    %v875 = vadd.f32 %v873, %v861
    %v876 = vadd.f32 %v873, %v866
    %s877 = scalar_lea.vmem %s8, 32
    %v878 = vld [vmem:[%s877] sm:$0xff]
    %v879 = vld [vmem:[%s877 + $0x8] sm:$0xff]
    %v880 = vld [vmem:[%s877 + $0x10] sm:$0xff]
    %v881 = vld [vmem:[%s877 + $0x18] sm:$0xff]
    %s882 = scalar_lea.vmem %s11, 1
    %v883 = vld [vmem:[%s882] sm:$0x1]
    %v885 = vlaneseq
    %v886 = vshrl.u32 %v885, 7
    %v887 = vsub.s32 0, %v886
    %v888 = vrot.slane %v883, %v887
    %890 = vmatprep.subr.mxu0 0.0
    %891 = vmatpush1.msra.mxu0 0.0
    %892 = vmatprep.subr.mxu0 0.0
    %893 = vmatpush1.msra.mxu0 0.0
    %894 = vmatprep.subr.mxu0 0.0
    %895 = vmatpush1.msra.mxu0 0.0
    %896 = vmatprep.subr.mxu0 0.0
    %897 = vmatpush1.msra.mxu0 0.0
    %898 = vmatprep.subr.mxu0 0.0
    %899 = vmatpush1.msra.mxu0 0.0
    %900 = vmatprep.subr.mxu0 0.0
    %901 = vmatpush1.msra.mxu0 0.0
    %902 = vmatprep.subr.mxu0 0.0
    %903 = vmatpush1.msra.mxu0 0.0
    %904 = vmatprep.subr.mxu0 0.0
    %905 = vmatpush1.msra.mxu0 0.0
    %906 = vmatprep.subr.mxu0 0.0
    %907 = vmatpush1.msra.mxu0 0.0
    %908 = vmatprep.subr.mxu0 0.0
    %909 = vmatpush1.msra.mxu0 0.0
    %910 = vmatprep.subr.mxu0 0.0
    %911 = vmatpush1.msra.mxu0 0.0
    %912 = vmatprep.subr.mxu0 0.0
    %913 = vmatpush1.msra.mxu0 0.0
    %914 = vmatprep.subr.mxu0 0.0
    %915 = vmatpush1.msra.mxu0 %v881
    %916 = vmatprep.subr.mxu0 0.0
    %917 = vmatpush1.msra.mxu0 %v880
    %918 = vmatprep.subr.mxu0 0.0
    %919 = vmatpush1.msra.mxu0 %v879
    %920 = vmatprep.subr.mxu0 0.0
    %921 = vmatpush1.msra.mxu0 %v878
    %922 = vmatprep.subr.mxu0 0.0
    %923 = vmatpush2.msra.mxu0 0.0
    %924 = vmatprep.subr.mxu0 0.0
    %925 = vmatpush2.msra.mxu0 0.0
    %926 = vmatprep.subr.mxu0 0.0
    %927 = vmatpush2.msra.mxu0 0.0
    %928 = vmatprep.subr.mxu0 0.0
    %929 = vmatpush2.msra.mxu0 0.0
    %930 = vmatprep.subr.mxu0 0.0
    %931 = vmatpush2.msra.mxu0 0.0
    %932 = vmatprep.subr.mxu0 0.0
    %933 = vmatpush2.msra.mxu0 0.0
    %934 = vmatprep.subr.mxu0 0.0
    %935 = vmatpush2.msra.mxu0 0.0
    %936 = vmatprep.subr.mxu0 0.0
    %937 = vmatpush2.msra.mxu0 0.0
    %938 = vmatprep.subr.mxu0 0.0
    %939 = vmatpush2.msra.mxu0 0.0
    %940 = vmatprep.subr.mxu0 0.0
    %941 = vmatpush2.msra.mxu0 0.0
    %942 = vmatprep.subr.mxu0 0.0
    %943 = vmatpush2.msra.mxu0 0.0
    %944 = vmatprep.subr.mxu0 0.0
    %945 = vmatpush2.msra.mxu0 0.0
    %946 = vmatprep.subr.mxu0 0.0
    %947 = vmatpush2.msra.mxu0 0.0
    %948 = vmatprep.subr.mxu0 0.0
    %949 = vmatpush2.msra.mxu0 0.0
    %950 = vmatprep.subr.mxu0 0.0
    %951 = vmatpush2.msra.mxu0 0.0
    %952 = vmatprep.subr.mxu0 0.0
    %953 = vmatpush2.msra.mxu0 0.0
    %954 = vmatprep.mubr.f32.mxu0 0.0
    %955 = vmatmul.mubr.f32.gmra.mxu0 %v335
    %v956 = vpop.f32.mrf.mxu0
    %v957 = vadd.f32 %v888, %v956
    %v958 = vpop.f32.mrf.mxu0
    %959 = vmatprep.mubr.f32.mxu0 0.0
    %960 = vmatmul.mubr.f32.gmra.mxu0 %v338
    %v961 = vpop.f32.mrf.mxu0
    %v962 = vadd.f32 %v888, %v961
    %v963 = vpop.f32.mrf.mxu0
    %964 = vdwg.mxu0
    %s965 = scalar_lea.vmem %s9, 32
    %v966 = vld [vmem:[%s965] sm:$0xff]
    %v967 = vld [vmem:[%s965 + $0x8] sm:$0xff]
    %v968 = vld [vmem:[%s965 + $0x10] sm:$0xff]
    %v969 = vld [vmem:[%s965 + $0x18] sm:$0xff]
    %s970 = scalar_lea.vmem %s12, 1
    %v971 = vld [vmem:[%s970] sm:$0x1]
    %v973 = vlaneseq
    %v974 = vshrl.u32 %v973, 7
    %v975 = vsub.s32 0, %v974
    %v976 = vrot.slane %v971, %v975
    %978 = vmatprep.subr.mxu0 0.0
    %979 = vmatpush1.msra.mxu0 0.0
    %980 = vmatprep.subr.mxu0 0.0
    %981 = vmatpush1.msra.mxu0 0.0
    %982 = vmatprep.subr.mxu0 0.0
    %983 = vmatpush1.msra.mxu0 0.0
    %984 = vmatprep.subr.mxu0 0.0
    %985 = vmatpush1.msra.mxu0 0.0
    %986 = vmatprep.subr.mxu0 0.0
    %987 = vmatpush1.msra.mxu0 0.0
    %988 = vmatprep.subr.mxu0 0.0
    %989 = vmatpush1.msra.mxu0 0.0
    %990 = vmatprep.subr.mxu0 0.0
    %991 = vmatpush1.msra.mxu0 0.0
    %992 = vmatprep.subr.mxu0 0.0
    %993 = vmatpush1.msra.mxu0 0.0
    %994 = vmatprep.subr.mxu0 0.0
    %995 = vmatpush1.msra.mxu0 0.0
    %996 = vmatprep.subr.mxu0 0.0
    %997 = vmatpush1.msra.mxu0 0.0
    %998 = vmatprep.subr.mxu0 0.0
    %999 = vmatpush1.msra.mxu0 0.0
    %1000 = vmatprep.subr.mxu0 0.0
    %1001 = vmatpush1.msra.mxu0 0.0
    %1002 = vmatprep.subr.mxu0 0.0
    %1003 = vmatpush1.msra.mxu0 %v969
    %1004 = vmatprep.subr.mxu0 0.0
    %1005 = vmatpush1.msra.mxu0 %v968
    %1006 = vmatprep.subr.mxu0 0.0
    %1007 = vmatpush1.msra.mxu0 %v967
    %1008 = vmatprep.subr.mxu0 0.0
    %1009 = vmatpush1.msra.mxu0 %v966
    %1010 = vmatprep.subr.mxu0 0.0
    %1011 = vmatpush2.msra.mxu0 0.0
    %1012 = vmatprep.subr.mxu0 0.0
    %1013 = vmatpush2.msra.mxu0 0.0
    %1014 = vmatprep.subr.mxu0 0.0
    %1015 = vmatpush2.msra.mxu0 0.0
    %1016 = vmatprep.subr.mxu0 0.0
    %1017 = vmatpush2.msra.mxu0 0.0
    %1018 = vmatprep.subr.mxu0 0.0
    %1019 = vmatpush2.msra.mxu0 0.0
    %1020 = vmatprep.subr.mxu0 0.0
    %1021 = vmatpush2.msra.mxu0 0.0
    %1022 = vmatprep.subr.mxu0 0.0
    %1023 = vmatpush2.msra.mxu0 0.0
    %1024 = vmatprep.subr.mxu0 0.0
    %1025 = vmatpush2.msra.mxu0 0.0
    %1026 = vmatprep.subr.mxu0 0.0
    %1027 = vmatpush2.msra.mxu0 0.0
    %1028 = vmatprep.subr.mxu0 0.0
    %1029 = vmatpush2.msra.mxu0 0.0
    %1030 = vmatprep.subr.mxu0 0.0
    %1031 = vmatpush2.msra.mxu0 0.0
    %1032 = vmatprep.subr.mxu0 0.0
    %1033 = vmatpush2.msra.mxu0 0.0
    %1034 = vmatprep.subr.mxu0 0.0
    %1035 = vmatpush2.msra.mxu0 0.0
    %1036 = vmatprep.subr.mxu0 0.0
    %1037 = vmatpush2.msra.mxu0 0.0
    %1038 = vmatprep.subr.mxu0 0.0
    %1039 = vmatpush2.msra.mxu0 0.0
    %1040 = vmatprep.subr.mxu0 0.0
    %1041 = vmatpush2.msra.mxu0 0.0
    %1042 = vmatprep.mubr.f32.mxu0 0.0
    %1043 = vmatmul.mubr.f32.gmra.mxu0 %v335
    %v1044 = vpop.f32.mrf.mxu0
    %v1045 = vadd.f32 %v976, %v1044
    %v1046 = vpop.f32.mrf.mxu0
    %1047 = vmatprep.mubr.f32.mxu0 0.0
    %1048 = vmatmul.mubr.f32.gmra.mxu0 %v338
    %v1049 = vpop.f32.mrf.mxu0
    %v1050 = vadd.f32 %v976, %v1049
    %v1051 = vpop.f32.mrf.mxu0
    %1052 = vdwg.mxu0
    %s1053 = scalar_lea.vmem %s10, 32
    %v1054 = vld [vmem:[%s1053] sm:$0xff]
    %v1055 = vld [vmem:[%s1053 + $0x8] sm:$0xff]
    %v1056 = vld [vmem:[%s1053 + $0x10] sm:$0xff]
    %v1057 = vld [vmem:[%s1053 + $0x18] sm:$0xff]
    %s1058 = scalar_lea.vmem %s13, 1
    %v1059 = vld [vmem:[%s1058] sm:$0x1]
    %v1061 = vlaneseq
    %v1062 = vshrl.u32 %v1061, 7
    %v1063 = vsub.s32 0, %v1062
    %v1064 = vrot.slane %v1059, %v1063
    %1066 = vmatprep.subr.mxu0 0.0
    %1067 = vmatpush1.msra.mxu0 0.0
    %1068 = vmatprep.subr.mxu0 0.0
    %1069 = vmatpush1.msra.mxu0 0.0
    %1070 = vmatprep.subr.mxu0 0.0
    %1071 = vmatpush1.msra.mxu0 0.0
    %1072 = vmatprep.subr.mxu0 0.0
    %1073 = vmatpush1.msra.mxu0 0.0
    %1074 = vmatprep.subr.mxu0 0.0
    %1075 = vmatpush1.msra.mxu0 0.0
    %1076 = vmatprep.subr.mxu0 0.0
    %1077 = vmatpush1.msra.mxu0 0.0
    %1078 = vmatprep.subr.mxu0 0.0
    %1079 = vmatpush1.msra.mxu0 0.0
    %1080 = vmatprep.subr.mxu0 0.0
    %1081 = vmatpush1.msra.mxu0 0.0
    %1082 = vmatprep.subr.mxu0 0.0
    %1083 = vmatpush1.msra.mxu0 0.0
    %1084 = vmatprep.subr.mxu0 0.0
    %1085 = vmatpush1.msra.mxu0 0.0
    %1086 = vmatprep.subr.mxu0 0.0
    %1087 = vmatpush1.msra.mxu0 0.0
    %1088 = vmatprep.subr.mxu0 0.0
    %1089 = vmatpush1.msra.mxu0 0.0
    %1090 = vmatprep.subr.mxu0 0.0
    %1091 = vmatpush1.msra.mxu0 %v1057
    %1092 = vmatprep.subr.mxu0 0.0
    %1093 = vmatpush1.msra.mxu0 %v1056
    %1094 = vmatprep.subr.mxu0 0.0
    %1095 = vmatpush1.msra.mxu0 %v1055
    %1096 = vmatprep.subr.mxu0 0.0
    %1097 = vmatpush1.msra.mxu0 %v1054
    %1098 = vmatprep.subr.mxu0 0.0
    %1099 = vmatpush2.msra.mxu0 0.0
    %1100 = vmatprep.subr.mxu0 0.0
    %1101 = vmatpush2.msra.mxu0 0.0
    %1102 = vmatprep.subr.mxu0 0.0
    %1103 = vmatpush2.msra.mxu0 0.0
    %1104 = vmatprep.subr.mxu0 0.0
    %1105 = vmatpush2.msra.mxu0 0.0
    %1106 = vmatprep.subr.mxu0 0.0
    %1107 = vmatpush2.msra.mxu0 0.0
    %1108 = vmatprep.subr.mxu0 0.0
    %1109 = vmatpush2.msra.mxu0 0.0
    %1110 = vmatprep.subr.mxu0 0.0
    %1111 = vmatpush2.msra.mxu0 0.0
    %1112 = vmatprep.subr.mxu0 0.0
    %1113 = vmatpush2.msra.mxu0 0.0
    %1114 = vmatprep.subr.mxu0 0.0
    %1115 = vmatpush2.msra.mxu0 0.0
    %1116 = vmatprep.subr.mxu0 0.0
    %1117 = vmatpush2.msra.mxu0 0.0
    %1118 = vmatprep.subr.mxu0 0.0
    %1119 = vmatpush2.msra.mxu0 0.0
    %1120 = vmatprep.subr.mxu0 0.0
    %1121 = vmatpush2.msra.mxu0 0.0
    %1122 = vmatprep.subr.mxu0 0.0
    %1123 = vmatpush2.msra.mxu0 0.0
    %1124 = vmatprep.subr.mxu0 0.0
    %1125 = vmatpush2.msra.mxu0 0.0
    %1126 = vmatprep.subr.mxu0 0.0
    %1127 = vmatpush2.msra.mxu0 0.0
    %1128 = vmatprep.subr.mxu0 0.0
    %1129 = vmatpush2.msra.mxu0 0.0
    %1130 = vmatprep.mubr.f32.mxu0 0.0
    %1131 = vmatmul.mubr.f32.gmra.mxu0 %v335
    %v1132 = vpop.f32.mrf.mxu0
    %v1133 = vadd.f32 %v1064, %v1132
    %v1134 = vpop.f32.mrf.mxu0
    %1135 = vmatprep.mubr.f32.mxu0 0.0
    %1136 = vmatmul.mubr.f32.gmra.mxu0 %v338
    %v1137 = vpop.f32.mrf.mxu0
    %v1138 = vadd.f32 %v1064, %v1137
    %v1139 = vpop.f32.mrf.mxu0
    %1140 = vdwg.mxu0
    %v1142 = vsel %vm189, %v957, 0
    %v1145 = vsel %vm189, %v962, 0
    %v1148 = vsel %vm189, %v1045, 0
    %v1151 = vsel %vm189, %v1050, 0
    %1153 = vmatprep.subr.mxu0 0.0
    %1154 = vmatpush1.xpose.msra.mxu0 0.0
    %1155 = vmatprep.subr.mxu0 0.0
    %1156 = vmatpush1.xpose.msra.mxu0 0.0
    %1157 = vmatprep.subr.mxu0 0.0
    %1158 = vmatpush1.xpose.msra.mxu0 0.0
    %1159 = vmatprep.subr.mxu0 0.0
    %1160 = vmatpush1.xpose.msra.mxu0 0.0
    %1161 = vmatprep.subr.mxu0 0.0
    %1162 = vmatpush1.xpose.msra.mxu0 0.0
    %1163 = vmatprep.subr.mxu0 0.0
    %1164 = vmatpush1.xpose.msra.mxu0 0.0
    %1165 = vmatprep.subr.mxu0 0.0
    %1166 = vmatpush1.xpose.msra.mxu0 0.0
    %1167 = vmatprep.subr.mxu0 0.0
    %1168 = vmatpush1.xpose.msra.mxu0 0.0
    %1169 = vmatprep.subr.mxu0 0.0
    %1170 = vmatpush1.xpose.msra.mxu0 0.0
    %1171 = vmatprep.subr.mxu0 0.0
    %1172 = vmatpush1.xpose.msra.mxu0 0.0
    %1173 = vmatprep.subr.mxu0 0.0
    %1174 = vmatpush1.xpose.msra.mxu0 0.0
    %1175 = vmatprep.subr.mxu0 0.0
    %1176 = vmatpush1.xpose.msra.mxu0 0.0
    %1177 = vmatprep.subr.mxu0 0.0
    %1178 = vmatpush1.xpose.msra.mxu0 0.0
    %1179 = vmatprep.subr.mxu0 0.0
    %1180 = vmatpush1.xpose.msra.mxu0 0.0
    %1181 = vmatprep.subr.mxu0 0.0
    %1182 = vmatpush1.xpose.msra.mxu0 %v1151
    %1183 = vmatprep.subr.mxu0 0.0
    %1184 = vmatpush1.xpose.msra.mxu0 %v1148
    %1185 = vmatprep.subr.mxu0 0.0
    %1186 = vmatpush2.xpose.msra.mxu0 0.0
    %1187 = vmatprep.subr.mxu0 0.0
    %1188 = vmatpush2.xpose.msra.mxu0 0.0
    %1189 = vmatprep.subr.mxu0 0.0
    %1190 = vmatpush2.xpose.msra.mxu0 0.0
    %1191 = vmatprep.subr.mxu0 0.0
    %1192 = vmatpush2.xpose.msra.mxu0 0.0
    %1193 = vmatprep.subr.mxu0 0.0
    %1194 = vmatpush2.xpose.msra.mxu0 0.0
    %1195 = vmatprep.subr.mxu0 0.0
    %1196 = vmatpush2.xpose.msra.mxu0 0.0
    %1197 = vmatprep.subr.mxu0 0.0
    %1198 = vmatpush2.xpose.msra.mxu0 0.0
    %1199 = vmatprep.subr.mxu0 0.0
    %1200 = vmatpush2.xpose.msra.mxu0 0.0
    %1201 = vmatprep.subr.mxu0 0.0
    %1202 = vmatpush2.xpose.msra.mxu0 0.0
    %1203 = vmatprep.subr.mxu0 0.0
    %1204 = vmatpush2.xpose.msra.mxu0 0.0
    %1205 = vmatprep.subr.mxu0 0.0
    %1206 = vmatpush2.xpose.msra.mxu0 0.0
    %1207 = vmatprep.subr.mxu0 0.0
    %1208 = vmatpush2.xpose.msra.mxu0 0.0
    %1209 = vmatprep.subr.mxu0 0.0
    %1210 = vmatpush2.xpose.msra.mxu0 0.0
    %1211 = vmatprep.subr.mxu0 0.0
    %1212 = vmatpush2.xpose.msra.mxu0 0.0
    %1213 = vmatprep.subr.mxu0 0.0
    %1214 = vmatpush2.xpose.msra.mxu0 0.0
    %1215 = vmatprep.subr.mxu0 0.0
    %1216 = vmatpush2.xpose.msra.mxu0 0.0
    %1217 = vmatprep.mubr.f32.mxu0 0.0
    %1218 = vmatmul.mubr.f32.gmra.mxu0 %v1142
    %v1219 = vpop.f32.mrf.mxu0
    %v1220 = vadd.f32 0.0, %v1219
    %v1221 = vpop.f32.mrf.mxu0
    %1222 = vmatprep.mubr.f32.mxu0 0.0
    %1223 = vmatmul.mubr.f32.gmra.mxu0 %v1145
    %v1224 = vpop.f32.mrf.mxu0
    %v1225 = vadd.f32 0.0, %v1224
    %v1226 = vpop.f32.mrf.mxu0
    %1227 = vdwg.mxu0
    %v1228 = vmul.f32 %v1220, 0.35355338
    %v1229 = vmul.f32 %v1225, 0.35355338
    %v1230 = vadd.f32 %v1228, %v273
    %v1231 = vadd.f32 %v1229, %v274
    %v1232 = vsel %vm678, %v1230, -inf
    %1233 = vmax.xlane.f32.xlu0 %v1232
    %v1234 = vpop.xlane.xlu0 %1233
    %v1235 = vsel %vm682, %v1231, -inf
    %1236 = vmax.xlane.f32.xlu0 %v1235
    %v1237 = vpop.xlane.xlu0 %1236
    %v1238 = vsub.f32 %v1230, %v1234
    %v1239 = vsub.f32 %v1231, %v1237
    %v1240 = vmul.f32 %v1238, 1.442695
    %v1241 = vpow.pop %v1240
    %v1242 = vmul.f32 %v1239, 1.442695
    %v1243 = vpow.pop %v1242
    %v1244 = vsel %vm678, %v1241, 0.0
    %1245 = vadd.xlane.f32.xlu0 %v1244
    %v1246 = vpop.xlane.xlu0 %1245
    %v1247 = vsel %vm682, %v1243, 0.0
    %1248 = vadd.xlane.f32.xlu0 %v1247
    %v1249 = vpop.xlane.xlu0 %1248
    %v1250 = vrcp.pop %v1246
    %v1251 = vrcp.pop %v1249
    %v1252 = vmul.f32 %v1241, %v1250
    %v1253 = vmul.f32 %v1243, %v1251
    %v1255 = vsel %vm678, %v1252, 0
    %v1258 = vsel %vm678, %v1253, 0
    %v1261 = vsel %vm708, %v1138, 0
    %1263 = vmatprep.subr.mxu0 0.0
    %1264 = vmatpush1.msra.mxu0 0.0
    %1265 = vmatprep.subr.mxu0 0.0
    %1266 = vmatpush1.msra.mxu0 0.0
    %1267 = vmatprep.subr.mxu0 0.0
    %1268 = vmatpush1.msra.mxu0 0.0
    %1269 = vmatprep.subr.mxu0 0.0
    %1270 = vmatpush1.msra.mxu0 0.0
    %1271 = vmatprep.subr.mxu0 0.0
    %1272 = vmatpush1.msra.mxu0 0.0
    %1273 = vmatprep.subr.mxu0 0.0
    %1274 = vmatpush1.msra.mxu0 0.0
    %1275 = vmatprep.subr.mxu0 0.0
    %1276 = vmatpush1.msra.mxu0 0.0
    %1277 = vmatprep.subr.mxu0 0.0
    %1278 = vmatpush1.msra.mxu0 0.0
    %1279 = vmatprep.subr.mxu0 0.0
    %1280 = vmatpush1.msra.mxu0 0.0
    %1281 = vmatprep.subr.mxu0 0.0
    %1282 = vmatpush1.msra.mxu0 0.0
    %1283 = vmatprep.subr.mxu0 0.0
    %1284 = vmatpush1.msra.mxu0 0.0
    %1285 = vmatprep.subr.mxu0 0.0
    %1286 = vmatpush1.msra.mxu0 0.0
    %1287 = vmatprep.subr.mxu0 0.0
    %1288 = vmatpush1.msra.mxu0 0.0
    %1289 = vmatprep.subr.mxu0 0.0
    %1290 = vmatpush1.msra.mxu0 0.0
    %1291 = vmatprep.subr.mxu0 0.0
    %1292 = vmatpush1.msra.mxu0 %v1261
    %1293 = vmatprep.subr.mxu0 0.0
    %1294 = vmatpush1.msra.mxu0 %v1133
    %1295 = vmatprep.subr.mxu0 0.0
    %1296 = vmatpush2.msra.mxu0 0.0
    %1297 = vmatprep.subr.mxu0 0.0
    %1298 = vmatpush2.msra.mxu0 0.0
    %1299 = vmatprep.subr.mxu0 0.0
    %1300 = vmatpush2.msra.mxu0 0.0
    %1301 = vmatprep.subr.mxu0 0.0
    %1302 = vmatpush2.msra.mxu0 0.0
    %1303 = vmatprep.subr.mxu0 0.0
    %1304 = vmatpush2.msra.mxu0 0.0
    %1305 = vmatprep.subr.mxu0 0.0
    %1306 = vmatpush2.msra.mxu0 0.0
    %1307 = vmatprep.subr.mxu0 0.0
    %1308 = vmatpush2.msra.mxu0 0.0
    %1309 = vmatprep.subr.mxu0 0.0
    %1310 = vmatpush2.msra.mxu0 0.0
    %1311 = vmatprep.subr.mxu0 0.0
    %1312 = vmatpush2.msra.mxu0 0.0
    %1313 = vmatprep.subr.mxu0 0.0
    %1314 = vmatpush2.msra.mxu0 0.0
    %1315 = vmatprep.subr.mxu0 0.0
    %1316 = vmatpush2.msra.mxu0 0.0
    %1317 = vmatprep.subr.mxu0 0.0
    %1318 = vmatpush2.msra.mxu0 0.0
    %1319 = vmatprep.subr.mxu0 0.0
    %1320 = vmatpush2.msra.mxu0 0.0
    %1321 = vmatprep.subr.mxu0 0.0
    %1322 = vmatpush2.msra.mxu0 0.0
    %1323 = vmatprep.subr.mxu0 0.0
    %1324 = vmatpush2.msra.mxu0 0.0
    %1325 = vmatprep.subr.mxu0 0.0
    %1326 = vmatpush2.msra.mxu0 0.0
    %1327 = vmatprep.mubr.f32.mxu0 0.0
    %1328 = vmatmul.mubr.f32.gmra.mxu0 %v1255
    %v1329 = vpop.f32.mrf.mxu0
    %v1330 = vadd.f32 0.0, %v1329
    %v1331 = vpop.f32.mrf.mxu0
    %1332 = vmatprep.mubr.f32.mxu0 0.0
    %1333 = vmatmul.mubr.f32.gmra.mxu0 %v1258
    %v1334 = vpop.f32.mrf.mxu0
    %v1335 = vadd.f32 0.0, %v1334
    %v1336 = vpop.f32.mrf.mxu0
    %1337 = vdwg.mxu0
    %s1338 = scalar_lea.vmem %s14, 8
    %v1339 = vld [vmem:[%s1338] sm:$0xff]
    %v1341 = vsel %vm189, %v1330, 0
    %v1344 = vsel %vm189, %v1335, 0
    %1346 = vmatprep.subr.mxu0 0.0
    %1347 = vmatpush1.msra.mxu0 0.0
    %1348 = vmatprep.subr.mxu0 0.0
    %1349 = vmatpush1.msra.mxu0 0.0
    %1350 = vmatprep.subr.mxu0 0.0
    %1351 = vmatpush1.msra.mxu0 0.0
    %1352 = vmatprep.subr.mxu0 0.0
    %1353 = vmatpush1.msra.mxu0 0.0
    %1354 = vmatprep.subr.mxu0 0.0
    %1355 = vmatpush1.msra.mxu0 0.0
    %1356 = vmatprep.subr.mxu0 0.0
    %1357 = vmatpush1.msra.mxu0 0.0
    %1358 = vmatprep.subr.mxu0 0.0
    %1359 = vmatpush1.msra.mxu0 0.0
    %1360 = vmatprep.subr.mxu0 0.0
    %1361 = vmatpush1.msra.mxu0 0.0
    %1362 = vmatprep.subr.mxu0 0.0
    %1363 = vmatpush1.msra.mxu0 0.0
    %1364 = vmatprep.subr.mxu0 0.0
    %1365 = vmatpush1.msra.mxu0 0.0
    %1366 = vmatprep.subr.mxu0 0.0
    %1367 = vmatpush1.msra.mxu0 0.0
    %1368 = vmatprep.subr.mxu0 0.0
    %1369 = vmatpush1.msra.mxu0 0.0
    %1370 = vmatprep.subr.mxu0 0.0
    %1371 = vmatpush1.msra.mxu0 0.0
    %1372 = vmatprep.subr.mxu0 0.0
    %1373 = vmatpush1.msra.mxu0 0.0
    %1374 = vmatprep.subr.mxu0 0.0
    %1375 = vmatpush1.msra.mxu0 0.0
    %1376 = vmatprep.subr.mxu0 0.0
    %1377 = vmatpush1.msra.mxu0 %v1339
    %1378 = vmatprep.subr.mxu0 0.0
    %1379 = vmatpush2.msra.mxu0 0.0
    %1380 = vmatprep.subr.mxu0 0.0
    %1381 = vmatpush2.msra.mxu0 0.0
    %1382 = vmatprep.subr.mxu0 0.0
    %1383 = vmatpush2.msra.mxu0 0.0
    %1384 = vmatprep.subr.mxu0 0.0
    %1385 = vmatpush2.msra.mxu0 0.0
    %1386 = vmatprep.subr.mxu0 0.0
    %1387 = vmatpush2.msra.mxu0 0.0
    %1388 = vmatprep.subr.mxu0 0.0
    %1389 = vmatpush2.msra.mxu0 0.0
    %1390 = vmatprep.subr.mxu0 0.0
    %1391 = vmatpush2.msra.mxu0 0.0
    %1392 = vmatprep.subr.mxu0 0.0
    %1393 = vmatpush2.msra.mxu0 0.0
    %1394 = vmatprep.subr.mxu0 0.0
    %1395 = vmatpush2.msra.mxu0 0.0
    %1396 = vmatprep.subr.mxu0 0.0
    %1397 = vmatpush2.msra.mxu0 0.0
    %1398 = vmatprep.subr.mxu0 0.0
    %1399 = vmatpush2.msra.mxu0 0.0
    %1400 = vmatprep.subr.mxu0 0.0
    %1401 = vmatpush2.msra.mxu0 0.0
    %1402 = vmatprep.subr.mxu0 0.0
    %1403 = vmatpush2.msra.mxu0 0.0
    %1404 = vmatprep.subr.mxu0 0.0
    %1405 = vmatpush2.msra.mxu0 0.0
    %1406 = vmatprep.subr.mxu0 0.0
    %1407 = vmatpush2.msra.mxu0 0.0
    %1408 = vmatprep.subr.mxu0 0.0
    %1409 = vmatpush2.msra.mxu0 0.0
    %1410 = vmatprep.mubr.f32.mxu0 0.0
    %1411 = vmatmul.mubr.f32.gmra.mxu0 %v1341
    %v1412 = vpop.f32.mrf.mxu0
    %v1413 = vadd.f32 0.0, %v1412
    %v1414 = vpop.f32.mrf.mxu0
    %1415 = vmatprep.mubr.f32.mxu0 0.0
    %1416 = vmatmul.mubr.f32.gmra.mxu0 %v1344
    %v1417 = vpop.f32.mrf.mxu0
    %v1418 = vadd.f32 0.0, %v1417
    %v1419 = vpop.f32.mrf.mxu0
    %1420 = vdwg.mxu0
    %v1421 = vadd.f32 %v875, %v1413
    %v1422 = vadd.f32 %v876, %v1418
    %s1423 = scalar_lea.vmem %s8, 64
    %v1424 = vld [vmem:[%s1423] sm:$0xff]
    %v1425 = vld [vmem:[%s1423 + $0x8] sm:$0xff]
    %v1426 = vld [vmem:[%s1423 + $0x10] sm:$0xff]
    %v1427 = vld [vmem:[%s1423 + $0x18] sm:$0xff]
    %s1428 = scalar_lea.vmem %s11, 2
    %v1429 = vld [vmem:[%s1428] sm:$0x1]
    %v1431 = vlaneseq
    %v1432 = vshrl.u32 %v1431, 7
    %v1433 = vsub.s32 0, %v1432
    %v1434 = vrot.slane %v1429, %v1433
    %1436 = vmatprep.subr.mxu0 0.0
    %1437 = vmatpush1.msra.mxu0 0.0
    %1438 = vmatprep.subr.mxu0 0.0
    %1439 = vmatpush1.msra.mxu0 0.0
    %1440 = vmatprep.subr.mxu0 0.0
    %1441 = vmatpush1.msra.mxu0 0.0
    %1442 = vmatprep.subr.mxu0 0.0
    %1443 = vmatpush1.msra.mxu0 0.0
    %1444 = vmatprep.subr.mxu0 0.0
    %1445 = vmatpush1.msra.mxu0 0.0
    %1446 = vmatprep.subr.mxu0 0.0
    %1447 = vmatpush1.msra.mxu0 0.0
    %1448 = vmatprep.subr.mxu0 0.0
    %1449 = vmatpush1.msra.mxu0 0.0
    %1450 = vmatprep.subr.mxu0 0.0
    %1451 = vmatpush1.msra.mxu0 0.0
    %1452 = vmatprep.subr.mxu0 0.0
    %1453 = vmatpush1.msra.mxu0 0.0
    %1454 = vmatprep.subr.mxu0 0.0
    %1455 = vmatpush1.msra.mxu0 0.0
    %1456 = vmatprep.subr.mxu0 0.0
    %1457 = vmatpush1.msra.mxu0 0.0
    %1458 = vmatprep.subr.mxu0 0.0
    %1459 = vmatpush1.msra.mxu0 0.0
    %1460 = vmatprep.subr.mxu0 0.0
    %1461 = vmatpush1.msra.mxu0 %v1427
    %1462 = vmatprep.subr.mxu0 0.0
    %1463 = vmatpush1.msra.mxu0 %v1426
    %1464 = vmatprep.subr.mxu0 0.0
    %1465 = vmatpush1.msra.mxu0 %v1425
    %1466 = vmatprep.subr.mxu0 0.0
    %1467 = vmatpush1.msra.mxu0 %v1424
    %1468 = vmatprep.subr.mxu0 0.0
    %1469 = vmatpush2.msra.mxu0 0.0
    %1470 = vmatprep.subr.mxu0 0.0
    %1471 = vmatpush2.msra.mxu0 0.0
    %1472 = vmatprep.subr.mxu0 0.0
    %1473 = vmatpush2.msra.mxu0 0.0
    %1474 = vmatprep.subr.mxu0 0.0
    %1475 = vmatpush2.msra.mxu0 0.0
    %1476 = vmatprep.subr.mxu0 0.0
    %1477 = vmatpush2.msra.mxu0 0.0
    %1478 = vmatprep.subr.mxu0 0.0
    %1479 = vmatpush2.msra.mxu0 0.0
    %1480 = vmatprep.subr.mxu0 0.0
    %1481 = vmatpush2.msra.mxu0 0.0
    %1482 = vmatprep.subr.mxu0 0.0
    %1483 = vmatpush2.msra.mxu0 0.0
    %1484 = vmatprep.subr.mxu0 0.0
    %1485 = vmatpush2.msra.mxu0 0.0
    %1486 = vmatprep.subr.mxu0 0.0
    %1487 = vmatpush2.msra.mxu0 0.0
    %1488 = vmatprep.subr.mxu0 0.0
    %1489 = vmatpush2.msra.mxu0 0.0
    %1490 = vmatprep.subr.mxu0 0.0
    %1491 = vmatpush2.msra.mxu0 0.0
    %1492 = vmatprep.subr.mxu0 0.0
    %1493 = vmatpush2.msra.mxu0 0.0
    %1494 = vmatprep.subr.mxu0 0.0
    %1495 = vmatpush2.msra.mxu0 0.0
    %1496 = vmatprep.subr.mxu0 0.0
    %1497 = vmatpush2.msra.mxu0 0.0
    %1498 = vmatprep.subr.mxu0 0.0
    %1499 = vmatpush2.msra.mxu0 0.0
    %1500 = vmatprep.mubr.f32.mxu0 0.0
    %1501 = vmatmul.mubr.f32.gmra.mxu0 %v335
    %v1502 = vpop.f32.mrf.mxu0
    %v1503 = vadd.f32 %v1434, %v1502
    %v1504 = vpop.f32.mrf.mxu0
    %1505 = vmatprep.mubr.f32.mxu0 0.0
    %1506 = vmatmul.mubr.f32.gmra.mxu0 %v338
    %v1507 = vpop.f32.mrf.mxu0
    %v1508 = vadd.f32 %v1434, %v1507
    %v1509 = vpop.f32.mrf.mxu0
    %1510 = vdwg.mxu0
    %s1511 = scalar_lea.vmem %s9, 64
    %v1512 = vld [vmem:[%s1511] sm:$0xff]
    %v1513 = vld [vmem:[%s1511 + $0x8] sm:$0xff]
    %v1514 = vld [vmem:[%s1511 + $0x10] sm:$0xff]
    %v1515 = vld [vmem:[%s1511 + $0x18] sm:$0xff]
    %s1516 = scalar_lea.vmem %s12, 2
    %v1517 = vld [vmem:[%s1516] sm:$0x1]
    %v1519 = vlaneseq
    %v1520 = vshrl.u32 %v1519, 7
    %v1521 = vsub.s32 0, %v1520
    %v1522 = vrot.slane %v1517, %v1521
    %1524 = vmatprep.subr.mxu0 0.0
    %1525 = vmatpush1.msra.mxu0 0.0
    %1526 = vmatprep.subr.mxu0 0.0
    %1527 = vmatpush1.msra.mxu0 0.0
    %1528 = vmatprep.subr.mxu0 0.0
    %1529 = vmatpush1.msra.mxu0 0.0
    %1530 = vmatprep.subr.mxu0 0.0
    %1531 = vmatpush1.msra.mxu0 0.0
    %1532 = vmatprep.subr.mxu0 0.0
    %1533 = vmatpush1.msra.mxu0 0.0
    %1534 = vmatprep.subr.mxu0 0.0
    %1535 = vmatpush1.msra.mxu0 0.0
    %1536 = vmatprep.subr.mxu0 0.0
    %1537 = vmatpush1.msra.mxu0 0.0
    %1538 = vmatprep.subr.mxu0 0.0
    %1539 = vmatpush1.msra.mxu0 0.0
    %1540 = vmatprep.subr.mxu0 0.0
    %1541 = vmatpush1.msra.mxu0 0.0
    %1542 = vmatprep.subr.mxu0 0.0
    %1543 = vmatpush1.msra.mxu0 0.0
    %1544 = vmatprep.subr.mxu0 0.0
    %1545 = vmatpush1.msra.mxu0 0.0
    %1546 = vmatprep.subr.mxu0 0.0
    %1547 = vmatpush1.msra.mxu0 0.0
    %1548 = vmatprep.subr.mxu0 0.0
    %1549 = vmatpush1.msra.mxu0 %v1515
    %1550 = vmatprep.subr.mxu0 0.0
    %1551 = vmatpush1.msra.mxu0 %v1514
    %1552 = vmatprep.subr.mxu0 0.0
    %1553 = vmatpush1.msra.mxu0 %v1513
    %1554 = vmatprep.subr.mxu0 0.0
    %1555 = vmatpush1.msra.mxu0 %v1512
    %1556 = vmatprep.subr.mxu0 0.0
    %1557 = vmatpush2.msra.mxu0 0.0
    %1558 = vmatprep.subr.mxu0 0.0
    %1559 = vmatpush2.msra.mxu0 0.0
    %1560 = vmatprep.subr.mxu0 0.0
    %1561 = vmatpush2.msra.mxu0 0.0
    %1562 = vmatprep.subr.mxu0 0.0
    %1563 = vmatpush2.msra.mxu0 0.0
    %1564 = vmatprep.subr.mxu0 0.0
    %1565 = vmatpush2.msra.mxu0 0.0
    %1566 = vmatprep.subr.mxu0 0.0
    %1567 = vmatpush2.msra.mxu0 0.0
    %1568 = vmatprep.subr.mxu0 0.0
    %1569 = vmatpush2.msra.mxu0 0.0
    %1570 = vmatprep.subr.mxu0 0.0
    %1571 = vmatpush2.msra.mxu0 0.0
    %1572 = vmatprep.subr.mxu0 0.0
    %1573 = vmatpush2.msra.mxu0 0.0
    %1574 = vmatprep.subr.mxu0 0.0
    %1575 = vmatpush2.msra.mxu0 0.0
    %1576 = vmatprep.subr.mxu0 0.0
    %1577 = vmatpush2.msra.mxu0 0.0
    %1578 = vmatprep.subr.mxu0 0.0
    %1579 = vmatpush2.msra.mxu0 0.0
    %1580 = vmatprep.subr.mxu0 0.0
    %1581 = vmatpush2.msra.mxu0 0.0
    %1582 = vmatprep.subr.mxu0 0.0
    %1583 = vmatpush2.msra.mxu0 0.0
    %1584 = vmatprep.subr.mxu0 0.0
    %1585 = vmatpush2.msra.mxu0 0.0
    %1586 = vmatprep.subr.mxu0 0.0
    %1587 = vmatpush2.msra.mxu0 0.0
    %1588 = vmatprep.mubr.f32.mxu0 0.0
    %1589 = vmatmul.mubr.f32.gmra.mxu0 %v335
    %v1590 = vpop.f32.mrf.mxu0
    %v1591 = vadd.f32 %v1522, %v1590
    %v1592 = vpop.f32.mrf.mxu0
    %1593 = vmatprep.mubr.f32.mxu0 0.0
    %1594 = vmatmul.mubr.f32.gmra.mxu0 %v338
    %v1595 = vpop.f32.mrf.mxu0
    %v1596 = vadd.f32 %v1522, %v1595
    %v1597 = vpop.f32.mrf.mxu0
    %1598 = vdwg.mxu0
    %s1599 = scalar_lea.vmem %s10, 64
    %v1600 = vld [vmem:[%s1599] sm:$0xff]
    %v1601 = vld [vmem:[%s1599 + $0x8] sm:$0xff]
    %v1602 = vld [vmem:[%s1599 + $0x10] sm:$0xff]
    %v1603 = vld [vmem:[%s1599 + $0x18] sm:$0xff]
    %s1604 = scalar_lea.vmem %s13, 2
    %v1605 = vld [vmem:[%s1604] sm:$0x1]
    %v1607 = vlaneseq
    %v1608 = vshrl.u32 %v1607, 7
    %v1609 = vsub.s32 0, %v1608
    %v1610 = vrot.slane %v1605, %v1609
    %1612 = vmatprep.subr.mxu0 0.0
    %1613 = vmatpush1.msra.mxu0 0.0
    %1614 = vmatprep.subr.mxu0 0.0
    %1615 = vmatpush1.msra.mxu0 0.0
    %1616 = vmatprep.subr.mxu0 0.0
    %1617 = vmatpush1.msra.mxu0 0.0
    %1618 = vmatprep.subr.mxu0 0.0
    %1619 = vmatpush1.msra.mxu0 0.0
    %1620 = vmatprep.subr.mxu0 0.0
    %1621 = vmatpush1.msra.mxu0 0.0
    %1622 = vmatprep.subr.mxu0 0.0
    %1623 = vmatpush1.msra.mxu0 0.0
    %1624 = vmatprep.subr.mxu0 0.0
    %1625 = vmatpush1.msra.mxu0 0.0
    %1626 = vmatprep.subr.mxu0 0.0
    %1627 = vmatpush1.msra.mxu0 0.0
    %1628 = vmatprep.subr.mxu0 0.0
    %1629 = vmatpush1.msra.mxu0 0.0
    %1630 = vmatprep.subr.mxu0 0.0
    %1631 = vmatpush1.msra.mxu0 0.0
    %1632 = vmatprep.subr.mxu0 0.0
    %1633 = vmatpush1.msra.mxu0 0.0
    %1634 = vmatprep.subr.mxu0 0.0
    %1635 = vmatpush1.msra.mxu0 0.0
    %1636 = vmatprep.subr.mxu0 0.0
    %1637 = vmatpush1.msra.mxu0 %v1603
    %1638 = vmatprep.subr.mxu0 0.0
    %1639 = vmatpush1.msra.mxu0 %v1602
    %1640 = vmatprep.subr.mxu0 0.0
    %1641 = vmatpush1.msra.mxu0 %v1601
    %1642 = vmatprep.subr.mxu0 0.0
    %1643 = vmatpush1.msra.mxu0 %v1600
    %1644 = vmatprep.subr.mxu0 0.0
    %1645 = vmatpush2.msra.mxu0 0.0
    %1646 = vmatprep.subr.mxu0 0.0
    %1647 = vmatpush2.msra.mxu0 0.0
    %1648 = vmatprep.subr.mxu0 0.0
    %1649 = vmatpush2.msra.mxu0 0.0
    %1650 = vmatprep.subr.mxu0 0.0
    %1651 = vmatpush2.msra.mxu0 0.0
    %1652 = vmatprep.subr.mxu0 0.0
    %1653 = vmatpush2.msra.mxu0 0.0
    %1654 = vmatprep.subr.mxu0 0.0
    %1655 = vmatpush2.msra.mxu0 0.0
    %1656 = vmatprep.subr.mxu0 0.0
    %1657 = vmatpush2.msra.mxu0 0.0
    %1658 = vmatprep.subr.mxu0 0.0
    %1659 = vmatpush2.msra.mxu0 0.0
    %1660 = vmatprep.subr.mxu0 0.0
    %1661 = vmatpush2.msra.mxu0 0.0
    %1662 = vmatprep.subr.mxu0 0.0
    %1663 = vmatpush2.msra.mxu0 0.0
    %1664 = vmatprep.subr.mxu0 0.0
    %1665 = vmatpush2.msra.mxu0 0.0
    %1666 = vmatprep.subr.mxu0 0.0
    %1667 = vmatpush2.msra.mxu0 0.0
    %1668 = vmatprep.subr.mxu0 0.0
    %1669 = vmatpush2.msra.mxu0 0.0
    %1670 = vmatprep.subr.mxu0 0.0
    %1671 = vmatpush2.msra.mxu0 0.0
    %1672 = vmatprep.subr.mxu0 0.0
    %1673 = vmatpush2.msra.mxu0 0.0
    %1674 = vmatprep.subr.mxu0 0.0
    %1675 = vmatpush2.msra.mxu0 0.0
    %1676 = vmatprep.mubr.f32.mxu0 0.0
    %1677 = vmatmul.mubr.f32.gmra.mxu0 %v335
    %v1678 = vpop.f32.mrf.mxu0
    %v1679 = vadd.f32 %v1610, %v1678
    %v1680 = vpop.f32.mrf.mxu0
    %1681 = vmatprep.mubr.f32.mxu0 0.0
    %1682 = vmatmul.mubr.f32.gmra.mxu0 %v338
    %v1683 = vpop.f32.mrf.mxu0
    %v1684 = vadd.f32 %v1610, %v1683
    %v1685 = vpop.f32.mrf.mxu0
    %1686 = vdwg.mxu0
    %v1688 = vsel %vm189, %v1503, 0
    %v1691 = vsel %vm189, %v1508, 0
    %v1694 = vsel %vm189, %v1591, 0
    %v1697 = vsel %vm189, %v1596, 0
    %1699 = vmatprep.subr.mxu0 0.0
    %1700 = vmatpush1.xpose.msra.mxu0 0.0
    %1701 = vmatprep.subr.mxu0 0.0
    %1702 = vmatpush1.xpose.msra.mxu0 0.0
    %1703 = vmatprep.subr.mxu0 0.0
    %1704 = vmatpush1.xpose.msra.mxu0 0.0
    %1705 = vmatprep.subr.mxu0 0.0
    %1706 = vmatpush1.xpose.msra.mxu0 0.0
    %1707 = vmatprep.subr.mxu0 0.0
    %1708 = vmatpush1.xpose.msra.mxu0 0.0
    %1709 = vmatprep.subr.mxu0 0.0
    %1710 = vmatpush1.xpose.msra.mxu0 0.0
    %1711 = vmatprep.subr.mxu0 0.0
    %1712 = vmatpush1.xpose.msra.mxu0 0.0
    %1713 = vmatprep.subr.mxu0 0.0
    %1714 = vmatpush1.xpose.msra.mxu0 0.0
    %1715 = vmatprep.subr.mxu0 0.0
    %1716 = vmatpush1.xpose.msra.mxu0 0.0
    %1717 = vmatprep.subr.mxu0 0.0
    %1718 = vmatpush1.xpose.msra.mxu0 0.0
    %1719 = vmatprep.subr.mxu0 0.0
    %1720 = vmatpush1.xpose.msra.mxu0 0.0
    %1721 = vmatprep.subr.mxu0 0.0
    %1722 = vmatpush1.xpose.msra.mxu0 0.0
    %1723 = vmatprep.subr.mxu0 0.0
    %1724 = vmatpush1.xpose.msra.mxu0 0.0
    %1725 = vmatprep.subr.mxu0 0.0
    %1726 = vmatpush1.xpose.msra.mxu0 0.0
    %1727 = vmatprep.subr.mxu0 0.0
    %1728 = vmatpush1.xpose.msra.mxu0 %v1697
    %1729 = vmatprep.subr.mxu0 0.0
    %1730 = vmatpush1.xpose.msra.mxu0 %v1694
    %1731 = vmatprep.subr.mxu0 0.0
    %1732 = vmatpush2.xpose.msra.mxu0 0.0
    %1733 = vmatprep.subr.mxu0 0.0
    %1734 = vmatpush2.xpose.msra.mxu0 0.0
    %1735 = vmatprep.subr.mxu0 0.0
    %1736 = vmatpush2.xpose.msra.mxu0 0.0
    %1737 = vmatprep.subr.mxu0 0.0
    %1738 = vmatpush2.xpose.msra.mxu0 0.0
    %1739 = vmatprep.subr.mxu0 0.0
    %1740 = vmatpush2.xpose.msra.mxu0 0.0
    %1741 = vmatprep.subr.mxu0 0.0
    %1742 = vmatpush2.xpose.msra.mxu0 0.0
    %1743 = vmatprep.subr.mxu0 0.0
    %1744 = vmatpush2.xpose.msra.mxu0 0.0
    %1745 = vmatprep.subr.mxu0 0.0
    %1746 = vmatpush2.xpose.msra.mxu0 0.0
    %1747 = vmatprep.subr.mxu0 0.0
    %1748 = vmatpush2.xpose.msra.mxu0 0.0
    %1749 = vmatprep.subr.mxu0 0.0
    %1750 = vmatpush2.xpose.msra.mxu0 0.0
    %1751 = vmatprep.subr.mxu0 0.0
    %1752 = vmatpush2.xpose.msra.mxu0 0.0
    %1753 = vmatprep.subr.mxu0 0.0
    %1754 = vmatpush2.xpose.msra.mxu0 0.0
    %1755 = vmatprep.subr.mxu0 0.0
    %1756 = vmatpush2.xpose.msra.mxu0 0.0
    %1757 = vmatprep.subr.mxu0 0.0
    %1758 = vmatpush2.xpose.msra.mxu0 0.0
    %1759 = vmatprep.subr.mxu0 0.0
    %1760 = vmatpush2.xpose.msra.mxu0 0.0
    %1761 = vmatprep.subr.mxu0 0.0
    %1762 = vmatpush2.xpose.msra.mxu0 0.0
    %1763 = vmatprep.mubr.f32.mxu0 0.0
    %1764 = vmatmul.mubr.f32.gmra.mxu0 %v1688
    %v1765 = vpop.f32.mrf.mxu0
    %v1766 = vadd.f32 0.0, %v1765
    %v1767 = vpop.f32.mrf.mxu0
    %1768 = vmatprep.mubr.f32.mxu0 0.0
    %1769 = vmatmul.mubr.f32.gmra.mxu0 %v1691
    %v1770 = vpop.f32.mrf.mxu0
    %v1771 = vadd.f32 0.0, %v1770
    %v1772 = vpop.f32.mrf.mxu0
    %1773 = vdwg.mxu0
    %v1774 = vmul.f32 %v1766, 0.35355338
    %v1775 = vmul.f32 %v1771, 0.35355338
    %v1776 = vadd.f32 %v1774, %v273
    %v1777 = vadd.f32 %v1775, %v274
    %v1778 = vsel %vm678, %v1776, -inf
    %1779 = vmax.xlane.f32.xlu0 %v1778
    %v1780 = vpop.xlane.xlu0 %1779
    %v1781 = vsel %vm682, %v1777, -inf
    %1782 = vmax.xlane.f32.xlu0 %v1781
    %v1783 = vpop.xlane.xlu0 %1782
    %v1784 = vsub.f32 %v1776, %v1780
    %v1785 = vsub.f32 %v1777, %v1783
    %v1786 = vmul.f32 %v1784, 1.442695
    %v1787 = vpow.pop %v1786
    %v1788 = vmul.f32 %v1785, 1.442695
    %v1789 = vpow.pop %v1788
    %v1790 = vsel %vm678, %v1787, 0.0
    %1791 = vadd.xlane.f32.xlu0 %v1790
    %v1792 = vpop.xlane.xlu0 %1791
    %v1793 = vsel %vm682, %v1789, 0.0
    %1794 = vadd.xlane.f32.xlu0 %v1793
    %v1795 = vpop.xlane.xlu0 %1794
    %v1796 = vrcp.pop %v1792
    %v1797 = vrcp.pop %v1795
    %v1798 = vmul.f32 %v1787, %v1796
    %v1799 = vmul.f32 %v1789, %v1797
    %v1801 = vsel %vm678, %v1798, 0
    %v1804 = vsel %vm678, %v1799, 0
    %v1807 = vsel %vm708, %v1684, 0
    %1809 = vmatprep.subr.mxu0 0.0
    %1810 = vmatpush1.msra.mxu0 0.0
    %1811 = vmatprep.subr.mxu0 0.0
    %1812 = vmatpush1.msra.mxu0 0.0
    %1813 = vmatprep.subr.mxu0 0.0
    %1814 = vmatpush1.msra.mxu0 0.0
    %1815 = vmatprep.subr.mxu0 0.0
    %1816 = vmatpush1.msra.mxu0 0.0
    %1817 = vmatprep.subr.mxu0 0.0
    %1818 = vmatpush1.msra.mxu0 0.0
    %1819 = vmatprep.subr.mxu0 0.0
    %1820 = vmatpush1.msra.mxu0 0.0
    %1821 = vmatprep.subr.mxu0 0.0
    %1822 = vmatpush1.msra.mxu0 0.0
    %1823 = vmatprep.subr.mxu0 0.0
    %1824 = vmatpush1.msra.mxu0 0.0
    %1825 = vmatprep.subr.mxu0 0.0
    %1826 = vmatpush1.msra.mxu0 0.0
    %1827 = vmatprep.subr.mxu0 0.0
    %1828 = vmatpush1.msra.mxu0 0.0
    %1829 = vmatprep.subr.mxu0 0.0
    %1830 = vmatpush1.msra.mxu0 0.0
    %1831 = vmatprep.subr.mxu0 0.0
    %1832 = vmatpush1.msra.mxu0 0.0
    %1833 = vmatprep.subr.mxu0 0.0
    %1834 = vmatpush1.msra.mxu0 0.0
    %1835 = vmatprep.subr.mxu0 0.0
    %1836 = vmatpush1.msra.mxu0 0.0
    %1837 = vmatprep.subr.mxu0 0.0
    %1838 = vmatpush1.msra.mxu0 %v1807
    %1839 = vmatprep.subr.mxu0 0.0
    %1840 = vmatpush1.msra.mxu0 %v1679
    %1841 = vmatprep.subr.mxu0 0.0
    %1842 = vmatpush2.msra.mxu0 0.0
    %1843 = vmatprep.subr.mxu0 0.0
    %1844 = vmatpush2.msra.mxu0 0.0
    %1845 = vmatprep.subr.mxu0 0.0
    %1846 = vmatpush2.msra.mxu0 0.0
    %1847 = vmatprep.subr.mxu0 0.0
    %1848 = vmatpush2.msra.mxu0 0.0
    %1849 = vmatprep.subr.mxu0 0.0
    %1850 = vmatpush2.msra.mxu0 0.0
    %1851 = vmatprep.subr.mxu0 0.0
    %1852 = vmatpush2.msra.mxu0 0.0
    %1853 = vmatprep.subr.mxu0 0.0
    %1854 = vmatpush2.msra.mxu0 0.0
    %1855 = vmatprep.subr.mxu0 0.0
    %1856 = vmatpush2.msra.mxu0 0.0
    %1857 = vmatprep.subr.mxu0 0.0
    %1858 = vmatpush2.msra.mxu0 0.0
    %1859 = vmatprep.subr.mxu0 0.0
    %1860 = vmatpush2.msra.mxu0 0.0
    %1861 = vmatprep.subr.mxu0 0.0
    %1862 = vmatpush2.msra.mxu0 0.0
    %1863 = vmatprep.subr.mxu0 0.0
    %1864 = vmatpush2.msra.mxu0 0.0
    %1865 = vmatprep.subr.mxu0 0.0
    %1866 = vmatpush2.msra.mxu0 0.0
    %1867 = vmatprep.subr.mxu0 0.0
    %1868 = vmatpush2.msra.mxu0 0.0
    %1869 = vmatprep.subr.mxu0 0.0
    %1870 = vmatpush2.msra.mxu0 0.0
    %1871 = vmatprep.subr.mxu0 0.0
    %1872 = vmatpush2.msra.mxu0 0.0
    %1873 = vmatprep.mubr.f32.mxu0 0.0
    %1874 = vmatmul.mubr.f32.gmra.mxu0 %v1801
    %v1875 = vpop.f32.mrf.mxu0
    %v1876 = vadd.f32 0.0, %v1875
    %v1877 = vpop.f32.mrf.mxu0
    %1878 = vmatprep.mubr.f32.mxu0 0.0
    %1879 = vmatmul.mubr.f32.gmra.mxu0 %v1804
    %v1880 = vpop.f32.mrf.mxu0
    %v1881 = vadd.f32 0.0, %v1880
    %v1882 = vpop.f32.mrf.mxu0
    %1883 = vdwg.mxu0
    %s1884 = scalar_lea.vmem %s14, 16
    %v1885 = vld [vmem:[%s1884] sm:$0xff]
    %v1887 = vsel %vm189, %v1876, 0
    %v1890 = vsel %vm189, %v1881, 0
    %1892 = vmatprep.subr.mxu0 0.0
    %1893 = vmatpush1.msra.mxu0 0.0
    %1894 = vmatprep.subr.mxu0 0.0
    %1895 = vmatpush1.msra.mxu0 0.0
    %1896 = vmatprep.subr.mxu0 0.0
    %1897 = vmatpush1.msra.mxu0 0.0
    %1898 = vmatprep.subr.mxu0 0.0
    %1899 = vmatpush1.msra.mxu0 0.0
    %1900 = vmatprep.subr.mxu0 0.0
    %1901 = vmatpush1.msra.mxu0 0.0
    %1902 = vmatprep.subr.mxu0 0.0
    %1903 = vmatpush1.msra.mxu0 0.0
    %1904 = vmatprep.subr.mxu0 0.0
    %1905 = vmatpush1.msra.mxu0 0.0
    %1906 = vmatprep.subr.mxu0 0.0
    %1907 = vmatpush1.msra.mxu0 0.0
    %1908 = vmatprep.subr.mxu0 0.0
    %1909 = vmatpush1.msra.mxu0 0.0
    %1910 = vmatprep.subr.mxu0 0.0
    %1911 = vmatpush1.msra.mxu0 0.0
    %1912 = vmatprep.subr.mxu0 0.0
    %1913 = vmatpush1.msra.mxu0 0.0
    %1914 = vmatprep.subr.mxu0 0.0
    %1915 = vmatpush1.msra.mxu0 0.0
    %1916 = vmatprep.subr.mxu0 0.0
    %1917 = vmatpush1.msra.mxu0 0.0
    %1918 = vmatprep.subr.mxu0 0.0
    %1919 = vmatpush1.msra.mxu0 0.0
    %1920 = vmatprep.subr.mxu0 0.0
    %1921 = vmatpush1.msra.mxu0 0.0
    %1922 = vmatprep.subr.mxu0 0.0
    %1923 = vmatpush1.msra.mxu0 %v1885
    %1924 = vmatprep.subr.mxu0 0.0
    %1925 = vmatpush2.msra.mxu0 0.0
    %1926 = vmatprep.subr.mxu0 0.0
    %1927 = vmatpush2.msra.mxu0 0.0
    %1928 = vmatprep.subr.mxu0 0.0
    %1929 = vmatpush2.msra.mxu0 0.0
    %1930 = vmatprep.subr.mxu0 0.0
    %1931 = vmatpush2.msra.mxu0 0.0
    %1932 = vmatprep.subr.mxu0 0.0
    %1933 = vmatpush2.msra.mxu0 0.0
    %1934 = vmatprep.subr.mxu0 0.0
    %1935 = vmatpush2.msra.mxu0 0.0
    %1936 = vmatprep.subr.mxu0 0.0
    %1937 = vmatpush2.msra.mxu0 0.0
    %1938 = vmatprep.subr.mxu0 0.0
    %1939 = vmatpush2.msra.mxu0 0.0
    %1940 = vmatprep.subr.mxu0 0.0
    %1941 = vmatpush2.msra.mxu0 0.0
    %1942 = vmatprep.subr.mxu0 0.0
    %1943 = vmatpush2.msra.mxu0 0.0
    %1944 = vmatprep.subr.mxu0 0.0
    %1945 = vmatpush2.msra.mxu0 0.0
    %1946 = vmatprep.subr.mxu0 0.0
    %1947 = vmatpush2.msra.mxu0 0.0
    %1948 = vmatprep.subr.mxu0 0.0
    %1949 = vmatpush2.msra.mxu0 0.0
    %1950 = vmatprep.subr.mxu0 0.0
    %1951 = vmatpush2.msra.mxu0 0.0
    %1952 = vmatprep.subr.mxu0 0.0
    %1953 = vmatpush2.msra.mxu0 0.0
    %1954 = vmatprep.subr.mxu0 0.0
    %1955 = vmatpush2.msra.mxu0 0.0
    %1956 = vmatprep.mubr.f32.mxu0 0.0
    %1957 = vmatmul.mubr.f32.gmra.mxu0 %v1887
    %v1958 = vpop.f32.mrf.mxu0
    %v1959 = vadd.f32 0.0, %v1958
    %v1960 = vpop.f32.mrf.mxu0
    %1961 = vmatprep.mubr.f32.mxu0 0.0
    %1962 = vmatmul.mubr.f32.gmra.mxu0 %v1890
    %v1963 = vpop.f32.mrf.mxu0
    %v1964 = vadd.f32 0.0, %v1963
    %v1965 = vpop.f32.mrf.mxu0
    %1966 = vdwg.mxu0
    %v1967 = vadd.f32 %v1421, %v1959
    %v1968 = vadd.f32 %v1422, %v1964
    %s1969 = scalar_lea.vmem %s8, 96
    %v1970 = vld [vmem:[%s1969] sm:$0xff]
    %v1971 = vld [vmem:[%s1969 + $0x8] sm:$0xff]
    %v1972 = vld [vmem:[%s1969 + $0x10] sm:$0xff]
    %v1973 = vld [vmem:[%s1969 + $0x18] sm:$0xff]
    %s1974 = scalar_lea.vmem %s11, 3
    %v1975 = vld [vmem:[%s1974] sm:$0x1]
    %v1977 = vlaneseq
    %v1978 = vshrl.u32 %v1977, 7
    %v1979 = vsub.s32 0, %v1978
    %v1980 = vrot.slane %v1975, %v1979
    %1982 = vmatprep.subr.mxu0 0.0
    %1983 = vmatpush1.msra.mxu0 0.0
    %1984 = vmatprep.subr.mxu0 0.0
    %1985 = vmatpush1.msra.mxu0 0.0
    %1986 = vmatprep.subr.mxu0 0.0
    %1987 = vmatpush1.msra.mxu0 0.0
    %1988 = vmatprep.subr.mxu0 0.0
    %1989 = vmatpush1.msra.mxu0 0.0
    %1990 = vmatprep.subr.mxu0 0.0
    %1991 = vmatpush1.msra.mxu0 0.0
    %1992 = vmatprep.subr.mxu0 0.0
    %1993 = vmatpush1.msra.mxu0 0.0
    %1994 = vmatprep.subr.mxu0 0.0
    %1995 = vmatpush1.msra.mxu0 0.0
    %1996 = vmatprep.subr.mxu0 0.0
    %1997 = vmatpush1.msra.mxu0 0.0
    %1998 = vmatprep.subr.mxu0 0.0
    %1999 = vmatpush1.msra.mxu0 0.0
    %2000 = vmatprep.subr.mxu0 0.0
    %2001 = vmatpush1.msra.mxu0 0.0
    %2002 = vmatprep.subr.mxu0 0.0
    %2003 = vmatpush1.msra.mxu0 0.0
    %2004 = vmatprep.subr.mxu0 0.0
    %2005 = vmatpush1.msra.mxu0 0.0
    %2006 = vmatprep.subr.mxu0 0.0
    %2007 = vmatpush1.msra.mxu0 %v1973
    %2008 = vmatprep.subr.mxu0 0.0
    %2009 = vmatpush1.msra.mxu0 %v1972
    %2010 = vmatprep.subr.mxu0 0.0
    %2011 = vmatpush1.msra.mxu0 %v1971
    %2012 = vmatprep.subr.mxu0 0.0
    %2013 = vmatpush1.msra.mxu0 %v1970
    %2014 = vmatprep.subr.mxu0 0.0
    %2015 = vmatpush2.msra.mxu0 0.0
    %2016 = vmatprep.subr.mxu0 0.0
    %2017 = vmatpush2.msra.mxu0 0.0
    %2018 = vmatprep.subr.mxu0 0.0
    %2019 = vmatpush2.msra.mxu0 0.0
    %2020 = vmatprep.subr.mxu0 0.0
    %2021 = vmatpush2.msra.mxu0 0.0
    %2022 = vmatprep.subr.mxu0 0.0
    %2023 = vmatpush2.msra.mxu0 0.0
    %2024 = vmatprep.subr.mxu0 0.0
    %2025 = vmatpush2.msra.mxu0 0.0
    %2026 = vmatprep.subr.mxu0 0.0
    %2027 = vmatpush2.msra.mxu0 0.0
    %2028 = vmatprep.subr.mxu0 0.0
    %2029 = vmatpush2.msra.mxu0 0.0
    %2030 = vmatprep.subr.mxu0 0.0
    %2031 = vmatpush2.msra.mxu0 0.0
    %2032 = vmatprep.subr.mxu0 0.0
    %2033 = vmatpush2.msra.mxu0 0.0
    %2034 = vmatprep.subr.mxu0 0.0
    %2035 = vmatpush2.msra.mxu0 0.0
    %2036 = vmatprep.subr.mxu0 0.0
    %2037 = vmatpush2.msra.mxu0 0.0
    %2038 = vmatprep.subr.mxu0 0.0
    %2039 = vmatpush2.msra.mxu0 0.0
    %2040 = vmatprep.subr.mxu0 0.0
    %2041 = vmatpush2.msra.mxu0 0.0
    %2042 = vmatprep.subr.mxu0 0.0
    %2043 = vmatpush2.msra.mxu0 0.0
    %2044 = vmatprep.subr.mxu0 0.0
    %2045 = vmatpush2.msra.mxu0 0.0
    %2046 = vmatprep.mubr.f32.mxu0 0.0
    %2047 = vmatmul.mubr.f32.gmra.mxu0 %v335
    %v2048 = vpop.f32.mrf.mxu0
    %v2049 = vadd.f32 %v1980, %v2048
    %v2050 = vpop.f32.mrf.mxu0
    %2051 = vmatprep.mubr.f32.mxu0 0.0
    %2052 = vmatmul.mubr.f32.gmra.mxu0 %v338
    %v2053 = vpop.f32.mrf.mxu0
    %v2054 = vadd.f32 %v1980, %v2053
    %v2055 = vpop.f32.mrf.mxu0
    %2056 = vdwg.mxu0
    %s2057 = scalar_lea.vmem %s9, 96
    %v2058 = vld [vmem:[%s2057] sm:$0xff]
    %v2059 = vld [vmem:[%s2057 + $0x8] sm:$0xff]
    %v2060 = vld [vmem:[%s2057 + $0x10] sm:$0xff]
    %v2061 = vld [vmem:[%s2057 + $0x18] sm:$0xff]
    %s2062 = scalar_lea.vmem %s12, 3
    %v2063 = vld [vmem:[%s2062] sm:$0x1]
    %v2065 = vlaneseq
    %v2066 = vshrl.u32 %v2065, 7
    %v2067 = vsub.s32 0, %v2066
    %v2068 = vrot.slane %v2063, %v2067
    %2070 = vmatprep.subr.mxu0 0.0
    %2071 = vmatpush1.msra.mxu0 0.0
    %2072 = vmatprep.subr.mxu0 0.0
    %2073 = vmatpush1.msra.mxu0 0.0
    %2074 = vmatprep.subr.mxu0 0.0
    %2075 = vmatpush1.msra.mxu0 0.0
    %2076 = vmatprep.subr.mxu0 0.0
    %2077 = vmatpush1.msra.mxu0 0.0
    %2078 = vmatprep.subr.mxu0 0.0
    %2079 = vmatpush1.msra.mxu0 0.0
    %2080 = vmatprep.subr.mxu0 0.0
    %2081 = vmatpush1.msra.mxu0 0.0
    %2082 = vmatprep.subr.mxu0 0.0
    %2083 = vmatpush1.msra.mxu0 0.0
    %2084 = vmatprep.subr.mxu0 0.0
    %2085 = vmatpush1.msra.mxu0 0.0
    %2086 = vmatprep.subr.mxu0 0.0
    %2087 = vmatpush1.msra.mxu0 0.0
    %2088 = vmatprep.subr.mxu0 0.0
    %2089 = vmatpush1.msra.mxu0 0.0
    %2090 = vmatprep.subr.mxu0 0.0
    %2091 = vmatpush1.msra.mxu0 0.0
    %2092 = vmatprep.subr.mxu0 0.0
    %2093 = vmatpush1.msra.mxu0 0.0
    %2094 = vmatprep.subr.mxu0 0.0
    %2095 = vmatpush1.msra.mxu0 %v2061
    %2096 = vmatprep.subr.mxu0 0.0
    %2097 = vmatpush1.msra.mxu0 %v2060
    %2098 = vmatprep.subr.mxu0 0.0
    %2099 = vmatpush1.msra.mxu0 %v2059
    %2100 = vmatprep.subr.mxu0 0.0
    %2101 = vmatpush1.msra.mxu0 %v2058
    %2102 = vmatprep.subr.mxu0 0.0
    %2103 = vmatpush2.msra.mxu0 0.0
    %2104 = vmatprep.subr.mxu0 0.0
    %2105 = vmatpush2.msra.mxu0 0.0
    %2106 = vmatprep.subr.mxu0 0.0
    %2107 = vmatpush2.msra.mxu0 0.0
    %2108 = vmatprep.subr.mxu0 0.0
    %2109 = vmatpush2.msra.mxu0 0.0
    %2110 = vmatprep.subr.mxu0 0.0
    %2111 = vmatpush2.msra.mxu0 0.0
    %2112 = vmatprep.subr.mxu0 0.0
    %2113 = vmatpush2.msra.mxu0 0.0
    %2114 = vmatprep.subr.mxu0 0.0
    %2115 = vmatpush2.msra.mxu0 0.0
    %2116 = vmatprep.subr.mxu0 0.0
    %2117 = vmatpush2.msra.mxu0 0.0
    %2118 = vmatprep.subr.mxu0 0.0
    %2119 = vmatpush2.msra.mxu0 0.0
    %2120 = vmatprep.subr.mxu0 0.0
    %2121 = vmatpush2.msra.mxu0 0.0
    %2122 = vmatprep.subr.mxu0 0.0
    %2123 = vmatpush2.msra.mxu0 0.0
    %2124 = vmatprep.subr.mxu0 0.0
    %2125 = vmatpush2.msra.mxu0 0.0
    %2126 = vmatprep.subr.mxu0 0.0
    %2127 = vmatpush2.msra.mxu0 0.0
    %2128 = vmatprep.subr.mxu0 0.0
    %2129 = vmatpush2.msra.mxu0 0.0
    %2130 = vmatprep.subr.mxu0 0.0
    %2131 = vmatpush2.msra.mxu0 0.0
    %2132 = vmatprep.subr.mxu0 0.0
    %2133 = vmatpush2.msra.mxu0 0.0
    %2134 = vmatprep.mubr.f32.mxu0 0.0
    %2135 = vmatmul.mubr.f32.gmra.mxu0 %v335
    %v2136 = vpop.f32.mrf.mxu0
    %v2137 = vadd.f32 %v2068, %v2136
    %v2138 = vpop.f32.mrf.mxu0
    %2139 = vmatprep.mubr.f32.mxu0 0.0
    %2140 = vmatmul.mubr.f32.gmra.mxu0 %v338
    %v2141 = vpop.f32.mrf.mxu0
    %v2142 = vadd.f32 %v2068, %v2141
    %v2143 = vpop.f32.mrf.mxu0
    %2144 = vdwg.mxu0
    %s2145 = scalar_lea.vmem %s10, 96
    %v2146 = vld [vmem:[%s2145] sm:$0xff]
    %v2147 = vld [vmem:[%s2145 + $0x8] sm:$0xff]
    %v2148 = vld [vmem:[%s2145 + $0x10] sm:$0xff]
    %v2149 = vld [vmem:[%s2145 + $0x18] sm:$0xff]
    %s2150 = scalar_lea.vmem %s13, 3
    %v2151 = vld [vmem:[%s2150] sm:$0x1]
    %v2153 = vlaneseq
    %v2154 = vshrl.u32 %v2153, 7
    %v2155 = vsub.s32 0, %v2154
    %v2156 = vrot.slane %v2151, %v2155
    %2158 = vmatprep.subr.mxu0 0.0
    %2159 = vmatpush1.msra.mxu0 0.0
    %2160 = vmatprep.subr.mxu0 0.0
    %2161 = vmatpush1.msra.mxu0 0.0
    %2162 = vmatprep.subr.mxu0 0.0
    %2163 = vmatpush1.msra.mxu0 0.0
    %2164 = vmatprep.subr.mxu0 0.0
    %2165 = vmatpush1.msra.mxu0 0.0
    %2166 = vmatprep.subr.mxu0 0.0
    %2167 = vmatpush1.msra.mxu0 0.0
    %2168 = vmatprep.subr.mxu0 0.0
    %2169 = vmatpush1.msra.mxu0 0.0
    %2170 = vmatprep.subr.mxu0 0.0
    %2171 = vmatpush1.msra.mxu0 0.0
    %2172 = vmatprep.subr.mxu0 0.0
    %2173 = vmatpush1.msra.mxu0 0.0
    %2174 = vmatprep.subr.mxu0 0.0
    %2175 = vmatpush1.msra.mxu0 0.0
    %2176 = vmatprep.subr.mxu0 0.0
    %2177 = vmatpush1.msra.mxu0 0.0
    %2178 = vmatprep.subr.mxu0 0.0
    %2179 = vmatpush1.msra.mxu0 0.0
    %2180 = vmatprep.subr.mxu0 0.0
    %2181 = vmatpush1.msra.mxu0 0.0
    %2182 = vmatprep.subr.mxu0 0.0
    %2183 = vmatpush1.msra.mxu0 %v2149
    %2184 = vmatprep.subr.mxu0 0.0
    %2185 = vmatpush1.msra.mxu0 %v2148
    %2186 = vmatprep.subr.mxu0 0.0
    %2187 = vmatpush1.msra.mxu0 %v2147
    %2188 = vmatprep.subr.mxu0 0.0
    %2189 = vmatpush1.msra.mxu0 %v2146
    %2190 = vmatprep.subr.mxu0 0.0
    %2191 = vmatpush2.msra.mxu0 0.0
    %2192 = vmatprep.subr.mxu0 0.0
    %2193 = vmatpush2.msra.mxu0 0.0
    %2194 = vmatprep.subr.mxu0 0.0
    %2195 = vmatpush2.msra.mxu0 0.0
    %2196 = vmatprep.subr.mxu0 0.0
    %2197 = vmatpush2.msra.mxu0 0.0
    %2198 = vmatprep.subr.mxu0 0.0
    %2199 = vmatpush2.msra.mxu0 0.0
    %2200 = vmatprep.subr.mxu0 0.0
    %2201 = vmatpush2.msra.mxu0 0.0
    %2202 = vmatprep.subr.mxu0 0.0
    %2203 = vmatpush2.msra.mxu0 0.0
    %2204 = vmatprep.subr.mxu0 0.0
    %2205 = vmatpush2.msra.mxu0 0.0
    %2206 = vmatprep.subr.mxu0 0.0
    %2207 = vmatpush2.msra.mxu0 0.0
    %2208 = vmatprep.subr.mxu0 0.0
    %2209 = vmatpush2.msra.mxu0 0.0
    %2210 = vmatprep.subr.mxu0 0.0
    %2211 = vmatpush2.msra.mxu0 0.0
    %2212 = vmatprep.subr.mxu0 0.0
    %2213 = vmatpush2.msra.mxu0 0.0
    %2214 = vmatprep.subr.mxu0 0.0
    %2215 = vmatpush2.msra.mxu0 0.0
    %2216 = vmatprep.subr.mxu0 0.0
    %2217 = vmatpush2.msra.mxu0 0.0
    %2218 = vmatprep.subr.mxu0 0.0
    %2219 = vmatpush2.msra.mxu0 0.0
    %2220 = vmatprep.subr.mxu0 0.0
    %2221 = vmatpush2.msra.mxu0 0.0
    %2222 = vmatprep.mubr.f32.mxu0 0.0
    %2223 = vmatmul.mubr.f32.gmra.mxu0 %v335
    %v2224 = vpop.f32.mrf.mxu0
    %v2225 = vadd.f32 %v2156, %v2224
    %v2226 = vpop.f32.mrf.mxu0
    %2227 = vmatprep.mubr.f32.mxu0 0.0
    %2228 = vmatmul.mubr.f32.gmra.mxu0 %v338
    %v2229 = vpop.f32.mrf.mxu0
    %v2230 = vadd.f32 %v2156, %v2229
    %v2231 = vpop.f32.mrf.mxu0
    %2232 = vdwg.mxu0
    %v2234 = vsel %vm189, %v2049, 0
    %v2237 = vsel %vm189, %v2054, 0
    %v2240 = vsel %vm189, %v2137, 0
    %v2243 = vsel %vm189, %v2142, 0
    %2245 = vmatprep.subr.mxu0 0.0
    %2246 = vmatpush1.xpose.msra.mxu0 0.0
    %2247 = vmatprep.subr.mxu0 0.0
    %2248 = vmatpush1.xpose.msra.mxu0 0.0
    %2249 = vmatprep.subr.mxu0 0.0
    %2250 = vmatpush1.xpose.msra.mxu0 0.0
    %2251 = vmatprep.subr.mxu0 0.0
    %2252 = vmatpush1.xpose.msra.mxu0 0.0
    %2253 = vmatprep.subr.mxu0 0.0
    %2254 = vmatpush1.xpose.msra.mxu0 0.0
    %2255 = vmatprep.subr.mxu0 0.0
    %2256 = vmatpush1.xpose.msra.mxu0 0.0
    %2257 = vmatprep.subr.mxu0 0.0
    %2258 = vmatpush1.xpose.msra.mxu0 0.0
    %2259 = vmatprep.subr.mxu0 0.0
    %2260 = vmatpush1.xpose.msra.mxu0 0.0
    %2261 = vmatprep.subr.mxu0 0.0
    %2262 = vmatpush1.xpose.msra.mxu0 0.0
    %2263 = vmatprep.subr.mxu0 0.0
    %2264 = vmatpush1.xpose.msra.mxu0 0.0
    %2265 = vmatprep.subr.mxu0 0.0
    %2266 = vmatpush1.xpose.msra.mxu0 0.0
    %2267 = vmatprep.subr.mxu0 0.0
    %2268 = vmatpush1.xpose.msra.mxu0 0.0
    %2269 = vmatprep.subr.mxu0 0.0
    %2270 = vmatpush1.xpose.msra.mxu0 0.0
    %2271 = vmatprep.subr.mxu0 0.0
    %2272 = vmatpush1.xpose.msra.mxu0 0.0
    %2273 = vmatprep.subr.mxu0 0.0
    %2274 = vmatpush1.xpose.msra.mxu0 %v2243
    %2275 = vmatprep.subr.mxu0 0.0
    %2276 = vmatpush1.xpose.msra.mxu0 %v2240
    %2277 = vmatprep.subr.mxu0 0.0
    %2278 = vmatpush2.xpose.msra.mxu0 0.0
    %2279 = vmatprep.subr.mxu0 0.0
    %2280 = vmatpush2.xpose.msra.mxu0 0.0
    %2281 = vmatprep.subr.mxu0 0.0
    %2282 = vmatpush2.xpose.msra.mxu0 0.0
    %2283 = vmatprep.subr.mxu0 0.0
    %2284 = vmatpush2.xpose.msra.mxu0 0.0
    %2285 = vmatprep.subr.mxu0 0.0
    %2286 = vmatpush2.xpose.msra.mxu0 0.0
    %2287 = vmatprep.subr.mxu0 0.0
    %2288 = vmatpush2.xpose.msra.mxu0 0.0
    %2289 = vmatprep.subr.mxu0 0.0
    %2290 = vmatpush2.xpose.msra.mxu0 0.0
    %2291 = vmatprep.subr.mxu0 0.0
    %2292 = vmatpush2.xpose.msra.mxu0 0.0
    %2293 = vmatprep.subr.mxu0 0.0
    %2294 = vmatpush2.xpose.msra.mxu0 0.0
    %2295 = vmatprep.subr.mxu0 0.0
    %2296 = vmatpush2.xpose.msra.mxu0 0.0
    %2297 = vmatprep.subr.mxu0 0.0
    %2298 = vmatpush2.xpose.msra.mxu0 0.0
    %2299 = vmatprep.subr.mxu0 0.0
    %2300 = vmatpush2.xpose.msra.mxu0 0.0
    %2301 = vmatprep.subr.mxu0 0.0
    %2302 = vmatpush2.xpose.msra.mxu0 0.0
    %2303 = vmatprep.subr.mxu0 0.0
    %2304 = vmatpush2.xpose.msra.mxu0 0.0
    %2305 = vmatprep.subr.mxu0 0.0
    %2306 = vmatpush2.xpose.msra.mxu0 0.0
    %2307 = vmatprep.subr.mxu0 0.0
    %2308 = vmatpush2.xpose.msra.mxu0 0.0
    %2309 = vmatprep.mubr.f32.mxu0 0.0
    %2310 = vmatmul.mubr.f32.gmra.mxu0 %v2234
    %v2311 = vpop.f32.mrf.mxu0
    %v2312 = vadd.f32 0.0, %v2311
    %v2313 = vpop.f32.mrf.mxu0
    %2314 = vmatprep.mubr.f32.mxu0 0.0
    %2315 = vmatmul.mubr.f32.gmra.mxu0 %v2237
    %v2316 = vpop.f32.mrf.mxu0
    %v2317 = vadd.f32 0.0, %v2316
    %v2318 = vpop.f32.mrf.mxu0
    %2319 = vdwg.mxu0
    %v2320 = vmul.f32 %v2312, 0.35355338
    %v2321 = vmul.f32 %v2317, 0.35355338
    %v2322 = vadd.f32 %v2320, %v273
    %v2323 = vadd.f32 %v2321, %v274
    %v2324 = vsel %vm678, %v2322, -inf
    %2325 = vmax.xlane.f32.xlu0 %v2324
    %v2326 = vpop.xlane.xlu0 %2325
    %v2327 = vsel %vm682, %v2323, -inf
    %2328 = vmax.xlane.f32.xlu0 %v2327
    %v2329 = vpop.xlane.xlu0 %2328
    %v2330 = vsub.f32 %v2322, %v2326
    %v2331 = vsub.f32 %v2323, %v2329
    %v2332 = vmul.f32 %v2330, 1.442695
    %v2333 = vpow.pop %v2332
    %v2334 = vmul.f32 %v2331, 1.442695
    %v2335 = vpow.pop %v2334
    %v2336 = vsel %vm678, %v2333, 0.0
    %2337 = vadd.xlane.f32.xlu0 %v2336
    %v2338 = vpop.xlane.xlu0 %2337
    %v2339 = vsel %vm682, %v2335, 0.0
    %2340 = vadd.xlane.f32.xlu0 %v2339
    %v2341 = vpop.xlane.xlu0 %2340
    %v2342 = vrcp.pop %v2338
    %v2343 = vrcp.pop %v2341
    %v2344 = vmul.f32 %v2333, %v2342
    %v2345 = vmul.f32 %v2335, %v2343
    %v2347 = vsel %vm678, %v2344, 0
    %v2350 = vsel %vm678, %v2345, 0
    %v2353 = vsel %vm708, %v2230, 0
    %2355 = vmatprep.subr.mxu0 0.0
    %2356 = vmatpush1.msra.mxu0 0.0
    %2357 = vmatprep.subr.mxu0 0.0
    %2358 = vmatpush1.msra.mxu0 0.0
    %2359 = vmatprep.subr.mxu0 0.0
    %2360 = vmatpush1.msra.mxu0 0.0
    %2361 = vmatprep.subr.mxu0 0.0
    %2362 = vmatpush1.msra.mxu0 0.0
    %2363 = vmatprep.subr.mxu0 0.0
    %2364 = vmatpush1.msra.mxu0 0.0
    %2365 = vmatprep.subr.mxu0 0.0
    %2366 = vmatpush1.msra.mxu0 0.0
    %2367 = vmatprep.subr.mxu0 0.0
    %2368 = vmatpush1.msra.mxu0 0.0
    %2369 = vmatprep.subr.mxu0 0.0
    %2370 = vmatpush1.msra.mxu0 0.0
    %2371 = vmatprep.subr.mxu0 0.0
    %2372 = vmatpush1.msra.mxu0 0.0
    %2373 = vmatprep.subr.mxu0 0.0
    %2374 = vmatpush1.msra.mxu0 0.0
    %2375 = vmatprep.subr.mxu0 0.0
    %2376 = vmatpush1.msra.mxu0 0.0
    %2377 = vmatprep.subr.mxu0 0.0
    %2378 = vmatpush1.msra.mxu0 0.0
    %2379 = vmatprep.subr.mxu0 0.0
    %2380 = vmatpush1.msra.mxu0 0.0
    %2381 = vmatprep.subr.mxu0 0.0
    %2382 = vmatpush1.msra.mxu0 0.0
    %2383 = vmatprep.subr.mxu0 0.0
    %2384 = vmatpush1.msra.mxu0 %v2353
    %2385 = vmatprep.subr.mxu0 0.0
    %2386 = vmatpush1.msra.mxu0 %v2225
    %2387 = vmatprep.subr.mxu0 0.0
    %2388 = vmatpush2.msra.mxu0 0.0
    %2389 = vmatprep.subr.mxu0 0.0
    %2390 = vmatpush2.msra.mxu0 0.0
    %2391 = vmatprep.subr.mxu0 0.0
    %2392 = vmatpush2.msra.mxu0 0.0
    %2393 = vmatprep.subr.mxu0 0.0
    %2394 = vmatpush2.msra.mxu0 0.0
    %2395 = vmatprep.subr.mxu0 0.0
    %2396 = vmatpush2.msra.mxu0 0.0
    %2397 = vmatprep.subr.mxu0 0.0
    %2398 = vmatpush2.msra.mxu0 0.0
    %2399 = vmatprep.subr.mxu0 0.0
    %2400 = vmatpush2.msra.mxu0 0.0
    %2401 = vmatprep.subr.mxu0 0.0
    %2402 = vmatpush2.msra.mxu0 0.0
    %2403 = vmatprep.subr.mxu0 0.0
    %2404 = vmatpush2.msra.mxu0 0.0
    %2405 = vmatprep.subr.mxu0 0.0
    %2406 = vmatpush2.msra.mxu0 0.0
    %2407 = vmatprep.subr.mxu0 0.0
    %2408 = vmatpush2.msra.mxu0 0.0
    %2409 = vmatprep.subr.mxu0 0.0
    %2410 = vmatpush2.msra.mxu0 0.0
    %2411 = vmatprep.subr.mxu0 0.0
    %2412 = vmatpush2.msra.mxu0 0.0
    %2413 = vmatprep.subr.mxu0 0.0
    %2414 = vmatpush2.msra.mxu0 0.0
    %2415 = vmatprep.subr.mxu0 0.0
    %2416 = vmatpush2.msra.mxu0 0.0
    %2417 = vmatprep.subr.mxu0 0.0
    %2418 = vmatpush2.msra.mxu0 0.0
    %2419 = vmatprep.mubr.f32.mxu0 0.0
    %2420 = vmatmul.mubr.f32.gmra.mxu0 %v2347
    %v2421 = vpop.f32.mrf.mxu0
    %v2422 = vadd.f32 0.0, %v2421
    %v2423 = vpop.f32.mrf.mxu0
    %2424 = vmatprep.mubr.f32.mxu0 0.0
    %2425 = vmatmul.mubr.f32.gmra.mxu0 %v2350
    %v2426 = vpop.f32.mrf.mxu0
    %v2427 = vadd.f32 0.0, %v2426
    %v2428 = vpop.f32.mrf.mxu0
    %2429 = vdwg.mxu0
    %s2430 = scalar_lea.vmem %s14, 24
    %v2431 = vld [vmem:[%s2430] sm:$0xff]
    %v2433 = vsel %vm189, %v2422, 0
    %v2436 = vsel %vm189, %v2427, 0
    %2438 = vmatprep.subr.mxu0 0.0
    %2439 = vmatpush1.msra.mxu0 0.0
    %2440 = vmatprep.subr.mxu0 0.0
    %2441 = vmatpush1.msra.mxu0 0.0
    %2442 = vmatprep.subr.mxu0 0.0
    %2443 = vmatpush1.msra.mxu0 0.0
    %2444 = vmatprep.subr.mxu0 0.0
    %2445 = vmatpush1.msra.mxu0 0.0
    %2446 = vmatprep.subr.mxu0 0.0
    %2447 = vmatpush1.msra.mxu0 0.0
    %2448 = vmatprep.subr.mxu0 0.0
    %2449 = vmatpush1.msra.mxu0 0.0
    %2450 = vmatprep.subr.mxu0 0.0
    %2451 = vmatpush1.msra.mxu0 0.0
    %2452 = vmatprep.subr.mxu0 0.0
    %2453 = vmatpush1.msra.mxu0 0.0
    %2454 = vmatprep.subr.mxu0 0.0
    %2455 = vmatpush1.msra.mxu0 0.0
    %2456 = vmatprep.subr.mxu0 0.0
    %2457 = vmatpush1.msra.mxu0 0.0
    %2458 = vmatprep.subr.mxu0 0.0
    %2459 = vmatpush1.msra.mxu0 0.0
    %2460 = vmatprep.subr.mxu0 0.0
    %2461 = vmatpush1.msra.mxu0 0.0
    %2462 = vmatprep.subr.mxu0 0.0
    %2463 = vmatpush1.msra.mxu0 0.0
    %2464 = vmatprep.subr.mxu0 0.0
    %2465 = vmatpush1.msra.mxu0 0.0
    %2466 = vmatprep.subr.mxu0 0.0
    %2467 = vmatpush1.msra.mxu0 0.0
    %2468 = vmatprep.subr.mxu0 0.0
    %2469 = vmatpush1.msra.mxu0 %v2431
    %2470 = vmatprep.subr.mxu0 0.0
    %2471 = vmatpush2.msra.mxu0 0.0
    %2472 = vmatprep.subr.mxu0 0.0
    %2473 = vmatpush2.msra.mxu0 0.0
    %2474 = vmatprep.subr.mxu0 0.0
    %2475 = vmatpush2.msra.mxu0 0.0
    %2476 = vmatprep.subr.mxu0 0.0
    %2477 = vmatpush2.msra.mxu0 0.0
    %2478 = vmatprep.subr.mxu0 0.0
    %2479 = vmatpush2.msra.mxu0 0.0
    %2480 = vmatprep.subr.mxu0 0.0
    %2481 = vmatpush2.msra.mxu0 0.0
    %2482 = vmatprep.subr.mxu0 0.0
    %2483 = vmatpush2.msra.mxu0 0.0
    %2484 = vmatprep.subr.mxu0 0.0
    %2485 = vmatpush2.msra.mxu0 0.0
    %2486 = vmatprep.subr.mxu0 0.0
    %2487 = vmatpush2.msra.mxu0 0.0
    %2488 = vmatprep.subr.mxu0 0.0
    %2489 = vmatpush2.msra.mxu0 0.0
    %2490 = vmatprep.subr.mxu0 0.0
    %2491 = vmatpush2.msra.mxu0 0.0
    %2492 = vmatprep.subr.mxu0 0.0
    %2493 = vmatpush2.msra.mxu0 0.0
    %2494 = vmatprep.subr.mxu0 0.0
    %2495 = vmatpush2.msra.mxu0 0.0
    %2496 = vmatprep.subr.mxu0 0.0
    %2497 = vmatpush2.msra.mxu0 0.0
    %2498 = vmatprep.subr.mxu0 0.0
    %2499 = vmatpush2.msra.mxu0 0.0
    %2500 = vmatprep.subr.mxu0 0.0
    %2501 = vmatpush2.msra.mxu0 0.0
    %2502 = vmatprep.mubr.f32.mxu0 0.0
    %2503 = vmatmul.mubr.f32.gmra.mxu0 %v2433
    %v2504 = vpop.f32.mrf.mxu0
    %v2505 = vadd.f32 0.0, %v2504
    %v2506 = vpop.f32.mrf.mxu0
    %2507 = vmatprep.mubr.f32.mxu0 0.0
    %2508 = vmatmul.mubr.f32.gmra.mxu0 %v2436
    %v2509 = vpop.f32.mrf.mxu0
    %v2510 = vadd.f32 0.0, %v2509
    %v2511 = vpop.f32.mrf.mxu0
    %2512 = vdwg.mxu0
    %v2513 = vadd.f32 %v1967, %v2505
    %v2514 = vadd.f32 %v1968, %v2510
    %v2515 = vadd.f32 %v271, %v2513
    %v2516 = vadd.f32 %v272, %v2514
    %v2517 = vld [vmem:[%s16] sm:$0x1]
    %v2518 = vld [vmem:[%s17] sm:$0x1]
    %v2519 = vsel %vm277, %v2515, 0.0
    %2520 = vadd.xlane.f32.xlu0 %v2519
    %v2521 = vpop.xlane.xlu0 %2520
    %v2522 = vsel %vm281, %v2516, 0.0
    %2523 = vadd.xlane.f32.xlu0 %v2522
    %v2524 = vpop.xlane.xlu0 %2523
    %v2525 = vmul.f32 %v2521, %v285
    %v2526 = vmul.f32 %v2524, %v285
    %v2527 = vsub.f32 %v2515, %v2525
    %v2528 = vsub.f32 %v2516, %v2526
    %v2529 = vmul.f32 %v2527, %v2527
    %v2530 = vmul.f32 %v2528, %v2528
    %v2531 = vsel %vm277, %v2529, 0.0
    %2532 = vadd.xlane.f32.xlu0 %v2531
    %v2533 = vpop.xlane.xlu0 %2532
    %v2534 = vsel %vm281, %v2530, 0.0
    %2535 = vadd.xlane.f32.xlu0 %v2534
    %v2536 = vpop.xlane.xlu0 %2535
    %v2537 = vmul.f32 %v2533, %v285
    %v2538 = vmul.f32 %v2536, %v285
    %v2539 = vadd.f32 %v2537, 1e-06
    %v2540 = vadd.f32 %v2538, 1e-06
    %v2541 = vrsqrt.pop %v2539
    %v2542 = vrsqrt.pop %v2540
    %v2543 = vmul.f32 %v2527, %v2541
    %v2544 = vmul.f32 %v2528, %v2542
    %v2546 = vlaneseq
    %v2547 = vshrl.u32 %v2546, 7
    %v2548 = vsub.s32 0, %v2547
    %v2549 = vrot.slane %v2517, %v2548
    %v2551 = vmul.f32 %v2543, %v2549
    %v2552 = vmul.f32 %v2544, %v2549
    %v2554 = vlaneseq
    %v2555 = vshrl.u32 %v2554, 7
    %v2556 = vsub.s32 0, %v2555
    %v2557 = vrot.slane %v2518, %v2556
    %v2559 = vadd.f32 %v2551, %v2557
    %v2560 = vadd.f32 %v2552, %v2557
    %v2561 = vld [vmem:[%s18] sm:$0xff]
    %v2562 = vld [vmem:[%s18 + $0x8] sm:$0xff]
    %v2563 = vld [vmem:[%s18 + $0x10] sm:$0xff]
    %v2564 = vld [vmem:[%s18 + $0x18] sm:$0xff]
    %v2565 = vld [vmem:[%s19] sm:$0x1]
    %v2567 = vlaneseq
    %v2568 = vshrl.u32 %v2567, 7
    %v2569 = vsub.s32 0, %v2568
    %v2570 = vrot.slane %v2565, %v2569
    %v2573 = vsel %vm277, %v2559, 0
    %v2576 = vsel %vm277, %v2560, 0
    %2578 = vmatprep.subr.mxu0 0.0
    %2579 = vmatpush1.msra.mxu0 0.0
    %2580 = vmatprep.subr.mxu0 0.0
    %2581 = vmatpush1.msra.mxu0 0.0
    %2582 = vmatprep.subr.mxu0 0.0
    %2583 = vmatpush1.msra.mxu0 0.0
    %2584 = vmatprep.subr.mxu0 0.0
    %2585 = vmatpush1.msra.mxu0 0.0
    %2586 = vmatprep.subr.mxu0 0.0
    %2587 = vmatpush1.msra.mxu0 0.0
    %2588 = vmatprep.subr.mxu0 0.0
    %2589 = vmatpush1.msra.mxu0 0.0
    %2590 = vmatprep.subr.mxu0 0.0
    %2591 = vmatpush1.msra.mxu0 0.0
    %2592 = vmatprep.subr.mxu0 0.0
    %2593 = vmatpush1.msra.mxu0 0.0
    %2594 = vmatprep.subr.mxu0 0.0
    %2595 = vmatpush1.msra.mxu0 0.0
    %2596 = vmatprep.subr.mxu0 0.0
    %2597 = vmatpush1.msra.mxu0 0.0
    %2598 = vmatprep.subr.mxu0 0.0
    %2599 = vmatpush1.msra.mxu0 0.0
    %2600 = vmatprep.subr.mxu0 0.0
    %2601 = vmatpush1.msra.mxu0 0.0
    %2602 = vmatprep.subr.mxu0 0.0
    %2603 = vmatpush1.msra.mxu0 %v2564
    %2604 = vmatprep.subr.mxu0 0.0
    %2605 = vmatpush1.msra.mxu0 %v2563
    %2606 = vmatprep.subr.mxu0 0.0
    %2607 = vmatpush1.msra.mxu0 %v2562
    %2608 = vmatprep.subr.mxu0 0.0
    %2609 = vmatpush1.msra.mxu0 %v2561
    %2610 = vmatprep.subr.mxu0 0.0
    %2611 = vmatpush2.msra.mxu0 0.0
    %2612 = vmatprep.subr.mxu0 0.0
    %2613 = vmatpush2.msra.mxu0 0.0
    %2614 = vmatprep.subr.mxu0 0.0
    %2615 = vmatpush2.msra.mxu0 0.0
    %2616 = vmatprep.subr.mxu0 0.0
    %2617 = vmatpush2.msra.mxu0 0.0
    %2618 = vmatprep.subr.mxu0 0.0
    %2619 = vmatpush2.msra.mxu0 0.0
    %2620 = vmatprep.subr.mxu0 0.0
    %2621 = vmatpush2.msra.mxu0 0.0
    %2622 = vmatprep.subr.mxu0 0.0
    %2623 = vmatpush2.msra.mxu0 0.0
    %2624 = vmatprep.subr.mxu0 0.0
    %2625 = vmatpush2.msra.mxu0 0.0
    %2626 = vmatprep.subr.mxu0 0.0
    %2627 = vmatpush2.msra.mxu0 0.0
    %2628 = vmatprep.subr.mxu0 0.0
    %2629 = vmatpush2.msra.mxu0 0.0
    %2630 = vmatprep.subr.mxu0 0.0
    %2631 = vmatpush2.msra.mxu0 0.0
    %2632 = vmatprep.subr.mxu0 0.0
    %2633 = vmatpush2.msra.mxu0 0.0
    %2634 = vmatprep.subr.mxu0 0.0
    %2635 = vmatpush2.msra.mxu0 0.0
    %2636 = vmatprep.subr.mxu0 0.0
    %2637 = vmatpush2.msra.mxu0 0.0
    %2638 = vmatprep.subr.mxu0 0.0
    %2639 = vmatpush2.msra.mxu0 0.0
    %2640 = vmatprep.subr.mxu0 0.0
    %2641 = vmatpush2.msra.mxu0 0.0
    %2642 = vmatprep.mubr.f32.mxu0 0.0
    %2643 = vmatmul.mubr.f32.gmra.mxu0 %v2573
    %v2644 = vpop.f32.mrf.mxu0
    %v2645 = vadd.f32 %v2570, %v2644
    %v2646 = vpop.f32.mrf.mxu0
    %2647 = vmatprep.mubr.f32.mxu0 0.0
    %2648 = vmatmul.mubr.f32.gmra.mxu0 %v2576
    %v2649 = vpop.f32.mrf.mxu0
    %v2650 = vadd.f32 %v2570, %v2649
    %v2651 = vpop.f32.mrf.mxu0
    %2652 = vdwg.mxu0
    %v2653 = vmul.f32 %v2645, %v2645
    %v2654 = vmul.f32 %v2650, %v2650
    %v2655 = vmul.f32 %v2645, %v2653
    %v2656 = vmul.f32 %v2650, %v2654
    %v2657 = vmul.f32 %v2655, 0.044715
    %v2658 = vmul.f32 %v2656, 0.044715
    %v2659 = vadd.f32 %v2645, %v2657
    %v2660 = vadd.f32 %v2650, %v2658
    %v2661 = vmul.f32 %v2659, 0.7978846
    %v2662 = vmul.f32 %v2660, 0.7978846
    %v2663 = vtanh.pop %v2661
    %v2664 = vtanh.pop %v2662
    %v2665 = vadd.f32 %v2663, 1.0
    %v2666 = vadd.f32 %v2664, 1.0
    %v2667 = vmul.f32 %v2665, 0.5
    %v2668 = vmul.f32 %v2666, 0.5
    %v2669 = vmul.f32 %v2645, %v2667
    %v2670 = vmul.f32 %v2650, %v2668
    %v2671 = vld [vmem:[%s20] sm:$0xff]
    %v2672 = vld [vmem:[%s20 + $0x8] sm:$0xff]
    %v2673 = vld [vmem:[%s20 + $0x10] sm:$0xff]
    %v2674 = vld [vmem:[%s20 + $0x18] sm:$0xff]
    %v2675 = vld [vmem:[%s20 + $0x20] sm:$0xff]
    %v2676 = vld [vmem:[%s20 + $0x28] sm:$0xff]
    %v2677 = vld [vmem:[%s20 + $0x30] sm:$0xff]
    %v2678 = vld [vmem:[%s20 + $0x38] sm:$0xff]
    %v2679 = vld [vmem:[%s20 + $0x40] sm:$0xff]
    %v2680 = vld [vmem:[%s20 + $0x48] sm:$0xff]
    %v2681 = vld [vmem:[%s20 + $0x50] sm:$0xff]
    %v2682 = vld [vmem:[%s20 + $0x58] sm:$0xff]
    %v2683 = vld [vmem:[%s20 + $0x60] sm:$0xff]
    %v2684 = vld [vmem:[%s20 + $0x68] sm:$0xff]
    %v2685 = vld [vmem:[%s20 + $0x70] sm:$0xff]
    %v2686 = vld [vmem:[%s20 + $0x78] sm:$0xff]
    %v2687 = vld [vmem:[%s21] sm:$0x1]
    %v2689 = vlaneseq
    %v2690 = vshrl.u32 %v2689, 7
    %v2691 = vsub.s32 0, %v2690
    %v2692 = vrot.slane %v2687, %v2691
    %2694 = vmatprep.subr.mxu0 0.0
    %2695 = vmatpush1.msra.mxu0 %v2686
    %2696 = vmatprep.subr.mxu0 0.0
    %2697 = vmatpush1.msra.mxu0 %v2685
    %2698 = vmatprep.subr.mxu0 0.0
    %2699 = vmatpush1.msra.mxu0 %v2684
    %2700 = vmatprep.subr.mxu0 0.0
    %2701 = vmatpush1.msra.mxu0 %v2683
    %2702 = vmatprep.subr.mxu0 0.0
    %2703 = vmatpush1.msra.mxu0 %v2682
    %2704 = vmatprep.subr.mxu0 0.0
    %2705 = vmatpush1.msra.mxu0 %v2681
    %2706 = vmatprep.subr.mxu0 0.0
    %2707 = vmatpush1.msra.mxu0 %v2680
    %2708 = vmatprep.subr.mxu0 0.0
    %2709 = vmatpush1.msra.mxu0 %v2679
    %2710 = vmatprep.subr.mxu0 0.0
    %2711 = vmatpush1.msra.mxu0 %v2678
    %2712 = vmatprep.subr.mxu0 0.0
    %2713 = vmatpush1.msra.mxu0 %v2677
    %2714 = vmatprep.subr.mxu0 0.0
    %2715 = vmatpush1.msra.mxu0 %v2676
    %2716 = vmatprep.subr.mxu0 0.0
    %2717 = vmatpush1.msra.mxu0 %v2675
    %2718 = vmatprep.subr.mxu0 0.0
    %2719 = vmatpush1.msra.mxu0 %v2674
    %2720 = vmatprep.subr.mxu0 0.0
    %2721 = vmatpush1.msra.mxu0 %v2673
    %2722 = vmatprep.subr.mxu0 0.0
    %2723 = vmatpush1.msra.mxu0 %v2672
    %2724 = vmatprep.subr.mxu0 0.0
    %2725 = vmatpush1.msra.mxu0 %v2671
    %2726 = vmatprep.subr.mxu0 0.0
    %2727 = vmatpush2.msra.mxu0 0.0
    %2728 = vmatprep.subr.mxu0 0.0
    %2729 = vmatpush2.msra.mxu0 0.0
    %2730 = vmatprep.subr.mxu0 0.0
    %2731 = vmatpush2.msra.mxu0 0.0
    %2732 = vmatprep.subr.mxu0 0.0
    %2733 = vmatpush2.msra.mxu0 0.0
    %2734 = vmatprep.subr.mxu0 0.0
    %2735 = vmatpush2.msra.mxu0 0.0
    %2736 = vmatprep.subr.mxu0 0.0
    %2737 = vmatpush2.msra.mxu0 0.0
    %2738 = vmatprep.subr.mxu0 0.0
    %2739 = vmatpush2.msra.mxu0 0.0
    %2740 = vmatprep.subr.mxu0 0.0
    %2741 = vmatpush2.msra.mxu0 0.0
    %2742 = vmatprep.subr.mxu0 0.0
    %2743 = vmatpush2.msra.mxu0 0.0
    %2744 = vmatprep.subr.mxu0 0.0
    %2745 = vmatpush2.msra.mxu0 0.0
    %2746 = vmatprep.subr.mxu0 0.0
    %2747 = vmatpush2.msra.mxu0 0.0
    %2748 = vmatprep.subr.mxu0 0.0
    %2749 = vmatpush2.msra.mxu0 0.0
    %2750 = vmatprep.subr.mxu0 0.0
    %2751 = vmatpush2.msra.mxu0 0.0
    %2752 = vmatprep.subr.mxu0 0.0
    %2753 = vmatpush2.msra.mxu0 0.0
    %2754 = vmatprep.subr.mxu0 0.0
    %2755 = vmatpush2.msra.mxu0 0.0
    %2756 = vmatprep.subr.mxu0 0.0
    %2757 = vmatpush2.msra.mxu0 0.0
    %2758 = vmatprep.mubr.f32.mxu0 0.0
    %2759 = vmatmul.mubr.f32.gmra.mxu0 %v2669
    %v2760 = vpop.f32.mrf.mxu0
    %v2761 = vadd.f32 %v2692, %v2760
    %v2762 = vpop.f32.mrf.mxu0
    %2763 = vmatprep.mubr.f32.mxu0 0.0
    %2764 = vmatmul.mubr.f32.gmra.mxu0 %v2670
    %v2765 = vpop.f32.mrf.mxu0
    %v2766 = vadd.f32 %v2692, %v2765
    %v2767 = vpop.f32.mrf.mxu0
    %2768 = vdwg.mxu0
    %v2769 = vadd.f32 %v2515, %v2761
    %v2770 = vadd.f32 %v2516, %v2766
    %s2771 = scalar_lea.vmem %s6, 1
    %v2772 = vld [vmem:[%s2771] sm:$0x1]
    %s2773 = scalar_lea.vmem %s7, 1
    %v2774 = vld [vmem:[%s2773] sm:$0x1]
    %v2775 = vsel %vm277, %v2769, 0.0
    %2776 = vadd.xlane.f32.xlu0 %v2775
    %v2777 = vpop.xlane.xlu0 %2776
    %v2778 = vsel %vm281, %v2770, 0.0
    %2779 = vadd.xlane.f32.xlu0 %v2778
    %v2780 = vpop.xlane.xlu0 %2779
    %v2781 = vmul.f32 %v2777, %v285
    %v2782 = vmul.f32 %v2780, %v285
    %v2783 = vsub.f32 %v2769, %v2781
    %v2784 = vsub.f32 %v2770, %v2782
    %v2785 = vmul.f32 %v2783, %v2783
    %v2786 = vmul.f32 %v2784, %v2784
    %v2787 = vsel %vm277, %v2785, 0.0
    %2788 = vadd.xlane.f32.xlu0 %v2787
    %v2789 = vpop.xlane.xlu0 %2788
    %v2790 = vsel %vm281, %v2786, 0.0
    %2791 = vadd.xlane.f32.xlu0 %v2790
    %v2792 = vpop.xlane.xlu0 %2791
    %v2793 = vmul.f32 %v2789, %v285
    %v2794 = vmul.f32 %v2792, %v285
    %v2795 = vadd.f32 %v2793, 1e-06
    %v2796 = vadd.f32 %v2794, 1e-06
    %v2797 = vrsqrt.pop %v2795
    %v2798 = vrsqrt.pop %v2796
    %v2799 = vmul.f32 %v2783, %v2797
    %v2800 = vmul.f32 %v2784, %v2798
    %v2802 = vlaneseq
    %v2803 = vshrl.u32 %v2802, 7
    %v2804 = vsub.s32 0, %v2803
    %v2805 = vrot.slane %v2772, %v2804
    %v2807 = vmul.f32 %v2799, %v2805
    %v2808 = vmul.f32 %v2800, %v2805
    %v2810 = vlaneseq
    %v2811 = vshrl.u32 %v2810, 7
    %v2812 = vsub.s32 0, %v2811
    %v2813 = vrot.slane %v2774, %v2812
    %v2815 = vadd.f32 %v2807, %v2813
    %v2816 = vadd.f32 %v2808, %v2813
    %s2817 = scalar_lea.vmem %s15, 1
    %v2818 = vld [vmem:[%s2817] sm:$0x1]
    %s2819 = scalar_lea.vmem %s8, 128
    %v2820 = vld [vmem:[%s2819] sm:$0xff]
    %v2821 = vld [vmem:[%s2819 + $0x8] sm:$0xff]
    %v2822 = vld [vmem:[%s2819 + $0x10] sm:$0xff]
    %v2823 = vld [vmem:[%s2819 + $0x18] sm:$0xff]
    %s2824 = scalar_lea.vmem %s11, 4
    %v2825 = vld [vmem:[%s2824] sm:$0x1]
    %v2827 = vlaneseq
    %v2828 = vshrl.u32 %v2827, 7
    %v2829 = vsub.s32 0, %v2828
    %v2830 = vrot.slane %v2825, %v2829
    %v2833 = vsel %vm277, %v2815, 0
    %v2836 = vsel %vm277, %v2816, 0
    %2838 = vmatprep.subr.mxu0 0.0
    %2839 = vmatpush1.msra.mxu0 0.0
    %2840 = vmatprep.subr.mxu0 0.0
    %2841 = vmatpush1.msra.mxu0 0.0
    %2842 = vmatprep.subr.mxu0 0.0
    %2843 = vmatpush1.msra.mxu0 0.0
    %2844 = vmatprep.subr.mxu0 0.0
    %2845 = vmatpush1.msra.mxu0 0.0
    %2846 = vmatprep.subr.mxu0 0.0
    %2847 = vmatpush1.msra.mxu0 0.0
    %2848 = vmatprep.subr.mxu0 0.0
    %2849 = vmatpush1.msra.mxu0 0.0
    %2850 = vmatprep.subr.mxu0 0.0
    %2851 = vmatpush1.msra.mxu0 0.0
    %2852 = vmatprep.subr.mxu0 0.0
    %2853 = vmatpush1.msra.mxu0 0.0
    %2854 = vmatprep.subr.mxu0 0.0
    %2855 = vmatpush1.msra.mxu0 0.0
    %2856 = vmatprep.subr.mxu0 0.0
    %2857 = vmatpush1.msra.mxu0 0.0
    %2858 = vmatprep.subr.mxu0 0.0
    %2859 = vmatpush1.msra.mxu0 0.0
    %2860 = vmatprep.subr.mxu0 0.0
    %2861 = vmatpush1.msra.mxu0 0.0
    %2862 = vmatprep.subr.mxu0 0.0
    %2863 = vmatpush1.msra.mxu0 %v2823
    %2864 = vmatprep.subr.mxu0 0.0
    %2865 = vmatpush1.msra.mxu0 %v2822
    %2866 = vmatprep.subr.mxu0 0.0
    %2867 = vmatpush1.msra.mxu0 %v2821
    %2868 = vmatprep.subr.mxu0 0.0
    %2869 = vmatpush1.msra.mxu0 %v2820
    %2870 = vmatprep.subr.mxu0 0.0
    %2871 = vmatpush2.msra.mxu0 0.0
    %2872 = vmatprep.subr.mxu0 0.0
    %2873 = vmatpush2.msra.mxu0 0.0
    %2874 = vmatprep.subr.mxu0 0.0
    %2875 = vmatpush2.msra.mxu0 0.0
    %2876 = vmatprep.subr.mxu0 0.0
    %2877 = vmatpush2.msra.mxu0 0.0
    %2878 = vmatprep.subr.mxu0 0.0
    %2879 = vmatpush2.msra.mxu0 0.0
    %2880 = vmatprep.subr.mxu0 0.0
    %2881 = vmatpush2.msra.mxu0 0.0
    %2882 = vmatprep.subr.mxu0 0.0
    %2883 = vmatpush2.msra.mxu0 0.0
    %2884 = vmatprep.subr.mxu0 0.0
    %2885 = vmatpush2.msra.mxu0 0.0
    %2886 = vmatprep.subr.mxu0 0.0
    %2887 = vmatpush2.msra.mxu0 0.0
    %2888 = vmatprep.subr.mxu0 0.0
    %2889 = vmatpush2.msra.mxu0 0.0
    %2890 = vmatprep.subr.mxu0 0.0
    %2891 = vmatpush2.msra.mxu0 0.0
    %2892 = vmatprep.subr.mxu0 0.0
    %2893 = vmatpush2.msra.mxu0 0.0
    %2894 = vmatprep.subr.mxu0 0.0
    %2895 = vmatpush2.msra.mxu0 0.0
    %2896 = vmatprep.subr.mxu0 0.0
    %2897 = vmatpush2.msra.mxu0 0.0
    %2898 = vmatprep.subr.mxu0 0.0
    %2899 = vmatpush2.msra.mxu0 0.0
    %2900 = vmatprep.subr.mxu0 0.0
    %2901 = vmatpush2.msra.mxu0 0.0
    %2902 = vmatprep.mubr.f32.mxu0 0.0
    %2903 = vmatmul.mubr.f32.gmra.mxu0 %v2833
    %v2904 = vpop.f32.mrf.mxu0
    %v2905 = vadd.f32 %v2830, %v2904
    %v2906 = vpop.f32.mrf.mxu0
    %2907 = vmatprep.mubr.f32.mxu0 0.0
    %2908 = vmatmul.mubr.f32.gmra.mxu0 %v2836
    %v2909 = vpop.f32.mrf.mxu0
    %v2910 = vadd.f32 %v2830, %v2909
    %v2911 = vpop.f32.mrf.mxu0
    %2912 = vdwg.mxu0
    %s2913 = scalar_lea.vmem %s9, 128
    %v2914 = vld [vmem:[%s2913] sm:$0xff]
    %v2915 = vld [vmem:[%s2913 + $0x8] sm:$0xff]
    %v2916 = vld [vmem:[%s2913 + $0x10] sm:$0xff]
    %v2917 = vld [vmem:[%s2913 + $0x18] sm:$0xff]
    %s2918 = scalar_lea.vmem %s12, 4
    %v2919 = vld [vmem:[%s2918] sm:$0x1]
    %v2921 = vlaneseq
    %v2922 = vshrl.u32 %v2921, 7
    %v2923 = vsub.s32 0, %v2922
    %v2924 = vrot.slane %v2919, %v2923
    %2926 = vmatprep.subr.mxu0 0.0
    %2927 = vmatpush1.msra.mxu0 0.0
    %2928 = vmatprep.subr.mxu0 0.0
    %2929 = vmatpush1.msra.mxu0 0.0
    %2930 = vmatprep.subr.mxu0 0.0
    %2931 = vmatpush1.msra.mxu0 0.0
    %2932 = vmatprep.subr.mxu0 0.0
    %2933 = vmatpush1.msra.mxu0 0.0
    %2934 = vmatprep.subr.mxu0 0.0
    %2935 = vmatpush1.msra.mxu0 0.0
    %2936 = vmatprep.subr.mxu0 0.0
    %2937 = vmatpush1.msra.mxu0 0.0
    %2938 = vmatprep.subr.mxu0 0.0
    %2939 = vmatpush1.msra.mxu0 0.0
    %2940 = vmatprep.subr.mxu0 0.0
    %2941 = vmatpush1.msra.mxu0 0.0
    %2942 = vmatprep.subr.mxu0 0.0
    %2943 = vmatpush1.msra.mxu0 0.0
    %2944 = vmatprep.subr.mxu0 0.0
    %2945 = vmatpush1.msra.mxu0 0.0
    %2946 = vmatprep.subr.mxu0 0.0
    %2947 = vmatpush1.msra.mxu0 0.0
    %2948 = vmatprep.subr.mxu0 0.0
    %2949 = vmatpush1.msra.mxu0 0.0
    %2950 = vmatprep.subr.mxu0 0.0
    %2951 = vmatpush1.msra.mxu0 %v2917
    %2952 = vmatprep.subr.mxu0 0.0
    %2953 = vmatpush1.msra.mxu0 %v2916
    %2954 = vmatprep.subr.mxu0 0.0
    %2955 = vmatpush1.msra.mxu0 %v2915
    %2956 = vmatprep.subr.mxu0 0.0
    %2957 = vmatpush1.msra.mxu0 %v2914
    %2958 = vmatprep.subr.mxu0 0.0
    %2959 = vmatpush2.msra.mxu0 0.0
    %2960 = vmatprep.subr.mxu0 0.0
    %2961 = vmatpush2.msra.mxu0 0.0
    %2962 = vmatprep.subr.mxu0 0.0
    %2963 = vmatpush2.msra.mxu0 0.0
    %2964 = vmatprep.subr.mxu0 0.0
    %2965 = vmatpush2.msra.mxu0 0.0
    %2966 = vmatprep.subr.mxu0 0.0
    %2967 = vmatpush2.msra.mxu0 0.0
    %2968 = vmatprep.subr.mxu0 0.0
    %2969 = vmatpush2.msra.mxu0 0.0
    %2970 = vmatprep.subr.mxu0 0.0
    %2971 = vmatpush2.msra.mxu0 0.0
    %2972 = vmatprep.subr.mxu0 0.0
    %2973 = vmatpush2.msra.mxu0 0.0
    %2974 = vmatprep.subr.mxu0 0.0
    %2975 = vmatpush2.msra.mxu0 0.0
    %2976 = vmatprep.subr.mxu0 0.0
    %2977 = vmatpush2.msra.mxu0 0.0
    %2978 = vmatprep.subr.mxu0 0.0
    %2979 = vmatpush2.msra.mxu0 0.0
    %2980 = vmatprep.subr.mxu0 0.0
    %2981 = vmatpush2.msra.mxu0 0.0
    %2982 = vmatprep.subr.mxu0 0.0
    %2983 = vmatpush2.msra.mxu0 0.0
    %2984 = vmatprep.subr.mxu0 0.0
    %2985 = vmatpush2.msra.mxu0 0.0
    %2986 = vmatprep.subr.mxu0 0.0
    %2987 = vmatpush2.msra.mxu0 0.0
    %2988 = vmatprep.subr.mxu0 0.0
    %2989 = vmatpush2.msra.mxu0 0.0
    %2990 = vmatprep.mubr.f32.mxu0 0.0
    %2991 = vmatmul.mubr.f32.gmra.mxu0 %v2833
    %v2992 = vpop.f32.mrf.mxu0
    %v2993 = vadd.f32 %v2924, %v2992
    %v2994 = vpop.f32.mrf.mxu0
    %2995 = vmatprep.mubr.f32.mxu0 0.0
    %2996 = vmatmul.mubr.f32.gmra.mxu0 %v2836
    %v2997 = vpop.f32.mrf.mxu0
    %v2998 = vadd.f32 %v2924, %v2997
    %v2999 = vpop.f32.mrf.mxu0
    %3000 = vdwg.mxu0
    %s3001 = scalar_lea.vmem %s10, 128
    %v3002 = vld [vmem:[%s3001] sm:$0xff]
    %v3003 = vld [vmem:[%s3001 + $0x8] sm:$0xff]
    %v3004 = vld [vmem:[%s3001 + $0x10] sm:$0xff]
    %v3005 = vld [vmem:[%s3001 + $0x18] sm:$0xff]
    %s3006 = scalar_lea.vmem %s13, 4
    %v3007 = vld [vmem:[%s3006] sm:$0x1]
    %v3009 = vlaneseq
    %v3010 = vshrl.u32 %v3009, 7
    %v3011 = vsub.s32 0, %v3010
    %v3012 = vrot.slane %v3007, %v3011
    %3014 = vmatprep.subr.mxu0 0.0
    %3015 = vmatpush1.msra.mxu0 0.0
    %3016 = vmatprep.subr.mxu0 0.0
    %3017 = vmatpush1.msra.mxu0 0.0
    %3018 = vmatprep.subr.mxu0 0.0
    %3019 = vmatpush1.msra.mxu0 0.0
    %3020 = vmatprep.subr.mxu0 0.0
    %3021 = vmatpush1.msra.mxu0 0.0
    %3022 = vmatprep.subr.mxu0 0.0
    %3023 = vmatpush1.msra.mxu0 0.0
    %3024 = vmatprep.subr.mxu0 0.0
    %3025 = vmatpush1.msra.mxu0 0.0
    %3026 = vmatprep.subr.mxu0 0.0
    %3027 = vmatpush1.msra.mxu0 0.0
    %3028 = vmatprep.subr.mxu0 0.0
    %3029 = vmatpush1.msra.mxu0 0.0
    %3030 = vmatprep.subr.mxu0 0.0
    %3031 = vmatpush1.msra.mxu0 0.0
    %3032 = vmatprep.subr.mxu0 0.0
    %3033 = vmatpush1.msra.mxu0 0.0
    %3034 = vmatprep.subr.mxu0 0.0
    %3035 = vmatpush1.msra.mxu0 0.0
    %3036 = vmatprep.subr.mxu0 0.0
    %3037 = vmatpush1.msra.mxu0 0.0
    %3038 = vmatprep.subr.mxu0 0.0
    %3039 = vmatpush1.msra.mxu0 %v3005
    %3040 = vmatprep.subr.mxu0 0.0
    %3041 = vmatpush1.msra.mxu0 %v3004
    %3042 = vmatprep.subr.mxu0 0.0
    %3043 = vmatpush1.msra.mxu0 %v3003
    %3044 = vmatprep.subr.mxu0 0.0
    %3045 = vmatpush1.msra.mxu0 %v3002
    %3046 = vmatprep.subr.mxu0 0.0
    %3047 = vmatpush2.msra.mxu0 0.0
    %3048 = vmatprep.subr.mxu0 0.0
    %3049 = vmatpush2.msra.mxu0 0.0
    %3050 = vmatprep.subr.mxu0 0.0
    %3051 = vmatpush2.msra.mxu0 0.0
    %3052 = vmatprep.subr.mxu0 0.0
    %3053 = vmatpush2.msra.mxu0 0.0
    %3054 = vmatprep.subr.mxu0 0.0
    %3055 = vmatpush2.msra.mxu0 0.0
    %3056 = vmatprep.subr.mxu0 0.0
    %3057 = vmatpush2.msra.mxu0 0.0
    %3058 = vmatprep.subr.mxu0 0.0
    %3059 = vmatpush2.msra.mxu0 0.0
    %3060 = vmatprep.subr.mxu0 0.0
    %3061 = vmatpush2.msra.mxu0 0.0
    %3062 = vmatprep.subr.mxu0 0.0
    %3063 = vmatpush2.msra.mxu0 0.0
    %3064 = vmatprep.subr.mxu0 0.0
    %3065 = vmatpush2.msra.mxu0 0.0
    %3066 = vmatprep.subr.mxu0 0.0
    %3067 = vmatpush2.msra.mxu0 0.0
    %3068 = vmatprep.subr.mxu0 0.0
    %3069 = vmatpush2.msra.mxu0 0.0
    %3070 = vmatprep.subr.mxu0 0.0
    %3071 = vmatpush2.msra.mxu0 0.0
    %3072 = vmatprep.subr.mxu0 0.0
    %3073 = vmatpush2.msra.mxu0 0.0
    %3074 = vmatprep.subr.mxu0 0.0
    %3075 = vmatpush2.msra.mxu0 0.0
    %3076 = vmatprep.subr.mxu0 0.0
    %3077 = vmatpush2.msra.mxu0 0.0
    %3078 = vmatprep.mubr.f32.mxu0 0.0
    %3079 = vmatmul.mubr.f32.gmra.mxu0 %v2833
    %v3080 = vpop.f32.mrf.mxu0
    %v3081 = vadd.f32 %v3012, %v3080
    %v3082 = vpop.f32.mrf.mxu0
    %3083 = vmatprep.mubr.f32.mxu0 0.0
    %3084 = vmatmul.mubr.f32.gmra.mxu0 %v2836
    %v3085 = vpop.f32.mrf.mxu0
    %v3086 = vadd.f32 %v3012, %v3085
    %v3087 = vpop.f32.mrf.mxu0
    %3088 = vdwg.mxu0
    %v3090 = vsel %vm189, %v2905, 0
    %v3093 = vsel %vm189, %v2910, 0
    %v3096 = vsel %vm189, %v2993, 0
    %v3099 = vsel %vm189, %v2998, 0
    %3101 = vmatprep.subr.mxu0 0.0
    %3102 = vmatpush1.xpose.msra.mxu0 0.0
    %3103 = vmatprep.subr.mxu0 0.0
    %3104 = vmatpush1.xpose.msra.mxu0 0.0
    %3105 = vmatprep.subr.mxu0 0.0
    %3106 = vmatpush1.xpose.msra.mxu0 0.0
    %3107 = vmatprep.subr.mxu0 0.0
    %3108 = vmatpush1.xpose.msra.mxu0 0.0
    %3109 = vmatprep.subr.mxu0 0.0
    %3110 = vmatpush1.xpose.msra.mxu0 0.0
    %3111 = vmatprep.subr.mxu0 0.0
    %3112 = vmatpush1.xpose.msra.mxu0 0.0
    %3113 = vmatprep.subr.mxu0 0.0
    %3114 = vmatpush1.xpose.msra.mxu0 0.0
    %3115 = vmatprep.subr.mxu0 0.0
    %3116 = vmatpush1.xpose.msra.mxu0 0.0
    %3117 = vmatprep.subr.mxu0 0.0
    %3118 = vmatpush1.xpose.msra.mxu0 0.0
    %3119 = vmatprep.subr.mxu0 0.0
    %3120 = vmatpush1.xpose.msra.mxu0 0.0
    %3121 = vmatprep.subr.mxu0 0.0
    %3122 = vmatpush1.xpose.msra.mxu0 0.0
    %3123 = vmatprep.subr.mxu0 0.0
    %3124 = vmatpush1.xpose.msra.mxu0 0.0
    %3125 = vmatprep.subr.mxu0 0.0
    %3126 = vmatpush1.xpose.msra.mxu0 0.0
    %3127 = vmatprep.subr.mxu0 0.0
    %3128 = vmatpush1.xpose.msra.mxu0 0.0
    %3129 = vmatprep.subr.mxu0 0.0
    %3130 = vmatpush1.xpose.msra.mxu0 %v3099
    %3131 = vmatprep.subr.mxu0 0.0
    %3132 = vmatpush1.xpose.msra.mxu0 %v3096
    %3133 = vmatprep.subr.mxu0 0.0
    %3134 = vmatpush2.xpose.msra.mxu0 0.0
    %3135 = vmatprep.subr.mxu0 0.0
    %3136 = vmatpush2.xpose.msra.mxu0 0.0
    %3137 = vmatprep.subr.mxu0 0.0
    %3138 = vmatpush2.xpose.msra.mxu0 0.0
    %3139 = vmatprep.subr.mxu0 0.0
    %3140 = vmatpush2.xpose.msra.mxu0 0.0
    %3141 = vmatprep.subr.mxu0 0.0
    %3142 = vmatpush2.xpose.msra.mxu0 0.0
    %3143 = vmatprep.subr.mxu0 0.0
    %3144 = vmatpush2.xpose.msra.mxu0 0.0
    %3145 = vmatprep.subr.mxu0 0.0
    %3146 = vmatpush2.xpose.msra.mxu0 0.0
    %3147 = vmatprep.subr.mxu0 0.0
    %3148 = vmatpush2.xpose.msra.mxu0 0.0
    %3149 = vmatprep.subr.mxu0 0.0
    %3150 = vmatpush2.xpose.msra.mxu0 0.0
    %3151 = vmatprep.subr.mxu0 0.0
    %3152 = vmatpush2.xpose.msra.mxu0 0.0
    %3153 = vmatprep.subr.mxu0 0.0
    %3154 = vmatpush2.xpose.msra.mxu0 0.0
    %3155 = vmatprep.subr.mxu0 0.0
    %3156 = vmatpush2.xpose.msra.mxu0 0.0
    %3157 = vmatprep.subr.mxu0 0.0
    %3158 = vmatpush2.xpose.msra.mxu0 0.0
    %3159 = vmatprep.subr.mxu0 0.0
    %3160 = vmatpush2.xpose.msra.mxu0 0.0
    %3161 = vmatprep.subr.mxu0 0.0
    %3162 = vmatpush2.xpose.msra.mxu0 0.0
    %3163 = vmatprep.subr.mxu0 0.0
    %3164 = vmatpush2.xpose.msra.mxu0 0.0
    %3165 = vmatprep.mubr.f32.mxu0 0.0
    %3166 = vmatmul.mubr.f32.gmra.mxu0 %v3090
    %v3167 = vpop.f32.mrf.mxu0
    %v3168 = vadd.f32 0.0, %v3167
    %v3169 = vpop.f32.mrf.mxu0
    %3170 = vmatprep.mubr.f32.mxu0 0.0
    %3171 = vmatmul.mubr.f32.gmra.mxu0 %v3093
    %v3172 = vpop.f32.mrf.mxu0
    %v3173 = vadd.f32 0.0, %v3172
    %v3174 = vpop.f32.mrf.mxu0
    %3175 = vdwg.mxu0
    %v3176 = vmul.f32 %v3168, 0.35355338
    %v3177 = vmul.f32 %v3173, 0.35355338
    %v3178 = vadd.f32 %v3176, %v273
    %v3179 = vadd.f32 %v3177, %v274
    %v3180 = vsel %vm678, %v3178, -inf
    %3181 = vmax.xlane.f32.xlu0 %v3180
    %v3182 = vpop.xlane.xlu0 %3181
    %v3183 = vsel %vm682, %v3179, -inf
    %3184 = vmax.xlane.f32.xlu0 %v3183
    %v3185 = vpop.xlane.xlu0 %3184
    %v3186 = vsub.f32 %v3178, %v3182
    %v3187 = vsub.f32 %v3179, %v3185
    %v3188 = vmul.f32 %v3186, 1.442695
    %v3189 = vpow.pop %v3188
    %v3190 = vmul.f32 %v3187, 1.442695
    %v3191 = vpow.pop %v3190
    %v3192 = vsel %vm678, %v3189, 0.0
    %3193 = vadd.xlane.f32.xlu0 %v3192
    %v3194 = vpop.xlane.xlu0 %3193
    %v3195 = vsel %vm682, %v3191, 0.0
    %3196 = vadd.xlane.f32.xlu0 %v3195
    %v3197 = vpop.xlane.xlu0 %3196
    %v3198 = vrcp.pop %v3194
    %v3199 = vrcp.pop %v3197
    %v3200 = vmul.f32 %v3189, %v3198
    %v3201 = vmul.f32 %v3191, %v3199
    %v3203 = vsel %vm678, %v3200, 0
    %v3206 = vsel %vm678, %v3201, 0
    %v3209 = vsel %vm708, %v3086, 0
    %3211 = vmatprep.subr.mxu0 0.0
    %3212 = vmatpush1.msra.mxu0 0.0
    %3213 = vmatprep.subr.mxu0 0.0
    %3214 = vmatpush1.msra.mxu0 0.0
    %3215 = vmatprep.subr.mxu0 0.0
    %3216 = vmatpush1.msra.mxu0 0.0
    %3217 = vmatprep.subr.mxu0 0.0
    %3218 = vmatpush1.msra.mxu0 0.0
    %3219 = vmatprep.subr.mxu0 0.0
    %3220 = vmatpush1.msra.mxu0 0.0
    %3221 = vmatprep.subr.mxu0 0.0
    %3222 = vmatpush1.msra.mxu0 0.0
    %3223 = vmatprep.subr.mxu0 0.0
    %3224 = vmatpush1.msra.mxu0 0.0
    %3225 = vmatprep.subr.mxu0 0.0
    %3226 = vmatpush1.msra.mxu0 0.0
    %3227 = vmatprep.subr.mxu0 0.0
    %3228 = vmatpush1.msra.mxu0 0.0
    %3229 = vmatprep.subr.mxu0 0.0
    %3230 = vmatpush1.msra.mxu0 0.0
    %3231 = vmatprep.subr.mxu0 0.0
    %3232 = vmatpush1.msra.mxu0 0.0
    %3233 = vmatprep.subr.mxu0 0.0
    %3234 = vmatpush1.msra.mxu0 0.0
    %3235 = vmatprep.subr.mxu0 0.0
    %3236 = vmatpush1.msra.mxu0 0.0
    %3237 = vmatprep.subr.mxu0 0.0
    %3238 = vmatpush1.msra.mxu0 0.0
    %3239 = vmatprep.subr.mxu0 0.0
    %3240 = vmatpush1.msra.mxu0 %v3209
    %3241 = vmatprep.subr.mxu0 0.0
    %3242 = vmatpush1.msra.mxu0 %v3081
    %3243 = vmatprep.subr.mxu0 0.0
    %3244 = vmatpush2.msra.mxu0 0.0
    %3245 = vmatprep.subr.mxu0 0.0
    %3246 = vmatpush2.msra.mxu0 0.0
    %3247 = vmatprep.subr.mxu0 0.0
    %3248 = vmatpush2.msra.mxu0 0.0
    %3249 = vmatprep.subr.mxu0 0.0
    %3250 = vmatpush2.msra.mxu0 0.0
    %3251 = vmatprep.subr.mxu0 0.0
    %3252 = vmatpush2.msra.mxu0 0.0
    %3253 = vmatprep.subr.mxu0 0.0
    %3254 = vmatpush2.msra.mxu0 0.0
    %3255 = vmatprep.subr.mxu0 0.0
    %3256 = vmatpush2.msra.mxu0 0.0
    %3257 = vmatprep.subr.mxu0 0.0
    %3258 = vmatpush2.msra.mxu0 0.0
    %3259 = vmatprep.subr.mxu0 0.0
    %3260 = vmatpush2.msra.mxu0 0.0
    %3261 = vmatprep.subr.mxu0 0.0
    %3262 = vmatpush2.msra.mxu0 0.0
    %3263 = vmatprep.subr.mxu0 0.0
    %3264 = vmatpush2.msra.mxu0 0.0
    %3265 = vmatprep.subr.mxu0 0.0
    %3266 = vmatpush2.msra.mxu0 0.0
    %3267 = vmatprep.subr.mxu0 0.0
    %3268 = vmatpush2.msra.mxu0 0.0
    %3269 = vmatprep.subr.mxu0 0.0
    %3270 = vmatpush2.msra.mxu0 0.0
    %3271 = vmatprep.subr.mxu0 0.0
    %3272 = vmatpush2.msra.mxu0 0.0
    %3273 = vmatprep.subr.mxu0 0.0
    %3274 = vmatpush2.msra.mxu0 0.0
    %3275 = vmatprep.mubr.f32.mxu0 0.0
    %3276 = vmatmul.mubr.f32.gmra.mxu0 %v3203
    %v3277 = vpop.f32.mrf.mxu0
    %v3278 = vadd.f32 0.0, %v3277
    %v3279 = vpop.f32.mrf.mxu0
    %3280 = vmatprep.mubr.f32.mxu0 0.0
    %3281 = vmatmul.mubr.f32.gmra.mxu0 %v3206
    %v3282 = vpop.f32.mrf.mxu0
    %v3283 = vadd.f32 0.0, %v3282
    %v3284 = vpop.f32.mrf.mxu0
    %3285 = vdwg.mxu0
    %s3286 = scalar_lea.vmem %s14, 32
    %v3287 = vld [vmem:[%s3286] sm:$0xff]
    %v3289 = vsel %vm189, %v3278, 0
    %v3292 = vsel %vm189, %v3283, 0
    %3294 = vmatprep.subr.mxu0 0.0
    %3295 = vmatpush1.msra.mxu0 0.0
    %3296 = vmatprep.subr.mxu0 0.0
    %3297 = vmatpush1.msra.mxu0 0.0
    %3298 = vmatprep.subr.mxu0 0.0
    %3299 = vmatpush1.msra.mxu0 0.0
    %3300 = vmatprep.subr.mxu0 0.0
    %3301 = vmatpush1.msra.mxu0 0.0
    %3302 = vmatprep.subr.mxu0 0.0
    %3303 = vmatpush1.msra.mxu0 0.0
    %3304 = vmatprep.subr.mxu0 0.0
    %3305 = vmatpush1.msra.mxu0 0.0
    %3306 = vmatprep.subr.mxu0 0.0
    %3307 = vmatpush1.msra.mxu0 0.0
    %3308 = vmatprep.subr.mxu0 0.0
    %3309 = vmatpush1.msra.mxu0 0.0
    %3310 = vmatprep.subr.mxu0 0.0
    %3311 = vmatpush1.msra.mxu0 0.0
    %3312 = vmatprep.subr.mxu0 0.0
    %3313 = vmatpush1.msra.mxu0 0.0
    %3314 = vmatprep.subr.mxu0 0.0
    %3315 = vmatpush1.msra.mxu0 0.0
    %3316 = vmatprep.subr.mxu0 0.0
    %3317 = vmatpush1.msra.mxu0 0.0
    %3318 = vmatprep.subr.mxu0 0.0
    %3319 = vmatpush1.msra.mxu0 0.0
    %3320 = vmatprep.subr.mxu0 0.0
    %3321 = vmatpush1.msra.mxu0 0.0
    %3322 = vmatprep.subr.mxu0 0.0
    %3323 = vmatpush1.msra.mxu0 0.0
    %3324 = vmatprep.subr.mxu0 0.0
    %3325 = vmatpush1.msra.mxu0 %v3287
    %3326 = vmatprep.subr.mxu0 0.0
    %3327 = vmatpush2.msra.mxu0 0.0
    %3328 = vmatprep.subr.mxu0 0.0
    %3329 = vmatpush2.msra.mxu0 0.0
    %3330 = vmatprep.subr.mxu0 0.0
    %3331 = vmatpush2.msra.mxu0 0.0
    %3332 = vmatprep.subr.mxu0 0.0
    %3333 = vmatpush2.msra.mxu0 0.0
    %3334 = vmatprep.subr.mxu0 0.0
    %3335 = vmatpush2.msra.mxu0 0.0
    %3336 = vmatprep.subr.mxu0 0.0
    %3337 = vmatpush2.msra.mxu0 0.0
    %3338 = vmatprep.subr.mxu0 0.0
    %3339 = vmatpush2.msra.mxu0 0.0
    %3340 = vmatprep.subr.mxu0 0.0
    %3341 = vmatpush2.msra.mxu0 0.0
    %3342 = vmatprep.subr.mxu0 0.0
    %3343 = vmatpush2.msra.mxu0 0.0
    %3344 = vmatprep.subr.mxu0 0.0
    %3345 = vmatpush2.msra.mxu0 0.0
    %3346 = vmatprep.subr.mxu0 0.0
    %3347 = vmatpush2.msra.mxu0 0.0
    %3348 = vmatprep.subr.mxu0 0.0
    %3349 = vmatpush2.msra.mxu0 0.0
    %3350 = vmatprep.subr.mxu0 0.0
    %3351 = vmatpush2.msra.mxu0 0.0
    %3352 = vmatprep.subr.mxu0 0.0
    %3353 = vmatpush2.msra.mxu0 0.0
    %3354 = vmatprep.subr.mxu0 0.0
    %3355 = vmatpush2.msra.mxu0 0.0
    %3356 = vmatprep.subr.mxu0 0.0
    %3357 = vmatpush2.msra.mxu0 0.0
    %3358 = vmatprep.mubr.f32.mxu0 0.0
    %3359 = vmatmul.mubr.f32.gmra.mxu0 %v3289
    %v3360 = vpop.f32.mrf.mxu0
    %v3361 = vadd.f32 0.0, %v3360
    %v3362 = vpop.f32.mrf.mxu0
    %3363 = vmatprep.mubr.f32.mxu0 0.0
    %3364 = vmatmul.mubr.f32.gmra.mxu0 %v3292
    %v3365 = vpop.f32.mrf.mxu0
    %v3366 = vadd.f32 0.0, %v3365
    %v3367 = vpop.f32.mrf.mxu0
    %3368 = vdwg.mxu0
    %v3370 = vlaneseq
    %v3371 = vshrl.u32 %v3370, 7
    %v3372 = vsub.s32 0, %v3371
    %v3373 = vrot.slane %v2818, %v3372
    %v3375 = vadd.f32 %v3373, %v3361
    %v3376 = vadd.f32 %v3373, %v3366
    %s3377 = scalar_lea.vmem %s8, 160
    %v3378 = vld [vmem:[%s3377] sm:$0xff]
    %v3379 = vld [vmem:[%s3377 + $0x8] sm:$0xff]
    %v3380 = vld [vmem:[%s3377 + $0x10] sm:$0xff]
    %v3381 = vld [vmem:[%s3377 + $0x18] sm:$0xff]
    %s3382 = scalar_lea.vmem %s11, 5
    %v3383 = vld [vmem:[%s3382] sm:$0x1]
    %v3385 = vlaneseq
    %v3386 = vshrl.u32 %v3385, 7
    %v3387 = vsub.s32 0, %v3386
    %v3388 = vrot.slane %v3383, %v3387
    %3390 = vmatprep.subr.mxu0 0.0
    %3391 = vmatpush1.msra.mxu0 0.0
    %3392 = vmatprep.subr.mxu0 0.0
    %3393 = vmatpush1.msra.mxu0 0.0
    %3394 = vmatprep.subr.mxu0 0.0
    %3395 = vmatpush1.msra.mxu0 0.0
    %3396 = vmatprep.subr.mxu0 0.0
    %3397 = vmatpush1.msra.mxu0 0.0
    %3398 = vmatprep.subr.mxu0 0.0
    %3399 = vmatpush1.msra.mxu0 0.0
    %3400 = vmatprep.subr.mxu0 0.0
    %3401 = vmatpush1.msra.mxu0 0.0
    %3402 = vmatprep.subr.mxu0 0.0
    %3403 = vmatpush1.msra.mxu0 0.0
    %3404 = vmatprep.subr.mxu0 0.0
    %3405 = vmatpush1.msra.mxu0 0.0
    %3406 = vmatprep.subr.mxu0 0.0
    %3407 = vmatpush1.msra.mxu0 0.0
    %3408 = vmatprep.subr.mxu0 0.0
    %3409 = vmatpush1.msra.mxu0 0.0
    %3410 = vmatprep.subr.mxu0 0.0
    %3411 = vmatpush1.msra.mxu0 0.0
    %3412 = vmatprep.subr.mxu0 0.0
    %3413 = vmatpush1.msra.mxu0 0.0
    %3414 = vmatprep.subr.mxu0 0.0
    %3415 = vmatpush1.msra.mxu0 %v3381
    %3416 = vmatprep.subr.mxu0 0.0
    %3417 = vmatpush1.msra.mxu0 %v3380
    %3418 = vmatprep.subr.mxu0 0.0
    %3419 = vmatpush1.msra.mxu0 %v3379
    %3420 = vmatprep.subr.mxu0 0.0
    %3421 = vmatpush1.msra.mxu0 %v3378
    %3422 = vmatprep.subr.mxu0 0.0
    %3423 = vmatpush2.msra.mxu0 0.0
    %3424 = vmatprep.subr.mxu0 0.0
    %3425 = vmatpush2.msra.mxu0 0.0
    %3426 = vmatprep.subr.mxu0 0.0
    %3427 = vmatpush2.msra.mxu0 0.0
    %3428 = vmatprep.subr.mxu0 0.0
    %3429 = vmatpush2.msra.mxu0 0.0
    %3430 = vmatprep.subr.mxu0 0.0
    %3431 = vmatpush2.msra.mxu0 0.0
    %3432 = vmatprep.subr.mxu0 0.0
    %3433 = vmatpush2.msra.mxu0 0.0
    %3434 = vmatprep.subr.mxu0 0.0
    %3435 = vmatpush2.msra.mxu0 0.0
    %3436 = vmatprep.subr.mxu0 0.0
    %3437 = vmatpush2.msra.mxu0 0.0
    %3438 = vmatprep.subr.mxu0 0.0
    %3439 = vmatpush2.msra.mxu0 0.0
    %3440 = vmatprep.subr.mxu0 0.0
    %3441 = vmatpush2.msra.mxu0 0.0
    %3442 = vmatprep.subr.mxu0 0.0
    %3443 = vmatpush2.msra.mxu0 0.0
    %3444 = vmatprep.subr.mxu0 0.0
    %3445 = vmatpush2.msra.mxu0 0.0
    %3446 = vmatprep.subr.mxu0 0.0
    %3447 = vmatpush2.msra.mxu0 0.0
    %3448 = vmatprep.subr.mxu0 0.0
    %3449 = vmatpush2.msra.mxu0 0.0
    %3450 = vmatprep.subr.mxu0 0.0
    %3451 = vmatpush2.msra.mxu0 0.0
    %3452 = vmatprep.subr.mxu0 0.0
    %3453 = vmatpush2.msra.mxu0 0.0
    %3454 = vmatprep.mubr.f32.mxu0 0.0
    %3455 = vmatmul.mubr.f32.gmra.mxu0 %v2833
    %v3456 = vpop.f32.mrf.mxu0
    %v3457 = vadd.f32 %v3388, %v3456
    %v3458 = vpop.f32.mrf.mxu0
    %3459 = vmatprep.mubr.f32.mxu0 0.0
    %3460 = vmatmul.mubr.f32.gmra.mxu0 %v2836
    %v3461 = vpop.f32.mrf.mxu0
    %v3462 = vadd.f32 %v3388, %v3461
    %v3463 = vpop.f32.mrf.mxu0
    %3464 = vdwg.mxu0
    %s3465 = scalar_lea.vmem %s9, 160
    %v3466 = vld [vmem:[%s3465] sm:$0xff]
    %v3467 = vld [vmem:[%s3465 + $0x8] sm:$0xff]
    %v3468 = vld [vmem:[%s3465 + $0x10] sm:$0xff]
    %v3469 = vld [vmem:[%s3465 + $0x18] sm:$0xff]
    %s3470 = scalar_lea.vmem %s12, 5
    %v3471 = vld [vmem:[%s3470] sm:$0x1]
    %v3473 = vlaneseq
    %v3474 = vshrl.u32 %v3473, 7
    %v3475 = vsub.s32 0, %v3474
    %v3476 = vrot.slane %v3471, %v3475
    %3478 = vmatprep.subr.mxu0 0.0
    %3479 = vmatpush1.msra.mxu0 0.0
    %3480 = vmatprep.subr.mxu0 0.0
    %3481 = vmatpush1.msra.mxu0 0.0
    %3482 = vmatprep.subr.mxu0 0.0
    %3483 = vmatpush1.msra.mxu0 0.0
    %3484 = vmatprep.subr.mxu0 0.0
    %3485 = vmatpush1.msra.mxu0 0.0
    %3486 = vmatprep.subr.mxu0 0.0
    %3487 = vmatpush1.msra.mxu0 0.0
    %3488 = vmatprep.subr.mxu0 0.0
    %3489 = vmatpush1.msra.mxu0 0.0
    %3490 = vmatprep.subr.mxu0 0.0
    %3491 = vmatpush1.msra.mxu0 0.0
    %3492 = vmatprep.subr.mxu0 0.0
    %3493 = vmatpush1.msra.mxu0 0.0
    %3494 = vmatprep.subr.mxu0 0.0
    %3495 = vmatpush1.msra.mxu0 0.0
    %3496 = vmatprep.subr.mxu0 0.0
    %3497 = vmatpush1.msra.mxu0 0.0
    %3498 = vmatprep.subr.mxu0 0.0
    %3499 = vmatpush1.msra.mxu0 0.0
    %3500 = vmatprep.subr.mxu0 0.0
    %3501 = vmatpush1.msra.mxu0 0.0
    %3502 = vmatprep.subr.mxu0 0.0
    %3503 = vmatpush1.msra.mxu0 %v3469
    %3504 = vmatprep.subr.mxu0 0.0
    %3505 = vmatpush1.msra.mxu0 %v3468
    %3506 = vmatprep.subr.mxu0 0.0
    %3507 = vmatpush1.msra.mxu0 %v3467
    %3508 = vmatprep.subr.mxu0 0.0
    %3509 = vmatpush1.msra.mxu0 %v3466
    %3510 = vmatprep.subr.mxu0 0.0
    %3511 = vmatpush2.msra.mxu0 0.0
    %3512 = vmatprep.subr.mxu0 0.0
    %3513 = vmatpush2.msra.mxu0 0.0
    %3514 = vmatprep.subr.mxu0 0.0
    %3515 = vmatpush2.msra.mxu0 0.0
    %3516 = vmatprep.subr.mxu0 0.0
    %3517 = vmatpush2.msra.mxu0 0.0
    %3518 = vmatprep.subr.mxu0 0.0
    %3519 = vmatpush2.msra.mxu0 0.0
    %3520 = vmatprep.subr.mxu0 0.0
    %3521 = vmatpush2.msra.mxu0 0.0
    %3522 = vmatprep.subr.mxu0 0.0
    %3523 = vmatpush2.msra.mxu0 0.0
    %3524 = vmatprep.subr.mxu0 0.0
    %3525 = vmatpush2.msra.mxu0 0.0
    %3526 = vmatprep.subr.mxu0 0.0
    %3527 = vmatpush2.msra.mxu0 0.0
    %3528 = vmatprep.subr.mxu0 0.0
    %3529 = vmatpush2.msra.mxu0 0.0
    %3530 = vmatprep.subr.mxu0 0.0
    %3531 = vmatpush2.msra.mxu0 0.0
    %3532 = vmatprep.subr.mxu0 0.0
    %3533 = vmatpush2.msra.mxu0 0.0
    %3534 = vmatprep.subr.mxu0 0.0
    %3535 = vmatpush2.msra.mxu0 0.0
    %3536 = vmatprep.subr.mxu0 0.0
    %3537 = vmatpush2.msra.mxu0 0.0
    %3538 = vmatprep.subr.mxu0 0.0
    %3539 = vmatpush2.msra.mxu0 0.0
    %3540 = vmatprep.subr.mxu0 0.0
    %3541 = vmatpush2.msra.mxu0 0.0
    %3542 = vmatprep.mubr.f32.mxu0 0.0
    %3543 = vmatmul.mubr.f32.gmra.mxu0 %v2833
    %v3544 = vpop.f32.mrf.mxu0
    %v3545 = vadd.f32 %v3476, %v3544
    %v3546 = vpop.f32.mrf.mxu0
    %3547 = vmatprep.mubr.f32.mxu0 0.0
    %3548 = vmatmul.mubr.f32.gmra.mxu0 %v2836
    %v3549 = vpop.f32.mrf.mxu0
    %v3550 = vadd.f32 %v3476, %v3549
    %v3551 = vpop.f32.mrf.mxu0
    %3552 = vdwg.mxu0
    %s3553 = scalar_lea.vmem %s10, 160
    %v3554 = vld [vmem:[%s3553] sm:$0xff]
    %v3555 = vld [vmem:[%s3553 + $0x8] sm:$0xff]
    %v3556 = vld [vmem:[%s3553 + $0x10] sm:$0xff]
    %v3557 = vld [vmem:[%s3553 + $0x18] sm:$0xff]
    %s3558 = scalar_lea.vmem %s13, 5
    %v3559 = vld [vmem:[%s3558] sm:$0x1]
    %v3561 = vlaneseq
    %v3562 = vshrl.u32 %v3561, 7
    %v3563 = vsub.s32 0, %v3562
    %v3564 = vrot.slane %v3559, %v3563
    %3566 = vmatprep.subr.mxu0 0.0
    %3567 = vmatpush1.msra.mxu0 0.0
    %3568 = vmatprep.subr.mxu0 0.0
    %3569 = vmatpush1.msra.mxu0 0.0
    %3570 = vmatprep.subr.mxu0 0.0
    %3571 = vmatpush1.msra.mxu0 0.0
    %3572 = vmatprep.subr.mxu0 0.0
    %3573 = vmatpush1.msra.mxu0 0.0
    %3574 = vmatprep.subr.mxu0 0.0
    %3575 = vmatpush1.msra.mxu0 0.0
    %3576 = vmatprep.subr.mxu0 0.0
    %3577 = vmatpush1.msra.mxu0 0.0
    %3578 = vmatprep.subr.mxu0 0.0
    %3579 = vmatpush1.msra.mxu0 0.0
    %3580 = vmatprep.subr.mxu0 0.0
    %3581 = vmatpush1.msra.mxu0 0.0
    %3582 = vmatprep.subr.mxu0 0.0
    %3583 = vmatpush1.msra.mxu0 0.0
    %3584 = vmatprep.subr.mxu0 0.0
    %3585 = vmatpush1.msra.mxu0 0.0
    %3586 = vmatprep.subr.mxu0 0.0
    %3587 = vmatpush1.msra.mxu0 0.0
    %3588 = vmatprep.subr.mxu0 0.0
    %3589 = vmatpush1.msra.mxu0 0.0
    %3590 = vmatprep.subr.mxu0 0.0
    %3591 = vmatpush1.msra.mxu0 %v3557
    %3592 = vmatprep.subr.mxu0 0.0
    %3593 = vmatpush1.msra.mxu0 %v3556
    %3594 = vmatprep.subr.mxu0 0.0
    %3595 = vmatpush1.msra.mxu0 %v3555
    %3596 = vmatprep.subr.mxu0 0.0
    %3597 = vmatpush1.msra.mxu0 %v3554
    %3598 = vmatprep.subr.mxu0 0.0
    %3599 = vmatpush2.msra.mxu0 0.0
    %3600 = vmatprep.subr.mxu0 0.0
    %3601 = vmatpush2.msra.mxu0 0.0
    %3602 = vmatprep.subr.mxu0 0.0
    %3603 = vmatpush2.msra.mxu0 0.0
    %3604 = vmatprep.subr.mxu0 0.0
    %3605 = vmatpush2.msra.mxu0 0.0
    %3606 = vmatprep.subr.mxu0 0.0
    %3607 = vmatpush2.msra.mxu0 0.0
    %3608 = vmatprep.subr.mxu0 0.0
    %3609 = vmatpush2.msra.mxu0 0.0
    %3610 = vmatprep.subr.mxu0 0.0
    %3611 = vmatpush2.msra.mxu0 0.0
    %3612 = vmatprep.subr.mxu0 0.0
    %3613 = vmatpush2.msra.mxu0 0.0
    %3614 = vmatprep.subr.mxu0 0.0
    %3615 = vmatpush2.msra.mxu0 0.0
    %3616 = vmatprep.subr.mxu0 0.0
    %3617 = vmatpush2.msra.mxu0 0.0
    %3618 = vmatprep.subr.mxu0 0.0
    %3619 = vmatpush2.msra.mxu0 0.0
    %3620 = vmatprep.subr.mxu0 0.0
    %3621 = vmatpush2.msra.mxu0 0.0
    %3622 = vmatprep.subr.mxu0 0.0
    %3623 = vmatpush2.msra.mxu0 0.0
    %3624 = vmatprep.subr.mxu0 0.0
    %3625 = vmatpush2.msra.mxu0 0.0
    %3626 = vmatprep.subr.mxu0 0.0
    %3627 = vmatpush2.msra.mxu0 0.0
    %3628 = vmatprep.subr.mxu0 0.0
    %3629 = vmatpush2.msra.mxu0 0.0
    %3630 = vmatprep.mubr.f32.mxu0 0.0
    %3631 = vmatmul.mubr.f32.gmra.mxu0 %v2833
    %v3632 = vpop.f32.mrf.mxu0
    %v3633 = vadd.f32 %v3564, %v3632
    %v3634 = vpop.f32.mrf.mxu0
    %3635 = vmatprep.mubr.f32.mxu0 0.0
    %3636 = vmatmul.mubr.f32.gmra.mxu0 %v2836
    %v3637 = vpop.f32.mrf.mxu0
    %v3638 = vadd.f32 %v3564, %v3637
    %v3639 = vpop.f32.mrf.mxu0
    %3640 = vdwg.mxu0
    %v3642 = vsel %vm189, %v3457, 0
    %v3645 = vsel %vm189, %v3462, 0
    %v3648 = vsel %vm189, %v3545, 0
    %v3651 = vsel %vm189, %v3550, 0
    %3653 = vmatprep.subr.mxu0 0.0
    %3654 = vmatpush1.xpose.msra.mxu0 0.0
    %3655 = vmatprep.subr.mxu0 0.0
    %3656 = vmatpush1.xpose.msra.mxu0 0.0
    %3657 = vmatprep.subr.mxu0 0.0
    %3658 = vmatpush1.xpose.msra.mxu0 0.0
    %3659 = vmatprep.subr.mxu0 0.0
    %3660 = vmatpush1.xpose.msra.mxu0 0.0
    %3661 = vmatprep.subr.mxu0 0.0
    %3662 = vmatpush1.xpose.msra.mxu0 0.0
    %3663 = vmatprep.subr.mxu0 0.0
    %3664 = vmatpush1.xpose.msra.mxu0 0.0
    %3665 = vmatprep.subr.mxu0 0.0
    %3666 = vmatpush1.xpose.msra.mxu0 0.0
    %3667 = vmatprep.subr.mxu0 0.0
    %3668 = vmatpush1.xpose.msra.mxu0 0.0
    %3669 = vmatprep.subr.mxu0 0.0
    %3670 = vmatpush1.xpose.msra.mxu0 0.0
    %3671 = vmatprep.subr.mxu0 0.0
    %3672 = vmatpush1.xpose.msra.mxu0 0.0
    %3673 = vmatprep.subr.mxu0 0.0
    %3674 = vmatpush1.xpose.msra.mxu0 0.0
    %3675 = vmatprep.subr.mxu0 0.0
    %3676 = vmatpush1.xpose.msra.mxu0 0.0
    %3677 = vmatprep.subr.mxu0 0.0
    %3678 = vmatpush1.xpose.msra.mxu0 0.0
    %3679 = vmatprep.subr.mxu0 0.0
    %3680 = vmatpush1.xpose.msra.mxu0 0.0
    %3681 = vmatprep.subr.mxu0 0.0
    %3682 = vmatpush1.xpose.msra.mxu0 %v3651
    %3683 = vmatprep.subr.mxu0 0.0
    %3684 = vmatpush1.xpose.msra.mxu0 %v3648
    %3685 = vmatprep.subr.mxu0 0.0
    %3686 = vmatpush2.xpose.msra.mxu0 0.0
    %3687 = vmatprep.subr.mxu0 0.0
    %3688 = vmatpush2.xpose.msra.mxu0 0.0
    %3689 = vmatprep.subr.mxu0 0.0
    %3690 = vmatpush2.xpose.msra.mxu0 0.0
    %3691 = vmatprep.subr.mxu0 0.0
    %3692 = vmatpush2.xpose.msra.mxu0 0.0
    %3693 = vmatprep.subr.mxu0 0.0
    %3694 = vmatpush2.xpose.msra.mxu0 0.0
    %3695 = vmatprep.subr.mxu0 0.0
    %3696 = vmatpush2.xpose.msra.mxu0 0.0
    %3697 = vmatprep.subr.mxu0 0.0
    %3698 = vmatpush2.xpose.msra.mxu0 0.0
    %3699 = vmatprep.subr.mxu0 0.0
    %3700 = vmatpush2.xpose.msra.mxu0 0.0
    %3701 = vmatprep.subr.mxu0 0.0
    %3702 = vmatpush2.xpose.msra.mxu0 0.0
    %3703 = vmatprep.subr.mxu0 0.0
    %3704 = vmatpush2.xpose.msra.mxu0 0.0
    %3705 = vmatprep.subr.mxu0 0.0
    %3706 = vmatpush2.xpose.msra.mxu0 0.0
    %3707 = vmatprep.subr.mxu0 0.0
    %3708 = vmatpush2.xpose.msra.mxu0 0.0
    %3709 = vmatprep.subr.mxu0 0.0
    %3710 = vmatpush2.xpose.msra.mxu0 0.0
    %3711 = vmatprep.subr.mxu0 0.0
    %3712 = vmatpush2.xpose.msra.mxu0 0.0
    %3713 = vmatprep.subr.mxu0 0.0
    %3714 = vmatpush2.xpose.msra.mxu0 0.0
    %3715 = vmatprep.subr.mxu0 0.0
    %3716 = vmatpush2.xpose.msra.mxu0 0.0
    %3717 = vmatprep.mubr.f32.mxu0 0.0
    %3718 = vmatmul.mubr.f32.gmra.mxu0 %v3642
    %v3719 = vpop.f32.mrf.mxu0
    %v3720 = vadd.f32 0.0, %v3719
    %v3721 = vpop.f32.mrf.mxu0
    %3722 = vmatprep.mubr.f32.mxu0 0.0
    %3723 = vmatmul.mubr.f32.gmra.mxu0 %v3645
    %v3724 = vpop.f32.mrf.mxu0
    %v3725 = vadd.f32 0.0, %v3724
    %v3726 = vpop.f32.mrf.mxu0
    %3727 = vdwg.mxu0
    %v3728 = vmul.f32 %v3720, 0.35355338
    %v3729 = vmul.f32 %v3725, 0.35355338
    %v3730 = vadd.f32 %v3728, %v273
    %v3731 = vadd.f32 %v3729, %v274
    %v3732 = vsel %vm678, %v3730, -inf
    %3733 = vmax.xlane.f32.xlu0 %v3732
    %v3734 = vpop.xlane.xlu0 %3733
    %v3735 = vsel %vm682, %v3731, -inf
    %3736 = vmax.xlane.f32.xlu0 %v3735
    %v3737 = vpop.xlane.xlu0 %3736
    %v3738 = vsub.f32 %v3730, %v3734
    %v3739 = vsub.f32 %v3731, %v3737
    %v3740 = vmul.f32 %v3738, 1.442695
    %v3741 = vpow.pop %v3740
    %v3742 = vmul.f32 %v3739, 1.442695
    %v3743 = vpow.pop %v3742
    %v3744 = vsel %vm678, %v3741, 0.0
    %3745 = vadd.xlane.f32.xlu0 %v3744
    %v3746 = vpop.xlane.xlu0 %3745
    %v3747 = vsel %vm682, %v3743, 0.0
    %3748 = vadd.xlane.f32.xlu0 %v3747
    %v3749 = vpop.xlane.xlu0 %3748
    %v3750 = vrcp.pop %v3746
    %v3751 = vrcp.pop %v3749
    %v3752 = vmul.f32 %v3741, %v3750
    %v3753 = vmul.f32 %v3743, %v3751
    %v3755 = vsel %vm678, %v3752, 0
    %v3758 = vsel %vm678, %v3753, 0
    %v3761 = vsel %vm708, %v3638, 0
    %3763 = vmatprep.subr.mxu0 0.0
    %3764 = vmatpush1.msra.mxu0 0.0
    %3765 = vmatprep.subr.mxu0 0.0
    %3766 = vmatpush1.msra.mxu0 0.0
    %3767 = vmatprep.subr.mxu0 0.0
    %3768 = vmatpush1.msra.mxu0 0.0
    %3769 = vmatprep.subr.mxu0 0.0
    %3770 = vmatpush1.msra.mxu0 0.0
    %3771 = vmatprep.subr.mxu0 0.0
    %3772 = vmatpush1.msra.mxu0 0.0
    %3773 = vmatprep.subr.mxu0 0.0
    %3774 = vmatpush1.msra.mxu0 0.0
    %3775 = vmatprep.subr.mxu0 0.0
    %3776 = vmatpush1.msra.mxu0 0.0
    %3777 = vmatprep.subr.mxu0 0.0
    %3778 = vmatpush1.msra.mxu0 0.0
    %3779 = vmatprep.subr.mxu0 0.0
    %3780 = vmatpush1.msra.mxu0 0.0
    %3781 = vmatprep.subr.mxu0 0.0
    %3782 = vmatpush1.msra.mxu0 0.0
    %3783 = vmatprep.subr.mxu0 0.0
    %3784 = vmatpush1.msra.mxu0 0.0
    %3785 = vmatprep.subr.mxu0 0.0
    %3786 = vmatpush1.msra.mxu0 0.0
    %3787 = vmatprep.subr.mxu0 0.0
    %3788 = vmatpush1.msra.mxu0 0.0
    %3789 = vmatprep.subr.mxu0 0.0
    %3790 = vmatpush1.msra.mxu0 0.0
    %3791 = vmatprep.subr.mxu0 0.0
    %3792 = vmatpush1.msra.mxu0 %v3761
    %3793 = vmatprep.subr.mxu0 0.0
    %3794 = vmatpush1.msra.mxu0 %v3633
    %3795 = vmatprep.subr.mxu0 0.0
    %3796 = vmatpush2.msra.mxu0 0.0
    %3797 = vmatprep.subr.mxu0 0.0
    %3798 = vmatpush2.msra.mxu0 0.0
    %3799 = vmatprep.subr.mxu0 0.0
    %3800 = vmatpush2.msra.mxu0 0.0
    %3801 = vmatprep.subr.mxu0 0.0
    %3802 = vmatpush2.msra.mxu0 0.0
    %3803 = vmatprep.subr.mxu0 0.0
    %3804 = vmatpush2.msra.mxu0 0.0
    %3805 = vmatprep.subr.mxu0 0.0
    %3806 = vmatpush2.msra.mxu0 0.0
    %3807 = vmatprep.subr.mxu0 0.0
    %3808 = vmatpush2.msra.mxu0 0.0
    %3809 = vmatprep.subr.mxu0 0.0
    %3810 = vmatpush2.msra.mxu0 0.0
    %3811 = vmatprep.subr.mxu0 0.0
    %3812 = vmatpush2.msra.mxu0 0.0
    %3813 = vmatprep.subr.mxu0 0.0
    %3814 = vmatpush2.msra.mxu0 0.0
    %3815 = vmatprep.subr.mxu0 0.0
    %3816 = vmatpush2.msra.mxu0 0.0
    %3817 = vmatprep.subr.mxu0 0.0
    %3818 = vmatpush2.msra.mxu0 0.0
    %3819 = vmatprep.subr.mxu0 0.0
    %3820 = vmatpush2.msra.mxu0 0.0
    %3821 = vmatprep.subr.mxu0 0.0
    %3822 = vmatpush2.msra.mxu0 0.0
    %3823 = vmatprep.subr.mxu0 0.0
    %3824 = vmatpush2.msra.mxu0 0.0
    %3825 = vmatprep.subr.mxu0 0.0
    %3826 = vmatpush2.msra.mxu0 0.0
    %3827 = vmatprep.mubr.f32.mxu0 0.0
    %3828 = vmatmul.mubr.f32.gmra.mxu0 %v3755
    %v3829 = vpop.f32.mrf.mxu0
    %v3830 = vadd.f32 0.0, %v3829
    %v3831 = vpop.f32.mrf.mxu0
    %3832 = vmatprep.mubr.f32.mxu0 0.0
    %3833 = vmatmul.mubr.f32.gmra.mxu0 %v3758
    %v3834 = vpop.f32.mrf.mxu0
    %v3835 = vadd.f32 0.0, %v3834
    %v3836 = vpop.f32.mrf.mxu0
    %3837 = vdwg.mxu0
    %s3838 = scalar_lea.vmem %s14, 40
    %v3839 = vld [vmem:[%s3838] sm:$0xff]
    %v3841 = vsel %vm189, %v3830, 0
    %v3844 = vsel %vm189, %v3835, 0
    %3846 = vmatprep.subr.mxu0 0.0
    %3847 = vmatpush1.msra.mxu0 0.0
    %3848 = vmatprep.subr.mxu0 0.0
    %3849 = vmatpush1.msra.mxu0 0.0
    %3850 = vmatprep.subr.mxu0 0.0
    %3851 = vmatpush1.msra.mxu0 0.0
    %3852 = vmatprep.subr.mxu0 0.0
    %3853 = vmatpush1.msra.mxu0 0.0
    %3854 = vmatprep.subr.mxu0 0.0
    %3855 = vmatpush1.msra.mxu0 0.0
    %3856 = vmatprep.subr.mxu0 0.0
    %3857 = vmatpush1.msra.mxu0 0.0
    %3858 = vmatprep.subr.mxu0 0.0
    %3859 = vmatpush1.msra.mxu0 0.0
    %3860 = vmatprep.subr.mxu0 0.0
    %3861 = vmatpush1.msra.mxu0 0.0
    %3862 = vmatprep.subr.mxu0 0.0
    %3863 = vmatpush1.msra.mxu0 0.0
    %3864 = vmatprep.subr.mxu0 0.0
    %3865 = vmatpush1.msra.mxu0 0.0
    %3866 = vmatprep.subr.mxu0 0.0
    %3867 = vmatpush1.msra.mxu0 0.0
    %3868 = vmatprep.subr.mxu0 0.0
    %3869 = vmatpush1.msra.mxu0 0.0
    %3870 = vmatprep.subr.mxu0 0.0
    %3871 = vmatpush1.msra.mxu0 0.0
    %3872 = vmatprep.subr.mxu0 0.0
    %3873 = vmatpush1.msra.mxu0 0.0
    %3874 = vmatprep.subr.mxu0 0.0
    %3875 = vmatpush1.msra.mxu0 0.0
    %3876 = vmatprep.subr.mxu0 0.0
    %3877 = vmatpush1.msra.mxu0 %v3839
    %3878 = vmatprep.subr.mxu0 0.0
    %3879 = vmatpush2.msra.mxu0 0.0
    %3880 = vmatprep.subr.mxu0 0.0
    %3881 = vmatpush2.msra.mxu0 0.0
    %3882 = vmatprep.subr.mxu0 0.0
    %3883 = vmatpush2.msra.mxu0 0.0
    %3884 = vmatprep.subr.mxu0 0.0
    %3885 = vmatpush2.msra.mxu0 0.0
    %3886 = vmatprep.subr.mxu0 0.0
    %3887 = vmatpush2.msra.mxu0 0.0
    %3888 = vmatprep.subr.mxu0 0.0
    %3889 = vmatpush2.msra.mxu0 0.0
    %3890 = vmatprep.subr.mxu0 0.0
    %3891 = vmatpush2.msra.mxu0 0.0
    %3892 = vmatprep.subr.mxu0 0.0
    %3893 = vmatpush2.msra.mxu0 0.0
    %3894 = vmatprep.subr.mxu0 0.0
    %3895 = vmatpush2.msra.mxu0 0.0
    %3896 = vmatprep.subr.mxu0 0.0
    %3897 = vmatpush2.msra.mxu0 0.0
    %3898 = vmatprep.subr.mxu0 0.0
    %3899 = vmatpush2.msra.mxu0 0.0
    %3900 = vmatprep.subr.mxu0 0.0
    %3901 = vmatpush2.msra.mxu0 0.0
    %3902 = vmatprep.subr.mxu0 0.0
    %3903 = vmatpush2.msra.mxu0 0.0
    %3904 = vmatprep.subr.mxu0 0.0
    %3905 = vmatpush2.msra.mxu0 0.0
    %3906 = vmatprep.subr.mxu0 0.0
    %3907 = vmatpush2.msra.mxu0 0.0
    %3908 = vmatprep.subr.mxu0 0.0
    %3909 = vmatpush2.msra.mxu0 0.0
    %3910 = vmatprep.mubr.f32.mxu0 0.0
    %3911 = vmatmul.mubr.f32.gmra.mxu0 %v3841
    %v3912 = vpop.f32.mrf.mxu0
    %v3913 = vadd.f32 0.0, %v3912
    %v3914 = vpop.f32.mrf.mxu0
    %3915 = vmatprep.mubr.f32.mxu0 0.0
    %3916 = vmatmul.mubr.f32.gmra.mxu0 %v3844
    %v3917 = vpop.f32.mrf.mxu0
    %v3918 = vadd.f32 0.0, %v3917
    %v3919 = vpop.f32.mrf.mxu0
    %3920 = vdwg.mxu0
    %v3921 = vadd.f32 %v3375, %v3913
    %v3922 = vadd.f32 %v3376, %v3918
    %s3923 = scalar_lea.vmem %s8, 192
    %v3924 = vld [vmem:[%s3923] sm:$0xff]
    %v3925 = vld [vmem:[%s3923 + $0x8] sm:$0xff]
    %v3926 = vld [vmem:[%s3923 + $0x10] sm:$0xff]
    %v3927 = vld [vmem:[%s3923 + $0x18] sm:$0xff]
    %s3928 = scalar_lea.vmem %s11, 6
    %v3929 = vld [vmem:[%s3928] sm:$0x1]
    %v3931 = vlaneseq
    %v3932 = vshrl.u32 %v3931, 7
    %v3933 = vsub.s32 0, %v3932
    %v3934 = vrot.slane %v3929, %v3933
    %3936 = vmatprep.subr.mxu0 0.0
    %3937 = vmatpush1.msra.mxu0 0.0
    %3938 = vmatprep.subr.mxu0 0.0
    %3939 = vmatpush1.msra.mxu0 0.0
    %3940 = vmatprep.subr.mxu0 0.0
    %3941 = vmatpush1.msra.mxu0 0.0
    %3942 = vmatprep.subr.mxu0 0.0
    %3943 = vmatpush1.msra.mxu0 0.0
    %3944 = vmatprep.subr.mxu0 0.0
    %3945 = vmatpush1.msra.mxu0 0.0
    %3946 = vmatprep.subr.mxu0 0.0
    %3947 = vmatpush1.msra.mxu0 0.0
    %3948 = vmatprep.subr.mxu0 0.0
    %3949 = vmatpush1.msra.mxu0 0.0
    %3950 = vmatprep.subr.mxu0 0.0
    %3951 = vmatpush1.msra.mxu0 0.0
    %3952 = vmatprep.subr.mxu0 0.0
    %3953 = vmatpush1.msra.mxu0 0.0
    %3954 = vmatprep.subr.mxu0 0.0
    %3955 = vmatpush1.msra.mxu0 0.0
    %3956 = vmatprep.subr.mxu0 0.0
    %3957 = vmatpush1.msra.mxu0 0.0
    %3958 = vmatprep.subr.mxu0 0.0
    %3959 = vmatpush1.msra.mxu0 0.0
    %3960 = vmatprep.subr.mxu0 0.0
    %3961 = vmatpush1.msra.mxu0 %v3927
    %3962 = vmatprep.subr.mxu0 0.0
    %3963 = vmatpush1.msra.mxu0 %v3926
    %3964 = vmatprep.subr.mxu0 0.0
    %3965 = vmatpush1.msra.mxu0 %v3925
    %3966 = vmatprep.subr.mxu0 0.0
    %3967 = vmatpush1.msra.mxu0 %v3924
    %3968 = vmatprep.subr.mxu0 0.0
    %3969 = vmatpush2.msra.mxu0 0.0
    %3970 = vmatprep.subr.mxu0 0.0
    %3971 = vmatpush2.msra.mxu0 0.0
    %3972 = vmatprep.subr.mxu0 0.0
    %3973 = vmatpush2.msra.mxu0 0.0
    %3974 = vmatprep.subr.mxu0 0.0
    %3975 = vmatpush2.msra.mxu0 0.0
    %3976 = vmatprep.subr.mxu0 0.0
    %3977 = vmatpush2.msra.mxu0 0.0
    %3978 = vmatprep.subr.mxu0 0.0
    %3979 = vmatpush2.msra.mxu0 0.0
    %3980 = vmatprep.subr.mxu0 0.0
    %3981 = vmatpush2.msra.mxu0 0.0
    %3982 = vmatprep.subr.mxu0 0.0
    %3983 = vmatpush2.msra.mxu0 0.0
    %3984 = vmatprep.subr.mxu0 0.0
    %3985 = vmatpush2.msra.mxu0 0.0
    %3986 = vmatprep.subr.mxu0 0.0
    %3987 = vmatpush2.msra.mxu0 0.0
    %3988 = vmatprep.subr.mxu0 0.0
    %3989 = vmatpush2.msra.mxu0 0.0
    %3990 = vmatprep.subr.mxu0 0.0
    %3991 = vmatpush2.msra.mxu0 0.0
    %3992 = vmatprep.subr.mxu0 0.0
    %3993 = vmatpush2.msra.mxu0 0.0
    %3994 = vmatprep.subr.mxu0 0.0
    %3995 = vmatpush2.msra.mxu0 0.0
    %3996 = vmatprep.subr.mxu0 0.0
    %3997 = vmatpush2.msra.mxu0 0.0
    %3998 = vmatprep.subr.mxu0 0.0
    %3999 = vmatpush2.msra.mxu0 0.0
    %4000 = vmatprep.mubr.f32.mxu0 0.0
    %4001 = vmatmul.mubr.f32.gmra.mxu0 %v2833
    %v4002 = vpop.f32.mrf.mxu0
    %v4003 = vadd.f32 %v3934, %v4002
    %v4004 = vpop.f32.mrf.mxu0
    %4005 = vmatprep.mubr.f32.mxu0 0.0
    %4006 = vmatmul.mubr.f32.gmra.mxu0 %v2836
    %v4007 = vpop.f32.mrf.mxu0
    %v4008 = vadd.f32 %v3934, %v4007
    %v4009 = vpop.f32.mrf.mxu0
    %4010 = vdwg.mxu0
    %s4011 = scalar_lea.vmem %s9, 192
    %v4012 = vld [vmem:[%s4011] sm:$0xff]
    %v4013 = vld [vmem:[%s4011 + $0x8] sm:$0xff]
    %v4014 = vld [vmem:[%s4011 + $0x10] sm:$0xff]
    %v4015 = vld [vmem:[%s4011 + $0x18] sm:$0xff]
    %s4016 = scalar_lea.vmem %s12, 6
    %v4017 = vld [vmem:[%s4016] sm:$0x1]
    %v4019 = vlaneseq
    %v4020 = vshrl.u32 %v4019, 7
    %v4021 = vsub.s32 0, %v4020
    %v4022 = vrot.slane %v4017, %v4021
    %4024 = vmatprep.subr.mxu0 0.0
    %4025 = vmatpush1.msra.mxu0 0.0
    %4026 = vmatprep.subr.mxu0 0.0
    %4027 = vmatpush1.msra.mxu0 0.0
    %4028 = vmatprep.subr.mxu0 0.0
    %4029 = vmatpush1.msra.mxu0 0.0
    %4030 = vmatprep.subr.mxu0 0.0
    %4031 = vmatpush1.msra.mxu0 0.0
    %4032 = vmatprep.subr.mxu0 0.0
    %4033 = vmatpush1.msra.mxu0 0.0
    %4034 = vmatprep.subr.mxu0 0.0
    %4035 = vmatpush1.msra.mxu0 0.0
    %4036 = vmatprep.subr.mxu0 0.0
    %4037 = vmatpush1.msra.mxu0 0.0
    %4038 = vmatprep.subr.mxu0 0.0
    %4039 = vmatpush1.msra.mxu0 0.0
    %4040 = vmatprep.subr.mxu0 0.0
    %4041 = vmatpush1.msra.mxu0 0.0
    %4042 = vmatprep.subr.mxu0 0.0
    %4043 = vmatpush1.msra.mxu0 0.0
    %4044 = vmatprep.subr.mxu0 0.0
    %4045 = vmatpush1.msra.mxu0 0.0
    %4046 = vmatprep.subr.mxu0 0.0
    %4047 = vmatpush1.msra.mxu0 0.0
    %4048 = vmatprep.subr.mxu0 0.0
    %4049 = vmatpush1.msra.mxu0 %v4015
    %4050 = vmatprep.subr.mxu0 0.0
    %4051 = vmatpush1.msra.mxu0 %v4014
    %4052 = vmatprep.subr.mxu0 0.0
    %4053 = vmatpush1.msra.mxu0 %v4013
    %4054 = vmatprep.subr.mxu0 0.0
    %4055 = vmatpush1.msra.mxu0 %v4012
    %4056 = vmatprep.subr.mxu0 0.0
    %4057 = vmatpush2.msra.mxu0 0.0
    %4058 = vmatprep.subr.mxu0 0.0
    %4059 = vmatpush2.msra.mxu0 0.0
    %4060 = vmatprep.subr.mxu0 0.0
    %4061 = vmatpush2.msra.mxu0 0.0
    %4062 = vmatprep.subr.mxu0 0.0
    %4063 = vmatpush2.msra.mxu0 0.0
    %4064 = vmatprep.subr.mxu0 0.0
    %4065 = vmatpush2.msra.mxu0 0.0
    %4066 = vmatprep.subr.mxu0 0.0
    %4067 = vmatpush2.msra.mxu0 0.0
    %4068 = vmatprep.subr.mxu0 0.0
    %4069 = vmatpush2.msra.mxu0 0.0
    %4070 = vmatprep.subr.mxu0 0.0
    %4071 = vmatpush2.msra.mxu0 0.0
    %4072 = vmatprep.subr.mxu0 0.0
    %4073 = vmatpush2.msra.mxu0 0.0
    %4074 = vmatprep.subr.mxu0 0.0
    %4075 = vmatpush2.msra.mxu0 0.0
    %4076 = vmatprep.subr.mxu0 0.0
    %4077 = vmatpush2.msra.mxu0 0.0
    %4078 = vmatprep.subr.mxu0 0.0
    %4079 = vmatpush2.msra.mxu0 0.0
    %4080 = vmatprep.subr.mxu0 0.0
    %4081 = vmatpush2.msra.mxu0 0.0
    %4082 = vmatprep.subr.mxu0 0.0
    %4083 = vmatpush2.msra.mxu0 0.0
    %4084 = vmatprep.subr.mxu0 0.0
    %4085 = vmatpush2.msra.mxu0 0.0
    %4086 = vmatprep.subr.mxu0 0.0
    %4087 = vmatpush2.msra.mxu0 0.0
    %4088 = vmatprep.mubr.f32.mxu0 0.0
    %4089 = vmatmul.mubr.f32.gmra.mxu0 %v2833
    %v4090 = vpop.f32.mrf.mxu0
    %v4091 = vadd.f32 %v4022, %v4090
    %v4092 = vpop.f32.mrf.mxu0
    %4093 = vmatprep.mubr.f32.mxu0 0.0
    %4094 = vmatmul.mubr.f32.gmra.mxu0 %v2836
    %v4095 = vpop.f32.mrf.mxu0
    %v4096 = vadd.f32 %v4022, %v4095
    %v4097 = vpop.f32.mrf.mxu0
    %4098 = vdwg.mxu0
    %s4099 = scalar_lea.vmem %s10, 192
    %v4100 = vld [vmem:[%s4099] sm:$0xff]
    %v4101 = vld [vmem:[%s4099 + $0x8] sm:$0xff]
    %v4102 = vld [vmem:[%s4099 + $0x10] sm:$0xff]
    %v4103 = vld [vmem:[%s4099 + $0x18] sm:$0xff]
    %s4104 = scalar_lea.vmem %s13, 6
    %v4105 = vld [vmem:[%s4104] sm:$0x1]
    %v4107 = vlaneseq
    %v4108 = vshrl.u32 %v4107, 7
    %v4109 = vsub.s32 0, %v4108
    %v4110 = vrot.slane %v4105, %v4109
    %4112 = vmatprep.subr.mxu0 0.0
    %4113 = vmatpush1.msra.mxu0 0.0
    %4114 = vmatprep.subr.mxu0 0.0
    %4115 = vmatpush1.msra.mxu0 0.0
    %4116 = vmatprep.subr.mxu0 0.0
    %4117 = vmatpush1.msra.mxu0 0.0
    %4118 = vmatprep.subr.mxu0 0.0
    %4119 = vmatpush1.msra.mxu0 0.0
    %4120 = vmatprep.subr.mxu0 0.0
    %4121 = vmatpush1.msra.mxu0 0.0
    %4122 = vmatprep.subr.mxu0 0.0
    %4123 = vmatpush1.msra.mxu0 0.0
    %4124 = vmatprep.subr.mxu0 0.0
    %4125 = vmatpush1.msra.mxu0 0.0
    %4126 = vmatprep.subr.mxu0 0.0
    %4127 = vmatpush1.msra.mxu0 0.0
    %4128 = vmatprep.subr.mxu0 0.0
    %4129 = vmatpush1.msra.mxu0 0.0
    %4130 = vmatprep.subr.mxu0 0.0
    %4131 = vmatpush1.msra.mxu0 0.0
    %4132 = vmatprep.subr.mxu0 0.0
    %4133 = vmatpush1.msra.mxu0 0.0
    %4134 = vmatprep.subr.mxu0 0.0
    %4135 = vmatpush1.msra.mxu0 0.0
    %4136 = vmatprep.subr.mxu0 0.0
    %4137 = vmatpush1.msra.mxu0 %v4103
    %4138 = vmatprep.subr.mxu0 0.0
    %4139 = vmatpush1.msra.mxu0 %v4102
    %4140 = vmatprep.subr.mxu0 0.0
    %4141 = vmatpush1.msra.mxu0 %v4101
    %4142 = vmatprep.subr.mxu0 0.0
    %4143 = vmatpush1.msra.mxu0 %v4100
    %4144 = vmatprep.subr.mxu0 0.0
    %4145 = vmatpush2.msra.mxu0 0.0
    %4146 = vmatprep.subr.mxu0 0.0
    %4147 = vmatpush2.msra.mxu0 0.0
    %4148 = vmatprep.subr.mxu0 0.0
    %4149 = vmatpush2.msra.mxu0 0.0
    %4150 = vmatprep.subr.mxu0 0.0
    %4151 = vmatpush2.msra.mxu0 0.0
    %4152 = vmatprep.subr.mxu0 0.0
    %4153 = vmatpush2.msra.mxu0 0.0
    %4154 = vmatprep.subr.mxu0 0.0
    %4155 = vmatpush2.msra.mxu0 0.0
    %4156 = vmatprep.subr.mxu0 0.0
    %4157 = vmatpush2.msra.mxu0 0.0
    %4158 = vmatprep.subr.mxu0 0.0
    %4159 = vmatpush2.msra.mxu0 0.0
    %4160 = vmatprep.subr.mxu0 0.0
    %4161 = vmatpush2.msra.mxu0 0.0
    %4162 = vmatprep.subr.mxu0 0.0
    %4163 = vmatpush2.msra.mxu0 0.0
    %4164 = vmatprep.subr.mxu0 0.0
    %4165 = vmatpush2.msra.mxu0 0.0
    %4166 = vmatprep.subr.mxu0 0.0
    %4167 = vmatpush2.msra.mxu0 0.0
    %4168 = vmatprep.subr.mxu0 0.0
    %4169 = vmatpush2.msra.mxu0 0.0
    %4170 = vmatprep.subr.mxu0 0.0
    %4171 = vmatpush2.msra.mxu0 0.0
    %4172 = vmatprep.subr.mxu0 0.0
    %4173 = vmatpush2.msra.mxu0 0.0
    %4174 = vmatprep.subr.mxu0 0.0
    %4175 = vmatpush2.msra.mxu0 0.0
    %4176 = vmatprep.mubr.f32.mxu0 0.0
    %4177 = vmatmul.mubr.f32.gmra.mxu0 %v2833
    %v4178 = vpop.f32.mrf.mxu0
    %v4179 = vadd.f32 %v4110, %v4178
    %v4180 = vpop.f32.mrf.mxu0
    %4181 = vmatprep.mubr.f32.mxu0 0.0
    %4182 = vmatmul.mubr.f32.gmra.mxu0 %v2836
    %v4183 = vpop.f32.mrf.mxu0
    %v4184 = vadd.f32 %v4110, %v4183
    %v4185 = vpop.f32.mrf.mxu0
    %4186 = vdwg.mxu0
    %v4188 = vsel %vm189, %v4003, 0
    %v4191 = vsel %vm189, %v4008, 0
    %v4194 = vsel %vm189, %v4091, 0
    %v4197 = vsel %vm189, %v4096, 0
    %4199 = vmatprep.subr.mxu0 0.0
    %4200 = vmatpush1.xpose.msra.mxu0 0.0
    %4201 = vmatprep.subr.mxu0 0.0
    %4202 = vmatpush1.xpose.msra.mxu0 0.0
    %4203 = vmatprep.subr.mxu0 0.0
    %4204 = vmatpush1.xpose.msra.mxu0 0.0
    %4205 = vmatprep.subr.mxu0 0.0
    %4206 = vmatpush1.xpose.msra.mxu0 0.0
    %4207 = vmatprep.subr.mxu0 0.0
    %4208 = vmatpush1.xpose.msra.mxu0 0.0
    %4209 = vmatprep.subr.mxu0 0.0
    %4210 = vmatpush1.xpose.msra.mxu0 0.0
    %4211 = vmatprep.subr.mxu0 0.0
    %4212 = vmatpush1.xpose.msra.mxu0 0.0
    %4213 = vmatprep.subr.mxu0 0.0
    %4214 = vmatpush1.xpose.msra.mxu0 0.0
    %4215 = vmatprep.subr.mxu0 0.0
    %4216 = vmatpush1.xpose.msra.mxu0 0.0
    %4217 = vmatprep.subr.mxu0 0.0
    %4218 = vmatpush1.xpose.msra.mxu0 0.0
    %4219 = vmatprep.subr.mxu0 0.0
    %4220 = vmatpush1.xpose.msra.mxu0 0.0
    %4221 = vmatprep.subr.mxu0 0.0
    %4222 = vmatpush1.xpose.msra.mxu0 0.0
    %4223 = vmatprep.subr.mxu0 0.0
    %4224 = vmatpush1.xpose.msra.mxu0 0.0
    %4225 = vmatprep.subr.mxu0 0.0
    %4226 = vmatpush1.xpose.msra.mxu0 0.0
    %4227 = vmatprep.subr.mxu0 0.0
    %4228 = vmatpush1.xpose.msra.mxu0 %v4197
    %4229 = vmatprep.subr.mxu0 0.0
    %4230 = vmatpush1.xpose.msra.mxu0 %v4194
    %4231 = vmatprep.subr.mxu0 0.0
    %4232 = vmatpush2.xpose.msra.mxu0 0.0
    %4233 = vmatprep.subr.mxu0 0.0
    %4234 = vmatpush2.xpose.msra.mxu0 0.0
    %4235 = vmatprep.subr.mxu0 0.0
    %4236 = vmatpush2.xpose.msra.mxu0 0.0
    %4237 = vmatprep.subr.mxu0 0.0
    %4238 = vmatpush2.xpose.msra.mxu0 0.0
    %4239 = vmatprep.subr.mxu0 0.0
    %4240 = vmatpush2.xpose.msra.mxu0 0.0
    %4241 = vmatprep.subr.mxu0 0.0
    %4242 = vmatpush2.xpose.msra.mxu0 0.0
    %4243 = vmatprep.subr.mxu0 0.0
    %4244 = vmatpush2.xpose.msra.mxu0 0.0
    %4245 = vmatprep.subr.mxu0 0.0
    %4246 = vmatpush2.xpose.msra.mxu0 0.0
    %4247 = vmatprep.subr.mxu0 0.0
    %4248 = vmatpush2.xpose.msra.mxu0 0.0
    %4249 = vmatprep.subr.mxu0 0.0
    %4250 = vmatpush2.xpose.msra.mxu0 0.0
    %4251 = vmatprep.subr.mxu0 0.0
    %4252 = vmatpush2.xpose.msra.mxu0 0.0
    %4253 = vmatprep.subr.mxu0 0.0
    %4254 = vmatpush2.xpose.msra.mxu0 0.0
    %4255 = vmatprep.subr.mxu0 0.0
    %4256 = vmatpush2.xpose.msra.mxu0 0.0
    %4257 = vmatprep.subr.mxu0 0.0
    %4258 = vmatpush2.xpose.msra.mxu0 0.0
    %4259 = vmatprep.subr.mxu0 0.0
    %4260 = vmatpush2.xpose.msra.mxu0 0.0
    %4261 = vmatprep.subr.mxu0 0.0
    %4262 = vmatpush2.xpose.msra.mxu0 0.0
    %4263 = vmatprep.mubr.f32.mxu0 0.0
    %4264 = vmatmul.mubr.f32.gmra.mxu0 %v4188
    %v4265 = vpop.f32.mrf.mxu0
    %v4266 = vadd.f32 0.0, %v4265
    %v4267 = vpop.f32.mrf.mxu0
    %4268 = vmatprep.mubr.f32.mxu0 0.0
    %4269 = vmatmul.mubr.f32.gmra.mxu0 %v4191
    %v4270 = vpop.f32.mrf.mxu0
    %v4271 = vadd.f32 0.0, %v4270
    %v4272 = vpop.f32.mrf.mxu0
    %4273 = vdwg.mxu0
    %v4274 = vmul.f32 %v4266, 0.35355338
    %v4275 = vmul.f32 %v4271, 0.35355338
    %v4276 = vadd.f32 %v4274, %v273
    %v4277 = vadd.f32 %v4275, %v274
    %v4278 = vsel %vm678, %v4276, -inf
    %4279 = vmax.xlane.f32.xlu0 %v4278
    %v4280 = vpop.xlane.xlu0 %4279
    %v4281 = vsel %vm682, %v4277, -inf
    %4282 = vmax.xlane.f32.xlu0 %v4281
    %v4283 = vpop.xlane.xlu0 %4282
    %v4284 = vsub.f32 %v4276, %v4280
    %v4285 = vsub.f32 %v4277, %v4283
    %v4286 = vmul.f32 %v4284, 1.442695
    %v4287 = vpow.pop %v4286
    %v4288 = vmul.f32 %v4285, 1.442695
    %v4289 = vpow.pop %v4288
    %v4290 = vsel %vm678, %v4287, 0.0
    %4291 = vadd.xlane.f32.xlu0 %v4290
    %v4292 = vpop.xlane.xlu0 %4291
    %v4293 = vsel %vm682, %v4289, 0.0
    %4294 = vadd.xlane.f32.xlu0 %v4293
    %v4295 = vpop.xlane.xlu0 %4294
    %v4296 = vrcp.pop %v4292
    %v4297 = vrcp.pop %v4295
    %v4298 = vmul.f32 %v4287, %v4296
    %v4299 = vmul.f32 %v4289, %v4297
    %v4301 = vsel %vm678, %v4298, 0
    %v4304 = vsel %vm678, %v4299, 0
    %v4307 = vsel %vm708, %v4184, 0
    %4309 = vmatprep.subr.mxu0 0.0
    %4310 = vmatpush1.msra.mxu0 0.0
    %4311 = vmatprep.subr.mxu0 0.0
    %4312 = vmatpush1.msra.mxu0 0.0
    %4313 = vmatprep.subr.mxu0 0.0
    %4314 = vmatpush1.msra.mxu0 0.0
    %4315 = vmatprep.subr.mxu0 0.0
    %4316 = vmatpush1.msra.mxu0 0.0
    %4317 = vmatprep.subr.mxu0 0.0
    %4318 = vmatpush1.msra.mxu0 0.0
    %4319 = vmatprep.subr.mxu0 0.0
    %4320 = vmatpush1.msra.mxu0 0.0
    %4321 = vmatprep.subr.mxu0 0.0
    %4322 = vmatpush1.msra.mxu0 0.0
    %4323 = vmatprep.subr.mxu0 0.0
    %4324 = vmatpush1.msra.mxu0 0.0
    %4325 = vmatprep.subr.mxu0 0.0
    %4326 = vmatpush1.msra.mxu0 0.0
    %4327 = vmatprep.subr.mxu0 0.0
    %4328 = vmatpush1.msra.mxu0 0.0
    %4329 = vmatprep.subr.mxu0 0.0
    %4330 = vmatpush1.msra.mxu0 0.0
    %4331 = vmatprep.subr.mxu0 0.0
    %4332 = vmatpush1.msra.mxu0 0.0
    %4333 = vmatprep.subr.mxu0 0.0
    %4334 = vmatpush1.msra.mxu0 0.0
    %4335 = vmatprep.subr.mxu0 0.0
    %4336 = vmatpush1.msra.mxu0 0.0
    %4337 = vmatprep.subr.mxu0 0.0
    %4338 = vmatpush1.msra.mxu0 %v4307
    %4339 = vmatprep.subr.mxu0 0.0
    %4340 = vmatpush1.msra.mxu0 %v4179
    %4341 = vmatprep.subr.mxu0 0.0
    %4342 = vmatpush2.msra.mxu0 0.0
    %4343 = vmatprep.subr.mxu0 0.0
    %4344 = vmatpush2.msra.mxu0 0.0
    %4345 = vmatprep.subr.mxu0 0.0
    %4346 = vmatpush2.msra.mxu0 0.0
    %4347 = vmatprep.subr.mxu0 0.0
    %4348 = vmatpush2.msra.mxu0 0.0
    %4349 = vmatprep.subr.mxu0 0.0
    %4350 = vmatpush2.msra.mxu0 0.0
    %4351 = vmatprep.subr.mxu0 0.0
    %4352 = vmatpush2.msra.mxu0 0.0
    %4353 = vmatprep.subr.mxu0 0.0
    %4354 = vmatpush2.msra.mxu0 0.0
    %4355 = vmatprep.subr.mxu0 0.0
    %4356 = vmatpush2.msra.mxu0 0.0
    %4357 = vmatprep.subr.mxu0 0.0
    %4358 = vmatpush2.msra.mxu0 0.0
    %4359 = vmatprep.subr.mxu0 0.0
    %4360 = vmatpush2.msra.mxu0 0.0
    %4361 = vmatprep.subr.mxu0 0.0
    %4362 = vmatpush2.msra.mxu0 0.0
    %4363 = vmatprep.subr.mxu0 0.0
    %4364 = vmatpush2.msra.mxu0 0.0
    %4365 = vmatprep.subr.mxu0 0.0
    %4366 = vmatpush2.msra.mxu0 0.0
    %4367 = vmatprep.subr.mxu0 0.0
    %4368 = vmatpush2.msra.mxu0 0.0
    %4369 = vmatprep.subr.mxu0 0.0
    %4370 = vmatpush2.msra.mxu0 0.0
    %4371 = vmatprep.subr.mxu0 0.0
    %4372 = vmatpush2.msra.mxu0 0.0
    %4373 = vmatprep.mubr.f32.mxu0 0.0
    %4374 = vmatmul.mubr.f32.gmra.mxu0 %v4301
    %v4375 = vpop.f32.mrf.mxu0
    %v4376 = vadd.f32 0.0, %v4375
    %v4377 = vpop.f32.mrf.mxu0
    %4378 = vmatprep.mubr.f32.mxu0 0.0
    %4379 = vmatmul.mubr.f32.gmra.mxu0 %v4304
    %v4380 = vpop.f32.mrf.mxu0
    %v4381 = vadd.f32 0.0, %v4380
    %v4382 = vpop.f32.mrf.mxu0
    %4383 = vdwg.mxu0
    %s4384 = scalar_lea.vmem %s14, 48
    %v4385 = vld [vmem:[%s4384] sm:$0xff]
    %v4387 = vsel %vm189, %v4376, 0
    %v4390 = vsel %vm189, %v4381, 0
    %4392 = vmatprep.subr.mxu0 0.0
    %4393 = vmatpush1.msra.mxu0 0.0
    %4394 = vmatprep.subr.mxu0 0.0
    %4395 = vmatpush1.msra.mxu0 0.0
    %4396 = vmatprep.subr.mxu0 0.0
    %4397 = vmatpush1.msra.mxu0 0.0
    %4398 = vmatprep.subr.mxu0 0.0
    %4399 = vmatpush1.msra.mxu0 0.0
    %4400 = vmatprep.subr.mxu0 0.0
    %4401 = vmatpush1.msra.mxu0 0.0
    %4402 = vmatprep.subr.mxu0 0.0
    %4403 = vmatpush1.msra.mxu0 0.0
    %4404 = vmatprep.subr.mxu0 0.0
    %4405 = vmatpush1.msra.mxu0 0.0
    %4406 = vmatprep.subr.mxu0 0.0
    %4407 = vmatpush1.msra.mxu0 0.0
    %4408 = vmatprep.subr.mxu0 0.0
    %4409 = vmatpush1.msra.mxu0 0.0
    %4410 = vmatprep.subr.mxu0 0.0
    %4411 = vmatpush1.msra.mxu0 0.0
    %4412 = vmatprep.subr.mxu0 0.0
    %4413 = vmatpush1.msra.mxu0 0.0
    %4414 = vmatprep.subr.mxu0 0.0
    %4415 = vmatpush1.msra.mxu0 0.0
    %4416 = vmatprep.subr.mxu0 0.0
    %4417 = vmatpush1.msra.mxu0 0.0
    %4418 = vmatprep.subr.mxu0 0.0
    %4419 = vmatpush1.msra.mxu0 0.0
    %4420 = vmatprep.subr.mxu0 0.0
    %4421 = vmatpush1.msra.mxu0 0.0
    %4422 = vmatprep.subr.mxu0 0.0
    %4423 = vmatpush1.msra.mxu0 %v4385
    %4424 = vmatprep.subr.mxu0 0.0
    %4425 = vmatpush2.msra.mxu0 0.0
    %4426 = vmatprep.subr.mxu0 0.0
    %4427 = vmatpush2.msra.mxu0 0.0
    %4428 = vmatprep.subr.mxu0 0.0
    %4429 = vmatpush2.msra.mxu0 0.0
    %4430 = vmatprep.subr.mxu0 0.0
    %4431 = vmatpush2.msra.mxu0 0.0
    %4432 = vmatprep.subr.mxu0 0.0
    %4433 = vmatpush2.msra.mxu0 0.0
    %4434 = vmatprep.subr.mxu0 0.0
    %4435 = vmatpush2.msra.mxu0 0.0
    %4436 = vmatprep.subr.mxu0 0.0
    %4437 = vmatpush2.msra.mxu0 0.0
    %4438 = vmatprep.subr.mxu0 0.0
    %4439 = vmatpush2.msra.mxu0 0.0
    %4440 = vmatprep.subr.mxu0 0.0
    %4441 = vmatpush2.msra.mxu0 0.0
    %4442 = vmatprep.subr.mxu0 0.0
    %4443 = vmatpush2.msra.mxu0 0.0
    %4444 = vmatprep.subr.mxu0 0.0
    %4445 = vmatpush2.msra.mxu0 0.0
    %4446 = vmatprep.subr.mxu0 0.0
    %4447 = vmatpush2.msra.mxu0 0.0
    %4448 = vmatprep.subr.mxu0 0.0
    %4449 = vmatpush2.msra.mxu0 0.0
    %4450 = vmatprep.subr.mxu0 0.0
    %4451 = vmatpush2.msra.mxu0 0.0
    %4452 = vmatprep.subr.mxu0 0.0
    %4453 = vmatpush2.msra.mxu0 0.0
    %4454 = vmatprep.subr.mxu0 0.0
    %4455 = vmatpush2.msra.mxu0 0.0
    %4456 = vmatprep.mubr.f32.mxu0 0.0
    %4457 = vmatmul.mubr.f32.gmra.mxu0 %v4387
    %v4458 = vpop.f32.mrf.mxu0
    %v4459 = vadd.f32 0.0, %v4458
    %v4460 = vpop.f32.mrf.mxu0
    %4461 = vmatprep.mubr.f32.mxu0 0.0
    %4462 = vmatmul.mubr.f32.gmra.mxu0 %v4390
    %v4463 = vpop.f32.mrf.mxu0
    %v4464 = vadd.f32 0.0, %v4463
    %v4465 = vpop.f32.mrf.mxu0
    %4466 = vdwg.mxu0
    %v4467 = vadd.f32 %v3921, %v4459
    %v4468 = vadd.f32 %v3922, %v4464
    %s4469 = scalar_lea.vmem %s8, 224
    %v4470 = vld [vmem:[%s4469] sm:$0xff]
    %v4471 = vld [vmem:[%s4469 + $0x8] sm:$0xff]
    %v4472 = vld [vmem:[%s4469 + $0x10] sm:$0xff]
    %v4473 = vld [vmem:[%s4469 + $0x18] sm:$0xff]
    %s4474 = scalar_lea.vmem %s11, 7
    %v4475 = vld [vmem:[%s4474] sm:$0x1]
    %v4477 = vlaneseq
    %v4478 = vshrl.u32 %v4477, 7
    %v4479 = vsub.s32 0, %v4478
    %v4480 = vrot.slane %v4475, %v4479
    %4482 = vmatprep.subr.mxu0 0.0
    %4483 = vmatpush1.msra.mxu0 0.0
    %4484 = vmatprep.subr.mxu0 0.0
    %4485 = vmatpush1.msra.mxu0 0.0
    %4486 = vmatprep.subr.mxu0 0.0
    %4487 = vmatpush1.msra.mxu0 0.0
    %4488 = vmatprep.subr.mxu0 0.0
    %4489 = vmatpush1.msra.mxu0 0.0
    %4490 = vmatprep.subr.mxu0 0.0
    %4491 = vmatpush1.msra.mxu0 0.0
    %4492 = vmatprep.subr.mxu0 0.0
    %4493 = vmatpush1.msra.mxu0 0.0
    %4494 = vmatprep.subr.mxu0 0.0
    %4495 = vmatpush1.msra.mxu0 0.0
    %4496 = vmatprep.subr.mxu0 0.0
    %4497 = vmatpush1.msra.mxu0 0.0
    %4498 = vmatprep.subr.mxu0 0.0
    %4499 = vmatpush1.msra.mxu0 0.0
    %4500 = vmatprep.subr.mxu0 0.0
    %4501 = vmatpush1.msra.mxu0 0.0
    %4502 = vmatprep.subr.mxu0 0.0
    %4503 = vmatpush1.msra.mxu0 0.0
    %4504 = vmatprep.subr.mxu0 0.0
    %4505 = vmatpush1.msra.mxu0 0.0
    %4506 = vmatprep.subr.mxu0 0.0
    %4507 = vmatpush1.msra.mxu0 %v4473
    %4508 = vmatprep.subr.mxu0 0.0
    %4509 = vmatpush1.msra.mxu0 %v4472
    %4510 = vmatprep.subr.mxu0 0.0
    %4511 = vmatpush1.msra.mxu0 %v4471
    %4512 = vmatprep.subr.mxu0 0.0
    %4513 = vmatpush1.msra.mxu0 %v4470
    %4514 = vmatprep.subr.mxu0 0.0
    %4515 = vmatpush2.msra.mxu0 0.0
    %4516 = vmatprep.subr.mxu0 0.0
    %4517 = vmatpush2.msra.mxu0 0.0
    %4518 = vmatprep.subr.mxu0 0.0
    %4519 = vmatpush2.msra.mxu0 0.0
    %4520 = vmatprep.subr.mxu0 0.0
    %4521 = vmatpush2.msra.mxu0 0.0
    %4522 = vmatprep.subr.mxu0 0.0
    %4523 = vmatpush2.msra.mxu0 0.0
    %4524 = vmatprep.subr.mxu0 0.0
    %4525 = vmatpush2.msra.mxu0 0.0
    %4526 = vmatprep.subr.mxu0 0.0
    %4527 = vmatpush2.msra.mxu0 0.0
    %4528 = vmatprep.subr.mxu0 0.0
    %4529 = vmatpush2.msra.mxu0 0.0
    %4530 = vmatprep.subr.mxu0 0.0
    %4531 = vmatpush2.msra.mxu0 0.0
    %4532 = vmatprep.subr.mxu0 0.0
    %4533 = vmatpush2.msra.mxu0 0.0
    %4534 = vmatprep.subr.mxu0 0.0
    %4535 = vmatpush2.msra.mxu0 0.0
    %4536 = vmatprep.subr.mxu0 0.0
    %4537 = vmatpush2.msra.mxu0 0.0
    %4538 = vmatprep.subr.mxu0 0.0
    %4539 = vmatpush2.msra.mxu0 0.0
    %4540 = vmatprep.subr.mxu0 0.0
    %4541 = vmatpush2.msra.mxu0 0.0
    %4542 = vmatprep.subr.mxu0 0.0
    %4543 = vmatpush2.msra.mxu0 0.0
    %4544 = vmatprep.subr.mxu0 0.0
    %4545 = vmatpush2.msra.mxu0 0.0
    %4546 = vmatprep.mubr.f32.mxu0 0.0
    %4547 = vmatmul.mubr.f32.gmra.mxu0 %v2833
    %v4548 = vpop.f32.mrf.mxu0
    %v4549 = vadd.f32 %v4480, %v4548
    %v4550 = vpop.f32.mrf.mxu0
    %4551 = vmatprep.mubr.f32.mxu0 0.0
    %4552 = vmatmul.mubr.f32.gmra.mxu0 %v2836
    %v4553 = vpop.f32.mrf.mxu0
    %v4554 = vadd.f32 %v4480, %v4553
    %v4555 = vpop.f32.mrf.mxu0
    %4556 = vdwg.mxu0
    %s4557 = scalar_lea.vmem %s9, 224
    %v4558 = vld [vmem:[%s4557] sm:$0xff]
    %v4559 = vld [vmem:[%s4557 + $0x8] sm:$0xff]
    %v4560 = vld [vmem:[%s4557 + $0x10] sm:$0xff]
    %v4561 = vld [vmem:[%s4557 + $0x18] sm:$0xff]
    %s4562 = scalar_lea.vmem %s12, 7
    %v4563 = vld [vmem:[%s4562] sm:$0x1]
    %v4565 = vlaneseq
    %v4566 = vshrl.u32 %v4565, 7
    %v4567 = vsub.s32 0, %v4566
    %v4568 = vrot.slane %v4563, %v4567
    %4570 = vmatprep.subr.mxu0 0.0
    %4571 = vmatpush1.msra.mxu0 0.0
    %4572 = vmatprep.subr.mxu0 0.0
    %4573 = vmatpush1.msra.mxu0 0.0
    %4574 = vmatprep.subr.mxu0 0.0
    %4575 = vmatpush1.msra.mxu0 0.0
    %4576 = vmatprep.subr.mxu0 0.0
    %4577 = vmatpush1.msra.mxu0 0.0
    %4578 = vmatprep.subr.mxu0 0.0
    %4579 = vmatpush1.msra.mxu0 0.0
    %4580 = vmatprep.subr.mxu0 0.0
    %4581 = vmatpush1.msra.mxu0 0.0
    %4582 = vmatprep.subr.mxu0 0.0
    %4583 = vmatpush1.msra.mxu0 0.0
    %4584 = vmatprep.subr.mxu0 0.0
    %4585 = vmatpush1.msra.mxu0 0.0
    %4586 = vmatprep.subr.mxu0 0.0
    %4587 = vmatpush1.msra.mxu0 0.0
    %4588 = vmatprep.subr.mxu0 0.0
    %4589 = vmatpush1.msra.mxu0 0.0
    %4590 = vmatprep.subr.mxu0 0.0
    %4591 = vmatpush1.msra.mxu0 0.0
    %4592 = vmatprep.subr.mxu0 0.0
    %4593 = vmatpush1.msra.mxu0 0.0
    %4594 = vmatprep.subr.mxu0 0.0
    %4595 = vmatpush1.msra.mxu0 %v4561
    %4596 = vmatprep.subr.mxu0 0.0
    %4597 = vmatpush1.msra.mxu0 %v4560
    %4598 = vmatprep.subr.mxu0 0.0
    %4599 = vmatpush1.msra.mxu0 %v4559
    %4600 = vmatprep.subr.mxu0 0.0
    %4601 = vmatpush1.msra.mxu0 %v4558
    %4602 = vmatprep.subr.mxu0 0.0
    %4603 = vmatpush2.msra.mxu0 0.0
    %4604 = vmatprep.subr.mxu0 0.0
    %4605 = vmatpush2.msra.mxu0 0.0
    %4606 = vmatprep.subr.mxu0 0.0
    %4607 = vmatpush2.msra.mxu0 0.0
    %4608 = vmatprep.subr.mxu0 0.0
    %4609 = vmatpush2.msra.mxu0 0.0
    %4610 = vmatprep.subr.mxu0 0.0
    %4611 = vmatpush2.msra.mxu0 0.0
    %4612 = vmatprep.subr.mxu0 0.0
    %4613 = vmatpush2.msra.mxu0 0.0
    %4614 = vmatprep.subr.mxu0 0.0
    %4615 = vmatpush2.msra.mxu0 0.0
    %4616 = vmatprep.subr.mxu0 0.0
    %4617 = vmatpush2.msra.mxu0 0.0
    %4618 = vmatprep.subr.mxu0 0.0
    %4619 = vmatpush2.msra.mxu0 0.0
    %4620 = vmatprep.subr.mxu0 0.0
    %4621 = vmatpush2.msra.mxu0 0.0
    %4622 = vmatprep.subr.mxu0 0.0
    %4623 = vmatpush2.msra.mxu0 0.0
    %4624 = vmatprep.subr.mxu0 0.0
    %4625 = vmatpush2.msra.mxu0 0.0
    %4626 = vmatprep.subr.mxu0 0.0
    %4627 = vmatpush2.msra.mxu0 0.0
    %4628 = vmatprep.subr.mxu0 0.0
    %4629 = vmatpush2.msra.mxu0 0.0
    %4630 = vmatprep.subr.mxu0 0.0
    %4631 = vmatpush2.msra.mxu0 0.0
    %4632 = vmatprep.subr.mxu0 0.0
    %4633 = vmatpush2.msra.mxu0 0.0
    %4634 = vmatprep.mubr.f32.mxu0 0.0
    %4635 = vmatmul.mubr.f32.gmra.mxu0 %v2833
    %v4636 = vpop.f32.mrf.mxu0
    %v4637 = vadd.f32 %v4568, %v4636
    %v4638 = vpop.f32.mrf.mxu0
    %4639 = vmatprep.mubr.f32.mxu0 0.0
    %4640 = vmatmul.mubr.f32.gmra.mxu0 %v2836
    %v4641 = vpop.f32.mrf.mxu0
    %v4642 = vadd.f32 %v4568, %v4641
    %v4643 = vpop.f32.mrf.mxu0
    %4644 = vdwg.mxu0
    %s4645 = scalar_lea.vmem %s10, 224
    %v4646 = vld [vmem:[%s4645] sm:$0xff]
    %v4647 = vld [vmem:[%s4645 + $0x8] sm:$0xff]
    %v4648 = vld [vmem:[%s4645 + $0x10] sm:$0xff]
    %v4649 = vld [vmem:[%s4645 + $0x18] sm:$0xff]
    %s4650 = scalar_lea.vmem %s13, 7
    %v4651 = vld [vmem:[%s4650] sm:$0x1]
    %v4653 = vlaneseq
    %v4654 = vshrl.u32 %v4653, 7
    %v4655 = vsub.s32 0, %v4654
    %v4656 = vrot.slane %v4651, %v4655
    %4658 = vmatprep.subr.mxu0 0.0
    %4659 = vmatpush1.msra.mxu0 0.0
    %4660 = vmatprep.subr.mxu0 0.0
    %4661 = vmatpush1.msra.mxu0 0.0
    %4662 = vmatprep.subr.mxu0 0.0
    %4663 = vmatpush1.msra.mxu0 0.0
    %4664 = vmatprep.subr.mxu0 0.0
    %4665 = vmatpush1.msra.mxu0 0.0
    %4666 = vmatprep.subr.mxu0 0.0
    %4667 = vmatpush1.msra.mxu0 0.0
    %4668 = vmatprep.subr.mxu0 0.0
    %4669 = vmatpush1.msra.mxu0 0.0
    %4670 = vmatprep.subr.mxu0 0.0
    %4671 = vmatpush1.msra.mxu0 0.0
    %4672 = vmatprep.subr.mxu0 0.0
    %4673 = vmatpush1.msra.mxu0 0.0
    %4674 = vmatprep.subr.mxu0 0.0
    %4675 = vmatpush1.msra.mxu0 0.0
    %4676 = vmatprep.subr.mxu0 0.0
    %4677 = vmatpush1.msra.mxu0 0.0
    %4678 = vmatprep.subr.mxu0 0.0
    %4679 = vmatpush1.msra.mxu0 0.0
    %4680 = vmatprep.subr.mxu0 0.0
    %4681 = vmatpush1.msra.mxu0 0.0
    %4682 = vmatprep.subr.mxu0 0.0
    %4683 = vmatpush1.msra.mxu0 %v4649
    %4684 = vmatprep.subr.mxu0 0.0
    %4685 = vmatpush1.msra.mxu0 %v4648
    %4686 = vmatprep.subr.mxu0 0.0
    %4687 = vmatpush1.msra.mxu0 %v4647
    %4688 = vmatprep.subr.mxu0 0.0
    %4689 = vmatpush1.msra.mxu0 %v4646
    %4690 = vmatprep.subr.mxu0 0.0
    %4691 = vmatpush2.msra.mxu0 0.0
    %4692 = vmatprep.subr.mxu0 0.0
    %4693 = vmatpush2.msra.mxu0 0.0
    %4694 = vmatprep.subr.mxu0 0.0
    %4695 = vmatpush2.msra.mxu0 0.0
    %4696 = vmatprep.subr.mxu0 0.0
    %4697 = vmatpush2.msra.mxu0 0.0
    %4698 = vmatprep.subr.mxu0 0.0
    %4699 = vmatpush2.msra.mxu0 0.0
    %4700 = vmatprep.subr.mxu0 0.0
    %4701 = vmatpush2.msra.mxu0 0.0
    %4702 = vmatprep.subr.mxu0 0.0
    %4703 = vmatpush2.msra.mxu0 0.0
    %4704 = vmatprep.subr.mxu0 0.0
    %4705 = vmatpush2.msra.mxu0 0.0
    %4706 = vmatprep.subr.mxu0 0.0
    %4707 = vmatpush2.msra.mxu0 0.0
    %4708 = vmatprep.subr.mxu0 0.0
    %4709 = vmatpush2.msra.mxu0 0.0
    %4710 = vmatprep.subr.mxu0 0.0
    %4711 = vmatpush2.msra.mxu0 0.0
    %4712 = vmatprep.subr.mxu0 0.0
    %4713 = vmatpush2.msra.mxu0 0.0
    %4714 = vmatprep.subr.mxu0 0.0
    %4715 = vmatpush2.msra.mxu0 0.0
    %4716 = vmatprep.subr.mxu0 0.0
    %4717 = vmatpush2.msra.mxu0 0.0
    %4718 = vmatprep.subr.mxu0 0.0
    %4719 = vmatpush2.msra.mxu0 0.0
    %4720 = vmatprep.subr.mxu0 0.0
    %4721 = vmatpush2.msra.mxu0 0.0
    %4722 = vmatprep.mubr.f32.mxu0 0.0
    %4723 = vmatmul.mubr.f32.gmra.mxu0 %v2833
    %v4724 = vpop.f32.mrf.mxu0
    %v4725 = vadd.f32 %v4656, %v4724
    %v4726 = vpop.f32.mrf.mxu0
    %4727 = vmatprep.mubr.f32.mxu0 0.0
    %4728 = vmatmul.mubr.f32.gmra.mxu0 %v2836
    %v4729 = vpop.f32.mrf.mxu0
    %v4730 = vadd.f32 %v4656, %v4729
    %v4731 = vpop.f32.mrf.mxu0
    %4732 = vdwg.mxu0
    %v4734 = vsel %vm189, %v4549, 0
    %v4737 = vsel %vm189, %v4554, 0
    %v4740 = vsel %vm189, %v4637, 0
    %v4743 = vsel %vm189, %v4642, 0
    %4745 = vmatprep.subr.mxu0 0.0
    %4746 = vmatpush1.xpose.msra.mxu0 0.0
    %4747 = vmatprep.subr.mxu0 0.0
    %4748 = vmatpush1.xpose.msra.mxu0 0.0
    %4749 = vmatprep.subr.mxu0 0.0
    %4750 = vmatpush1.xpose.msra.mxu0 0.0
    %4751 = vmatprep.subr.mxu0 0.0
    %4752 = vmatpush1.xpose.msra.mxu0 0.0
    %4753 = vmatprep.subr.mxu0 0.0
    %4754 = vmatpush1.xpose.msra.mxu0 0.0
    %4755 = vmatprep.subr.mxu0 0.0
    %4756 = vmatpush1.xpose.msra.mxu0 0.0
    %4757 = vmatprep.subr.mxu0 0.0
    %4758 = vmatpush1.xpose.msra.mxu0 0.0
    %4759 = vmatprep.subr.mxu0 0.0
    %4760 = vmatpush1.xpose.msra.mxu0 0.0
    %4761 = vmatprep.subr.mxu0 0.0
    %4762 = vmatpush1.xpose.msra.mxu0 0.0
    %4763 = vmatprep.subr.mxu0 0.0
    %4764 = vmatpush1.xpose.msra.mxu0 0.0
    %4765 = vmatprep.subr.mxu0 0.0
    %4766 = vmatpush1.xpose.msra.mxu0 0.0
    %4767 = vmatprep.subr.mxu0 0.0
    %4768 = vmatpush1.xpose.msra.mxu0 0.0
    %4769 = vmatprep.subr.mxu0 0.0
    %4770 = vmatpush1.xpose.msra.mxu0 0.0
    %4771 = vmatprep.subr.mxu0 0.0
    %4772 = vmatpush1.xpose.msra.mxu0 0.0
    %4773 = vmatprep.subr.mxu0 0.0
    %4774 = vmatpush1.xpose.msra.mxu0 %v4743
    %4775 = vmatprep.subr.mxu0 0.0
    %4776 = vmatpush1.xpose.msra.mxu0 %v4740
    %4777 = vmatprep.subr.mxu0 0.0
    %4778 = vmatpush2.xpose.msra.mxu0 0.0
    %4779 = vmatprep.subr.mxu0 0.0
    %4780 = vmatpush2.xpose.msra.mxu0 0.0
    %4781 = vmatprep.subr.mxu0 0.0
    %4782 = vmatpush2.xpose.msra.mxu0 0.0
    %4783 = vmatprep.subr.mxu0 0.0
    %4784 = vmatpush2.xpose.msra.mxu0 0.0
    %4785 = vmatprep.subr.mxu0 0.0
    %4786 = vmatpush2.xpose.msra.mxu0 0.0
    %4787 = vmatprep.subr.mxu0 0.0
    %4788 = vmatpush2.xpose.msra.mxu0 0.0
    %4789 = vmatprep.subr.mxu0 0.0
    %4790 = vmatpush2.xpose.msra.mxu0 0.0
    %4791 = vmatprep.subr.mxu0 0.0
    %4792 = vmatpush2.xpose.msra.mxu0 0.0
    %4793 = vmatprep.subr.mxu0 0.0
    %4794 = vmatpush2.xpose.msra.mxu0 0.0
    %4795 = vmatprep.subr.mxu0 0.0
    %4796 = vmatpush2.xpose.msra.mxu0 0.0
    %4797 = vmatprep.subr.mxu0 0.0
    %4798 = vmatpush2.xpose.msra.mxu0 0.0
    %4799 = vmatprep.subr.mxu0 0.0
    %4800 = vmatpush2.xpose.msra.mxu0 0.0
    %4801 = vmatprep.subr.mxu0 0.0
    %4802 = vmatpush2.xpose.msra.mxu0 0.0
    %4803 = vmatprep.subr.mxu0 0.0
    %4804 = vmatpush2.xpose.msra.mxu0 0.0
    %4805 = vmatprep.subr.mxu0 0.0
    %4806 = vmatpush2.xpose.msra.mxu0 0.0
    %4807 = vmatprep.subr.mxu0 0.0
    %4808 = vmatpush2.xpose.msra.mxu0 0.0
    %4809 = vmatprep.mubr.f32.mxu0 0.0
    %4810 = vmatmul.mubr.f32.gmra.mxu0 %v4734
    %v4811 = vpop.f32.mrf.mxu0
    %v4812 = vadd.f32 0.0, %v4811
    %v4813 = vpop.f32.mrf.mxu0
    %4814 = vmatprep.mubr.f32.mxu0 0.0
    %4815 = vmatmul.mubr.f32.gmra.mxu0 %v4737
    %v4816 = vpop.f32.mrf.mxu0
    %v4817 = vadd.f32 0.0, %v4816
    %v4818 = vpop.f32.mrf.mxu0
    %4819 = vdwg.mxu0
    %v4820 = vmul.f32 %v4812, 0.35355338
    %v4821 = vmul.f32 %v4817, 0.35355338
    %v4822 = vadd.f32 %v4820, %v273
    %v4823 = vadd.f32 %v4821, %v274
    %v4824 = vsel %vm678, %v4822, -inf
    %4825 = vmax.xlane.f32.xlu0 %v4824
    %v4826 = vpop.xlane.xlu0 %4825
    %v4827 = vsel %vm682, %v4823, -inf
    %4828 = vmax.xlane.f32.xlu0 %v4827
    %v4829 = vpop.xlane.xlu0 %4828
    %v4830 = vsub.f32 %v4822, %v4826
    %v4831 = vsub.f32 %v4823, %v4829
    %v4832 = vmul.f32 %v4830, 1.442695
    %v4833 = vpow.pop %v4832
    %v4834 = vmul.f32 %v4831, 1.442695
    %v4835 = vpow.pop %v4834
    %v4836 = vsel %vm678, %v4833, 0.0
    %4837 = vadd.xlane.f32.xlu0 %v4836
    %v4838 = vpop.xlane.xlu0 %4837
    %v4839 = vsel %vm682, %v4835, 0.0
    %4840 = vadd.xlane.f32.xlu0 %v4839
    %v4841 = vpop.xlane.xlu0 %4840
    %v4842 = vrcp.pop %v4838
    %v4843 = vrcp.pop %v4841
    %v4844 = vmul.f32 %v4833, %v4842
    %v4845 = vmul.f32 %v4835, %v4843
    %v4847 = vsel %vm678, %v4844, 0
    %v4850 = vsel %vm678, %v4845, 0
    %v4853 = vsel %vm708, %v4730, 0
    %4855 = vmatprep.subr.mxu0 0.0
    %4856 = vmatpush1.msra.mxu0 0.0
    %4857 = vmatprep.subr.mxu0 0.0
    %4858 = vmatpush1.msra.mxu0 0.0
    %4859 = vmatprep.subr.mxu0 0.0
    %4860 = vmatpush1.msra.mxu0 0.0
    %4861 = vmatprep.subr.mxu0 0.0
    %4862 = vmatpush1.msra.mxu0 0.0
    %4863 = vmatprep.subr.mxu0 0.0
    %4864 = vmatpush1.msra.mxu0 0.0
    %4865 = vmatprep.subr.mxu0 0.0
    %4866 = vmatpush1.msra.mxu0 0.0
    %4867 = vmatprep.subr.mxu0 0.0
    %4868 = vmatpush1.msra.mxu0 0.0
    %4869 = vmatprep.subr.mxu0 0.0
    %4870 = vmatpush1.msra.mxu0 0.0
    %4871 = vmatprep.subr.mxu0 0.0
    %4872 = vmatpush1.msra.mxu0 0.0
    %4873 = vmatprep.subr.mxu0 0.0
    %4874 = vmatpush1.msra.mxu0 0.0
    %4875 = vmatprep.subr.mxu0 0.0
    %4876 = vmatpush1.msra.mxu0 0.0
    %4877 = vmatprep.subr.mxu0 0.0
    %4878 = vmatpush1.msra.mxu0 0.0
    %4879 = vmatprep.subr.mxu0 0.0
    %4880 = vmatpush1.msra.mxu0 0.0
    %4881 = vmatprep.subr.mxu0 0.0
    %4882 = vmatpush1.msra.mxu0 0.0
    %4883 = vmatprep.subr.mxu0 0.0
    %4884 = vmatpush1.msra.mxu0 %v4853
    %4885 = vmatprep.subr.mxu0 0.0
    %4886 = vmatpush1.msra.mxu0 %v4725
    %4887 = vmatprep.subr.mxu0 0.0
    %4888 = vmatpush2.msra.mxu0 0.0
    %4889 = vmatprep.subr.mxu0 0.0
    %4890 = vmatpush2.msra.mxu0 0.0
    %4891 = vmatprep.subr.mxu0 0.0
    %4892 = vmatpush2.msra.mxu0 0.0
    %4893 = vmatprep.subr.mxu0 0.0
    %4894 = vmatpush2.msra.mxu0 0.0
    %4895 = vmatprep.subr.mxu0 0.0
    %4896 = vmatpush2.msra.mxu0 0.0
    %4897 = vmatprep.subr.mxu0 0.0
    %4898 = vmatpush2.msra.mxu0 0.0
    %4899 = vmatprep.subr.mxu0 0.0
    %4900 = vmatpush2.msra.mxu0 0.0
    %4901 = vmatprep.subr.mxu0 0.0
    %4902 = vmatpush2.msra.mxu0 0.0
    %4903 = vmatprep.subr.mxu0 0.0
    %4904 = vmatpush2.msra.mxu0 0.0
    %4905 = vmatprep.subr.mxu0 0.0
    %4906 = vmatpush2.msra.mxu0 0.0
    %4907 = vmatprep.subr.mxu0 0.0
    %4908 = vmatpush2.msra.mxu0 0.0
    %4909 = vmatprep.subr.mxu0 0.0
    %4910 = vmatpush2.msra.mxu0 0.0
    %4911 = vmatprep.subr.mxu0 0.0
    %4912 = vmatpush2.msra.mxu0 0.0
    %4913 = vmatprep.subr.mxu0 0.0
    %4914 = vmatpush2.msra.mxu0 0.0
    %4915 = vmatprep.subr.mxu0 0.0
    %4916 = vmatpush2.msra.mxu0 0.0
    %4917 = vmatprep.subr.mxu0 0.0
    %4918 = vmatpush2.msra.mxu0 0.0
    %4919 = vmatprep.mubr.f32.mxu0 0.0
    %4920 = vmatmul.mubr.f32.gmra.mxu0 %v4847
    %v4921 = vpop.f32.mrf.mxu0
    %v4922 = vadd.f32 0.0, %v4921
    %v4923 = vpop.f32.mrf.mxu0
    %4924 = vmatprep.mubr.f32.mxu0 0.0
    %4925 = vmatmul.mubr.f32.gmra.mxu0 %v4850
    %v4926 = vpop.f32.mrf.mxu0
    %v4927 = vadd.f32 0.0, %v4926
    %v4928 = vpop.f32.mrf.mxu0
    %4929 = vdwg.mxu0
    %s4930 = scalar_lea.vmem %s14, 56
    %v4931 = vld [vmem:[%s4930] sm:$0xff]
    %v4933 = vsel %vm189, %v4922, 0
    %v4936 = vsel %vm189, %v4927, 0
    %4938 = vmatprep.subr.mxu0 0.0
    %4939 = vmatpush1.msra.mxu0 0.0
    %4940 = vmatprep.subr.mxu0 0.0
    %4941 = vmatpush1.msra.mxu0 0.0
    %4942 = vmatprep.subr.mxu0 0.0
    %4943 = vmatpush1.msra.mxu0 0.0
    %4944 = vmatprep.subr.mxu0 0.0
    %4945 = vmatpush1.msra.mxu0 0.0
    %4946 = vmatprep.subr.mxu0 0.0
    %4947 = vmatpush1.msra.mxu0 0.0
    %4948 = vmatprep.subr.mxu0 0.0
    %4949 = vmatpush1.msra.mxu0 0.0
    %4950 = vmatprep.subr.mxu0 0.0
    %4951 = vmatpush1.msra.mxu0 0.0
    %4952 = vmatprep.subr.mxu0 0.0
    %4953 = vmatpush1.msra.mxu0 0.0
    %4954 = vmatprep.subr.mxu0 0.0
    %4955 = vmatpush1.msra.mxu0 0.0
    %4956 = vmatprep.subr.mxu0 0.0
    %4957 = vmatpush1.msra.mxu0 0.0
    %4958 = vmatprep.subr.mxu0 0.0
    %4959 = vmatpush1.msra.mxu0 0.0
    %4960 = vmatprep.subr.mxu0 0.0
    %4961 = vmatpush1.msra.mxu0 0.0
    %4962 = vmatprep.subr.mxu0 0.0
    %4963 = vmatpush1.msra.mxu0 0.0
    %4964 = vmatprep.subr.mxu0 0.0
    %4965 = vmatpush1.msra.mxu0 0.0
    %4966 = vmatprep.subr.mxu0 0.0
    %4967 = vmatpush1.msra.mxu0 0.0
    %4968 = vmatprep.subr.mxu0 0.0
    %4969 = vmatpush1.msra.mxu0 %v4931
    %4970 = vmatprep.subr.mxu0 0.0
    %4971 = vmatpush2.msra.mxu0 0.0
    %4972 = vmatprep.subr.mxu0 0.0
    %4973 = vmatpush2.msra.mxu0 0.0
    %4974 = vmatprep.subr.mxu0 0.0
    %4975 = vmatpush2.msra.mxu0 0.0
    %4976 = vmatprep.subr.mxu0 0.0
    %4977 = vmatpush2.msra.mxu0 0.0
    %4978 = vmatprep.subr.mxu0 0.0
    %4979 = vmatpush2.msra.mxu0 0.0
    %4980 = vmatprep.subr.mxu0 0.0
    %4981 = vmatpush2.msra.mxu0 0.0
    %4982 = vmatprep.subr.mxu0 0.0
    %4983 = vmatpush2.msra.mxu0 0.0
    %4984 = vmatprep.subr.mxu0 0.0
    %4985 = vmatpush2.msra.mxu0 0.0
    %4986 = vmatprep.subr.mxu0 0.0
    %4987 = vmatpush2.msra.mxu0 0.0
    %4988 = vmatprep.subr.mxu0 0.0
    %4989 = vmatpush2.msra.mxu0 0.0
    %4990 = vmatprep.subr.mxu0 0.0
    %4991 = vmatpush2.msra.mxu0 0.0
    %4992 = vmatprep.subr.mxu0 0.0
    %4993 = vmatpush2.msra.mxu0 0.0
    %4994 = vmatprep.subr.mxu0 0.0
    %4995 = vmatpush2.msra.mxu0 0.0
    %4996 = vmatprep.subr.mxu0 0.0
    %4997 = vmatpush2.msra.mxu0 0.0
    %4998 = vmatprep.subr.mxu0 0.0
    %4999 = vmatpush2.msra.mxu0 0.0
    %5000 = vmatprep.subr.mxu0 0.0
    %5001 = vmatpush2.msra.mxu0 0.0
    %5002 = vmatprep.mubr.f32.mxu0 0.0
    %5003 = vmatmul.mubr.f32.gmra.mxu0 %v4933
    %v5004 = vpop.f32.mrf.mxu0
    %v5005 = vadd.f32 0.0, %v5004
    %v5006 = vpop.f32.mrf.mxu0
    %5007 = vmatprep.mubr.f32.mxu0 0.0
    %5008 = vmatmul.mubr.f32.gmra.mxu0 %v4936
    %v5009 = vpop.f32.mrf.mxu0
    %v5010 = vadd.f32 0.0, %v5009
    %v5011 = vpop.f32.mrf.mxu0
    %5012 = vdwg.mxu0
    %v5013 = vadd.f32 %v4467, %v5005
    %v5014 = vadd.f32 %v4468, %v5010
    %v5015 = vadd.f32 %v2769, %v5013
    %v5016 = vadd.f32 %v2770, %v5014
    %s5017 = scalar_lea.vmem %s16, 1
    %v5018 = vld [vmem:[%s5017] sm:$0x1]
    %s5019 = scalar_lea.vmem %s17, 1
    %v5020 = vld [vmem:[%s5019] sm:$0x1]
    %v5021 = vsel %vm277, %v5015, 0.0
    %5022 = vadd.xlane.f32.xlu0 %v5021
    %v5023 = vpop.xlane.xlu0 %5022
    %v5024 = vsel %vm281, %v5016, 0.0
    %5025 = vadd.xlane.f32.xlu0 %v5024
    %v5026 = vpop.xlane.xlu0 %5025
    %v5027 = vmul.f32 %v5023, %v285
    %v5028 = vmul.f32 %v5026, %v285
    %v5029 = vsub.f32 %v5015, %v5027
    %v5030 = vsub.f32 %v5016, %v5028
    %v5031 = vmul.f32 %v5029, %v5029
    %v5032 = vmul.f32 %v5030, %v5030
    %v5033 = vsel %vm277, %v5031, 0.0
    %5034 = vadd.xlane.f32.xlu0 %v5033
    %v5035 = vpop.xlane.xlu0 %5034
    %v5036 = vsel %vm281, %v5032, 0.0
    %5037 = vadd.xlane.f32.xlu0 %v5036
    %v5038 = vpop.xlane.xlu0 %5037
    %v5039 = vmul.f32 %v5035, %v285
    %v5040 = vmul.f32 %v5038, %v285
    %v5041 = vadd.f32 %v5039, 1e-06
    %v5042 = vadd.f32 %v5040, 1e-06
    %v5043 = vrsqrt.pop %v5041
    %v5044 = vrsqrt.pop %v5042
    %v5045 = vmul.f32 %v5029, %v5043
    %v5046 = vmul.f32 %v5030, %v5044
    %v5048 = vlaneseq
    %v5049 = vshrl.u32 %v5048, 7
    %v5050 = vsub.s32 0, %v5049
    %v5051 = vrot.slane %v5018, %v5050
    %v5053 = vmul.f32 %v5045, %v5051
    %v5054 = vmul.f32 %v5046, %v5051
    %v5056 = vlaneseq
    %v5057 = vshrl.u32 %v5056, 7
    %v5058 = vsub.s32 0, %v5057
    %v5059 = vrot.slane %v5020, %v5058
    %v5061 = vadd.f32 %v5053, %v5059
    %v5062 = vadd.f32 %v5054, %v5059
    %s5063 = scalar_lea.vmem %s18, 32
    %v5064 = vld [vmem:[%s5063] sm:$0xff]
    %v5065 = vld [vmem:[%s5063 + $0x8] sm:$0xff]
    %v5066 = vld [vmem:[%s5063 + $0x10] sm:$0xff]
    %v5067 = vld [vmem:[%s5063 + $0x18] sm:$0xff]
    %s5068 = scalar_lea.vmem %s19, 1
    %v5069 = vld [vmem:[%s5068] sm:$0x1]
    %v5071 = vlaneseq
    %v5072 = vshrl.u32 %v5071, 7
    %v5073 = vsub.s32 0, %v5072
    %v5074 = vrot.slane %v5069, %v5073
    %v5077 = vsel %vm277, %v5061, 0
    %v5080 = vsel %vm277, %v5062, 0
    %5082 = vmatprep.subr.mxu0 0.0
    %5083 = vmatpush1.msra.mxu0 0.0
    %5084 = vmatprep.subr.mxu0 0.0
    %5085 = vmatpush1.msra.mxu0 0.0
    %5086 = vmatprep.subr.mxu0 0.0
    %5087 = vmatpush1.msra.mxu0 0.0
    %5088 = vmatprep.subr.mxu0 0.0
    %5089 = vmatpush1.msra.mxu0 0.0
    %5090 = vmatprep.subr.mxu0 0.0
    %5091 = vmatpush1.msra.mxu0 0.0
    %5092 = vmatprep.subr.mxu0 0.0
    %5093 = vmatpush1.msra.mxu0 0.0
    %5094 = vmatprep.subr.mxu0 0.0
    %5095 = vmatpush1.msra.mxu0 0.0
    %5096 = vmatprep.subr.mxu0 0.0
    %5097 = vmatpush1.msra.mxu0 0.0
    %5098 = vmatprep.subr.mxu0 0.0
    %5099 = vmatpush1.msra.mxu0 0.0
    %5100 = vmatprep.subr.mxu0 0.0
    %5101 = vmatpush1.msra.mxu0 0.0
    %5102 = vmatprep.subr.mxu0 0.0
    %5103 = vmatpush1.msra.mxu0 0.0
    %5104 = vmatprep.subr.mxu0 0.0
    %5105 = vmatpush1.msra.mxu0 0.0
    %5106 = vmatprep.subr.mxu0 0.0
    %5107 = vmatpush1.msra.mxu0 %v5067
    %5108 = vmatprep.subr.mxu0 0.0
    %5109 = vmatpush1.msra.mxu0 %v5066
    %5110 = vmatprep.subr.mxu0 0.0
    %5111 = vmatpush1.msra.mxu0 %v5065
    %5112 = vmatprep.subr.mxu0 0.0
    %5113 = vmatpush1.msra.mxu0 %v5064
    %5114 = vmatprep.subr.mxu0 0.0
    %5115 = vmatpush2.msra.mxu0 0.0
    %5116 = vmatprep.subr.mxu0 0.0
    %5117 = vmatpush2.msra.mxu0 0.0
    %5118 = vmatprep.subr.mxu0 0.0
    %5119 = vmatpush2.msra.mxu0 0.0
    %5120 = vmatprep.subr.mxu0 0.0
    %5121 = vmatpush2.msra.mxu0 0.0
    %5122 = vmatprep.subr.mxu0 0.0
    %5123 = vmatpush2.msra.mxu0 0.0
    %5124 = vmatprep.subr.mxu0 0.0
    %5125 = vmatpush2.msra.mxu0 0.0
    %5126 = vmatprep.subr.mxu0 0.0
    %5127 = vmatpush2.msra.mxu0 0.0
    %5128 = vmatprep.subr.mxu0 0.0
    %5129 = vmatpush2.msra.mxu0 0.0
    %5130 = vmatprep.subr.mxu0 0.0
    %5131 = vmatpush2.msra.mxu0 0.0
    %5132 = vmatprep.subr.mxu0 0.0
    %5133 = vmatpush2.msra.mxu0 0.0
    %5134 = vmatprep.subr.mxu0 0.0
    %5135 = vmatpush2.msra.mxu0 0.0
    %5136 = vmatprep.subr.mxu0 0.0
    %5137 = vmatpush2.msra.mxu0 0.0
    %5138 = vmatprep.subr.mxu0 0.0
    %5139 = vmatpush2.msra.mxu0 0.0
    %5140 = vmatprep.subr.mxu0 0.0
    %5141 = vmatpush2.msra.mxu0 0.0
    %5142 = vmatprep.subr.mxu0 0.0
    %5143 = vmatpush2.msra.mxu0 0.0
    %5144 = vmatprep.subr.mxu0 0.0
    %5145 = vmatpush2.msra.mxu0 0.0
    %5146 = vmatprep.mubr.f32.mxu0 0.0
    %5147 = vmatmul.mubr.f32.gmra.mxu0 %v5077
    %v5148 = vpop.f32.mrf.mxu0
    %v5149 = vadd.f32 %v5074, %v5148
    %v5150 = vpop.f32.mrf.mxu0
    %5151 = vmatprep.mubr.f32.mxu0 0.0
    %5152 = vmatmul.mubr.f32.gmra.mxu0 %v5080
    %v5153 = vpop.f32.mrf.mxu0
    %v5154 = vadd.f32 %v5074, %v5153
    %v5155 = vpop.f32.mrf.mxu0
    %5156 = vdwg.mxu0
    %v5157 = vmul.f32 %v5149, %v5149
    %v5158 = vmul.f32 %v5154, %v5154
    %v5159 = vmul.f32 %v5149, %v5157
    %v5160 = vmul.f32 %v5154, %v5158
    %v5161 = vmul.f32 %v5159, 0.044715
    %v5162 = vmul.f32 %v5160, 0.044715
    %v5163 = vadd.f32 %v5149, %v5161
    %v5164 = vadd.f32 %v5154, %v5162
    %v5165 = vmul.f32 %v5163, 0.7978846
    %v5166 = vmul.f32 %v5164, 0.7978846
    %v5167 = vtanh.pop %v5165
    %v5168 = vtanh.pop %v5166
    %v5169 = vadd.f32 %v5167, 1.0
    %v5170 = vadd.f32 %v5168, 1.0
    %v5171 = vmul.f32 %v5169, 0.5
    %v5172 = vmul.f32 %v5170, 0.5
    %v5173 = vmul.f32 %v5149, %v5171
    %v5174 = vmul.f32 %v5154, %v5172
    %s5175 = scalar_lea.vmem %s20, 128
    %v5176 = vld [vmem:[%s5175] sm:$0xff]
    %v5177 = vld [vmem:[%s5175 + $0x8] sm:$0xff]
    %v5178 = vld [vmem:[%s5175 + $0x10] sm:$0xff]
    %v5179 = vld [vmem:[%s5175 + $0x18] sm:$0xff]
    %v5180 = vld [vmem:[%s5175 + $0x20] sm:$0xff]
    %v5181 = vld [vmem:[%s5175 + $0x28] sm:$0xff]
    %v5182 = vld [vmem:[%s5175 + $0x30] sm:$0xff]
    %v5183 = vld [vmem:[%s5175 + $0x38] sm:$0xff]
    %v5184 = vld [vmem:[%s5175 + $0x40] sm:$0xff]
    %v5185 = vld [vmem:[%s5175 + $0x48] sm:$0xff]
    %v5186 = vld [vmem:[%s5175 + $0x50] sm:$0xff]
    %v5187 = vld [vmem:[%s5175 + $0x58] sm:$0xff]
    %v5188 = vld [vmem:[%s5175 + $0x60] sm:$0xff]
    %v5189 = vld [vmem:[%s5175 + $0x68] sm:$0xff]
    %v5190 = vld [vmem:[%s5175 + $0x70] sm:$0xff]
    %v5191 = vld [vmem:[%s5175 + $0x78] sm:$0xff]
    %s5192 = scalar_lea.vmem %s21, 1
    %v5193 = vld [vmem:[%s5192] sm:$0x1]
    %v5195 = vlaneseq
    %v5196 = vshrl.u32 %v5195, 7
    %v5197 = vsub.s32 0, %v5196
    %v5198 = vrot.slane %v5193, %v5197
    %5200 = vmatprep.subr.mxu0 0.0
    %5201 = vmatpush1.msra.mxu0 %v5191
    %5202 = vmatprep.subr.mxu0 0.0
    %5203 = vmatpush1.msra.mxu0 %v5190
    %5204 = vmatprep.subr.mxu0 0.0
    %5205 = vmatpush1.msra.mxu0 %v5189
    %5206 = vmatprep.subr.mxu0 0.0
    %5207 = vmatpush1.msra.mxu0 %v5188
    %5208 = vmatprep.subr.mxu0 0.0
    %5209 = vmatpush1.msra.mxu0 %v5187
    %5210 = vmatprep.subr.mxu0 0.0
    %5211 = vmatpush1.msra.mxu0 %v5186
    %5212 = vmatprep.subr.mxu0 0.0
    %5213 = vmatpush1.msra.mxu0 %v5185
    %5214 = vmatprep.subr.mxu0 0.0
    %5215 = vmatpush1.msra.mxu0 %v5184
    %5216 = vmatprep.subr.mxu0 0.0
    %5217 = vmatpush1.msra.mxu0 %v5183
    %5218 = vmatprep.subr.mxu0 0.0
    %5219 = vmatpush1.msra.mxu0 %v5182
    %5220 = vmatprep.subr.mxu0 0.0
    %5221 = vmatpush1.msra.mxu0 %v5181
    %5222 = vmatprep.subr.mxu0 0.0
    %5223 = vmatpush1.msra.mxu0 %v5180
    %5224 = vmatprep.subr.mxu0 0.0
    %5225 = vmatpush1.msra.mxu0 %v5179
    %5226 = vmatprep.subr.mxu0 0.0
    %5227 = vmatpush1.msra.mxu0 %v5178
    %5228 = vmatprep.subr.mxu0 0.0
    %5229 = vmatpush1.msra.mxu0 %v5177
    %5230 = vmatprep.subr.mxu0 0.0
    %5231 = vmatpush1.msra.mxu0 %v5176
    %5232 = vmatprep.subr.mxu0 0.0
    %5233 = vmatpush2.msra.mxu0 0.0
    %5234 = vmatprep.subr.mxu0 0.0
    %5235 = vmatpush2.msra.mxu0 0.0
    %5236 = vmatprep.subr.mxu0 0.0
    %5237 = vmatpush2.msra.mxu0 0.0
    %5238 = vmatprep.subr.mxu0 0.0
    %5239 = vmatpush2.msra.mxu0 0.0
    %5240 = vmatprep.subr.mxu0 0.0
    %5241 = vmatpush2.msra.mxu0 0.0
    %5242 = vmatprep.subr.mxu0 0.0
    %5243 = vmatpush2.msra.mxu0 0.0
    %5244 = vmatprep.subr.mxu0 0.0
    %5245 = vmatpush2.msra.mxu0 0.0
    %5246 = vmatprep.subr.mxu0 0.0
    %5247 = vmatpush2.msra.mxu0 0.0
    %5248 = vmatprep.subr.mxu0 0.0
    %5249 = vmatpush2.msra.mxu0 0.0
    %5250 = vmatprep.subr.mxu0 0.0
    %5251 = vmatpush2.msra.mxu0 0.0
    %5252 = vmatprep.subr.mxu0 0.0
    %5253 = vmatpush2.msra.mxu0 0.0
    %5254 = vmatprep.subr.mxu0 0.0
    %5255 = vmatpush2.msra.mxu0 0.0
    %5256 = vmatprep.subr.mxu0 0.0
    %5257 = vmatpush2.msra.mxu0 0.0
    %5258 = vmatprep.subr.mxu0 0.0
    %5259 = vmatpush2.msra.mxu0 0.0
    %5260 = vmatprep.subr.mxu0 0.0
    %5261 = vmatpush2.msra.mxu0 0.0
    %5262 = vmatprep.subr.mxu0 0.0
    %5263 = vmatpush2.msra.mxu0 0.0
    %5264 = vmatprep.mubr.f32.mxu0 0.0
    %5265 = vmatmul.mubr.f32.gmra.mxu0 %v5173
    %v5266 = vpop.f32.mrf.mxu0
    %v5267 = vadd.f32 %v5198, %v5266
    %v5268 = vpop.f32.mrf.mxu0
    %5269 = vmatprep.mubr.f32.mxu0 0.0
    %5270 = vmatmul.mubr.f32.gmra.mxu0 %v5174
    %v5271 = vpop.f32.mrf.mxu0
    %v5272 = vadd.f32 %v5198, %v5271
    %v5273 = vpop.f32.mrf.mxu0
    %5274 = vdwg.mxu0
    %v5275 = vadd.f32 %v5015, %v5267
    %v5276 = vadd.f32 %v5016, %v5272
    %v5277 = vld [vmem:[%s22] sm:$0x1]
    %v5278 = vld [vmem:[%s23] sm:$0x1]
    %v5279 = vsel %vm277, %v5275, 0.0
    %5280 = vadd.xlane.f32.xlu0 %v5279
    %v5281 = vpop.xlane.xlu0 %5280
    %v5282 = vsel %vm281, %v5276, 0.0
    %5283 = vadd.xlane.f32.xlu0 %v5282
    %v5284 = vpop.xlane.xlu0 %5283
    %v5285 = vmul.f32 %v5281, %v285
    %v5286 = vmul.f32 %v5284, %v285
    %v5287 = vsub.f32 %v5275, %v5285
    %v5288 = vsub.f32 %v5276, %v5286
    %v5289 = vmul.f32 %v5287, %v5287
    %v5290 = vmul.f32 %v5288, %v5288
    %v5291 = vsel %vm277, %v5289, 0.0
    %5292 = vadd.xlane.f32.xlu0 %v5291
    %v5293 = vpop.xlane.xlu0 %5292
    %v5294 = vsel %vm281, %v5290, 0.0
    %5295 = vadd.xlane.f32.xlu0 %v5294
    %v5296 = vpop.xlane.xlu0 %5295
    %v5297 = vmul.f32 %v5293, %v285
    %v5298 = vmul.f32 %v5296, %v285
    %v5299 = vadd.f32 %v5297, 1e-06
    %v5300 = vadd.f32 %v5298, 1e-06
    %v5301 = vrsqrt.pop %v5299
    %v5302 = vrsqrt.pop %v5300
    %v5303 = vmul.f32 %v5287, %v5301
    %v5304 = vmul.f32 %v5288, %v5302
    %v5306 = vlaneseq
    %v5307 = vshrl.u32 %v5306, 7
    %v5308 = vsub.s32 0, %v5307
    %v5309 = vrot.slane %v5277, %v5308
    %v5311 = vmul.f32 %v5303, %v5309
    %v5312 = vmul.f32 %v5304, %v5309
    %v5314 = vlaneseq
    %v5315 = vshrl.u32 %v5314, 7
    %v5316 = vsub.s32 0, %v5315
    %v5317 = vrot.slane %v5278, %v5316
    %v5319 = vadd.f32 %v5311, %v5317
    %v5320 = vadd.f32 %v5312, %v5317
    %5321 = vst.msk [vmem:[#allocation2] sm:$0xff] %vm277, %v5319
    %5322 = vst.msk [vmem:[#allocation2 + $0x8] sm:$0x3] %vm281, %v5320
    // Predicated region
    $region98: #{tpu_custom_call.1} parent=1 // pred_check
      _
    $region99: #{tpu_custom_call.1} parent=1 // pred_check_branch
      %5324 = sbr.rel (0) target = $region101
    $region100: #{tpu_custom_call.1} parent=1 // pred_region
      %s5326 = ssub.s32 256, 256
      %5327 = vsyncadd [#allocation3], %s5326
      %s5328 = sshll.u32 [#allocation2], 4
      %s5329 = int_to_ptr.vmem [resolvable:$true] %s5328
      %5334 = dma.vmem_to_hbm [thread:$0]  %s5329, 256, %s24, [#allocation3], 128, 128, 8
    $region101: #{tpu_custom_call.1} parent=1 // pred_fallthru
      _
    // Predicated region
    $region102: #{tpu_custom_call.1} parent=1 // pred_check
      _
    $region103: #{tpu_custom_call.1} parent=1 // pred_check_branch
      %5336 = sbr.rel (0) target = $region105
    $region104: #{tpu_custom_call.1} parent=1 // pred_region
      %5337 = dma.done [#allocation3], 256
    $region105: #{tpu_custom_call.1} parent=1 // pred_fallthru
      _
    %5338 = vsyncpa [#allocation3], 1

</llo_original>
